<compile_context>
chip_gen: v7x
topology: tpu7x:2x2x1
jax: 0.10.0
libtpu: 0.0.40
codegen_flags: <defaults>
</compile_context>

<pallas_src>
import jax
import jax.numpy as jnp
from jax.experimental import pallas as pl
from jax.experimental.pallas import tpu as pltpu

N_EMBD = 384
HIDDEN = 4 * N_EMBD          # 1536
K_CHUNK = 512                # HIDDEN split for the 2nd matmul (3 chunks of 512)


def ffn_kernel(x_ref, w1_ref, b1_ref, w2_ref, b2_ref, o_ref):
    # x_ref : (TILE_M, C)   float32
    # w1_ref: (C, 4C)       bfloat16     b1_ref: (1, 4C) float32
    # w2_ref: (4C, C)       bfloat16     b2_ref: (1, C)  float32
    # o_ref : (TILE_M, C)   float32
    tile_m = x_ref.shape[0]
    x = x_ref[...].astype(jnp.bfloat16)          # MXU operand; accumulate in f32

    # Chunk the HIDDEN (K) dimension so only a (TILE_M, 512) slice of the f32
    # hidden activation (and its bf16 copy) is live at a time.  Statically
    # unrolled: 3 chunks, slice boundaries aligned to 128 lanes / 8 sublanes.
    acc = jnp.zeros((tile_m, N_EMBD), jnp.float32)
    for k0 in range(0, HIDDEN, K_CHUNK):
        h = jnp.dot(x, w1_ref[:, k0:k0 + K_CHUNK],
                    preferred_element_type=jnp.float32)
        h = jnp.maximum(h + b1_ref[:, k0:k0 + K_CHUNK], 0.0)   # bias + ReLU, f32
        acc = acc + jnp.dot(h.astype(jnp.bfloat16),
                            w2_ref[k0:k0 + K_CHUNK, :],
                            preferred_element_type=jnp.float32)

    # Dropout(p=0.2) is identity in eval mode.
    o_ref[...] = (acc + b2_ref[...]).astype(o_ref.dtype)


def _round_up(v, m):
    return ((v + m - 1) // m) * m


def feedforward_forward(x, prepared, *, tile_m=1024):
    """Eval-mode FFN forward.  x: (..., N_EMBD) f32 -> (..., N_EMBD) f32.

    `prepared` comes from `prepare_params` (weights already bf16 — cast once,
    not per call; biases f32).
    """
    *lead, C = x.shape
    assert C == N_EMBD
    x2 = x.reshape(-1, C)
    M = x2.shape[0]

    # Large inputs: up to 1024 rows per grid step (amortizes weight pushes +
    # per-step overhead).  Small inputs: shrink so the grid still has >= 2 steps
    # (v7x megacore) and the tile is a multiple of 8.
    if M < 2 * tile_m:
        tile_m = max(8, _round_up(-(-M // 2), 8))
    m_pad = _round_up(M, tile_m)
    if m_pad != M:
        x2 = jnp.pad(x2, ((0, m_pad - M), (0, 0)))

    w1, b1, w2, b2 = prepared["w1"], prepared["b1"], prepared["w2"], prepared["b2"]

    grid = (m_pad // tile_m,)
    flops = 2 * m_pad * (C * HIDDEN + HIDDEN * C)
    bytes_accessed = (x2.size * 4 + m_pad * C * 4
                      + w1.size * 2 + w2.size * 2 + b1.size * 4 + b2.size * 4)

    # Weights/biases have constant index_maps -> never re-fetched across the M
    # grid; single-buffer them so no dead second VMEM copy is allocated.
    resident = pl.Buffered(buffer_count=1)

    out = pl.pallas_call(
        ffn_kernel,
        out_shape=jax.ShapeDtypeStruct((m_pad, C), x.dtype),
        grid_spec=pltpu.PrefetchScalarGridSpec(
            num_scalar_prefetch=0,
            grid=grid,
            in_specs=[
                pl.BlockSpec((tile_m, C), lambda i: (i, 0)),   # x rows (streamed)
                pl.BlockSpec((C, HIDDEN), lambda i: (0, 0), pipeline_mode=resident),
                pl.BlockSpec((1, HIDDEN), lambda i: (0, 0), pipeline_mode=resident),
                pl.BlockSpec((HIDDEN, C), lambda i: (0, 0), pipeline_mode=resident),
                pl.BlockSpec((1, C), lambda i: (0, 0), pipeline_mode=resident),
            ],
            out_specs=pl.BlockSpec((tile_m, C), lambda i: (i, 0)),
        ),
        compiler_params=pltpu.CompilerParams(
            dimension_semantics=("parallel",),
            vmem_limit_bytes=32 * 1024 * 1024,
        ),
        cost_estimate=pl.CostEstimate(
            flops=flops, transcendentals=0, bytes_accessed=bytes_accessed),
    )(x2, w1, b1, w2, b2)

    return out[:M].reshape(*lead, C)


def init_params(key):
    """Module-faithful f32 parameters (as the PyTorch nn.Linear layers hold)."""
    k1, k2 = jax.random.split(key)
    s = 0.02
    f32 = jnp.float32
    return {
        "w1": jax.random.normal(k1, (N_EMBD, HIDDEN), f32) * s,
        "b1": jnp.full((1, HIDDEN), 0.01, f32),
        "w2": jax.random.normal(k2, (HIDDEN, N_EMBD), f32) * s,
        "b2": jnp.full((1, N_EMBD), 0.01, f32),
    }


def prepare_params(params):
    """One-time kernel-ready params: bf16 weights for the MXU, f32 biases.
    Call once (e.g. at load time), NOT per forward call."""
    return {
        "w1": params["w1"].astype(jnp.bfloat16),
        "b1": params["b1"].astype(jnp.float32),
        "w2": params["w2"].astype(jnp.bfloat16),
        "b2": params["b2"].astype(jnp.float32),
    }


def feedforward_ref(x, p):
    """Pure-JAX f32 reference of the eval-mode forward (module semantics)."""
    h = jnp.maximum(
        jnp.einsum("...c,cd->...d", x, p["w1"], precision="highest") + p["b1"][0],
        0.0)
    return jnp.einsum("...c,cd->...d", h, p["w2"], precision="highest") + p["b2"][0]


if __name__ == "__main__":
    key = jax.random.PRNGKey(0)
    k_x, k_p = jax.random.split(key)

    params = init_params(k_p)              # f32 module params
    prepared = prepare_params(params)      # one-time bf16 weight cast

    # Main example: batch=8, seq=64, n_embd=384 -> M=512 rows -> 2 grid steps of 256.
    B, T = 8, 64
    x = jax.random.normal(k_x, (B, T, N_EMBD), jnp.float32)
    out = jax.block_until_ready(feedforward_forward(x, prepared))
    ref = feedforward_ref(x, params)
    assert out.shape == (B, T, N_EMBD)
    assert jnp.all(jnp.isfinite(out))
    # loose tolerance: bf16 MXU operands (f32 accumulation) vs f32 "highest" ref
    assert jnp.allclose(out, ref, rtol=2e-2, atol=2e-2), (
        float(jnp.max(jnp.abs(out - ref))))

    # Tiny / ragged input: exercises the tile-shrink + pad path (M=5 -> tile 8).
    x_small = jax.random.normal(k_x, (1, 5, N_EMBD), jnp.float32)
    out_s = jax.block_until_ready(feedforward_forward(x_small, prepared))
    ref_s = feedforward_ref(x_small, params)
    assert out_s.shape == (1, 5, N_EMBD)
    assert jnp.allclose(out_s, ref_s, rtol=2e-2, atol=2e-2)

    print("KERNEL_OK")
</pallas_src>

<mosaic_0001>
module attributes {stable_mosaic.version = 11 : i64} {
  func.func @ffn_kernel(%arg0: i32, %arg1: memref<256x384xf32, #tpu.memory_space<vmem>>, %arg2: memref<384x1536xbf16, #tpu.memory_space<vmem>>, %arg3: memref<1x1536xf32, #tpu.memory_space<vmem>>, %arg4: memref<1536x384xbf16, #tpu.memory_space<vmem>>, %arg5: memref<1x384xf32, #tpu.memory_space<vmem>>, %arg6: memref<256x384xf32, #tpu.memory_space<vmem>>) attributes {dimension_semantics = [#tpu.dimension_semantics<parallel>], iteration_bounds = array<i64: 2>, scalar_prefetch = 0 : i64, scratch_operands = 0 : i64, tpu.core_type = #tpu.core_type<tc>, window_params = [{transform_indices = @transform_0, window_bounds = array<i64: 256, 384>}, {pipeline_mode = #tpu.pipeline_mode<synchronous>, transform_indices = @transform_1, window_bounds = array<i64: 384, 1536>}, {pipeline_mode = #tpu.pipeline_mode<synchronous>, transform_indices = @transform_2, window_bounds = array<i64: 1, 1536>}, {pipeline_mode = #tpu.pipeline_mode<synchronous>, transform_indices = @transform_3, window_bounds = array<i64: 1536, 384>}, {pipeline_mode = #tpu.pipeline_mode<synchronous>, transform_indices = @transform_4, window_bounds = array<i64: 1, 384>}, {transform_indices = @transform_5, window_bounds = array<i64: 256, 384>}]} {
    %c0 = arith.constant 0 : index
    %c0_0 = arith.constant 0 : index
    %0 = vector.load %arg1[%c0, %c0_0] : memref<256x384xf32, #tpu.memory_space<vmem>>, vector<256x384xf32>
    %1 = arith.truncf %0 : vector<256x384xf32> to vector<256x384xbf16>
    %cst = arith.constant 0.000000e+00 : f32
    %2 = vector.broadcast %cst : f32 to vector<256x384xf32>
    %c0_1 = arith.constant 0 : index
    %c0_2 = arith.constant 0 : index
    %3 = vector.load %arg2[%c0_1, %c0_2] : memref<384x1536xbf16, #tpu.memory_space<vmem>>, vector<384x512xbf16>
    %cst_3 = arith.constant dense<0.000000e+00> : vector<256x512xf32>
    %4 = tpu.matmul %1, %3, %cst_3 {dimension_numbers = #tpu.dot_dimension_numbers<[1], [0], [0], [1], [0, 0, 1, 1], [], []>} : vector<256x384xbf16>, vector<384x512xbf16>, vector<256x512xf32> -> vector<256x512xf32>
    %c0_4 = arith.constant 0 : index
    %c0_5 = arith.constant 0 : index
    %5 = vector.load %arg3[%c0_4, %c0_5] : memref<1x1536xf32, #tpu.memory_space<vmem>>, vector<1x512xf32>
    %6 = vector.broadcast %5 : vector<1x512xf32> to vector<256x512xf32>
    %7 = arith.addf %4, %6 : vector<256x512xf32>
    %cst_6 = arith.constant 0.000000e+00 : f32
    %8 = vector.broadcast %cst_6 : f32 to vector<256x512xf32>
    %9 = arith.maximumf %7, %8 : vector<256x512xf32>
    %10 = arith.truncf %9 : vector<256x512xf32> to vector<256x512xbf16>
    %c0_7 = arith.constant 0 : index
    %c0_8 = arith.constant 0 : index
    %11 = vector.load %arg4[%c0_7, %c0_8] : memref<1536x384xbf16, #tpu.memory_space<vmem>>, vector<512x384xbf16>
    %cst_9 = arith.constant dense<0.000000e+00> : vector<256x384xf32>
    %12 = tpu.matmul %10, %11, %cst_9 {dimension_numbers = #tpu.dot_dimension_numbers<[1], [0], [0], [1], [0, 0, 1, 1], [], []>} : vector<256x512xbf16>, vector<512x384xbf16>, vector<256x384xf32> -> vector<256x384xf32>
    %13 = arith.addf %2, %12 : vector<256x384xf32>
    %c0_10 = arith.constant 0 : index
    %c512 = arith.constant 512 : index
    %14 = vector.load %arg2[%c0_10, %c512] : memref<384x1536xbf16, #tpu.memory_space<vmem>>, vector<384x512xbf16>
    %cst_11 = arith.constant dense<0.000000e+00> : vector<256x512xf32>
    %15 = tpu.matmul %1, %14, %cst_11 {dimension_numbers = #tpu.dot_dimension_numbers<[1], [0], [0], [1], [0, 0, 1, 1], [], []>} : vector<256x384xbf16>, vector<384x512xbf16>, vector<256x512xf32> -> vector<256x512xf32>
    %c0_12 = arith.constant 0 : index
    %c512_13 = arith.constant 512 : index
    %16 = vector.load %arg3[%c0_12, %c512_13] : memref<1x1536xf32, #tpu.memory_space<vmem>>, vector<1x512xf32>
    %17 = vector.broadcast %16 : vector<1x512xf32> to vector<256x512xf32>
    %18 = arith.addf %15, %17 : vector<256x512xf32>
    %cst_14 = arith.constant 0.000000e+00 : f32
    %19 = vector.broadcast %cst_14 : f32 to vector<256x512xf32>
    %20 = arith.maximumf %18, %19 : vector<256x512xf32>
    %21 = arith.truncf %20 : vector<256x512xf32> to vector<256x512xbf16>
    %c512_15 = arith.constant 512 : index
    %c0_16 = arith.constant 0 : index
    %22 = vector.load %arg4[%c512_15, %c0_16] : memref<1536x384xbf16, #tpu.memory_space<vmem>>, vector<512x384xbf16>
    %cst_17 = arith.constant dense<0.000000e+00> : vector<256x384xf32>
    %23 = tpu.matmul %21, %22, %cst_17 {dimension_numbers = #tpu.dot_dimension_numbers<[1], [0], [0], [1], [0, 0, 1, 1], [], []>} : vector<256x512xbf16>, vector<512x384xbf16>, vector<256x384xf32> -> vector<256x384xf32>
    %24 = arith.addf %13, %23 : vector<256x384xf32>
    %c0_18 = arith.constant 0 : index
    %c1024 = arith.constant 1024 : index
    %25 = vector.load %arg2[%c0_18, %c1024] : memref<384x1536xbf16, #tpu.memory_space<vmem>>, vector<384x512xbf16>
    %cst_19 = arith.constant dense<0.000000e+00> : vector<256x512xf32>
    %26 = tpu.matmul %1, %25, %cst_19 {dimension_numbers = #tpu.dot_dimension_numbers<[1], [0], [0], [1], [0, 0, 1, 1], [], []>} : vector<256x384xbf16>, vector<384x512xbf16>, vector<256x512xf32> -> vector<256x512xf32>
    %c0_20 = arith.constant 0 : index
    %c1024_21 = arith.constant 1024 : index
    %27 = vector.load %arg3[%c0_20, %c1024_21] : memref<1x1536xf32, #tpu.memory_space<vmem>>, vector<1x512xf32>
    %28 = vector.broadcast %27 : vector<1x512xf32> to vector<256x512xf32>
    %29 = arith.addf %26, %28 : vector<256x512xf32>
    %cst_22 = arith.constant 0.000000e+00 : f32
    %30 = vector.broadcast %cst_22 : f32 to vector<256x512xf32>
    %31 = arith.maximumf %29, %30 : vector<256x512xf32>
    %32 = arith.truncf %31 : vector<256x512xf32> to vector<256x512xbf16>
    %c1024_23 = arith.constant 1024 : index
    %c0_24 = arith.constant 0 : index
    %33 = vector.load %arg4[%c1024_23, %c0_24] : memref<1536x384xbf16, #tpu.memory_space<vmem>>, vector<512x384xbf16>
    %cst_25 = arith.constant dense<0.000000e+00> : vector<256x384xf32>
    %34 = tpu.matmul %32, %33, %cst_25 {dimension_numbers = #tpu.dot_dimension_numbers<[1], [0], [0], [1], [0, 0, 1, 1], [], []>} : vector<256x512xbf16>, vector<512x384xbf16>, vector<256x384xf32> -> vector<256x384xf32>
    %35 = arith.addf %24, %34 : vector<256x384xf32>
    %c0_26 = arith.constant 0 : index
    %c0_27 = arith.constant 0 : index
    %36 = vector.load %arg5[%c0_26, %c0_27] : memref<1x384xf32, #tpu.memory_space<vmem>>, vector<1x384xf32>
    %37 = vector.broadcast %36 : vector<1x384xf32> to vector<256x384xf32>
    %38 = arith.addf %35, %37 : vector<256x384xf32>
    %c0_28 = arith.constant 0 : index
    %c0_29 = arith.constant 0 : index
    %39 = vector.load %arg6[%c0_28, %c0_29] : memref<256x384xf32, #tpu.memory_space<vmem>>, vector<256x384xf32>
    tpu.vector_store %arg6[%c0_28, %c0_29], %38 {strides = array<i32>} : memref<256x384xf32, #tpu.memory_space<vmem>>, vector<256x384xf32>,
    return
  }
  func.func @transform_0(%arg0: i32) -> (i32, i32) {
    %c0_i32 = arith.constant 0 : i32
    %c0_i32_0 = arith.constant 0 : i32
    return %arg0, %c0_i32 : i32, i32
  }
  func.func @transform_1(%arg0: i32) -> (i32, i32) {
    %c0_i32 = arith.constant 0 : i32
    %c0_i32_0 = arith.constant 0 : i32
    %c0_i32_1 = arith.constant 0 : i32
    return %c0_i32, %c0_i32_0 : i32, i32
  }
  func.func @transform_2(%arg0: i32) -> (i32, i32) {
    %c0_i32 = arith.constant 0 : i32
    %c0_i32_0 = arith.constant 0 : i32
    %c0_i32_1 = arith.constant 0 : i32
    return %c0_i32, %c0_i32_0 : i32, i32
  }
  func.func @transform_3(%arg0: i32) -> (i32, i32) {
    %c0_i32 = arith.constant 0 : i32
    %c0_i32_0 = arith.constant 0 : i32
    %c0_i32_1 = arith.constant 0 : i32
    return %c0_i32, %c0_i32_0 : i32, i32
  }
  func.func @transform_4(%arg0: i32) -> (i32, i32) {
    %c0_i32 = arith.constant 0 : i32
    %c0_i32_0 = arith.constant 0 : i32
    %c0_i32_1 = arith.constant 0 : i32
    return %c0_i32, %c0_i32_0 : i32, i32
  }
  func.func @transform_5(%arg0: i32) -> (i32, i32) {
    %c0_i32 = arith.constant 0 : i32
    %c0_i32_0 = arith.constant 0 : i32
    return %arg0, %c0_i32 : i32, i32
  }
}

</mosaic_0001>

<llo_original>
// kernel: tpu_custom_call.1
$region0: #{tpu_custom_call.1}
  #allocation0 [shape = 'u32[]', space=smem, size = 0x4, offset = 0x4, fixed_abs, tag = 'smem constant byte address 0x4 - core index']
  #allocation1 [shape = 'u32[144,128]{1,0:T(1,128)}', space=vmem, size = 0x12000, scoped, tag = 'internal scratch']
  %s0 = inlined_call_operand.hbm [shape: f32[512,384], index: 0, kind: input, shape index: {}]
  %s1 = inlined_call_operand.hbm [shape: bf16[384,1536], index: 1, kind: input, shape index: {}]
  %s2 = inlined_call_operand.hbm [shape: f32[1,1536], index: 2, kind: input, shape index: {}]
  %s3 = inlined_call_operand.hbm [shape: bf16[1536,384], index: 3, kind: input, shape index: {}]
  %s4 = inlined_call_operand.hbm [shape: f32[1,384], index: 4, kind: input, shape index: {}]
  %s5 = inlined_call_operand.hbm [shape: f32[512,384], index: 5, kind: output, shape index: {}]
  %s6 = sld [smem:[#allocation0]]
  $region73: #{tpu_custom_call.1} parent=0
    _
  %s8 = ssub.s32 1, %s6
  %s9 = scalar_select 0, %s8, %s6
  $region1: #{tpu_custom_call.1} parent=0
    #allocation2 [shape = 'u8[786432]{0}', space=vmem, size = 0xc0000, scoped, tag = 'input window, operand 0']
    #allocation3 [shape = 's32[2]{0}', space=sflag, size = 0x8, scoped, tag = 'scoped memory for tpu_custom_call.1']
    #allocation4 [shape = 's32[2]{0}', space=sflag, size = 0x8, scoped, tag = 'scoped memory for tpu_custom_call.1']
    #allocation5 [shape = 'u8[1179648]{0}', space=vmem, size = 0x120000, scoped, tag = 'input window, operand 1, single buffered']
    #allocation6 [shape = 's32[1]{0}', space=sflag, size = 0x4, scoped, tag = 'scoped memory for tpu_custom_call.1']
    #allocation7 [shape = 'u8[6144]{0}', space=vmem, size = 0x1800, scoped, tag = 'input window, operand 2, single buffered']
    #allocation8 [shape = 'u8[1179648]{0}', space=vmem, size = 0x120000, scoped, tag = 'input window, operand 3, single buffered']
    #allocation9 [shape = 's32[1]{0}', space=sflag, size = 0x4, scoped, tag = 'scoped memory for tpu_custom_call.1']
    #allocation10 [shape = 'u8[1536]{0}', space=vmem, size = 0x800, scoped, tag = 'input window, operand 4, single buffered']
    #allocation11 [shape = 'u8[786432]{0}', space=vmem, size = 0xc0000, scoped, tag = 'output window, operand 0']
    %10 = vsyncpa [#allocation3], 0
    %s11 = scalar_lea.sflag [#allocation3], 1
    %12 = vsyncpa %s11, 0
    %13 = vsyncpa [#allocation6], 0
    %14 = vsyncpa [#allocation9], 0
    %15 = vsyncpa [#allocation4], 0
    %s16 = scalar_lea.sflag [#allocation4], 1
    %17 = vsyncpa %s16, 0
    loop: start=0, step=1, limit=4
    $region2: #{tpu_custom_call.1} parent=1 // loop_pre_header
      _
    $region3: #{tpu_custom_call.1} parent=1 // loop_header
      %s19 = sphi 0, %s23
      %p20 = scmp.ge.s32.totalorder %s19, 4
      %s29 = sphi 0, %s31
      %s32 = sphi 0, %s29
      %s33 = sphi 0, %s32
      %s49 = sphi 0, %s33
      %s53 = sphi 0, %s53
      %s55 = sphi 0, %s53
      %s56 = sphi 0, %s55
      %s70 = sphi 0, %s56
      %s74 = sphi 0, %s74
      %s76 = sphi 0, %s74
      %s77 = sphi 0, %s76
      %s91 = sphi 0, %s77
      %s95 = sphi 0, %s95
      %s97 = sphi 0, %s95
      %s98 = sphi 0, %s97
      %s112 = sphi 0, %s98
      %s116 = sphi 0, %s116
      %s118 = sphi 0, %s116
      %s119 = sphi 0, %s118
      %s133 = sphi 0, %s119
      %s139 = sphi 0, %s141
      %s142 = sphi 0, %s139
      %s143 = sphi 0, %s142
      %s159 = sphi 0, %s143
    $region4: #{tpu_custom_call.1} parent=1 // loop_header_branch
      %22 = sbr.rel (%p20) target = $region8
    $region5: #{tpu_custom_call.1} parent=1 // loop_body
      %s24 = ssub.s32 %s19, 1
      %s25 = ssub.s32 %s19, 2
      %s26 = sadd.s32 %s19, 1
      %s27 = ssub.s32 %s19, %s26
      %p28 = scmp.eq.s32.totalorder %s27, 0
      %s30 = sadd.s32 %s29, 1
      %s31 = scalar_select %p28, %s29, %s30
      %p34 = pneg %p28
      %p35 = scmp.eq.s32.totalorder %s19, 1
      %p36 = por %p34, %p35
      %p37 = scmp.ne.s32.totalorder %s29, %s32
      %p38 = scmp.eq.s32.totalorder %s19, 0
      %p39 = por %p37, %p38
      %p40 = scmp.ne.s32.totalorder %s29, %s32
      %p41 = scmp.eq.s32.totalorder %s24, 1
      %p42 = por %p40, %p41
      %p43 = scmp.ne.s32.totalorder %s32, %s33
      %p44 = scmp.eq.s32.totalorder %s24, 0
      %p45 = por %p43, %p44
      %p46 = scmp.ne.s32.totalorder %s32, %s33
      %p47 = scmp.eq.s32.totalorder %s25, 1
      %p48 = por %p46, %p47
      %p50 = scmp.ne.s32.totalorder %s33, %s49
      %p51 = scmp.eq.s32.totalorder %s25, 0
      %p52 = por %p50, %p51
      %s54 = sadd.s32 %s53, 1
      %p57 = scmp.eq.s32.totalorder %s19, 1
      %p58 = scmp.ne.s32.totalorder %s53, %s55
      %p59 = scmp.eq.s32.totalorder %s19, 0
      %p60 = por %p58, %p59
      %p61 = scmp.ne.s32.totalorder %s53, %s55
      %p62 = scmp.eq.s32.totalorder %s24, 1
      %p63 = por %p61, %p62
      %p64 = scmp.ne.s32.totalorder %s55, %s56
      %p65 = scmp.eq.s32.totalorder %s24, 0
      %p66 = por %p64, %p65
      %p67 = scmp.ne.s32.totalorder %s55, %s56
      %p68 = scmp.eq.s32.totalorder %s25, 1
      %p69 = por %p67, %p68
      %p71 = scmp.ne.s32.totalorder %s56, %s70
      %p72 = scmp.eq.s32.totalorder %s25, 0
      %p73 = por %p71, %p72
      %s75 = sadd.s32 %s74, 1
      %p78 = scmp.eq.s32.totalorder %s19, 1
      %p79 = scmp.ne.s32.totalorder %s74, %s76
      %p80 = scmp.eq.s32.totalorder %s19, 0
      %p81 = por %p79, %p80
      %p82 = scmp.ne.s32.totalorder %s74, %s76
      %p83 = scmp.eq.s32.totalorder %s24, 1
      %p84 = por %p82, %p83
      %p85 = scmp.ne.s32.totalorder %s76, %s77
      %p86 = scmp.eq.s32.totalorder %s24, 0
      %p87 = por %p85, %p86
      %p88 = scmp.ne.s32.totalorder %s76, %s77
      %p89 = scmp.eq.s32.totalorder %s25, 1
      %p90 = por %p88, %p89
      %p92 = scmp.ne.s32.totalorder %s77, %s91
      %p93 = scmp.eq.s32.totalorder %s25, 0
      %p94 = por %p92, %p93
      %s96 = sadd.s32 %s95, 1
      %p99 = scmp.eq.s32.totalorder %s19, 1
      %p100 = scmp.ne.s32.totalorder %s95, %s97
      %p101 = scmp.eq.s32.totalorder %s19, 0
      %p102 = por %p100, %p101
      %p103 = scmp.ne.s32.totalorder %s95, %s97
      %p104 = scmp.eq.s32.totalorder %s24, 1
      %p105 = por %p103, %p104
      %p106 = scmp.ne.s32.totalorder %s97, %s98
      %p107 = scmp.eq.s32.totalorder %s24, 0
      %p108 = por %p106, %p107
      %p109 = scmp.ne.s32.totalorder %s97, %s98
      %p110 = scmp.eq.s32.totalorder %s25, 1
      %p111 = por %p109, %p110
      %p113 = scmp.ne.s32.totalorder %s98, %s112
      %p114 = scmp.eq.s32.totalorder %s25, 0
      %p115 = por %p113, %p114
      %s117 = sadd.s32 %s116, 1
      %p120 = scmp.eq.s32.totalorder %s19, 1
      %p121 = scmp.ne.s32.totalorder %s116, %s118
      %p122 = scmp.eq.s32.totalorder %s19, 0
      %p123 = por %p121, %p122
      %p124 = scmp.ne.s32.totalorder %s116, %s118
      %p125 = scmp.eq.s32.totalorder %s24, 1
      %p126 = por %p124, %p125
      %p127 = scmp.ne.s32.totalorder %s118, %s119
      %p128 = scmp.eq.s32.totalorder %s24, 0
      %p129 = por %p127, %p128
      %p130 = scmp.ne.s32.totalorder %s118, %s119
      %p131 = scmp.eq.s32.totalorder %s25, 1
      %p132 = por %p130, %p131
      %p134 = scmp.ne.s32.totalorder %s119, %s133
      %p135 = scmp.eq.s32.totalorder %s25, 0
      %p136 = por %p134, %p135
      %s137 = ssub.s32 %s19, %s26
      %p138 = scmp.eq.s32.totalorder %s137, 0
      %s140 = sadd.s32 %s139, 1
      %s141 = scalar_select %p138, %s139, %s140
      %p144 = pneg %p138
      %p145 = scmp.eq.s32.totalorder %s19, 1
      %p146 = por %p144, %p145
      %p147 = scmp.ne.s32.totalorder %s139, %s142
      %p148 = scmp.eq.s32.totalorder %s19, 0
      %p149 = por %p147, %p148
      %p150 = scmp.ne.s32.totalorder %s139, %s142
      %p151 = scmp.eq.s32.totalorder %s24, 1
      %p152 = por %p150, %p151
      %p153 = scmp.ne.s32.totalorder %s142, %s143
      %p154 = scmp.eq.s32.totalorder %s24, 0
      %p155 = por %p153, %p154
      %p156 = scmp.ne.s32.totalorder %s142, %s143
      %p157 = scmp.eq.s32.totalorder %s25, 1
      %p158 = por %p156, %p157
      %p160 = scmp.ne.s32.totalorder %s143, %s159
      %p161 = scmp.eq.s32.totalorder %s25, 0
      %p162 = por %p160, %p161
      %p163 = scmp.le.s32.totalorder 1, %s19
      %p164 = scmp.lt.s32.totalorder %s19, 3
      %p165 = pnand %p163, %p164
      %p166 = pneg %p165
      // Predicated region
      $region9: #{tpu_custom_call.1} parent=5 // pred_check
        _
      $region10: #{tpu_custom_call.1} parent=5 // pred_check_branch
        %168 = sbr.rel (%p165) target = $region12
      $region11: #{tpu_custom_call.1} parent=5 // pred_region
        %s169 = ssub.s32 %s19, 1
        // Predicated region
        $region13: #{tpu_custom_call.1} parent=11 // pred_check
          %p170 = pneg %p66
        $region14: #{tpu_custom_call.1} parent=11 // pred_check_branch
          %172 = sbr.rel (%p170) target = $region16
        $region15: #{tpu_custom_call.1} parent=11 // pred_region
          %s174 = ssub.s32 36864, 36864
          %175 = vsyncadd [#allocation6], %s174
          %s176 = sshll.u32 [#allocation5], 4
          %s177 = int_to_ptr.vmem [resolvable:$true] %s176
          %182 = dma.hbm_to_vmem [thread:$0]  %s1, 36864, %s177, [#allocation6], 768, 768, 48
        $region16: #{tpu_custom_call.1} parent=11 // pred_fallthru
          _
        // Predicated region
        $region17: #{tpu_custom_call.1} parent=11 // pred_check
          %p183 = pneg %p87
        $region18: #{tpu_custom_call.1} parent=11 // pred_check_branch
          %185 = sbr.rel (%p183) target = $region20
        $region19: #{tpu_custom_call.1} parent=11 // pred_region
          %s187 = ssub.s32 192, 192
          %188 = vsyncadd [#allocation6], %s187
          %s190 = sshll.u32 [#allocation7], 4
          %s191 = int_to_ptr.vmem [resolvable:$true] %s190
          %193 = dma.hbm_to_vmem [thread:$0]  %s2, 192, %s191, [#allocation6]
        $region20: #{tpu_custom_call.1} parent=11 // pred_fallthru
          _
        // Predicated region
        $region21: #{tpu_custom_call.1} parent=11 // pred_check
          %p194 = pneg %p108
        $region22: #{tpu_custom_call.1} parent=11 // pred_check_branch
          %196 = sbr.rel (%p194) target = $region24
        $region23: #{tpu_custom_call.1} parent=11 // pred_region
          %s198 = ssub.s32 36864, 36864
          %199 = vsyncadd [#allocation9], %s198
          %s200 = sshll.u32 [#allocation8], 4
          %s201 = int_to_ptr.vmem [resolvable:$true] %s200
          %206 = dma.hbm_to_vmem [thread:$0]  %s3, 36864, %s201, [#allocation9], 192, 192, 12
        $region24: #{tpu_custom_call.1} parent=11 // pred_fallthru
          _
        // Predicated region
        $region25: #{tpu_custom_call.1} parent=11 // pred_check
          %p207 = pneg %p129
        $region26: #{tpu_custom_call.1} parent=11 // pred_check_branch
          %209 = sbr.rel (%p207) target = $region28
        $region27: #{tpu_custom_call.1} parent=11 // pred_region
          %s211 = ssub.s32 48, 48
          %212 = vsyncadd [#allocation9], %s211
          %s214 = sshll.u32 [#allocation10], 4
          %s215 = int_to_ptr.vmem [resolvable:$true] %s214
          %217 = dma.hbm_to_vmem [thread:$0]  %s4, 48, %s215, [#allocation9]
        $region28: #{tpu_custom_call.1} parent=11 // pred_fallthru
          _
      $region12: #{tpu_custom_call.1} parent=5 // pred_fallthru
        _
      %p218 = scmp.lt.s32.totalorder %s19, 2
      // Predicated region
      $region29: #{tpu_custom_call.1} parent=5 // pred_check
        %p219 = pneg %p218
      $region30: #{tpu_custom_call.1} parent=5 // pred_check_branch
        %221 = sbr.rel (%p219) target = $region32
      $region31: #{tpu_custom_call.1} parent=5 // pred_region
        // Predicated region
        $region33: #{tpu_custom_call.1} parent=31 // pred_check
          %p222 = pneg %p39
        $region34: #{tpu_custom_call.1} parent=31 // pred_check_branch
          %224 = sbr.rel (%p222) target = $region36
        $region35: #{tpu_custom_call.1} parent=31 // pred_region
          %s225 = sand.u32 %s29, 1
          %s226 = scalar_lea.sflag [#allocation3], %s225
          %s227 = sand.u32 %s29, 1
          %s228 = smul.addr %s227, 768
          %s229 = scalar_lea.vmem [#allocation2], %s228
          %s230 = smul.u32 32, %s19
          %s232 = ssub.s32 12288, 12288
          %233 = vsyncadd %s226, %s232
          %s234 = smul.addr %s230, 3
          %s235 = smul.addr %s234, 128
          %s236 = scalar_lea.hbm %s0, %s235
          %s237 = sshll.u32 %s229, 4
          %s238 = int_to_ptr.vmem [resolvable:$true] %s237
          %243 = dma.hbm_to_vmem [thread:$0]  %s236, 12288, %s238, %s226, 384, 384, 24
        $region36: #{tpu_custom_call.1} parent=31 // pred_fallthru
          _
      $region32: #{tpu_custom_call.1} parent=5 // pred_fallthru
        _
      %p244 = scmp.le.s32.totalorder 1, %s19
      %p245 = scmp.lt.s32.totalorder %s19, 3
      %p246 = pnand %p244, %p245
      %p247 = pneg %p246
      // Predicated region
      $region37: #{tpu_custom_call.1} parent=5 // pred_check
        _
      $region38: #{tpu_custom_call.1} parent=5 // pred_check_branch
        %249 = sbr.rel (%p246) target = $region40
      $region39: #{tpu_custom_call.1} parent=5 // pred_region
        %s250 = ssub.s32 %s19, 1
        %s251 = sand.u32 %s32, 1
        %s252 = scalar_lea.sflag [#allocation3], %s251
        %s253 = sand.u32 %s32, 1
        %s254 = smul.addr %s253, 768
        %s255 = scalar_lea.vmem [#allocation2], %s254
        // Predicated region
        $region41: #{tpu_custom_call.1} parent=39 // pred_check
          %p256 = pneg %p45
        $region42: #{tpu_custom_call.1} parent=39 // pred_check_branch
          %258 = sbr.rel (%p256) target = $region44
        $region43: #{tpu_custom_call.1} parent=39 // pred_region
          %259 = dma.done %s252, 12288
        $region44: #{tpu_custom_call.1} parent=39 // pred_fallthru
          _
        // Predicated region
        $region45: #{tpu_custom_call.1} parent=39 // pred_check
          %p260 = pneg %p66
        $region46: #{tpu_custom_call.1} parent=39 // pred_check_branch
          %262 = sbr.rel (%p260) target = $region48
        $region47: #{tpu_custom_call.1} parent=39 // pred_region
          %263 = dma.done [#allocation6], 36864
        $region48: #{tpu_custom_call.1} parent=39 // pred_fallthru
          _
        // Predicated region
        $region49: #{tpu_custom_call.1} parent=39 // pred_check
          %p264 = pneg %p87
        $region50: #{tpu_custom_call.1} parent=39 // pred_check_branch
          %266 = sbr.rel (%p264) target = $region52
        $region51: #{tpu_custom_call.1} parent=39 // pred_region
          %267 = dma.done [#allocation6], 192
        $region52: #{tpu_custom_call.1} parent=39 // pred_fallthru
          _
        // Predicated region
        $region53: #{tpu_custom_call.1} parent=39 // pred_check
          %p268 = pneg %p108
        $region54: #{tpu_custom_call.1} parent=39 // pred_check_branch
          %270 = sbr.rel (%p268) target = $region56
        $region55: #{tpu_custom_call.1} parent=39 // pred_region
          %271 = dma.done [#allocation9], 36864
        $region56: #{tpu_custom_call.1} parent=39 // pred_fallthru
          _
        // Predicated region
        $region57: #{tpu_custom_call.1} parent=39 // pred_check
          %p272 = pneg %p129
        $region58: #{tpu_custom_call.1} parent=39 // pred_check_branch
          %274 = sbr.rel (%p272) target = $region60
        $region59: #{tpu_custom_call.1} parent=39 // pred_region
          %275 = dma.done [#allocation9], 48
        $region60: #{tpu_custom_call.1} parent=39 // pred_fallthru
          _
        %s276 = sand.u32 %s32, 1
        %s277 = scalar_lea.sflag [#allocation3], %s276
        %s278 = sand.u32 %s32, 1
        %s279 = smul.addr %s278, 768
        %s280 = scalar_lea.vmem [#allocation2], %s279
        %p281 = pneg %p45
        %p282 = pneg %p42
        %p283 = pneg %p66
        %p284 = pneg %p63
        %p285 = pneg %p87
        %p286 = pneg %p84
        %p287 = pneg %p108
        %p288 = pneg %p105
        %p289 = pneg %p129
        %p290 = pneg %p126
        %p291 = pneg %p155
        %p292 = pneg %p152
        %s293 = sand.u32 %s142, 1
        %s294 = scalar_lea.sflag [#allocation4], %s293
        %s295 = sand.u32 %s142, 1
        %s296 = smul.addr %s295, 768
        %s297 = scalar_lea.vmem [#allocation11], %s296
        %s298 = smul.u32 32, %s24
        %s299 = smul.u32 32, %s24
        %v301 = vld [vmem:[%s255] sm:$0xff]
        %v302 = vld [vmem:[%s255 + $0x8] sm:$0xff]
        %v303 = vld [vmem:[%s255 + $0x10] sm:$0xff]
        %v304 = vld [vmem:[%s255 + $0x18] sm:$0xff]
        %v305 = vld [vmem:[%s255 + $0x20] sm:$0xff]
        %v306 = vld [vmem:[%s255 + $0x28] sm:$0xff]
        %v307 = vld [vmem:[%s255 + $0x30] sm:$0xff]
        %v308 = vld [vmem:[%s255 + $0x38] sm:$0xff]
        %v309 = vld [vmem:[%s255 + $0x40] sm:$0xff]
        %v310 = vld [vmem:[%s255 + $0x48] sm:$0xff]
        %v311 = vld [vmem:[%s255 + $0x50] sm:$0xff]
        %v312 = vld [vmem:[%s255 + $0x58] sm:$0xff]
        %v313 = vld [vmem:[%s255 + $0x60] sm:$0xff]
        %v314 = vld [vmem:[%s255 + $0x68] sm:$0xff]
        %v315 = vld [vmem:[%s255 + $0x70] sm:$0xff]
        %v316 = vld [vmem:[%s255 + $0x78] sm:$0xff]
        %v317 = vld [vmem:[%s255 + $0x80] sm:$0xff]
        %v318 = vld [vmem:[%s255 + $0x88] sm:$0xff]
        %v319 = vld [vmem:[%s255 + $0x90] sm:$0xff]
        %v320 = vld [vmem:[%s255 + $0x98] sm:$0xff]
        %v321 = vld [vmem:[%s255 + $0xa0] sm:$0xff]
        %v322 = vld [vmem:[%s255 + $0xa8] sm:$0xff]
        %v323 = vld [vmem:[%s255 + $0xb0] sm:$0xff]
        %v324 = vld [vmem:[%s255 + $0xb8] sm:$0xff]
        %v325 = vld [vmem:[%s255 + $0xc0] sm:$0xff]
        %v326 = vld [vmem:[%s255 + $0xc8] sm:$0xff]
        %v327 = vld [vmem:[%s255 + $0xd0] sm:$0xff]
        %v328 = vld [vmem:[%s255 + $0xd8] sm:$0xff]
        %v329 = vld [vmem:[%s255 + $0xe0] sm:$0xff]
        %v330 = vld [vmem:[%s255 + $0xe8] sm:$0xff]
        %v331 = vld [vmem:[%s255 + $0xf0] sm:$0xff]
        %v332 = vld [vmem:[%s255 + $0xf8] sm:$0xff]
        %v333 = vld [vmem:[%s255 + $0x100] sm:$0xff]
        %v334 = vld [vmem:[%s255 + $0x108] sm:$0xff]
        %v335 = vld [vmem:[%s255 + $0x110] sm:$0xff]
        %v336 = vld [vmem:[%s255 + $0x118] sm:$0xff]
        %v337 = vld [vmem:[%s255 + $0x120] sm:$0xff]
        %v338 = vld [vmem:[%s255 + $0x128] sm:$0xff]
        %v339 = vld [vmem:[%s255 + $0x130] sm:$0xff]
        %v340 = vld [vmem:[%s255 + $0x138] sm:$0xff]
        %v341 = vld [vmem:[%s255 + $0x140] sm:$0xff]
        %v342 = vld [vmem:[%s255 + $0x148] sm:$0xff]
        %v343 = vld [vmem:[%s255 + $0x150] sm:$0xff]
        %v344 = vld [vmem:[%s255 + $0x158] sm:$0xff]
        %v345 = vld [vmem:[%s255 + $0x160] sm:$0xff]
        %v346 = vld [vmem:[%s255 + $0x168] sm:$0xff]
        %v347 = vld [vmem:[%s255 + $0x170] sm:$0xff]
        %v348 = vld [vmem:[%s255 + $0x178] sm:$0xff]
        %v349 = vld [vmem:[%s255 + $0x180] sm:$0xff]
        %v350 = vld [vmem:[%s255 + $0x188] sm:$0xff]
        %v351 = vld [vmem:[%s255 + $0x190] sm:$0xff]
        %v352 = vld [vmem:[%s255 + $0x198] sm:$0xff]
        %v353 = vld [vmem:[%s255 + $0x1a0] sm:$0xff]
        %v354 = vld [vmem:[%s255 + $0x1a8] sm:$0xff]
        %v355 = vld [vmem:[%s255 + $0x1b0] sm:$0xff]
        %v356 = vld [vmem:[%s255 + $0x1b8] sm:$0xff]
        %v357 = vld [vmem:[%s255 + $0x1c0] sm:$0xff]
        %v358 = vld [vmem:[%s255 + $0x1c8] sm:$0xff]
        %v359 = vld [vmem:[%s255 + $0x1d0] sm:$0xff]
        %v360 = vld [vmem:[%s255 + $0x1d8] sm:$0xff]
        %v361 = vld [vmem:[%s255 + $0x1e0] sm:$0xff]
        %v362 = vld [vmem:[%s255 + $0x1e8] sm:$0xff]
        %v363 = vld [vmem:[%s255 + $0x1f0] sm:$0xff]
        %v364 = vld [vmem:[%s255 + $0x1f8] sm:$0xff]
        %v365 = vld [vmem:[%s255 + $0x200] sm:$0xff]
        %v366 = vld [vmem:[%s255 + $0x208] sm:$0xff]
        %v367 = vld [vmem:[%s255 + $0x210] sm:$0xff]
        %v368 = vld [vmem:[%s255 + $0x218] sm:$0xff]
        %v369 = vld [vmem:[%s255 + $0x220] sm:$0xff]
        %v370 = vld [vmem:[%s255 + $0x228] sm:$0xff]
        %v371 = vld [vmem:[%s255 + $0x230] sm:$0xff]
        %v372 = vld [vmem:[%s255 + $0x238] sm:$0xff]
        %v373 = vld [vmem:[%s255 + $0x240] sm:$0xff]
        %v374 = vld [vmem:[%s255 + $0x248] sm:$0xff]
        %v375 = vld [vmem:[%s255 + $0x250] sm:$0xff]
        %v376 = vld [vmem:[%s255 + $0x258] sm:$0xff]
        %v377 = vld [vmem:[%s255 + $0x260] sm:$0xff]
        %v378 = vld [vmem:[%s255 + $0x268] sm:$0xff]
        %v379 = vld [vmem:[%s255 + $0x270] sm:$0xff]
        %v380 = vld [vmem:[%s255 + $0x278] sm:$0xff]
        %v381 = vld [vmem:[%s255 + $0x280] sm:$0xff]
        %v382 = vld [vmem:[%s255 + $0x288] sm:$0xff]
        %v383 = vld [vmem:[%s255 + $0x290] sm:$0xff]
        %v384 = vld [vmem:[%s255 + $0x298] sm:$0xff]
        %v385 = vld [vmem:[%s255 + $0x2a0] sm:$0xff]
        %v386 = vld [vmem:[%s255 + $0x2a8] sm:$0xff]
        %v387 = vld [vmem:[%s255 + $0x2b0] sm:$0xff]
        %v388 = vld [vmem:[%s255 + $0x2b8] sm:$0xff]
        %v389 = vld [vmem:[%s255 + $0x2c0] sm:$0xff]
        %v390 = vld [vmem:[%s255 + $0x2c8] sm:$0xff]
        %v391 = vld [vmem:[%s255 + $0x2d0] sm:$0xff]
        %v392 = vld [vmem:[%s255 + $0x2d8] sm:$0xff]
        %v393 = vld [vmem:[%s255 + $0x2e0] sm:$0xff]
        %v394 = vld [vmem:[%s255 + $0x2e8] sm:$0xff]
        %v395 = vld [vmem:[%s255 + $0x2f0] sm:$0xff]
        %v396 = vld [vmem:[%s255 + $0x2f8] sm:$0xff]
        %v397 = vpack.c.bf16 %v304, %v301
        %v398 = vpack.c.bf16 %v305, %v302
        %v399 = vpack.c.bf16 %v306, %v303
        %v400 = vpack.c.bf16 %v310, %v307
        %v401 = vpack.c.bf16 %v311, %v308
        %v402 = vpack.c.bf16 %v312, %v309
        %v403 = vpack.c.bf16 %v316, %v313
        %v404 = vpack.c.bf16 %v317, %v314
        %v405 = vpack.c.bf16 %v318, %v315
        %v406 = vpack.c.bf16 %v322, %v319
        %v407 = vpack.c.bf16 %v323, %v320
        %v408 = vpack.c.bf16 %v324, %v321
        %v409 = vpack.c.bf16 %v328, %v325
        %v410 = vpack.c.bf16 %v329, %v326
        %v411 = vpack.c.bf16 %v330, %v327
        %v412 = vpack.c.bf16 %v334, %v331
        %v413 = vpack.c.bf16 %v335, %v332
        %v414 = vpack.c.bf16 %v336, %v333
        %v415 = vpack.c.bf16 %v340, %v337
        %v416 = vpack.c.bf16 %v341, %v338
        %v417 = vpack.c.bf16 %v342, %v339
        %v418 = vpack.c.bf16 %v346, %v343
        %v419 = vpack.c.bf16 %v347, %v344
        %v420 = vpack.c.bf16 %v348, %v345
        %v421 = vpack.c.bf16 %v352, %v349
        %v422 = vpack.c.bf16 %v353, %v350
        %v423 = vpack.c.bf16 %v354, %v351
        %v424 = vpack.c.bf16 %v358, %v355
        %v425 = vpack.c.bf16 %v359, %v356
        %v426 = vpack.c.bf16 %v360, %v357
        %v427 = vpack.c.bf16 %v364, %v361
        %v428 = vpack.c.bf16 %v365, %v362
        %v429 = vpack.c.bf16 %v366, %v363
        %v430 = vpack.c.bf16 %v370, %v367
        %v431 = vpack.c.bf16 %v371, %v368
        %v432 = vpack.c.bf16 %v372, %v369
        %v433 = vpack.c.bf16 %v376, %v373
        %v434 = vpack.c.bf16 %v377, %v374
        %v435 = vpack.c.bf16 %v378, %v375
        %v436 = vpack.c.bf16 %v382, %v379
        %v437 = vpack.c.bf16 %v383, %v380
        %v438 = vpack.c.bf16 %v384, %v381
        %v439 = vpack.c.bf16 %v388, %v385
        %v440 = vpack.c.bf16 %v389, %v386
        %v441 = vpack.c.bf16 %v390, %v387
        %v442 = vpack.c.bf16 %v394, %v391
        %v443 = vpack.c.bf16 %v395, %v392
        %v444 = vpack.c.bf16 %v396, %v393
        %v445 = vld [vmem:[#allocation5] sm:$0xff]
        %v446 = vld [vmem:[#allocation5 + $0x8] sm:$0xff]
        %v447 = vld [vmem:[#allocation5 + $0x30] sm:$0xff]
        %v448 = vld [vmem:[#allocation5 + $0x38] sm:$0xff]
        %v449 = vld [vmem:[#allocation5 + $0x60] sm:$0xff]
        %v450 = vld [vmem:[#allocation5 + $0x68] sm:$0xff]
        %v451 = vld [vmem:[#allocation5 + $0x90] sm:$0xff]
        %v452 = vld [vmem:[#allocation5 + $0x98] sm:$0xff]
        %v453 = vld [vmem:[#allocation5 + $0xc0] sm:$0xff]
        %v454 = vld [vmem:[#allocation5 + $0xc8] sm:$0xff]
        %v455 = vld [vmem:[#allocation5 + $0xf0] sm:$0xff]
        %v456 = vld [vmem:[#allocation5 + $0xf8] sm:$0xff]
        %v457 = vld [vmem:[#allocation5 + $0x120] sm:$0xff]
        %v458 = vld [vmem:[#allocation5 + $0x128] sm:$0xff]
        %v459 = vld [vmem:[#allocation5 + $0x150] sm:$0xff]
        %v460 = vld [vmem:[#allocation5 + $0x158] sm:$0xff]
        %v461 = vld [vmem:[#allocation5 + $0x180] sm:$0xff]
        %v462 = vld [vmem:[#allocation5 + $0x188] sm:$0xff]
        %v463 = vld [vmem:[#allocation5 + $0x1b0] sm:$0xff]
        %v464 = vld [vmem:[#allocation5 + $0x1b8] sm:$0xff]
        %v465 = vld [vmem:[#allocation5 + $0x1e0] sm:$0xff]
        %v466 = vld [vmem:[#allocation5 + $0x1e8] sm:$0xff]
        %v467 = vld [vmem:[#allocation5 + $0x210] sm:$0xff]
        %v468 = vld [vmem:[#allocation5 + $0x218] sm:$0xff]
        %v469 = vld [vmem:[#allocation5 + $0x240] sm:$0xff]
        %v470 = vld [vmem:[#allocation5 + $0x248] sm:$0xff]
        %v471 = vld [vmem:[#allocation5 + $0x270] sm:$0xff]
        %v472 = vld [vmem:[#allocation5 + $0x278] sm:$0xff]
        %v473 = vld [vmem:[#allocation5 + $0x2a0] sm:$0xff]
        %v474 = vld [vmem:[#allocation5 + $0x2a8] sm:$0xff]
        %v475 = vld [vmem:[#allocation5 + $0x2d0] sm:$0xff]
        %v476 = vld [vmem:[#allocation5 + $0x2d8] sm:$0xff]
        %v477 = vld [vmem:[#allocation5 + $0x300] sm:$0xff]
        %v478 = vld [vmem:[#allocation5 + $0x308] sm:$0xff]
        %v479 = vld [vmem:[#allocation5 + $0x330] sm:$0xff]
        %v480 = vld [vmem:[#allocation5 + $0x338] sm:$0xff]
        %v481 = vld [vmem:[#allocation5 + $0x360] sm:$0xff]
        %v482 = vld [vmem:[#allocation5 + $0x368] sm:$0xff]
        %v483 = vld [vmem:[#allocation5 + $0x390] sm:$0xff]
        %v484 = vld [vmem:[#allocation5 + $0x398] sm:$0xff]
        %v485 = vld [vmem:[#allocation5 + $0x3c0] sm:$0xff]
        %v486 = vld [vmem:[#allocation5 + $0x3c8] sm:$0xff]
        %v487 = vld [vmem:[#allocation5 + $0x3f0] sm:$0xff]
        %v488 = vld [vmem:[#allocation5 + $0x3f8] sm:$0xff]
        %v489 = vld [vmem:[#allocation5 + $0x420] sm:$0xff]
        %v490 = vld [vmem:[#allocation5 + $0x428] sm:$0xff]
        %v491 = vld [vmem:[#allocation5 + $0x450] sm:$0xff]
        %v492 = vld [vmem:[#allocation5 + $0x458] sm:$0xff]
        %v493 = vld [vmem:[#allocation5 + $0x480] sm:$0xff]
        %v494 = vld [vmem:[#allocation5 + $0x488] sm:$0xff]
        %v495 = vld [vmem:[#allocation5 + $0x4b0] sm:$0xff]
        %v496 = vld [vmem:[#allocation5 + $0x4b8] sm:$0xff]
        %v497 = vld [vmem:[#allocation5 + $0x4e0] sm:$0xff]
        %v498 = vld [vmem:[#allocation5 + $0x4e8] sm:$0xff]
        %v499 = vld [vmem:[#allocation5 + $0x510] sm:$0xff]
        %v500 = vld [vmem:[#allocation5 + $0x518] sm:$0xff]
        %v501 = vld [vmem:[#allocation5 + $0x540] sm:$0xff]
        %v502 = vld [vmem:[#allocation5 + $0x548] sm:$0xff]
        %v503 = vld [vmem:[#allocation5 + $0x570] sm:$0xff]
        %v504 = vld [vmem:[#allocation5 + $0x578] sm:$0xff]
        %v505 = vld [vmem:[#allocation5 + $0x5a0] sm:$0xff]
        %v506 = vld [vmem:[#allocation5 + $0x5a8] sm:$0xff]
        %v507 = vld [vmem:[#allocation5 + $0x5d0] sm:$0xff]
        %v508 = vld [vmem:[#allocation5 + $0x5d8] sm:$0xff]
        %v509 = vld [vmem:[#allocation5 + $0x600] sm:$0xff]
        %v510 = vld [vmem:[#allocation5 + $0x608] sm:$0xff]
        %v511 = vld [vmem:[#allocation5 + $0x630] sm:$0xff]
        %v512 = vld [vmem:[#allocation5 + $0x638] sm:$0xff]
        %v513 = vld [vmem:[#allocation5 + $0x660] sm:$0xff]
        %v514 = vld [vmem:[#allocation5 + $0x668] sm:$0xff]
        %v515 = vld [vmem:[#allocation5 + $0x690] sm:$0xff]
        %v516 = vld [vmem:[#allocation5 + $0x698] sm:$0xff]
        %v517 = vld [vmem:[#allocation5 + $0x6c0] sm:$0xff]
        %v518 = vld [vmem:[#allocation5 + $0x6c8] sm:$0xff]
        %v519 = vld [vmem:[#allocation5 + $0x6f0] sm:$0xff]
        %v520 = vld [vmem:[#allocation5 + $0x6f8] sm:$0xff]
        %v521 = vld [vmem:[#allocation5 + $0x720] sm:$0xff]
        %v522 = vld [vmem:[#allocation5 + $0x728] sm:$0xff]
        %v523 = vld [vmem:[#allocation5 + $0x750] sm:$0xff]
        %v524 = vld [vmem:[#allocation5 + $0x758] sm:$0xff]
        %v525 = vld [vmem:[#allocation5 + $0x780] sm:$0xff]
        %v526 = vld [vmem:[#allocation5 + $0x788] sm:$0xff]
        %v527 = vld [vmem:[#allocation5 + $0x7b0] sm:$0xff]
        %v528 = vld [vmem:[#allocation5 + $0x7b8] sm:$0xff]
        %v529 = vld [vmem:[#allocation5 + $0x7e0] sm:$0xff]
        %v530 = vld [vmem:[#allocation5 + $0x7e8] sm:$0xff]
        %v531 = vld [vmem:[#allocation5 + $0x810] sm:$0xff]
        %v532 = vld [vmem:[#allocation5 + $0x818] sm:$0xff]
        %v533 = vld [vmem:[#allocation5 + $0x840] sm:$0xff]
        %v534 = vld [vmem:[#allocation5 + $0x848] sm:$0xff]
        %v535 = vld [vmem:[#allocation5 + $0x870] sm:$0xff]
        %v536 = vld [vmem:[#allocation5 + $0x878] sm:$0xff]
        %v537 = vld [vmem:[#allocation5 + $0x8a0] sm:$0xff]
        %v538 = vld [vmem:[#allocation5 + $0x8a8] sm:$0xff]
        %v539 = vld [vmem:[#allocation5 + $0x8d0] sm:$0xff]
        %v540 = vld [vmem:[#allocation5 + $0x8d8] sm:$0xff]
        %v541 = vld [vmem:[#allocation7] sm:$0xf]
        %v543 = vlaneseq
        %v544 = vshrl.u32 %v543, 7
        %v545 = vsub.s32 0, %v544
        %v546 = vrot.slane %v541, %v545
        %v547 = vlaneseq
        %v548 = vshrl.u32 %v547, 7
        %v549 = vsub.s32 1, %v548
        %v550 = vrot.slane %v541, %v549
        %v551 = vlaneseq
        %v552 = vshrl.u32 %v551, 7
        %v553 = vsub.s32 2, %v552
        %v554 = vrot.slane %v541, %v553
        %v555 = vlaneseq
        %v556 = vshrl.u32 %v555, 7
        %v557 = vsub.s32 3, %v556
        %v558 = vrot.slane %v541, %v557
        %v659 = vunpack.c.l.b16 %v445
        %v660 = vunpack.c.h.b16 %v445
        %v661 = vunpack.c.l.b16 %v446
        %v662 = vunpack.c.h.b16 %v446
        %v663 = vunpack.c.l.b16 %v447
        %v664 = vunpack.c.h.b16 %v447
        %v665 = vunpack.c.l.b16 %v448
        %v666 = vunpack.c.h.b16 %v448
        %v667 = vunpack.c.l.b16 %v449
        %v668 = vunpack.c.h.b16 %v449
        %v669 = vunpack.c.l.b16 %v450
        %v670 = vunpack.c.h.b16 %v450
        %v671 = vunpack.c.l.b16 %v451
        %v672 = vunpack.c.h.b16 %v451
        %v673 = vunpack.c.l.b16 %v452
        %v674 = vunpack.c.h.b16 %v452
        %v675 = vunpack.c.l.b16 %v453
        %v676 = vunpack.c.h.b16 %v453
        %v677 = vunpack.c.l.b16 %v454
        %v678 = vunpack.c.h.b16 %v454
        %v679 = vunpack.c.l.b16 %v455
        %v680 = vunpack.c.h.b16 %v455
        %v681 = vunpack.c.l.b16 %v456
        %v682 = vunpack.c.h.b16 %v456
        %v683 = vunpack.c.l.b16 %v457
        %v684 = vunpack.c.h.b16 %v457
        %v685 = vunpack.c.l.b16 %v458
        %v686 = vunpack.c.h.b16 %v458
        %v687 = vunpack.c.l.b16 %v459
        %v688 = vunpack.c.h.b16 %v459
        %v689 = vunpack.c.l.b16 %v460
        %v690 = vunpack.c.h.b16 %v460
        %v691 = vunpack.c.l.b16 %v461
        %v692 = vunpack.c.h.b16 %v461
        %v693 = vunpack.c.l.b16 %v462
        %v694 = vunpack.c.h.b16 %v462
        %v695 = vunpack.c.l.b16 %v463
        %v696 = vunpack.c.h.b16 %v463
        %v697 = vunpack.c.l.b16 %v464
        %v698 = vunpack.c.h.b16 %v464
        %v699 = vunpack.c.l.b16 %v465
        %v700 = vunpack.c.h.b16 %v465
        %v701 = vunpack.c.l.b16 %v466
        %v702 = vunpack.c.h.b16 %v466
        %v703 = vunpack.c.l.b16 %v467
        %v704 = vunpack.c.h.b16 %v467
        %v705 = vunpack.c.l.b16 %v468
        %v706 = vunpack.c.h.b16 %v468
        %v707 = vunpack.c.l.b16 %v469
        %v708 = vunpack.c.h.b16 %v469
        %v709 = vunpack.c.l.b16 %v470
        %v710 = vunpack.c.h.b16 %v470
        %v711 = vunpack.c.l.b16 %v471
        %v712 = vunpack.c.h.b16 %v471
        %v713 = vunpack.c.l.b16 %v472
        %v714 = vunpack.c.h.b16 %v472
        %v715 = vunpack.c.l.b16 %v473
        %v716 = vunpack.c.h.b16 %v473
        %v717 = vunpack.c.l.b16 %v474
        %v718 = vunpack.c.h.b16 %v474
        %v719 = vunpack.c.l.b16 %v475
        %v720 = vunpack.c.h.b16 %v475
        %v721 = vunpack.c.l.b16 %v476
        %v722 = vunpack.c.h.b16 %v476
        %v723 = vunpack.c.l.b16 %v477
        %v724 = vunpack.c.h.b16 %v477
        %v725 = vunpack.c.l.b16 %v478
        %v726 = vunpack.c.h.b16 %v478
        %v727 = vunpack.c.l.b16 %v479
        %v728 = vunpack.c.h.b16 %v479
        %v729 = vunpack.c.l.b16 %v480
        %v730 = vunpack.c.h.b16 %v480
        %v731 = vunpack.c.l.b16 %v481
        %v732 = vunpack.c.h.b16 %v481
        %v733 = vunpack.c.l.b16 %v482
        %v734 = vunpack.c.h.b16 %v482
        %v735 = vunpack.c.l.b16 %v483
        %v736 = vunpack.c.h.b16 %v483
        %v737 = vunpack.c.l.b16 %v484
        %v738 = vunpack.c.h.b16 %v484
        %v739 = vunpack.c.l.b16 %v485
        %v740 = vunpack.c.h.b16 %v485
        %v741 = vunpack.c.l.b16 %v486
        %v742 = vunpack.c.h.b16 %v486
        %v743 = vunpack.c.l.b16 %v487
        %v744 = vunpack.c.h.b16 %v487
        %v745 = vunpack.c.l.b16 %v488
        %v746 = vunpack.c.h.b16 %v488
        %v747 = vunpack.c.l.b16 %v489
        %v748 = vunpack.c.h.b16 %v489
        %v749 = vunpack.c.l.b16 %v490
        %v750 = vunpack.c.h.b16 %v490
        %v751 = vunpack.c.l.b16 %v491
        %v752 = vunpack.c.h.b16 %v491
        %v753 = vunpack.c.l.b16 %v492
        %v754 = vunpack.c.h.b16 %v492
        %v755 = vunpack.c.l.b16 %v493
        %v756 = vunpack.c.h.b16 %v493
        %v757 = vunpack.c.l.b16 %v494
        %v758 = vunpack.c.h.b16 %v494
        %v759 = vunpack.c.l.b16 %v495
        %v760 = vunpack.c.h.b16 %v495
        %v761 = vunpack.c.l.b16 %v496
        %v762 = vunpack.c.h.b16 %v496
        %v763 = vunpack.c.l.b16 %v497
        %v764 = vunpack.c.h.b16 %v497
        %v765 = vunpack.c.l.b16 %v498
        %v766 = vunpack.c.h.b16 %v498
        %v767 = vunpack.c.l.b16 %v499
        %v768 = vunpack.c.h.b16 %v499
        %v769 = vunpack.c.l.b16 %v500
        %v770 = vunpack.c.h.b16 %v500
        %v771 = vunpack.c.l.b16 %v501
        %v772 = vunpack.c.h.b16 %v501
        %v773 = vunpack.c.l.b16 %v502
        %v774 = vunpack.c.h.b16 %v502
        %v775 = vunpack.c.l.b16 %v503
        %v776 = vunpack.c.h.b16 %v503
        %v777 = vunpack.c.l.b16 %v504
        %v778 = vunpack.c.h.b16 %v504
        %v779 = vunpack.c.l.b16 %v505
        %v780 = vunpack.c.h.b16 %v505
        %v781 = vunpack.c.l.b16 %v506
        %v782 = vunpack.c.h.b16 %v506
        %v783 = vunpack.c.l.b16 %v507
        %v784 = vunpack.c.h.b16 %v507
        %v785 = vunpack.c.l.b16 %v508
        %v786 = vunpack.c.h.b16 %v508
        %v787 = vunpack.c.l.b16 %v509
        %v788 = vunpack.c.h.b16 %v509
        %v789 = vunpack.c.l.b16 %v510
        %v790 = vunpack.c.h.b16 %v510
        %v791 = vunpack.c.l.b16 %v511
        %v792 = vunpack.c.h.b16 %v511
        %v793 = vunpack.c.l.b16 %v512
        %v794 = vunpack.c.h.b16 %v512
        %v795 = vunpack.c.l.b16 %v513
        %v796 = vunpack.c.h.b16 %v513
        %v797 = vunpack.c.l.b16 %v514
        %v798 = vunpack.c.h.b16 %v514
        %v799 = vunpack.c.l.b16 %v515
        %v800 = vunpack.c.h.b16 %v515
        %v801 = vunpack.c.l.b16 %v516
        %v802 = vunpack.c.h.b16 %v516
        %v803 = vunpack.c.l.b16 %v517
        %v804 = vunpack.c.h.b16 %v517
        %v805 = vunpack.c.l.b16 %v518
        %v806 = vunpack.c.h.b16 %v518
        %v807 = vunpack.c.l.b16 %v519
        %v808 = vunpack.c.h.b16 %v519
        %v809 = vunpack.c.l.b16 %v520
        %v810 = vunpack.c.h.b16 %v520
        %v811 = vunpack.c.l.b16 %v521
        %v812 = vunpack.c.h.b16 %v521
        %v813 = vunpack.c.l.b16 %v522
        %v814 = vunpack.c.h.b16 %v522
        %v815 = vunpack.c.l.b16 %v523
        %v816 = vunpack.c.h.b16 %v523
        %v817 = vunpack.c.l.b16 %v524
        %v818 = vunpack.c.h.b16 %v524
        %v819 = vunpack.c.l.b16 %v525
        %v820 = vunpack.c.h.b16 %v525
        %v821 = vunpack.c.l.b16 %v526
        %v822 = vunpack.c.h.b16 %v526
        %v823 = vunpack.c.l.b16 %v527
        %v824 = vunpack.c.h.b16 %v527
        %v825 = vunpack.c.l.b16 %v528
        %v826 = vunpack.c.h.b16 %v528
        %v827 = vunpack.c.l.b16 %v529
        %v828 = vunpack.c.h.b16 %v529
        %v829 = vunpack.c.l.b16 %v530
        %v830 = vunpack.c.h.b16 %v530
        %v831 = vunpack.c.l.b16 %v531
        %v832 = vunpack.c.h.b16 %v531
        %v833 = vunpack.c.l.b16 %v532
        %v834 = vunpack.c.h.b16 %v532
        %v835 = vunpack.c.l.b16 %v533
        %v836 = vunpack.c.h.b16 %v533
        %v837 = vunpack.c.l.b16 %v534
        %v838 = vunpack.c.h.b16 %v534
        %v839 = vunpack.c.l.b16 %v535
        %v840 = vunpack.c.h.b16 %v535
        %v841 = vunpack.c.l.b16 %v536
        %v842 = vunpack.c.h.b16 %v536
        %v843 = vunpack.c.l.b16 %v537
        %v844 = vunpack.c.h.b16 %v537
        %v845 = vunpack.c.l.b16 %v538
        %v846 = vunpack.c.h.b16 %v538
        %v847 = vunpack.c.l.b16 %v539
        %v848 = vunpack.c.h.b16 %v539
        %v849 = vunpack.c.l.b16 %v540
        %v850 = vunpack.c.h.b16 %v540
        %v851 = vpack.c.b16 %v663, %v659
        %v852 = vpack.c.b16 %v664, %v660
        %v853 = vpack.c.b16 %v665, %v661
        %v854 = vpack.c.b16 %v666, %v662
        %v855 = vpack.c.b16 %v671, %v667
        %v856 = vpack.c.b16 %v672, %v668
        %v857 = vpack.c.b16 %v673, %v669
        %v858 = vpack.c.b16 %v674, %v670
        %v859 = vpack.c.b16 %v679, %v675
        %v860 = vpack.c.b16 %v680, %v676
        %v861 = vpack.c.b16 %v681, %v677
        %v862 = vpack.c.b16 %v682, %v678
        %v863 = vpack.c.b16 %v687, %v683
        %v864 = vpack.c.b16 %v688, %v684
        %v865 = vpack.c.b16 %v689, %v685
        %v866 = vpack.c.b16 %v690, %v686
        %v867 = vpack.c.b16 %v695, %v691
        %v868 = vpack.c.b16 %v696, %v692
        %v869 = vpack.c.b16 %v697, %v693
        %v870 = vpack.c.b16 %v698, %v694
        %v871 = vpack.c.b16 %v703, %v699
        %v872 = vpack.c.b16 %v704, %v700
        %v873 = vpack.c.b16 %v705, %v701
        %v874 = vpack.c.b16 %v706, %v702
        %v875 = vpack.c.b16 %v711, %v707
        %v876 = vpack.c.b16 %v712, %v708
        %v877 = vpack.c.b16 %v713, %v709
        %v878 = vpack.c.b16 %v714, %v710
        %v879 = vpack.c.b16 %v719, %v715
        %v880 = vpack.c.b16 %v720, %v716
        %v881 = vpack.c.b16 %v721, %v717
        %v882 = vpack.c.b16 %v722, %v718
        %v883 = vpack.c.b16 %v727, %v723
        %v884 = vpack.c.b16 %v728, %v724
        %v885 = vpack.c.b16 %v729, %v725
        %v886 = vpack.c.b16 %v730, %v726
        %v887 = vpack.c.b16 %v735, %v731
        %v888 = vpack.c.b16 %v736, %v732
        %v889 = vpack.c.b16 %v737, %v733
        %v890 = vpack.c.b16 %v738, %v734
        %v891 = vpack.c.b16 %v743, %v739
        %v892 = vpack.c.b16 %v744, %v740
        %v893 = vpack.c.b16 %v745, %v741
        %v894 = vpack.c.b16 %v746, %v742
        %v895 = vpack.c.b16 %v751, %v747
        %v896 = vpack.c.b16 %v752, %v748
        %v897 = vpack.c.b16 %v753, %v749
        %v898 = vpack.c.b16 %v754, %v750
        %v899 = vpack.c.b16 %v759, %v755
        %v900 = vpack.c.b16 %v760, %v756
        %v901 = vpack.c.b16 %v761, %v757
        %v902 = vpack.c.b16 %v762, %v758
        %v903 = vpack.c.b16 %v767, %v763
        %v904 = vpack.c.b16 %v768, %v764
        %v905 = vpack.c.b16 %v769, %v765
        %v906 = vpack.c.b16 %v770, %v766
        %v907 = vpack.c.b16 %v775, %v771
        %v908 = vpack.c.b16 %v776, %v772
        %v909 = vpack.c.b16 %v777, %v773
        %v910 = vpack.c.b16 %v778, %v774
        %v911 = vpack.c.b16 %v783, %v779
        %v912 = vpack.c.b16 %v784, %v780
        %v913 = vpack.c.b16 %v785, %v781
        %v914 = vpack.c.b16 %v786, %v782
        %v915 = vpack.c.b16 %v791, %v787
        %v916 = vpack.c.b16 %v792, %v788
        %v917 = vpack.c.b16 %v793, %v789
        %v918 = vpack.c.b16 %v794, %v790
        %v919 = vpack.c.b16 %v799, %v795
        %v920 = vpack.c.b16 %v800, %v796
        %v921 = vpack.c.b16 %v801, %v797
        %v922 = vpack.c.b16 %v802, %v798
        %v923 = vpack.c.b16 %v807, %v803
        %v924 = vpack.c.b16 %v808, %v804
        %v925 = vpack.c.b16 %v809, %v805
        %v926 = vpack.c.b16 %v810, %v806
        %v927 = vpack.c.b16 %v815, %v811
        %v928 = vpack.c.b16 %v816, %v812
        %v929 = vpack.c.b16 %v817, %v813
        %v930 = vpack.c.b16 %v818, %v814
        %v931 = vpack.c.b16 %v823, %v819
        %v932 = vpack.c.b16 %v824, %v820
        %v933 = vpack.c.b16 %v825, %v821
        %v934 = vpack.c.b16 %v826, %v822
        %v935 = vpack.c.b16 %v831, %v827
        %v936 = vpack.c.b16 %v832, %v828
        %v937 = vpack.c.b16 %v833, %v829
        %v938 = vpack.c.b16 %v834, %v830
        %v939 = vpack.c.b16 %v839, %v835
        %v940 = vpack.c.b16 %v840, %v836
        %v941 = vpack.c.b16 %v841, %v837
        %v942 = vpack.c.b16 %v842, %v838
        %v943 = vpack.c.b16 %v847, %v843
        %v944 = vpack.c.b16 %v848, %v844
        %v945 = vpack.c.b16 %v849, %v845
        %v946 = vpack.c.b16 %v850, %v846
        %1043 = vmatprep.subr.bf16.mxu0 %v852
        %1044 = vmatpush1.bf16.msra.mxu0 %v851
        %1045 = vmatprep.subr.bf16.mxu0 %v856
        %1046 = vmatpush1.bf16.msra.mxu0 %v855
        %1047 = vmatprep.subr.bf16.mxu0 %v860
        %1048 = vmatpush1.bf16.msra.mxu0 %v859
        %1049 = vmatprep.subr.bf16.mxu0 %v864
        %1050 = vmatpush1.bf16.msra.mxu0 %v863
        %1051 = vmatprep.subr.bf16.mxu0 %v868
        %1052 = vmatpush1.bf16.msra.mxu0 %v867
        %1053 = vmatprep.subr.bf16.mxu0 %v872
        %1054 = vmatpush1.bf16.msra.mxu0 %v871
        %1055 = vmatprep.subr.bf16.mxu0 %v876
        %1056 = vmatpush1.bf16.msra.mxu0 %v875
        %1057 = vmatprep.subr.bf16.mxu0 %v880
        %1058 = vmatpush1.bf16.msra.mxu0 %v879
        %1059 = vmatprep.subr.bf16.mxu0 %v884
        %1060 = vmatpush1.bf16.msra.mxu0 %v883
        %1061 = vmatprep.subr.bf16.mxu0 %v888
        %1062 = vmatpush1.bf16.msra.mxu0 %v887
        %1063 = vmatprep.subr.bf16.mxu0 %v892
        %1064 = vmatpush1.bf16.msra.mxu0 %v891
        %1065 = vmatprep.subr.bf16.mxu0 %v896
        %1066 = vmatpush1.bf16.msra.mxu0 %v895
        %1067 = vmatprep.subr.bf16.mxu0 %v900
        %1068 = vmatpush1.bf16.msra.mxu0 %v899
        %1069 = vmatprep.subr.bf16.mxu0 %v904
        %1070 = vmatpush1.bf16.msra.mxu0 %v903
        %1071 = vmatprep.subr.bf16.mxu0 %v908
        %1072 = vmatpush1.bf16.msra.mxu0 %v907
        %1073 = vmatprep.subr.bf16.mxu0 %v912
        %1074 = vmatpush1.bf16.msra.mxu0 %v911
        %1075 = vmatprep.mubr.bf16.mxu0 %v398
        %1076 = vmatmul.mubr.bf16.gmra.mrb[0].mxu0 %v397
        %v1077 = vpop.f32.mrb[0].mxu0
        %v1078 = vadd.f32 %v546, %v1077
        %v1079 = vpop.f32.mrb[0].mxu0
        %v1080 = vadd.f32 %v550, %v1079
        %v1081 = vpop.f32.mrb[0].mxu0
        %v1082 = vadd.f32 %v546, %v1081
        %v1083 = vpop.f32.mrb[0].mxu0
        %v1084 = vadd.f32 %v550, %v1083
        %1085 = vmatprep.mubr.bf16.mxu0 %v401
        %1086 = vmatmul.mubr.bf16.gmra.mrb[0].mxu0 %v400
        %v1087 = vpop.f32.mrb[0].mxu0
        %v1088 = vadd.f32 %v546, %v1087
        %v1089 = vpop.f32.mrb[0].mxu0
        %v1090 = vadd.f32 %v550, %v1089
        %v1091 = vpop.f32.mrb[0].mxu0
        %v1092 = vadd.f32 %v546, %v1091
        %v1093 = vpop.f32.mrb[0].mxu0
        %v1094 = vadd.f32 %v550, %v1093
        %1095 = vmatprep.mubr.bf16.mxu0 %v404
        %1096 = vmatmul.mubr.bf16.gmra.mrb[0].mxu0 %v403
        %v1097 = vpop.f32.mrb[0].mxu0
        %v1098 = vadd.f32 %v546, %v1097
        %v1099 = vpop.f32.mrb[0].mxu0
        %v1100 = vadd.f32 %v550, %v1099
        %v1101 = vpop.f32.mrb[0].mxu0
        %v1102 = vadd.f32 %v546, %v1101
        %v1103 = vpop.f32.mrb[0].mxu0
        %v1104 = vadd.f32 %v550, %v1103
        %1105 = vmatprep.mubr.bf16.mxu0 %v407
        %1106 = vmatmul.mubr.bf16.gmra.mrb[0].mxu0 %v406
        %v1107 = vpop.f32.mrb[0].mxu0
        %v1108 = vadd.f32 %v546, %v1107
        %v1109 = vpop.f32.mrb[0].mxu0
        %v1110 = vadd.f32 %v550, %v1109
        %v1111 = vpop.f32.mrb[0].mxu0
        %v1112 = vadd.f32 %v546, %v1111
        %v1113 = vpop.f32.mrb[0].mxu0
        %v1114 = vadd.f32 %v550, %v1113
        %1115 = vmatprep.mubr.bf16.mxu0 %v410
        %1116 = vmatmul.mubr.bf16.gmra.mrb[0].mxu0 %v409
        %v1117 = vpop.f32.mrb[0].mxu0
        %v1118 = vadd.f32 %v546, %v1117
        %v1119 = vpop.f32.mrb[0].mxu0
        %v1120 = vadd.f32 %v550, %v1119
        %v1121 = vpop.f32.mrb[0].mxu0
        %v1122 = vadd.f32 %v546, %v1121
        %v1123 = vpop.f32.mrb[0].mxu0
        %v1124 = vadd.f32 %v550, %v1123
        %1125 = vmatprep.mubr.bf16.mxu0 %v413
        %1126 = vmatmul.mubr.bf16.gmra.mrb[0].mxu0 %v412
        %v1127 = vpop.f32.mrb[0].mxu0
        %v1128 = vadd.f32 %v546, %v1127
        %v1129 = vpop.f32.mrb[0].mxu0
        %v1130 = vadd.f32 %v550, %v1129
        %v1131 = vpop.f32.mrb[0].mxu0
        %v1132 = vadd.f32 %v546, %v1131
        %v1133 = vpop.f32.mrb[0].mxu0
        %v1134 = vadd.f32 %v550, %v1133
        %1135 = vmatprep.mubr.bf16.mxu0 %v416
        %1136 = vmatmul.mubr.bf16.gmra.mrb[0].mxu0 %v415
        %v1137 = vpop.f32.mrb[0].mxu0
        %v1138 = vadd.f32 %v546, %v1137
        %v1139 = vpop.f32.mrb[0].mxu0
        %v1140 = vadd.f32 %v550, %v1139
        %v1141 = vpop.f32.mrb[0].mxu0
        %v1142 = vadd.f32 %v546, %v1141
        %v1143 = vpop.f32.mrb[0].mxu0
        %v1144 = vadd.f32 %v550, %v1143
        %1145 = vmatprep.mubr.bf16.mxu0 %v419
        %1146 = vmatmul.mubr.bf16.gmra.mrb[0].mxu0 %v418
        %v1147 = vpop.f32.mrb[0].mxu0
        %v1148 = vadd.f32 %v546, %v1147
        %v1149 = vpop.f32.mrb[0].mxu0
        %v1150 = vadd.f32 %v550, %v1149
        %v1151 = vpop.f32.mrb[0].mxu0
        %v1152 = vadd.f32 %v546, %v1151
        %v1153 = vpop.f32.mrb[0].mxu0
        %v1154 = vadd.f32 %v550, %v1153
        %1155 = vmatprep.mubr.bf16.mxu0 %v422
        %1156 = vmatmul.mubr.bf16.gmra.mrb[0].mxu0 %v421
        %v1157 = vpop.f32.mrb[0].mxu0
        %v1158 = vadd.f32 %v546, %v1157
        %v1159 = vpop.f32.mrb[0].mxu0
        %v1160 = vadd.f32 %v550, %v1159
        %v1161 = vpop.f32.mrb[0].mxu0
        %v1162 = vadd.f32 %v546, %v1161
        %v1163 = vpop.f32.mrb[0].mxu0
        %v1164 = vadd.f32 %v550, %v1163
        %1165 = vmatprep.mubr.bf16.mxu0 %v425
        %1166 = vmatmul.mubr.bf16.gmra.mrb[0].mxu0 %v424
        %v1167 = vpop.f32.mrb[0].mxu0
        %v1168 = vadd.f32 %v546, %v1167
        %v1169 = vpop.f32.mrb[0].mxu0
        %v1170 = vadd.f32 %v550, %v1169
        %v1171 = vpop.f32.mrb[0].mxu0
        %v1172 = vadd.f32 %v546, %v1171
        %v1173 = vpop.f32.mrb[0].mxu0
        %v1174 = vadd.f32 %v550, %v1173
        %1175 = vmatprep.mubr.bf16.mxu0 %v428
        %1176 = vmatmul.mubr.bf16.gmra.mrb[0].mxu0 %v427
        %v1177 = vpop.f32.mrb[0].mxu0
        %v1178 = vadd.f32 %v546, %v1177
        %v1179 = vpop.f32.mrb[0].mxu0
        %v1180 = vadd.f32 %v550, %v1179
        %v1181 = vpop.f32.mrb[0].mxu0
        %v1182 = vadd.f32 %v546, %v1181
        %v1183 = vpop.f32.mrb[0].mxu0
        %v1184 = vadd.f32 %v550, %v1183
        %1185 = vmatprep.mubr.bf16.mxu0 %v431
        %1186 = vmatmul.mubr.bf16.gmra.mrb[0].mxu0 %v430
        %v1187 = vpop.f32.mrb[0].mxu0
        %v1188 = vadd.f32 %v546, %v1187
        %v1189 = vpop.f32.mrb[0].mxu0
        %v1190 = vadd.f32 %v550, %v1189
        %v1191 = vpop.f32.mrb[0].mxu0
        %v1192 = vadd.f32 %v546, %v1191
        %v1193 = vpop.f32.mrb[0].mxu0
        %v1194 = vadd.f32 %v550, %v1193
        %1195 = vmatprep.mubr.bf16.mxu0 %v434
        %1196 = vmatmul.mubr.bf16.gmra.mrb[0].mxu0 %v433
        %v1197 = vpop.f32.mrb[0].mxu0
        %v1198 = vadd.f32 %v546, %v1197
        %v1199 = vpop.f32.mrb[0].mxu0
        %v1200 = vadd.f32 %v550, %v1199
        %v1201 = vpop.f32.mrb[0].mxu0
        %v1202 = vadd.f32 %v546, %v1201
        %v1203 = vpop.f32.mrb[0].mxu0
        %v1204 = vadd.f32 %v550, %v1203
        %1205 = vmatprep.mubr.bf16.mxu0 %v437
        %1206 = vmatmul.mubr.bf16.gmra.mrb[0].mxu0 %v436
        %v1207 = vpop.f32.mrb[0].mxu0
        %v1208 = vadd.f32 %v546, %v1207
        %v1209 = vpop.f32.mrb[0].mxu0
        %v1210 = vadd.f32 %v550, %v1209
        %v1211 = vpop.f32.mrb[0].mxu0
        %v1212 = vadd.f32 %v546, %v1211
        %v1213 = vpop.f32.mrb[0].mxu0
        %v1214 = vadd.f32 %v550, %v1213
        %1215 = vmatprep.mubr.bf16.mxu0 %v440
        %1216 = vmatmul.mubr.bf16.gmra.mrb[0].mxu0 %v439
        %v1217 = vpop.f32.mrb[0].mxu0
        %v1218 = vadd.f32 %v546, %v1217
        %v1219 = vpop.f32.mrb[0].mxu0
        %v1220 = vadd.f32 %v550, %v1219
        %v1221 = vpop.f32.mrb[0].mxu0
        %v1222 = vadd.f32 %v546, %v1221
        %v1223 = vpop.f32.mrb[0].mxu0
        %v1224 = vadd.f32 %v550, %v1223
        %1225 = vmatprep.mubr.bf16.mxu0 %v443
        %1226 = vmatmul.mubr.bf16.gmra.mrb[0].mxu0 %v442
        %v1227 = vpop.f32.mrb[0].mxu0
        %v1228 = vadd.f32 %v546, %v1227
        %v1229 = vpop.f32.mrb[0].mxu0
        %v1230 = vadd.f32 %v550, %v1229
        %v1231 = vpop.f32.mrb[0].mxu0
        %v1232 = vadd.f32 %v546, %v1231
        %v1233 = vpop.f32.mrb[0].mxu0
        %v1234 = vadd.f32 %v550, %v1233
        %1235 = vdwg.mxu0
        %1236 = vmatprep.subr.bf16.mxu0 %v916
        %1237 = vmatpush1.bf16.msra.mxu0 %v915
        %1238 = vmatprep.subr.bf16.mxu0 %v920
        %1239 = vmatpush1.bf16.msra.mxu0 %v919
        %1240 = vmatprep.subr.bf16.mxu0 %v924
        %1241 = vmatpush1.bf16.msra.mxu0 %v923
        %1242 = vmatprep.subr.bf16.mxu0 %v928
        %1243 = vmatpush1.bf16.msra.mxu0 %v927
        %1244 = vmatprep.subr.bf16.mxu0 %v932
        %1245 = vmatpush1.bf16.msra.mxu0 %v931
        %1246 = vmatprep.subr.bf16.mxu0 %v936
        %1247 = vmatpush1.bf16.msra.mxu0 %v935
        %1248 = vmatprep.subr.bf16.mxu0 %v940
        %1249 = vmatpush1.bf16.msra.mxu0 %v939
        %1250 = vmatprep.subr.bf16.mxu0 %v944
        %1251 = vmatpush1.bf16.msra.mxu0 %v943
        %1252 = vmatprep.subr.bf16.mxu0 0
        %1253 = vmatpush1.bf16.msra.mxu0 0
        %1254 = vmatprep.subr.bf16.mxu0 0
        %1255 = vmatpush1.bf16.msra.mxu0 0
        %1256 = vmatprep.subr.bf16.mxu0 0
        %1257 = vmatpush1.bf16.msra.mxu0 0
        %1258 = vmatprep.subr.bf16.mxu0 0
        %1259 = vmatpush1.bf16.msra.mxu0 0
        %1260 = vmatprep.subr.bf16.mxu0 0
        %1261 = vmatpush1.bf16.msra.mxu0 0
        %1262 = vmatprep.subr.bf16.mxu0 0
        %1263 = vmatpush1.bf16.msra.mxu0 0
        %1264 = vmatprep.subr.bf16.mxu0 0
        %1265 = vmatpush1.bf16.msra.mxu0 0
        %1266 = vmatprep.subr.bf16.mxu0 0
        %1267 = vmatpush1.bf16.msra.mxu0 0
        %1268 = vmatprep.mubr.bf16.mxu0 0
        %1269 = vmatmul.mubr.bf16.gmra.mrb[0].mxu0 %v399
        %v1270 = vpop.f32.mrb[0].mxu0
        %v1271 = vadd.f32 %v1078, %v1270
        %v1272 = vpop.f32.mrb[0].mxu0
        %v1273 = vadd.f32 %v1080, %v1272
        %v1274 = vpop.f32.mrb[0].mxu0
        %v1275 = vadd.f32 %v1082, %v1274
        %v1276 = vpop.f32.mrb[0].mxu0
        %v1277 = vadd.f32 %v1084, %v1276
        %1278 = vmatprep.mubr.bf16.mxu0 0
        %1279 = vmatmul.mubr.bf16.gmra.mrb[0].mxu0 %v402
        %v1280 = vpop.f32.mrb[0].mxu0
        %v1281 = vadd.f32 %v1088, %v1280
        %v1282 = vpop.f32.mrb[0].mxu0
        %v1283 = vadd.f32 %v1090, %v1282
        %v1284 = vpop.f32.mrb[0].mxu0
        %v1285 = vadd.f32 %v1092, %v1284
        %v1286 = vpop.f32.mrb[0].mxu0
        %v1287 = vadd.f32 %v1094, %v1286
        %1288 = vmatprep.mubr.bf16.mxu0 0
        %1289 = vmatmul.mubr.bf16.gmra.mrb[0].mxu0 %v405
        %v1290 = vpop.f32.mrb[0].mxu0
        %v1291 = vadd.f32 %v1098, %v1290
        %v1292 = vpop.f32.mrb[0].mxu0
        %v1293 = vadd.f32 %v1100, %v1292
        %v1294 = vpop.f32.mrb[0].mxu0
        %v1295 = vadd.f32 %v1102, %v1294
        %v1296 = vpop.f32.mrb[0].mxu0
        %v1297 = vadd.f32 %v1104, %v1296
        %1298 = vmatprep.mubr.bf16.mxu0 0
        %1299 = vmatmul.mubr.bf16.gmra.mrb[0].mxu0 %v408
        %v1300 = vpop.f32.mrb[0].mxu0
        %v1301 = vadd.f32 %v1108, %v1300
        %v1302 = vpop.f32.mrb[0].mxu0
        %v1303 = vadd.f32 %v1110, %v1302
        %v1304 = vpop.f32.mrb[0].mxu0
        %v1305 = vadd.f32 %v1112, %v1304
        %v1306 = vpop.f32.mrb[0].mxu0
        %v1307 = vadd.f32 %v1114, %v1306
        %1308 = vmatprep.mubr.bf16.mxu0 0
        %1309 = vmatmul.mubr.bf16.gmra.mrb[0].mxu0 %v411
        %v1310 = vpop.f32.mrb[0].mxu0
        %v1311 = vadd.f32 %v1118, %v1310
        %v1312 = vpop.f32.mrb[0].mxu0
        %v1313 = vadd.f32 %v1120, %v1312
        %v1314 = vpop.f32.mrb[0].mxu0
        %v1315 = vadd.f32 %v1122, %v1314
        %v1316 = vpop.f32.mrb[0].mxu0
        %v1317 = vadd.f32 %v1124, %v1316
        %1318 = vmatprep.mubr.bf16.mxu0 0
        %1319 = vmatmul.mubr.bf16.gmra.mrb[0].mxu0 %v414
        %v1320 = vpop.f32.mrb[0].mxu0
        %v1321 = vadd.f32 %v1128, %v1320
        %v1322 = vpop.f32.mrb[0].mxu0
        %v1323 = vadd.f32 %v1130, %v1322
        %v1324 = vpop.f32.mrb[0].mxu0
        %v1325 = vadd.f32 %v1132, %v1324
        %v1326 = vpop.f32.mrb[0].mxu0
        %v1327 = vadd.f32 %v1134, %v1326
        %1328 = vmatprep.mubr.bf16.mxu0 0
        %1329 = vmatmul.mubr.bf16.gmra.mrb[0].mxu0 %v417
        %v1330 = vpop.f32.mrb[0].mxu0
        %v1331 = vadd.f32 %v1138, %v1330
        %v1332 = vpop.f32.mrb[0].mxu0
        %v1333 = vadd.f32 %v1140, %v1332
        %v1334 = vpop.f32.mrb[0].mxu0
        %v1335 = vadd.f32 %v1142, %v1334
        %v1336 = vpop.f32.mrb[0].mxu0
        %v1337 = vadd.f32 %v1144, %v1336
        %1338 = vmatprep.mubr.bf16.mxu0 0
        %1339 = vmatmul.mubr.bf16.gmra.mrb[0].mxu0 %v420
        %v1340 = vpop.f32.mrb[0].mxu0
        %v1341 = vadd.f32 %v1148, %v1340
        %v1342 = vpop.f32.mrb[0].mxu0
        %v1343 = vadd.f32 %v1150, %v1342
        %v1344 = vpop.f32.mrb[0].mxu0
        %v1345 = vadd.f32 %v1152, %v1344
        %v1346 = vpop.f32.mrb[0].mxu0
        %v1347 = vadd.f32 %v1154, %v1346
        %1348 = vmatprep.mubr.bf16.mxu0 0
        %1349 = vmatmul.mubr.bf16.gmra.mrb[0].mxu0 %v423
        %v1350 = vpop.f32.mrb[0].mxu0
        %v1351 = vadd.f32 %v1158, %v1350
        %v1352 = vpop.f32.mrb[0].mxu0
        %v1353 = vadd.f32 %v1160, %v1352
        %v1354 = vpop.f32.mrb[0].mxu0
        %v1355 = vadd.f32 %v1162, %v1354
        %v1356 = vpop.f32.mrb[0].mxu0
        %v1357 = vadd.f32 %v1164, %v1356
        %1358 = vmatprep.mubr.bf16.mxu0 0
        %1359 = vmatmul.mubr.bf16.gmra.mrb[0].mxu0 %v426
        %v1360 = vpop.f32.mrb[0].mxu0
        %v1361 = vadd.f32 %v1168, %v1360
        %v1362 = vpop.f32.mrb[0].mxu0
        %v1363 = vadd.f32 %v1170, %v1362
        %v1364 = vpop.f32.mrb[0].mxu0
        %v1365 = vadd.f32 %v1172, %v1364
        %v1366 = vpop.f32.mrb[0].mxu0
        %v1367 = vadd.f32 %v1174, %v1366
        %1368 = vmatprep.mubr.bf16.mxu0 0
        %1369 = vmatmul.mubr.bf16.gmra.mrb[0].mxu0 %v429
        %v1370 = vpop.f32.mrb[0].mxu0
        %v1371 = vadd.f32 %v1178, %v1370
        %v1372 = vpop.f32.mrb[0].mxu0
        %v1373 = vadd.f32 %v1180, %v1372
        %v1374 = vpop.f32.mrb[0].mxu0
        %v1375 = vadd.f32 %v1182, %v1374
        %v1376 = vpop.f32.mrb[0].mxu0
        %v1377 = vadd.f32 %v1184, %v1376
        %1378 = vmatprep.mubr.bf16.mxu0 0
        %1379 = vmatmul.mubr.bf16.gmra.mrb[0].mxu0 %v432
        %v1380 = vpop.f32.mrb[0].mxu0
        %v1381 = vadd.f32 %v1188, %v1380
        %v1382 = vpop.f32.mrb[0].mxu0
        %v1383 = vadd.f32 %v1190, %v1382
        %v1384 = vpop.f32.mrb[0].mxu0
        %v1385 = vadd.f32 %v1192, %v1384
        %v1386 = vpop.f32.mrb[0].mxu0
        %v1387 = vadd.f32 %v1194, %v1386
        %1388 = vmatprep.mubr.bf16.mxu0 0
        %1389 = vmatmul.mubr.bf16.gmra.mrb[0].mxu0 %v435
        %v1390 = vpop.f32.mrb[0].mxu0
        %v1391 = vadd.f32 %v1198, %v1390
        %v1392 = vpop.f32.mrb[0].mxu0
        %v1393 = vadd.f32 %v1200, %v1392
        %v1394 = vpop.f32.mrb[0].mxu0
        %v1395 = vadd.f32 %v1202, %v1394
        %v1396 = vpop.f32.mrb[0].mxu0
        %v1397 = vadd.f32 %v1204, %v1396
        %1398 = vmatprep.mubr.bf16.mxu0 0
        %1399 = vmatmul.mubr.bf16.gmra.mrb[0].mxu0 %v438
        %v1400 = vpop.f32.mrb[0].mxu0
        %v1401 = vadd.f32 %v1208, %v1400
        %v1402 = vpop.f32.mrb[0].mxu0
        %v1403 = vadd.f32 %v1210, %v1402
        %v1404 = vpop.f32.mrb[0].mxu0
        %v1405 = vadd.f32 %v1212, %v1404
        %v1406 = vpop.f32.mrb[0].mxu0
        %v1407 = vadd.f32 %v1214, %v1406
        %1408 = vmatprep.mubr.bf16.mxu0 0
        %1409 = vmatmul.mubr.bf16.gmra.mrb[0].mxu0 %v441
        %v1410 = vpop.f32.mrb[0].mxu0
        %v1411 = vadd.f32 %v1218, %v1410
        %v1412 = vpop.f32.mrb[0].mxu0
        %v1413 = vadd.f32 %v1220, %v1412
        %v1414 = vpop.f32.mrb[0].mxu0
        %v1415 = vadd.f32 %v1222, %v1414
        %v1416 = vpop.f32.mrb[0].mxu0
        %v1417 = vadd.f32 %v1224, %v1416
        %1418 = vmatprep.mubr.bf16.mxu0 0
        %1419 = vmatmul.mubr.bf16.gmra.mrb[0].mxu0 %v444
        %v1420 = vpop.f32.mrb[0].mxu0
        %v1421 = vadd.f32 %v1228, %v1420
        %v1422 = vpop.f32.mrb[0].mxu0
        %v1423 = vadd.f32 %v1230, %v1422
        %v1424 = vpop.f32.mrb[0].mxu0
        %v1425 = vadd.f32 %v1232, %v1424
        %v1426 = vpop.f32.mrb[0].mxu0
        %v1427 = vadd.f32 %v1234, %v1426
        %1428 = vdwg.mxu0
        %1429 = vmatprep.subr.bf16.mxu0 %v854
        %1430 = vmatpush1.bf16.msra.mxu0 %v853
        %1431 = vmatprep.subr.bf16.mxu0 %v858
        %1432 = vmatpush1.bf16.msra.mxu0 %v857
        %1433 = vmatprep.subr.bf16.mxu0 %v862
        %1434 = vmatpush1.bf16.msra.mxu0 %v861
        %1435 = vmatprep.subr.bf16.mxu0 %v866
        %1436 = vmatpush1.bf16.msra.mxu0 %v865
        %1437 = vmatprep.subr.bf16.mxu0 %v870
        %1438 = vmatpush1.bf16.msra.mxu0 %v869
        %1439 = vmatprep.subr.bf16.mxu0 %v874
        %1440 = vmatpush1.bf16.msra.mxu0 %v873
        %1441 = vmatprep.subr.bf16.mxu0 %v878
        %1442 = vmatpush1.bf16.msra.mxu0 %v877
        %1443 = vmatprep.subr.bf16.mxu0 %v882
        %1444 = vmatpush1.bf16.msra.mxu0 %v881
        %1445 = vmatprep.subr.bf16.mxu0 %v886
        %1446 = vmatpush1.bf16.msra.mxu0 %v885
        %1447 = vmatprep.subr.bf16.mxu0 %v890
        %1448 = vmatpush1.bf16.msra.mxu0 %v889
        %1449 = vmatprep.subr.bf16.mxu0 %v894
        %1450 = vmatpush1.bf16.msra.mxu0 %v893
        %1451 = vmatprep.subr.bf16.mxu0 %v898
        %1452 = vmatpush1.bf16.msra.mxu0 %v897
        %1453 = vmatprep.subr.bf16.mxu0 %v902
        %1454 = vmatpush1.bf16.msra.mxu0 %v901
        %1455 = vmatprep.subr.bf16.mxu0 %v906
        %1456 = vmatpush1.bf16.msra.mxu0 %v905
        %1457 = vmatprep.subr.bf16.mxu0 %v910
        %1458 = vmatpush1.bf16.msra.mxu0 %v909
        %1459 = vmatprep.subr.bf16.mxu0 %v914
        %1460 = vmatpush1.bf16.msra.mxu0 %v913
        %1461 = vmatprep.mubr.bf16.mxu0 %v398
        %1462 = vmatmul.mubr.bf16.gmra.mrb[0].mxu0 %v397
        %v1463 = vpop.f32.mrb[0].mxu0
        %v1464 = vadd.f32 %v554, %v1463
        %v1465 = vpop.f32.mrb[0].mxu0
        %v1466 = vadd.f32 %v558, %v1465
        %v1467 = vpop.f32.mrb[0].mxu0
        %v1468 = vadd.f32 %v554, %v1467
        %v1469 = vpop.f32.mrb[0].mxu0
        %v1470 = vadd.f32 %v558, %v1469
        %1471 = vmatprep.mubr.bf16.mxu0 %v401
        %1472 = vmatmul.mubr.bf16.gmra.mrb[0].mxu0 %v400
        %v1473 = vpop.f32.mrb[0].mxu0
        %v1474 = vadd.f32 %v554, %v1473
        %v1475 = vpop.f32.mrb[0].mxu0
        %v1476 = vadd.f32 %v558, %v1475
        %v1477 = vpop.f32.mrb[0].mxu0
        %v1478 = vadd.f32 %v554, %v1477
        %v1479 = vpop.f32.mrb[0].mxu0
        %v1480 = vadd.f32 %v558, %v1479
        %1481 = vmatprep.mubr.bf16.mxu0 %v404
        %1482 = vmatmul.mubr.bf16.gmra.mrb[0].mxu0 %v403
        %v1483 = vpop.f32.mrb[0].mxu0
        %v1484 = vadd.f32 %v554, %v1483
        %v1485 = vpop.f32.mrb[0].mxu0
        %v1486 = vadd.f32 %v558, %v1485
        %v1487 = vpop.f32.mrb[0].mxu0
        %v1488 = vadd.f32 %v554, %v1487
        %v1489 = vpop.f32.mrb[0].mxu0
        %v1490 = vadd.f32 %v558, %v1489
        %1491 = vmatprep.mubr.bf16.mxu0 %v407
        %1492 = vmatmul.mubr.bf16.gmra.mrb[0].mxu0 %v406
        %v1493 = vpop.f32.mrb[0].mxu0
        %v1494 = vadd.f32 %v554, %v1493
        %v1495 = vpop.f32.mrb[0].mxu0
        %v1496 = vadd.f32 %v558, %v1495
        %v1497 = vpop.f32.mrb[0].mxu0
        %v1498 = vadd.f32 %v554, %v1497
        %v1499 = vpop.f32.mrb[0].mxu0
        %v1500 = vadd.f32 %v558, %v1499
        %1501 = vmatprep.mubr.bf16.mxu0 %v410
        %1502 = vmatmul.mubr.bf16.gmra.mrb[0].mxu0 %v409
        %v1503 = vpop.f32.mrb[0].mxu0
        %v1504 = vadd.f32 %v554, %v1503
        %v1505 = vpop.f32.mrb[0].mxu0
        %v1506 = vadd.f32 %v558, %v1505
        %v1507 = vpop.f32.mrb[0].mxu0
        %v1508 = vadd.f32 %v554, %v1507
        %v1509 = vpop.f32.mrb[0].mxu0
        %v1510 = vadd.f32 %v558, %v1509
        %1511 = vmatprep.mubr.bf16.mxu0 %v413
        %1512 = vmatmul.mubr.bf16.gmra.mrb[0].mxu0 %v412
        %v1513 = vpop.f32.mrb[0].mxu0
        %v1514 = vadd.f32 %v554, %v1513
        %v1515 = vpop.f32.mrb[0].mxu0
        %v1516 = vadd.f32 %v558, %v1515
        %v1517 = vpop.f32.mrb[0].mxu0
        %v1518 = vadd.f32 %v554, %v1517
        %v1519 = vpop.f32.mrb[0].mxu0
        %v1520 = vadd.f32 %v558, %v1519
        %1521 = vmatprep.mubr.bf16.mxu0 %v416
        %1522 = vmatmul.mubr.bf16.gmra.mrb[0].mxu0 %v415
        %v1523 = vpop.f32.mrb[0].mxu0
        %v1524 = vadd.f32 %v554, %v1523
        %v1525 = vpop.f32.mrb[0].mxu0
        %v1526 = vadd.f32 %v558, %v1525
        %v1527 = vpop.f32.mrb[0].mxu0
        %v1528 = vadd.f32 %v554, %v1527
        %v1529 = vpop.f32.mrb[0].mxu0
        %v1530 = vadd.f32 %v558, %v1529
        %1531 = vmatprep.mubr.bf16.mxu0 %v419
        %1532 = vmatmul.mubr.bf16.gmra.mrb[0].mxu0 %v418
        %v1533 = vpop.f32.mrb[0].mxu0
        %v1534 = vadd.f32 %v554, %v1533
        %v1535 = vpop.f32.mrb[0].mxu0
        %v1536 = vadd.f32 %v558, %v1535
        %v1537 = vpop.f32.mrb[0].mxu0
        %v1538 = vadd.f32 %v554, %v1537
        %v1539 = vpop.f32.mrb[0].mxu0
        %v1540 = vadd.f32 %v558, %v1539
        %1541 = vmatprep.mubr.bf16.mxu0 %v422
        %1542 = vmatmul.mubr.bf16.gmra.mrb[0].mxu0 %v421
        %v1543 = vpop.f32.mrb[0].mxu0
        %v1544 = vadd.f32 %v554, %v1543
        %v1545 = vpop.f32.mrb[0].mxu0
        %v1546 = vadd.f32 %v558, %v1545
        %v1547 = vpop.f32.mrb[0].mxu0
        %v1548 = vadd.f32 %v554, %v1547
        %v1549 = vpop.f32.mrb[0].mxu0
        %v1550 = vadd.f32 %v558, %v1549
        %1551 = vmatprep.mubr.bf16.mxu0 %v425
        %1552 = vmatmul.mubr.bf16.gmra.mrb[0].mxu0 %v424
        %v1553 = vpop.f32.mrb[0].mxu0
        %v1554 = vadd.f32 %v554, %v1553
        %v1555 = vpop.f32.mrb[0].mxu0
        %v1556 = vadd.f32 %v558, %v1555
        %v1557 = vpop.f32.mrb[0].mxu0
        %v1558 = vadd.f32 %v554, %v1557
        %v1559 = vpop.f32.mrb[0].mxu0
        %v1560 = vadd.f32 %v558, %v1559
        %1561 = vmatprep.mubr.bf16.mxu0 %v428
        %1562 = vmatmul.mubr.bf16.gmra.mrb[0].mxu0 %v427
        %v1563 = vpop.f32.mrb[0].mxu0
        %v1564 = vadd.f32 %v554, %v1563
        %v1565 = vpop.f32.mrb[0].mxu0
        %v1566 = vadd.f32 %v558, %v1565
        %v1567 = vpop.f32.mrb[0].mxu0
        %v1568 = vadd.f32 %v554, %v1567
        %v1569 = vpop.f32.mrb[0].mxu0
        %v1570 = vadd.f32 %v558, %v1569
        %1571 = vmatprep.mubr.bf16.mxu0 %v431
        %1572 = vmatmul.mubr.bf16.gmra.mrb[0].mxu0 %v430
        %v1573 = vpop.f32.mrb[0].mxu0
        %v1574 = vadd.f32 %v554, %v1573
        %v1575 = vpop.f32.mrb[0].mxu0
        %v1576 = vadd.f32 %v558, %v1575
        %v1577 = vpop.f32.mrb[0].mxu0
        %v1578 = vadd.f32 %v554, %v1577
        %v1579 = vpop.f32.mrb[0].mxu0
        %v1580 = vadd.f32 %v558, %v1579
        %1581 = vmatprep.mubr.bf16.mxu0 %v434
        %1582 = vmatmul.mubr.bf16.gmra.mrb[0].mxu0 %v433
        %v1583 = vpop.f32.mrb[0].mxu0
        %v1584 = vadd.f32 %v554, %v1583
        %v1585 = vpop.f32.mrb[0].mxu0
        %v1586 = vadd.f32 %v558, %v1585
        %v1587 = vpop.f32.mrb[0].mxu0
        %v1588 = vadd.f32 %v554, %v1587
        %v1589 = vpop.f32.mrb[0].mxu0
        %v1590 = vadd.f32 %v558, %v1589
        %1591 = vmatprep.mubr.bf16.mxu0 %v437
        %1592 = vmatmul.mubr.bf16.gmra.mrb[0].mxu0 %v436
        %v1593 = vpop.f32.mrb[0].mxu0
        %v1594 = vadd.f32 %v554, %v1593
        %v1595 = vpop.f32.mrb[0].mxu0
        %v1596 = vadd.f32 %v558, %v1595
        %v1597 = vpop.f32.mrb[0].mxu0
        %v1598 = vadd.f32 %v554, %v1597
        %v1599 = vpop.f32.mrb[0].mxu0
        %v1600 = vadd.f32 %v558, %v1599
        %1601 = vmatprep.mubr.bf16.mxu0 %v440
        %1602 = vmatmul.mubr.bf16.gmra.mrb[0].mxu0 %v439
        %v1603 = vpop.f32.mrb[0].mxu0
        %v1604 = vadd.f32 %v554, %v1603
        %v1605 = vpop.f32.mrb[0].mxu0
        %v1606 = vadd.f32 %v558, %v1605
        %v1607 = vpop.f32.mrb[0].mxu0
        %v1608 = vadd.f32 %v554, %v1607
        %v1609 = vpop.f32.mrb[0].mxu0
        %v1610 = vadd.f32 %v558, %v1609
        %1611 = vmatprep.mubr.bf16.mxu0 %v443
        %1612 = vmatmul.mubr.bf16.gmra.mrb[0].mxu0 %v442
        %v1613 = vpop.f32.mrb[0].mxu0
        %v1614 = vadd.f32 %v554, %v1613
        %v1615 = vpop.f32.mrb[0].mxu0
        %v1616 = vadd.f32 %v558, %v1615
        %v1617 = vpop.f32.mrb[0].mxu0
        %v1618 = vadd.f32 %v554, %v1617
        %v1619 = vpop.f32.mrb[0].mxu0
        %v1620 = vadd.f32 %v558, %v1619
        %1621 = vdwg.mxu0
        %1622 = vmatprep.subr.bf16.mxu0 %v918
        %1623 = vmatpush1.bf16.msra.mxu0 %v917
        %1624 = vmatprep.subr.bf16.mxu0 %v922
        %1625 = vmatpush1.bf16.msra.mxu0 %v921
        %1626 = vmatprep.subr.bf16.mxu0 %v926
        %1627 = vmatpush1.bf16.msra.mxu0 %v925
        %1628 = vmatprep.subr.bf16.mxu0 %v930
        %1629 = vmatpush1.bf16.msra.mxu0 %v929
        %1630 = vmatprep.subr.bf16.mxu0 %v934
        %1631 = vmatpush1.bf16.msra.mxu0 %v933
        %1632 = vmatprep.subr.bf16.mxu0 %v938
        %1633 = vmatpush1.bf16.msra.mxu0 %v937
        %1634 = vmatprep.subr.bf16.mxu0 %v942
        %1635 = vmatpush1.bf16.msra.mxu0 %v941
        %1636 = vmatprep.subr.bf16.mxu0 %v946
        %1637 = vmatpush1.bf16.msra.mxu0 %v945
        %1638 = vmatprep.subr.bf16.mxu0 0
        %1639 = vmatpush1.bf16.msra.mxu0 0
        %1640 = vmatprep.subr.bf16.mxu0 0
        %1641 = vmatpush1.bf16.msra.mxu0 0
        %1642 = vmatprep.subr.bf16.mxu0 0
        %1643 = vmatpush1.bf16.msra.mxu0 0
        %1644 = vmatprep.subr.bf16.mxu0 0
        %1645 = vmatpush1.bf16.msra.mxu0 0
        %1646 = vmatprep.subr.bf16.mxu0 0
        %1647 = vmatpush1.bf16.msra.mxu0 0
        %1648 = vmatprep.subr.bf16.mxu0 0
        %1649 = vmatpush1.bf16.msra.mxu0 0
        %1650 = vmatprep.subr.bf16.mxu0 0
        %1651 = vmatpush1.bf16.msra.mxu0 0
        %1652 = vmatprep.subr.bf16.mxu0 0
        %1653 = vmatpush1.bf16.msra.mxu0 0
        %1654 = vmatprep.mubr.bf16.mxu0 0
        %1655 = vmatmul.mubr.bf16.gmra.mrb[0].mxu0 %v399
        %v1656 = vpop.f32.mrb[0].mxu0
        %v1657 = vadd.f32 %v1464, %v1656
        %v1658 = vpop.f32.mrb[0].mxu0
        %v1659 = vadd.f32 %v1466, %v1658
        %v1660 = vpop.f32.mrb[0].mxu0
        %v1661 = vadd.f32 %v1468, %v1660
        %v1662 = vpop.f32.mrb[0].mxu0
        %v1663 = vadd.f32 %v1470, %v1662
        %1664 = vmatprep.mubr.bf16.mxu0 0
        %1665 = vmatmul.mubr.bf16.gmra.mrb[0].mxu0 %v402
        %v1666 = vpop.f32.mrb[0].mxu0
        %v1667 = vadd.f32 %v1474, %v1666
        %v1668 = vpop.f32.mrb[0].mxu0
        %v1669 = vadd.f32 %v1476, %v1668
        %v1670 = vpop.f32.mrb[0].mxu0
        %v1671 = vadd.f32 %v1478, %v1670
        %v1672 = vpop.f32.mrb[0].mxu0
        %v1673 = vadd.f32 %v1480, %v1672
        %1674 = vmatprep.mubr.bf16.mxu0 0
        %1675 = vmatmul.mubr.bf16.gmra.mrb[0].mxu0 %v405
        %v1676 = vpop.f32.mrb[0].mxu0
        %v1677 = vadd.f32 %v1484, %v1676
        %v1678 = vpop.f32.mrb[0].mxu0
        %v1679 = vadd.f32 %v1486, %v1678
        %v1680 = vpop.f32.mrb[0].mxu0
        %v1681 = vadd.f32 %v1488, %v1680
        %v1682 = vpop.f32.mrb[0].mxu0
        %v1683 = vadd.f32 %v1490, %v1682
        %1684 = vmatprep.mubr.bf16.mxu0 0
        %1685 = vmatmul.mubr.bf16.gmra.mrb[0].mxu0 %v408
        %v1686 = vpop.f32.mrb[0].mxu0
        %v1687 = vadd.f32 %v1494, %v1686
        %v1688 = vpop.f32.mrb[0].mxu0
        %v1689 = vadd.f32 %v1496, %v1688
        %v1690 = vpop.f32.mrb[0].mxu0
        %v1691 = vadd.f32 %v1498, %v1690
        %v1692 = vpop.f32.mrb[0].mxu0
        %v1693 = vadd.f32 %v1500, %v1692
        %1694 = vmatprep.mubr.bf16.mxu0 0
        %1695 = vmatmul.mubr.bf16.gmra.mrb[0].mxu0 %v411
        %v1696 = vpop.f32.mrb[0].mxu0
        %v1697 = vadd.f32 %v1504, %v1696
        %v1698 = vpop.f32.mrb[0].mxu0
        %v1699 = vadd.f32 %v1506, %v1698
        %v1700 = vpop.f32.mrb[0].mxu0
        %v1701 = vadd.f32 %v1508, %v1700
        %v1702 = vpop.f32.mrb[0].mxu0
        %v1703 = vadd.f32 %v1510, %v1702
        %1704 = vmatprep.mubr.bf16.mxu0 0
        %1705 = vmatmul.mubr.bf16.gmra.mrb[0].mxu0 %v414
        %v1706 = vpop.f32.mrb[0].mxu0
        %v1707 = vadd.f32 %v1514, %v1706
        %v1708 = vpop.f32.mrb[0].mxu0
        %v1709 = vadd.f32 %v1516, %v1708
        %v1710 = vpop.f32.mrb[0].mxu0
        %v1711 = vadd.f32 %v1518, %v1710
        %v1712 = vpop.f32.mrb[0].mxu0
        %v1713 = vadd.f32 %v1520, %v1712
        %1714 = vmatprep.mubr.bf16.mxu0 0
        %1715 = vmatmul.mubr.bf16.gmra.mrb[0].mxu0 %v417
        %v1716 = vpop.f32.mrb[0].mxu0
        %v1717 = vadd.f32 %v1524, %v1716
        %v1718 = vpop.f32.mrb[0].mxu0
        %v1719 = vadd.f32 %v1526, %v1718
        %v1720 = vpop.f32.mrb[0].mxu0
        %v1721 = vadd.f32 %v1528, %v1720
        %v1722 = vpop.f32.mrb[0].mxu0
        %v1723 = vadd.f32 %v1530, %v1722
        %1724 = vmatprep.mubr.bf16.mxu0 0
        %1725 = vmatmul.mubr.bf16.gmra.mrb[0].mxu0 %v420
        %v1726 = vpop.f32.mrb[0].mxu0
        %v1727 = vadd.f32 %v1534, %v1726
        %v1728 = vpop.f32.mrb[0].mxu0
        %v1729 = vadd.f32 %v1536, %v1728
        %v1730 = vpop.f32.mrb[0].mxu0
        %v1731 = vadd.f32 %v1538, %v1730
        %v1732 = vpop.f32.mrb[0].mxu0
        %v1733 = vadd.f32 %v1540, %v1732
        %1734 = vmatprep.mubr.bf16.mxu0 0
        %1735 = vmatmul.mubr.bf16.gmra.mrb[0].mxu0 %v423
        %v1736 = vpop.f32.mrb[0].mxu0
        %v1737 = vadd.f32 %v1544, %v1736
        %v1738 = vpop.f32.mrb[0].mxu0
        %v1739 = vadd.f32 %v1546, %v1738
        %v1740 = vpop.f32.mrb[0].mxu0
        %v1741 = vadd.f32 %v1548, %v1740
        %v1742 = vpop.f32.mrb[0].mxu0
        %v1743 = vadd.f32 %v1550, %v1742
        %1744 = vmatprep.mubr.bf16.mxu0 0
        %1745 = vmatmul.mubr.bf16.gmra.mrb[0].mxu0 %v426
        %v1746 = vpop.f32.mrb[0].mxu0
        %v1747 = vadd.f32 %v1554, %v1746
        %v1748 = vpop.f32.mrb[0].mxu0
        %v1749 = vadd.f32 %v1556, %v1748
        %v1750 = vpop.f32.mrb[0].mxu0
        %v1751 = vadd.f32 %v1558, %v1750
        %v1752 = vpop.f32.mrb[0].mxu0
        %v1753 = vadd.f32 %v1560, %v1752
        %1754 = vmatprep.mubr.bf16.mxu0 0
        %1755 = vmatmul.mubr.bf16.gmra.mrb[0].mxu0 %v429
        %v1756 = vpop.f32.mrb[0].mxu0
        %v1757 = vadd.f32 %v1564, %v1756
        %v1758 = vpop.f32.mrb[0].mxu0
        %v1759 = vadd.f32 %v1566, %v1758
        %v1760 = vpop.f32.mrb[0].mxu0
        %v1761 = vadd.f32 %v1568, %v1760
        %v1762 = vpop.f32.mrb[0].mxu0
        %v1763 = vadd.f32 %v1570, %v1762
        %1764 = vmatprep.mubr.bf16.mxu0 0
        %1765 = vmatmul.mubr.bf16.gmra.mrb[0].mxu0 %v432
        %v1766 = vpop.f32.mrb[0].mxu0
        %v1767 = vadd.f32 %v1574, %v1766
        %v1768 = vpop.f32.mrb[0].mxu0
        %v1769 = vadd.f32 %v1576, %v1768
        %v1770 = vpop.f32.mrb[0].mxu0
        %v1771 = vadd.f32 %v1578, %v1770
        %v1772 = vpop.f32.mrb[0].mxu0
        %v1773 = vadd.f32 %v1580, %v1772
        %1774 = vmatprep.mubr.bf16.mxu0 0
        %1775 = vmatmul.mubr.bf16.gmra.mrb[0].mxu0 %v435
        %v1776 = vpop.f32.mrb[0].mxu0
        %v1777 = vadd.f32 %v1584, %v1776
        %v1778 = vpop.f32.mrb[0].mxu0
        %v1779 = vadd.f32 %v1586, %v1778
        %v1780 = vpop.f32.mrb[0].mxu0
        %v1781 = vadd.f32 %v1588, %v1780
        %v1782 = vpop.f32.mrb[0].mxu0
        %v1783 = vadd.f32 %v1590, %v1782
        %1784 = vmatprep.mubr.bf16.mxu0 0
        %1785 = vmatmul.mubr.bf16.gmra.mrb[0].mxu0 %v438
        %v1786 = vpop.f32.mrb[0].mxu0
        %v1787 = vadd.f32 %v1594, %v1786
        %v1788 = vpop.f32.mrb[0].mxu0
        %v1789 = vadd.f32 %v1596, %v1788
        %v1790 = vpop.f32.mrb[0].mxu0
        %v1791 = vadd.f32 %v1598, %v1790
        %v1792 = vpop.f32.mrb[0].mxu0
        %v1793 = vadd.f32 %v1600, %v1792
        %1794 = vmatprep.mubr.bf16.mxu0 0
        %1795 = vmatmul.mubr.bf16.gmra.mrb[0].mxu0 %v441
        %v1796 = vpop.f32.mrb[0].mxu0
        %v1797 = vadd.f32 %v1604, %v1796
        %v1798 = vpop.f32.mrb[0].mxu0
        %v1799 = vadd.f32 %v1606, %v1798
        %v1800 = vpop.f32.mrb[0].mxu0
        %v1801 = vadd.f32 %v1608, %v1800
        %v1802 = vpop.f32.mrb[0].mxu0
        %v1803 = vadd.f32 %v1610, %v1802
        %1804 = vmatprep.mubr.bf16.mxu0 0
        %1805 = vmatmul.mubr.bf16.gmra.mrb[0].mxu0 %v444
        %v1806 = vpop.f32.mrb[0].mxu0
        %v1807 = vadd.f32 %v1614, %v1806
        %v1808 = vpop.f32.mrb[0].mxu0
        %v1809 = vadd.f32 %v1616, %v1808
        %v1810 = vpop.f32.mrb[0].mxu0
        %v1811 = vadd.f32 %v1618, %v1810
        %v1812 = vpop.f32.mrb[0].mxu0
        %v1813 = vadd.f32 %v1620, %v1812
        %1814 = vdwg.mxu0
        %v1815 = vmax.f32 %v1271, 0.0
        %v1816 = vmax.f32 %v1273, 0.0
        %v1817 = vmax.f32 %v1657, 0.0
        %v1818 = vmax.f32 %v1659, 0.0
        %v1819 = vmax.f32 %v1275, 0.0
        %v1820 = vmax.f32 %v1277, 0.0
        %v1821 = vmax.f32 %v1661, 0.0
        %v1822 = vmax.f32 %v1663, 0.0
        %v1823 = vmax.f32 %v1281, 0.0
        %v1824 = vmax.f32 %v1283, 0.0
        %v1825 = vmax.f32 %v1667, 0.0
        %v1826 = vmax.f32 %v1669, 0.0
        %v1827 = vmax.f32 %v1285, 0.0
        %v1828 = vmax.f32 %v1287, 0.0
        %v1829 = vmax.f32 %v1671, 0.0
        %v1830 = vmax.f32 %v1673, 0.0
        %v1831 = vmax.f32 %v1291, 0.0
        %v1832 = vmax.f32 %v1293, 0.0
        %v1833 = vmax.f32 %v1677, 0.0
        %v1834 = vmax.f32 %v1679, 0.0
        %v1835 = vmax.f32 %v1295, 0.0
        %v1836 = vmax.f32 %v1297, 0.0
        %v1837 = vmax.f32 %v1681, 0.0
        %v1838 = vmax.f32 %v1683, 0.0
        %v1839 = vmax.f32 %v1301, 0.0
        %v1840 = vmax.f32 %v1303, 0.0
        %v1841 = vmax.f32 %v1687, 0.0
        %v1842 = vmax.f32 %v1689, 0.0
        %v1843 = vmax.f32 %v1305, 0.0
        %v1844 = vmax.f32 %v1307, 0.0
        %v1845 = vmax.f32 %v1691, 0.0
        %v1846 = vmax.f32 %v1693, 0.0
        %v1847 = vmax.f32 %v1311, 0.0
        %v1848 = vmax.f32 %v1313, 0.0
        %v1849 = vmax.f32 %v1697, 0.0
        %v1850 = vmax.f32 %v1699, 0.0
        %v1851 = vmax.f32 %v1315, 0.0
        %v1852 = vmax.f32 %v1317, 0.0
        %v1853 = vmax.f32 %v1701, 0.0
        %v1854 = vmax.f32 %v1703, 0.0
        %v1855 = vmax.f32 %v1321, 0.0
        %v1856 = vmax.f32 %v1323, 0.0
        %v1857 = vmax.f32 %v1707, 0.0
        %v1858 = vmax.f32 %v1709, 0.0
        %v1859 = vmax.f32 %v1325, 0.0
        %v1860 = vmax.f32 %v1327, 0.0
        %v1861 = vmax.f32 %v1711, 0.0
        %v1862 = vmax.f32 %v1713, 0.0
        %v1863 = vmax.f32 %v1331, 0.0
        %v1864 = vmax.f32 %v1333, 0.0
        %v1865 = vmax.f32 %v1717, 0.0
        %v1866 = vmax.f32 %v1719, 0.0
        %v1867 = vmax.f32 %v1335, 0.0
        %v1868 = vmax.f32 %v1337, 0.0
        %v1869 = vmax.f32 %v1721, 0.0
        %v1870 = vmax.f32 %v1723, 0.0
        %v1871 = vmax.f32 %v1341, 0.0
        %v1872 = vmax.f32 %v1343, 0.0
        %v1873 = vmax.f32 %v1727, 0.0
        %v1874 = vmax.f32 %v1729, 0.0
        %v1875 = vmax.f32 %v1345, 0.0
        %v1876 = vmax.f32 %v1347, 0.0
        %v1877 = vmax.f32 %v1731, 0.0
        %v1878 = vmax.f32 %v1733, 0.0
        %v1879 = vmax.f32 %v1351, 0.0
        %v1880 = vmax.f32 %v1353, 0.0
        %v1881 = vmax.f32 %v1737, 0.0
        %v1882 = vmax.f32 %v1739, 0.0
        %v1883 = vmax.f32 %v1355, 0.0
        %v1884 = vmax.f32 %v1357, 0.0
        %v1885 = vmax.f32 %v1741, 0.0
        %v1886 = vmax.f32 %v1743, 0.0
        %v1887 = vmax.f32 %v1361, 0.0
        %v1888 = vmax.f32 %v1363, 0.0
        %v1889 = vmax.f32 %v1747, 0.0
        %v1890 = vmax.f32 %v1749, 0.0
        %v1891 = vmax.f32 %v1365, 0.0
        %v1892 = vmax.f32 %v1367, 0.0
        %v1893 = vmax.f32 %v1751, 0.0
        %v1894 = vmax.f32 %v1753, 0.0
        %v1895 = vmax.f32 %v1371, 0.0
        %v1896 = vmax.f32 %v1373, 0.0
        %v1897 = vmax.f32 %v1757, 0.0
        %v1898 = vmax.f32 %v1759, 0.0
        %v1899 = vmax.f32 %v1375, 0.0
        %v1900 = vmax.f32 %v1377, 0.0
        %v1901 = vmax.f32 %v1761, 0.0
        %v1902 = vmax.f32 %v1763, 0.0
        %v1903 = vmax.f32 %v1381, 0.0
        %v1904 = vmax.f32 %v1383, 0.0
        %v1905 = vmax.f32 %v1767, 0.0
        %v1906 = vmax.f32 %v1769, 0.0
        %v1907 = vmax.f32 %v1385, 0.0
        %v1908 = vmax.f32 %v1387, 0.0
        %v1909 = vmax.f32 %v1771, 0.0
        %v1910 = vmax.f32 %v1773, 0.0
        %v1911 = vmax.f32 %v1391, 0.0
        %v1912 = vmax.f32 %v1393, 0.0
        %v1913 = vmax.f32 %v1777, 0.0
        %v1914 = vmax.f32 %v1779, 0.0
        %v1915 = vmax.f32 %v1395, 0.0
        %v1916 = vmax.f32 %v1397, 0.0
        %v1917 = vmax.f32 %v1781, 0.0
        %v1918 = vmax.f32 %v1783, 0.0
        %v1919 = vmax.f32 %v1401, 0.0
        %v1920 = vmax.f32 %v1403, 0.0
        %v1921 = vmax.f32 %v1787, 0.0
        %v1922 = vmax.f32 %v1789, 0.0
        %v1923 = vmax.f32 %v1405, 0.0
        %v1924 = vmax.f32 %v1407, 0.0
        %v1925 = vmax.f32 %v1791, 0.0
        %v1926 = vmax.f32 %v1793, 0.0
        %v1927 = vmax.f32 %v1411, 0.0
        %v1928 = vmax.f32 %v1413, 0.0
        %v1929 = vmax.f32 %v1797, 0.0
        %v1930 = vmax.f32 %v1799, 0.0
        %v1931 = vmax.f32 %v1415, 0.0
        %v1932 = vmax.f32 %v1417, 0.0
        %v1933 = vmax.f32 %v1801, 0.0
        %v1934 = vmax.f32 %v1803, 0.0
        %v1935 = vmax.f32 %v1421, 0.0
        %v1936 = vmax.f32 %v1423, 0.0
        %v1937 = vmax.f32 %v1807, 0.0
        %v1938 = vmax.f32 %v1809, 0.0
        %v1939 = vmax.f32 %v1425, 0.0
        %v1940 = vmax.f32 %v1427, 0.0
        %v1941 = vmax.f32 %v1811, 0.0
        %v1942 = vmax.f32 %v1813, 0.0
        %v1943 = vpack.c.bf16 %v1819, %v1815
        %v1944 = vpack.c.bf16 %v1820, %v1816
        %v1945 = vpack.c.bf16 %v1821, %v1817
        %v1946 = vpack.c.bf16 %v1822, %v1818
        %v1947 = vpack.c.bf16 %v1827, %v1823
        %v1948 = vpack.c.bf16 %v1828, %v1824
        %v1949 = vpack.c.bf16 %v1829, %v1825
        %v1950 = vpack.c.bf16 %v1830, %v1826
        %v1951 = vpack.c.bf16 %v1835, %v1831
        %v1952 = vpack.c.bf16 %v1836, %v1832
        %v1953 = vpack.c.bf16 %v1837, %v1833
        %v1954 = vpack.c.bf16 %v1838, %v1834
        %v1955 = vpack.c.bf16 %v1843, %v1839
        %v1956 = vpack.c.bf16 %v1844, %v1840
        %v1957 = vpack.c.bf16 %v1845, %v1841
        %v1958 = vpack.c.bf16 %v1846, %v1842
        %v1959 = vpack.c.bf16 %v1851, %v1847
        %v1960 = vpack.c.bf16 %v1852, %v1848
        %v1961 = vpack.c.bf16 %v1853, %v1849
        %v1962 = vpack.c.bf16 %v1854, %v1850
        %v1963 = vpack.c.bf16 %v1859, %v1855
        %v1964 = vpack.c.bf16 %v1860, %v1856
        %v1965 = vpack.c.bf16 %v1861, %v1857
        %v1966 = vpack.c.bf16 %v1862, %v1858
        %v1967 = vpack.c.bf16 %v1867, %v1863
        %v1968 = vpack.c.bf16 %v1868, %v1864
        %v1969 = vpack.c.bf16 %v1869, %v1865
        %v1970 = vpack.c.bf16 %v1870, %v1866
        %v1971 = vpack.c.bf16 %v1875, %v1871
        %v1972 = vpack.c.bf16 %v1876, %v1872
        %v1973 = vpack.c.bf16 %v1877, %v1873
        %v1974 = vpack.c.bf16 %v1878, %v1874
        %v1975 = vpack.c.bf16 %v1883, %v1879
        %v1976 = vpack.c.bf16 %v1884, %v1880
        %v1977 = vpack.c.bf16 %v1885, %v1881
        %v1978 = vpack.c.bf16 %v1886, %v1882
        %v1979 = vpack.c.bf16 %v1891, %v1887
        %v1980 = vpack.c.bf16 %v1892, %v1888
        %v1981 = vpack.c.bf16 %v1893, %v1889
        %v1982 = vpack.c.bf16 %v1894, %v1890
        %v1983 = vpack.c.bf16 %v1899, %v1895
        %v1984 = vpack.c.bf16 %v1900, %v1896
        %v1985 = vpack.c.bf16 %v1901, %v1897
        %v1986 = vpack.c.bf16 %v1902, %v1898
        %v1987 = vpack.c.bf16 %v1907, %v1903
        %v1988 = vpack.c.bf16 %v1908, %v1904
        %v1989 = vpack.c.bf16 %v1909, %v1905
        %v1990 = vpack.c.bf16 %v1910, %v1906
        %v1991 = vpack.c.bf16 %v1915, %v1911
        %v1992 = vpack.c.bf16 %v1916, %v1912
        %v1993 = vpack.c.bf16 %v1917, %v1913
        %v1994 = vpack.c.bf16 %v1918, %v1914
        %v1995 = vpack.c.bf16 %v1923, %v1919
        %v1996 = vpack.c.bf16 %v1924, %v1920
        %v1997 = vpack.c.bf16 %v1925, %v1921
        %v1998 = vpack.c.bf16 %v1926, %v1922
        %v1999 = vpack.c.bf16 %v1931, %v1927
        %v2000 = vpack.c.bf16 %v1932, %v1928
        %v2001 = vpack.c.bf16 %v1933, %v1929
        %v2002 = vpack.c.bf16 %v1934, %v1930
        %v2003 = vpack.c.bf16 %v1939, %v1935
        %v2004 = vpack.c.bf16 %v1940, %v1936
        %v2005 = vpack.c.bf16 %v1941, %v1937
        %v2006 = vpack.c.bf16 %v1942, %v1938
        %v2007 = vld [vmem:[#allocation8] sm:$0xff]
        %v2008 = vld [vmem:[#allocation8 + $0x8] sm:$0xf]
        %v2009 = vld [vmem:[#allocation8 + $0xc] sm:$0xff]
        %v2010 = vld [vmem:[#allocation8 + $0x14] sm:$0xf]
        %v2011 = vld [vmem:[#allocation8 + $0x18] sm:$0xff]
        %v2012 = vld [vmem:[#allocation8 + $0x20] sm:$0xf]
        %v2013 = vld [vmem:[#allocation8 + $0x24] sm:$0xff]
        %v2014 = vld [vmem:[#allocation8 + $0x2c] sm:$0xf]
        %v2015 = vld [vmem:[#allocation8 + $0x30] sm:$0xff]
        %v2016 = vld [vmem:[#allocation8 + $0x38] sm:$0xf]
        %v2017 = vld [vmem:[#allocation8 + $0x3c] sm:$0xff]
        %v2018 = vld [vmem:[#allocation8 + $0x44] sm:$0xf]
        %v2019 = vld [vmem:[#allocation8 + $0x48] sm:$0xff]
        %v2020 = vld [vmem:[#allocation8 + $0x50] sm:$0xf]
        %v2021 = vld [vmem:[#allocation8 + $0x54] sm:$0xff]
        %v2022 = vld [vmem:[#allocation8 + $0x5c] sm:$0xf]
        %v2023 = vld [vmem:[#allocation8 + $0x60] sm:$0xff]
        %v2024 = vld [vmem:[#allocation8 + $0x68] sm:$0xf]
        %v2025 = vld [vmem:[#allocation8 + $0x6c] sm:$0xff]
        %v2026 = vld [vmem:[#allocation8 + $0x74] sm:$0xf]
        %v2027 = vld [vmem:[#allocation8 + $0x78] sm:$0xff]
        %v2028 = vld [vmem:[#allocation8 + $0x80] sm:$0xf]
        %v2029 = vld [vmem:[#allocation8 + $0x84] sm:$0xff]
        %v2030 = vld [vmem:[#allocation8 + $0x8c] sm:$0xf]
        %v2031 = vld [vmem:[#allocation8 + $0x90] sm:$0xff]
        %v2032 = vld [vmem:[#allocation8 + $0x98] sm:$0xf]
        %v2033 = vld [vmem:[#allocation8 + $0x9c] sm:$0xff]
        %v2034 = vld [vmem:[#allocation8 + $0xa4] sm:$0xf]
        %v2035 = vld [vmem:[#allocation8 + $0xa8] sm:$0xff]
        %v2036 = vld [vmem:[#allocation8 + $0xb0] sm:$0xf]
        %v2037 = vld [vmem:[#allocation8 + $0xb4] sm:$0xff]
        %v2038 = vld [vmem:[#allocation8 + $0xbc] sm:$0xf]
        %v2039 = vld [vmem:[#allocation8 + $0xc0] sm:$0xff]
        %v2040 = vld [vmem:[#allocation8 + $0xc8] sm:$0xf]
        %v2041 = vld [vmem:[#allocation8 + $0xcc] sm:$0xff]
        %v2042 = vld [vmem:[#allocation8 + $0xd4] sm:$0xf]
        %v2043 = vld [vmem:[#allocation8 + $0xd8] sm:$0xff]
        %v2044 = vld [vmem:[#allocation8 + $0xe0] sm:$0xf]
        %v2045 = vld [vmem:[#allocation8 + $0xe4] sm:$0xff]
        %v2046 = vld [vmem:[#allocation8 + $0xec] sm:$0xf]
        %v2047 = vld [vmem:[#allocation8 + $0xf0] sm:$0xff]
        %v2048 = vld [vmem:[#allocation8 + $0xf8] sm:$0xf]
        %v2049 = vld [vmem:[#allocation8 + $0xfc] sm:$0xff]
        %v2050 = vld [vmem:[#allocation8 + $0x104] sm:$0xf]
        %v2051 = vld [vmem:[#allocation8 + $0x108] sm:$0xff]
        %v2052 = vld [vmem:[#allocation8 + $0x110] sm:$0xf]
        %v2053 = vld [vmem:[#allocation8 + $0x114] sm:$0xff]
        %v2054 = vld [vmem:[#allocation8 + $0x11c] sm:$0xf]
        %v2055 = vld [vmem:[#allocation8 + $0x120] sm:$0xff]
        %v2056 = vld [vmem:[#allocation8 + $0x128] sm:$0xf]
        %v2057 = vld [vmem:[#allocation8 + $0x12c] sm:$0xff]
        %v2058 = vld [vmem:[#allocation8 + $0x134] sm:$0xf]
        %v2059 = vld [vmem:[#allocation8 + $0x138] sm:$0xff]
        %v2060 = vld [vmem:[#allocation8 + $0x140] sm:$0xf]
        %v2061 = vld [vmem:[#allocation8 + $0x144] sm:$0xff]
        %v2062 = vld [vmem:[#allocation8 + $0x14c] sm:$0xf]
        %v2063 = vld [vmem:[#allocation8 + $0x150] sm:$0xff]
        %v2064 = vld [vmem:[#allocation8 + $0x158] sm:$0xf]
        %v2065 = vld [vmem:[#allocation8 + $0x15c] sm:$0xff]
        %v2066 = vld [vmem:[#allocation8 + $0x164] sm:$0xf]
        %v2067 = vld [vmem:[#allocation8 + $0x168] sm:$0xff]
        %v2068 = vld [vmem:[#allocation8 + $0x170] sm:$0xf]
        %v2069 = vld [vmem:[#allocation8 + $0x174] sm:$0xff]
        %v2070 = vld [vmem:[#allocation8 + $0x17c] sm:$0xf]
        %v2071 = vld [vmem:[#allocation8 + $0x180] sm:$0xff]
        %v2072 = vld [vmem:[#allocation8 + $0x188] sm:$0xf]
        %v2073 = vld [vmem:[#allocation8 + $0x18c] sm:$0xff]
        %v2074 = vld [vmem:[#allocation8 + $0x194] sm:$0xf]
        %v2075 = vld [vmem:[#allocation8 + $0x198] sm:$0xff]
        %v2076 = vld [vmem:[#allocation8 + $0x1a0] sm:$0xf]
        %v2077 = vld [vmem:[#allocation8 + $0x1a4] sm:$0xff]
        %v2078 = vld [vmem:[#allocation8 + $0x1ac] sm:$0xf]
        %v2079 = vld [vmem:[#allocation8 + $0x1b0] sm:$0xff]
        %v2080 = vld [vmem:[#allocation8 + $0x1b8] sm:$0xf]
        %v2081 = vld [vmem:[#allocation8 + $0x1bc] sm:$0xff]
        %v2082 = vld [vmem:[#allocation8 + $0x1c4] sm:$0xf]
        %v2083 = vld [vmem:[#allocation8 + $0x1c8] sm:$0xff]
        %v2084 = vld [vmem:[#allocation8 + $0x1d0] sm:$0xf]
        %v2085 = vld [vmem:[#allocation8 + $0x1d4] sm:$0xff]
        %v2086 = vld [vmem:[#allocation8 + $0x1dc] sm:$0xf]
        %v2087 = vld [vmem:[#allocation8 + $0x1e0] sm:$0xff]
        %v2088 = vld [vmem:[#allocation8 + $0x1e8] sm:$0xf]
        %v2089 = vld [vmem:[#allocation8 + $0x1ec] sm:$0xff]
        %v2090 = vld [vmem:[#allocation8 + $0x1f4] sm:$0xf]
        %v2091 = vld [vmem:[#allocation8 + $0x1f8] sm:$0xff]
        %v2092 = vld [vmem:[#allocation8 + $0x200] sm:$0xf]
        %v2093 = vld [vmem:[#allocation8 + $0x204] sm:$0xff]
        %v2094 = vld [vmem:[#allocation8 + $0x20c] sm:$0xf]
        %v2095 = vld [vmem:[#allocation8 + $0x210] sm:$0xff]
        %v2096 = vld [vmem:[#allocation8 + $0x218] sm:$0xf]
        %v2097 = vld [vmem:[#allocation8 + $0x21c] sm:$0xff]
        %v2098 = vld [vmem:[#allocation8 + $0x224] sm:$0xf]
        %v2099 = vld [vmem:[#allocation8 + $0x228] sm:$0xff]
        %v2100 = vld [vmem:[#allocation8 + $0x230] sm:$0xf]
        %v2101 = vld [vmem:[#allocation8 + $0x234] sm:$0xff]
        %v2102 = vld [vmem:[#allocation8 + $0x23c] sm:$0xf]
        %v2103 = vld [vmem:[#allocation8 + $0x240] sm:$0xff]
        %v2104 = vld [vmem:[#allocation8 + $0x248] sm:$0xf]
        %v2105 = vld [vmem:[#allocation8 + $0x24c] sm:$0xff]
        %v2106 = vld [vmem:[#allocation8 + $0x254] sm:$0xf]
        %v2107 = vld [vmem:[#allocation8 + $0x258] sm:$0xff]
        %v2108 = vld [vmem:[#allocation8 + $0x260] sm:$0xf]
        %v2109 = vld [vmem:[#allocation8 + $0x264] sm:$0xff]
        %v2110 = vld [vmem:[#allocation8 + $0x26c] sm:$0xf]
        %v2111 = vld [vmem:[#allocation8 + $0x270] sm:$0xff]
        %v2112 = vld [vmem:[#allocation8 + $0x278] sm:$0xf]
        %v2113 = vld [vmem:[#allocation8 + $0x27c] sm:$0xff]
        %v2114 = vld [vmem:[#allocation8 + $0x284] sm:$0xf]
        %v2115 = vld [vmem:[#allocation8 + $0x288] sm:$0xff]
        %v2116 = vld [vmem:[#allocation8 + $0x290] sm:$0xf]
        %v2117 = vld [vmem:[#allocation8 + $0x294] sm:$0xff]
        %v2118 = vld [vmem:[#allocation8 + $0x29c] sm:$0xf]
        %v2119 = vld [vmem:[#allocation8 + $0x2a0] sm:$0xff]
        %v2120 = vld [vmem:[#allocation8 + $0x2a8] sm:$0xf]
        %v2121 = vld [vmem:[#allocation8 + $0x2ac] sm:$0xff]
        %v2122 = vld [vmem:[#allocation8 + $0x2b4] sm:$0xf]
        %v2123 = vld [vmem:[#allocation8 + $0x2b8] sm:$0xff]
        %v2124 = vld [vmem:[#allocation8 + $0x2c0] sm:$0xf]
        %v2125 = vld [vmem:[#allocation8 + $0x2c4] sm:$0xff]
        %v2126 = vld [vmem:[#allocation8 + $0x2cc] sm:$0xf]
        %v2127 = vld [vmem:[#allocation8 + $0x2d0] sm:$0xff]
        %v2128 = vld [vmem:[#allocation8 + $0x2d8] sm:$0xf]
        %v2129 = vld [vmem:[#allocation8 + $0x2dc] sm:$0xff]
        %v2130 = vld [vmem:[#allocation8 + $0x2e4] sm:$0xf]
        %v2131 = vld [vmem:[#allocation8 + $0x2e8] sm:$0xff]
        %v2132 = vld [vmem:[#allocation8 + $0x2f0] sm:$0xf]
        %v2133 = vld [vmem:[#allocation8 + $0x2f4] sm:$0xff]
        %v2134 = vld [vmem:[#allocation8 + $0x2fc] sm:$0xf]
        %v2135 = vld [vmem:[#allocation5 + $0x10] sm:$0xff]
        %v2136 = vld [vmem:[#allocation5 + $0x18] sm:$0xff]
        %v2137 = vld [vmem:[#allocation5 + $0x40] sm:$0xff]
        %v2138 = vld [vmem:[#allocation5 + $0x48] sm:$0xff]
        %v2139 = vld [vmem:[#allocation5 + $0x70] sm:$0xff]
        %v2140 = vld [vmem:[#allocation5 + $0x78] sm:$0xff]
        %v2141 = vld [vmem:[#allocation5 + $0xa0] sm:$0xff]
        %v2142 = vld [vmem:[#allocation5 + $0xa8] sm:$0xff]
        %v2143 = vld [vmem:[#allocation5 + $0xd0] sm:$0xff]
        %v2144 = vld [vmem:[#allocation5 + $0xd8] sm:$0xff]
        %v2145 = vld [vmem:[#allocation5 + $0x100] sm:$0xff]
        %v2146 = vld [vmem:[#allocation5 + $0x108] sm:$0xff]
        %v2147 = vld [vmem:[#allocation5 + $0x130] sm:$0xff]
        %v2148 = vld [vmem:[#allocation5 + $0x138] sm:$0xff]
        %v2149 = vld [vmem:[#allocation5 + $0x160] sm:$0xff]
        %v2150 = vld [vmem:[#allocation5 + $0x168] sm:$0xff]
        %v2151 = vld [vmem:[#allocation5 + $0x190] sm:$0xff]
        %v2152 = vld [vmem:[#allocation5 + $0x198] sm:$0xff]
        %v2153 = vld [vmem:[#allocation5 + $0x1c0] sm:$0xff]
        %v2154 = vld [vmem:[#allocation5 + $0x1c8] sm:$0xff]
        %v2155 = vld [vmem:[#allocation5 + $0x1f0] sm:$0xff]
        %v2156 = vld [vmem:[#allocation5 + $0x1f8] sm:$0xff]
        %v2157 = vld [vmem:[#allocation5 + $0x220] sm:$0xff]
        %v2158 = vld [vmem:[#allocation5 + $0x228] sm:$0xff]
        %v2159 = vld [vmem:[#allocation5 + $0x250] sm:$0xff]
        %v2160 = vld [vmem:[#allocation5 + $0x258] sm:$0xff]
        %v2161 = vld [vmem:[#allocation5 + $0x280] sm:$0xff]
        %v2162 = vld [vmem:[#allocation5 + $0x288] sm:$0xff]
        %v2163 = vld [vmem:[#allocation5 + $0x2b0] sm:$0xff]
        %v2164 = vld [vmem:[#allocation5 + $0x2b8] sm:$0xff]
        %v2165 = vld [vmem:[#allocation5 + $0x2e0] sm:$0xff]
        %v2166 = vld [vmem:[#allocation5 + $0x2e8] sm:$0xff]
        %v2167 = vld [vmem:[#allocation5 + $0x310] sm:$0xff]
        %v2168 = vld [vmem:[#allocation5 + $0x318] sm:$0xff]
        %v2169 = vld [vmem:[#allocation5 + $0x340] sm:$0xff]
        %v2170 = vld [vmem:[#allocation5 + $0x348] sm:$0xff]
        %v2171 = vld [vmem:[#allocation5 + $0x370] sm:$0xff]
        %v2172 = vld [vmem:[#allocation5 + $0x378] sm:$0xff]
        %v2173 = vld [vmem:[#allocation5 + $0x3a0] sm:$0xff]
        %v2174 = vld [vmem:[#allocation5 + $0x3a8] sm:$0xff]
        %v2175 = vld [vmem:[#allocation5 + $0x3d0] sm:$0xff]
        %v2176 = vld [vmem:[#allocation5 + $0x3d8] sm:$0xff]
        %v2177 = vld [vmem:[#allocation5 + $0x400] sm:$0xff]
        %v2178 = vld [vmem:[#allocation5 + $0x408] sm:$0xff]
        %v2179 = vld [vmem:[#allocation5 + $0x430] sm:$0xff]
        %v2180 = vld [vmem:[#allocation5 + $0x438] sm:$0xff]
        %v2181 = vld [vmem:[#allocation5 + $0x460] sm:$0xff]
        %v2182 = vld [vmem:[#allocation5 + $0x468] sm:$0xff]
        %v2183 = vld [vmem:[#allocation5 + $0x490] sm:$0xff]
        %v2184 = vld [vmem:[#allocation5 + $0x498] sm:$0xff]
        %v2185 = vld [vmem:[#allocation5 + $0x4c0] sm:$0xff]
        %v2186 = vld [vmem:[#allocation5 + $0x4c8] sm:$0xff]
        %v2187 = vld [vmem:[#allocation5 + $0x4f0] sm:$0xff]
        %v2188 = vld [vmem:[#allocation5 + $0x4f8] sm:$0xff]
        %v2189 = vld [vmem:[#allocation5 + $0x520] sm:$0xff]
        %v2190 = vld [vmem:[#allocation5 + $0x528] sm:$0xff]
        %v2191 = vld [vmem:[#allocation5 + $0x550] sm:$0xff]
        %v2192 = vld [vmem:[#allocation5 + $0x558] sm:$0xff]
        %v2193 = vld [vmem:[#allocation5 + $0x580] sm:$0xff]
        %v2194 = vld [vmem:[#allocation5 + $0x588] sm:$0xff]
        %v2195 = vld [vmem:[#allocation5 + $0x5b0] sm:$0xff]
        %v2196 = vld [vmem:[#allocation5 + $0x5b8] sm:$0xff]
        %v2197 = vld [vmem:[#allocation5 + $0x5e0] sm:$0xff]
        %v2198 = vld [vmem:[#allocation5 + $0x5e8] sm:$0xff]
        %v2199 = vld [vmem:[#allocation5 + $0x610] sm:$0xff]
        %v2200 = vld [vmem:[#allocation5 + $0x618] sm:$0xff]
        %v2201 = vld [vmem:[#allocation5 + $0x640] sm:$0xff]
        %v2202 = vld [vmem:[#allocation5 + $0x648] sm:$0xff]
        %v2203 = vld [vmem:[#allocation5 + $0x670] sm:$0xff]
        %v2204 = vld [vmem:[#allocation5 + $0x678] sm:$0xff]
        %v2205 = vld [vmem:[#allocation5 + $0x6a0] sm:$0xff]
        %v2206 = vld [vmem:[#allocation5 + $0x6a8] sm:$0xff]
        %v2207 = vld [vmem:[#allocation5 + $0x6d0] sm:$0xff]
        %v2208 = vld [vmem:[#allocation5 + $0x6d8] sm:$0xff]
        %v2209 = vld [vmem:[#allocation5 + $0x700] sm:$0xff]
        %v2210 = vld [vmem:[#allocation5 + $0x708] sm:$0xff]
        %v2211 = vld [vmem:[#allocation5 + $0x730] sm:$0xff]
        %v2212 = vld [vmem:[#allocation5 + $0x738] sm:$0xff]
        %v2213 = vld [vmem:[#allocation5 + $0x760] sm:$0xff]
        %v2214 = vld [vmem:[#allocation5 + $0x768] sm:$0xff]
        %v2215 = vld [vmem:[#allocation5 + $0x790] sm:$0xff]
        %v2216 = vld [vmem:[#allocation5 + $0x798] sm:$0xff]
        %v2217 = vld [vmem:[#allocation5 + $0x7c0] sm:$0xff]
        %v2218 = vld [vmem:[#allocation5 + $0x7c8] sm:$0xff]
        %v2219 = vld [vmem:[#allocation5 + $0x7f0] sm:$0xff]
        %v2220 = vld [vmem:[#allocation5 + $0x7f8] sm:$0xff]
        %v2221 = vld [vmem:[#allocation5 + $0x820] sm:$0xff]
        %v2222 = vld [vmem:[#allocation5 + $0x828] sm:$0xff]
        %v2223 = vld [vmem:[#allocation5 + $0x850] sm:$0xff]
        %v2224 = vld [vmem:[#allocation5 + $0x858] sm:$0xff]
        %v2225 = vld [vmem:[#allocation5 + $0x880] sm:$0xff]
        %v2226 = vld [vmem:[#allocation5 + $0x888] sm:$0xff]
        %v2227 = vld [vmem:[#allocation5 + $0x8b0] sm:$0xff]
        %v2228 = vld [vmem:[#allocation5 + $0x8b8] sm:$0xff]
        %v2229 = vld [vmem:[#allocation5 + $0x8e0] sm:$0xff]
        %v2230 = vld [vmem:[#allocation5 + $0x8e8] sm:$0xff]
        %v2231 = vld [vmem:[#allocation7 + $0x4] sm:$0xf]
        %v2233 = vlaneseq
        %v2234 = vshrl.u32 %v2233, 7
        %v2235 = vsub.s32 0, %v2234
        %v2236 = vrot.slane %v2231, %v2235
        %v2237 = vlaneseq
        %v2238 = vshrl.u32 %v2237, 7
        %v2239 = vsub.s32 1, %v2238
        %v2240 = vrot.slane %v2231, %v2239
        %v2241 = vlaneseq
        %v2242 = vshrl.u32 %v2241, 7
        %v2243 = vsub.s32 2, %v2242
        %v2244 = vrot.slane %v2231, %v2243
        %v2245 = vlaneseq
        %v2246 = vshrl.u32 %v2245, 7
        %v2247 = vsub.s32 3, %v2246
        %v2248 = vrot.slane %v2231, %v2247
        %v2349 = vunpack.c.l.b16 %v2135
        %v2350 = vunpack.c.h.b16 %v2135
        %v2351 = vunpack.c.l.b16 %v2136
        %v2352 = vunpack.c.h.b16 %v2136
        %v2353 = vunpack.c.l.b16 %v2137
        %v2354 = vunpack.c.h.b16 %v2137
        %v2355 = vunpack.c.l.b16 %v2138
        %v2356 = vunpack.c.h.b16 %v2138
        %v2357 = vunpack.c.l.b16 %v2139
        %v2358 = vunpack.c.h.b16 %v2139
        %v2359 = vunpack.c.l.b16 %v2140
        %v2360 = vunpack.c.h.b16 %v2140
        %v2361 = vunpack.c.l.b16 %v2141
        %v2362 = vunpack.c.h.b16 %v2141
        %v2363 = vunpack.c.l.b16 %v2142
        %v2364 = vunpack.c.h.b16 %v2142
        %v2365 = vunpack.c.l.b16 %v2143
        %v2366 = vunpack.c.h.b16 %v2143
        %v2367 = vunpack.c.l.b16 %v2144
        %v2368 = vunpack.c.h.b16 %v2144
        %v2369 = vunpack.c.l.b16 %v2145
        %v2370 = vunpack.c.h.b16 %v2145
        %v2371 = vunpack.c.l.b16 %v2146
        %v2372 = vunpack.c.h.b16 %v2146
        %v2373 = vunpack.c.l.b16 %v2147
        %v2374 = vunpack.c.h.b16 %v2147
        %v2375 = vunpack.c.l.b16 %v2148
        %v2376 = vunpack.c.h.b16 %v2148
        %v2377 = vunpack.c.l.b16 %v2149
        %v2378 = vunpack.c.h.b16 %v2149
        %v2379 = vunpack.c.l.b16 %v2150
        %v2380 = vunpack.c.h.b16 %v2150
        %v2381 = vunpack.c.l.b16 %v2151
        %v2382 = vunpack.c.h.b16 %v2151
        %v2383 = vunpack.c.l.b16 %v2152
        %v2384 = vunpack.c.h.b16 %v2152
        %v2385 = vunpack.c.l.b16 %v2153
        %v2386 = vunpack.c.h.b16 %v2153
        %v2387 = vunpack.c.l.b16 %v2154
        %v2388 = vunpack.c.h.b16 %v2154
        %v2389 = vunpack.c.l.b16 %v2155
        %v2390 = vunpack.c.h.b16 %v2155
        %v2391 = vunpack.c.l.b16 %v2156
        %v2392 = vunpack.c.h.b16 %v2156
        %v2393 = vunpack.c.l.b16 %v2157
        %v2394 = vunpack.c.h.b16 %v2157
        %v2395 = vunpack.c.l.b16 %v2158
        %v2396 = vunpack.c.h.b16 %v2158
        %v2397 = vunpack.c.l.b16 %v2159
        %v2398 = vunpack.c.h.b16 %v2159
        %v2399 = vunpack.c.l.b16 %v2160
        %v2400 = vunpack.c.h.b16 %v2160
        %v2401 = vunpack.c.l.b16 %v2161
        %v2402 = vunpack.c.h.b16 %v2161
        %v2403 = vunpack.c.l.b16 %v2162
        %v2404 = vunpack.c.h.b16 %v2162
        %v2405 = vunpack.c.l.b16 %v2163
        %v2406 = vunpack.c.h.b16 %v2163
        %v2407 = vunpack.c.l.b16 %v2164
        %v2408 = vunpack.c.h.b16 %v2164
        %v2409 = vunpack.c.l.b16 %v2165
        %v2410 = vunpack.c.h.b16 %v2165
        %v2411 = vunpack.c.l.b16 %v2166
        %v2412 = vunpack.c.h.b16 %v2166
        %v2413 = vunpack.c.l.b16 %v2167
        %v2414 = vunpack.c.h.b16 %v2167
        %v2415 = vunpack.c.l.b16 %v2168
        %v2416 = vunpack.c.h.b16 %v2168
        %v2417 = vunpack.c.l.b16 %v2169
        %v2418 = vunpack.c.h.b16 %v2169
        %v2419 = vunpack.c.l.b16 %v2170
        %v2420 = vunpack.c.h.b16 %v2170
        %v2421 = vunpack.c.l.b16 %v2171
        %v2422 = vunpack.c.h.b16 %v2171
        %v2423 = vunpack.c.l.b16 %v2172
        %v2424 = vunpack.c.h.b16 %v2172
        %v2425 = vunpack.c.l.b16 %v2173
        %v2426 = vunpack.c.h.b16 %v2173
        %v2427 = vunpack.c.l.b16 %v2174
        %v2428 = vunpack.c.h.b16 %v2174
        %v2429 = vunpack.c.l.b16 %v2175
        %v2430 = vunpack.c.h.b16 %v2175
        %v2431 = vunpack.c.l.b16 %v2176
        %v2432 = vunpack.c.h.b16 %v2176
        %v2433 = vunpack.c.l.b16 %v2177
        %v2434 = vunpack.c.h.b16 %v2177
        %v2435 = vunpack.c.l.b16 %v2178
        %v2436 = vunpack.c.h.b16 %v2178
        %v2437 = vunpack.c.l.b16 %v2179
        %v2438 = vunpack.c.h.b16 %v2179
        %v2439 = vunpack.c.l.b16 %v2180
        %v2440 = vunpack.c.h.b16 %v2180
        %v2441 = vunpack.c.l.b16 %v2181
        %v2442 = vunpack.c.h.b16 %v2181
        %v2443 = vunpack.c.l.b16 %v2182
        %v2444 = vunpack.c.h.b16 %v2182
        %v2445 = vunpack.c.l.b16 %v2183
        %v2446 = vunpack.c.h.b16 %v2183
        %v2447 = vunpack.c.l.b16 %v2184
        %v2448 = vunpack.c.h.b16 %v2184
        %v2449 = vunpack.c.l.b16 %v2185
        %v2450 = vunpack.c.h.b16 %v2185
        %v2451 = vunpack.c.l.b16 %v2186
        %v2452 = vunpack.c.h.b16 %v2186
        %v2453 = vunpack.c.l.b16 %v2187
        %v2454 = vunpack.c.h.b16 %v2187
        %v2455 = vunpack.c.l.b16 %v2188
        %v2456 = vunpack.c.h.b16 %v2188
        %v2457 = vunpack.c.l.b16 %v2189
        %v2458 = vunpack.c.h.b16 %v2189
        %v2459 = vunpack.c.l.b16 %v2190
        %v2460 = vunpack.c.h.b16 %v2190
        %v2461 = vunpack.c.l.b16 %v2191
        %v2462 = vunpack.c.h.b16 %v2191
        %v2463 = vunpack.c.l.b16 %v2192
        %v2464 = vunpack.c.h.b16 %v2192
        %v2465 = vunpack.c.l.b16 %v2193
        %v2466 = vunpack.c.h.b16 %v2193
        %v2467 = vunpack.c.l.b16 %v2194
        %v2468 = vunpack.c.h.b16 %v2194
        %v2469 = vunpack.c.l.b16 %v2195
        %v2470 = vunpack.c.h.b16 %v2195
        %v2471 = vunpack.c.l.b16 %v2196
        %v2472 = vunpack.c.h.b16 %v2196
        %v2473 = vunpack.c.l.b16 %v2197
        %v2474 = vunpack.c.h.b16 %v2197
        %v2475 = vunpack.c.l.b16 %v2198
        %v2476 = vunpack.c.h.b16 %v2198
        %v2477 = vunpack.c.l.b16 %v2199
        %v2478 = vunpack.c.h.b16 %v2199
        %v2479 = vunpack.c.l.b16 %v2200
        %v2480 = vunpack.c.h.b16 %v2200
        %v2481 = vunpack.c.l.b16 %v2201
        %v2482 = vunpack.c.h.b16 %v2201
        %v2483 = vunpack.c.l.b16 %v2202
        %v2484 = vunpack.c.h.b16 %v2202
        %v2485 = vunpack.c.l.b16 %v2203
        %v2486 = vunpack.c.h.b16 %v2203
        %v2487 = vunpack.c.l.b16 %v2204
        %v2488 = vunpack.c.h.b16 %v2204
        %v2489 = vunpack.c.l.b16 %v2205
        %v2490 = vunpack.c.h.b16 %v2205
        %v2491 = vunpack.c.l.b16 %v2206
        %v2492 = vunpack.c.h.b16 %v2206
        %v2493 = vunpack.c.l.b16 %v2207
        %v2494 = vunpack.c.h.b16 %v2207
        %v2495 = vunpack.c.l.b16 %v2208
        %v2496 = vunpack.c.h.b16 %v2208
        %v2497 = vunpack.c.l.b16 %v2209
        %v2498 = vunpack.c.h.b16 %v2209
        %v2499 = vunpack.c.l.b16 %v2210
        %v2500 = vunpack.c.h.b16 %v2210
        %v2501 = vunpack.c.l.b16 %v2211
        %v2502 = vunpack.c.h.b16 %v2211
        %v2503 = vunpack.c.l.b16 %v2212
        %v2504 = vunpack.c.h.b16 %v2212
        %v2505 = vunpack.c.l.b16 %v2213
        %v2506 = vunpack.c.h.b16 %v2213
        %v2507 = vunpack.c.l.b16 %v2214
        %v2508 = vunpack.c.h.b16 %v2214
        %v2509 = vunpack.c.l.b16 %v2215
        %v2510 = vunpack.c.h.b16 %v2215
        %v2511 = vunpack.c.l.b16 %v2216
        %v2512 = vunpack.c.h.b16 %v2216
        %v2513 = vunpack.c.l.b16 %v2217
        %v2514 = vunpack.c.h.b16 %v2217
        %v2515 = vunpack.c.l.b16 %v2218
        %v2516 = vunpack.c.h.b16 %v2218
        %v2517 = vunpack.c.l.b16 %v2219
        %v2518 = vunpack.c.h.b16 %v2219
        %v2519 = vunpack.c.l.b16 %v2220
        %v2520 = vunpack.c.h.b16 %v2220
        %v2521 = vunpack.c.l.b16 %v2221
        %v2522 = vunpack.c.h.b16 %v2221
        %v2523 = vunpack.c.l.b16 %v2222
        %v2524 = vunpack.c.h.b16 %v2222
        %v2525 = vunpack.c.l.b16 %v2223
        %v2526 = vunpack.c.h.b16 %v2223
        %v2527 = vunpack.c.l.b16 %v2224
        %v2528 = vunpack.c.h.b16 %v2224
        %v2529 = vunpack.c.l.b16 %v2225
        %v2530 = vunpack.c.h.b16 %v2225
        %v2531 = vunpack.c.l.b16 %v2226
        %v2532 = vunpack.c.h.b16 %v2226
        %v2533 = vunpack.c.l.b16 %v2227
        %v2534 = vunpack.c.h.b16 %v2227
        %v2535 = vunpack.c.l.b16 %v2228
        %v2536 = vunpack.c.h.b16 %v2228
        %v2537 = vunpack.c.l.b16 %v2229
        %v2538 = vunpack.c.h.b16 %v2229
        %v2539 = vunpack.c.l.b16 %v2230
        %v2540 = vunpack.c.h.b16 %v2230
        %v2541 = vpack.c.b16 %v2353, %v2349
        %v2542 = vpack.c.b16 %v2354, %v2350
        %v2543 = vpack.c.b16 %v2355, %v2351
        %v2544 = vpack.c.b16 %v2356, %v2352
        %v2545 = vpack.c.b16 %v2361, %v2357
        %v2546 = vpack.c.b16 %v2362, %v2358
        %v2547 = vpack.c.b16 %v2363, %v2359
        %v2548 = vpack.c.b16 %v2364, %v2360
        %v2549 = vpack.c.b16 %v2369, %v2365
        %v2550 = vpack.c.b16 %v2370, %v2366
        %v2551 = vpack.c.b16 %v2371, %v2367
        %v2552 = vpack.c.b16 %v2372, %v2368
        %v2553 = vpack.c.b16 %v2377, %v2373
        %v2554 = vpack.c.b16 %v2378, %v2374
        %v2555 = vpack.c.b16 %v2379, %v2375
        %v2556 = vpack.c.b16 %v2380, %v2376
        %v2557 = vpack.c.b16 %v2385, %v2381
        %v2558 = vpack.c.b16 %v2386, %v2382
        %v2559 = vpack.c.b16 %v2387, %v2383
        %v2560 = vpack.c.b16 %v2388, %v2384
        %v2561 = vpack.c.b16 %v2393, %v2389
        %v2562 = vpack.c.b16 %v2394, %v2390
        %v2563 = vpack.c.b16 %v2395, %v2391
        %v2564 = vpack.c.b16 %v2396, %v2392
        %v2565 = vpack.c.b16 %v2401, %v2397
        %v2566 = vpack.c.b16 %v2402, %v2398
        %v2567 = vpack.c.b16 %v2403, %v2399
        %v2568 = vpack.c.b16 %v2404, %v2400
        %v2569 = vpack.c.b16 %v2409, %v2405
        %v2570 = vpack.c.b16 %v2410, %v2406
        %v2571 = vpack.c.b16 %v2411, %v2407
        %v2572 = vpack.c.b16 %v2412, %v2408
        %v2573 = vpack.c.b16 %v2417, %v2413
        %v2574 = vpack.c.b16 %v2418, %v2414
        %v2575 = vpack.c.b16 %v2419, %v2415
        %v2576 = vpack.c.b16 %v2420, %v2416
        %v2577 = vpack.c.b16 %v2425, %v2421
        %v2578 = vpack.c.b16 %v2426, %v2422
        %v2579 = vpack.c.b16 %v2427, %v2423
        %v2580 = vpack.c.b16 %v2428, %v2424
        %v2581 = vpack.c.b16 %v2433, %v2429
        %v2582 = vpack.c.b16 %v2434, %v2430
        %v2583 = vpack.c.b16 %v2435, %v2431
        %v2584 = vpack.c.b16 %v2436, %v2432
        %v2585 = vpack.c.b16 %v2441, %v2437
        %v2586 = vpack.c.b16 %v2442, %v2438
        %v2587 = vpack.c.b16 %v2443, %v2439
        %v2588 = vpack.c.b16 %v2444, %v2440
        %v2589 = vpack.c.b16 %v2449, %v2445
        %v2590 = vpack.c.b16 %v2450, %v2446
        %v2591 = vpack.c.b16 %v2451, %v2447
        %v2592 = vpack.c.b16 %v2452, %v2448
        %v2593 = vpack.c.b16 %v2457, %v2453
        %v2594 = vpack.c.b16 %v2458, %v2454
        %v2595 = vpack.c.b16 %v2459, %v2455
        %v2596 = vpack.c.b16 %v2460, %v2456
        %v2597 = vpack.c.b16 %v2465, %v2461
        %v2598 = vpack.c.b16 %v2466, %v2462
        %v2599 = vpack.c.b16 %v2467, %v2463
        %v2600 = vpack.c.b16 %v2468, %v2464
        %v2601 = vpack.c.b16 %v2473, %v2469
        %v2602 = vpack.c.b16 %v2474, %v2470
        %v2603 = vpack.c.b16 %v2475, %v2471
        %v2604 = vpack.c.b16 %v2476, %v2472
        %v2605 = vpack.c.b16 %v2481, %v2477
        %v2606 = vpack.c.b16 %v2482, %v2478
        %v2607 = vpack.c.b16 %v2483, %v2479
        %v2608 = vpack.c.b16 %v2484, %v2480
        %v2609 = vpack.c.b16 %v2489, %v2485
        %v2610 = vpack.c.b16 %v2490, %v2486
        %v2611 = vpack.c.b16 %v2491, %v2487
        %v2612 = vpack.c.b16 %v2492, %v2488
        %v2613 = vpack.c.b16 %v2497, %v2493
        %v2614 = vpack.c.b16 %v2498, %v2494
        %v2615 = vpack.c.b16 %v2499, %v2495
        %v2616 = vpack.c.b16 %v2500, %v2496
        %v2617 = vpack.c.b16 %v2505, %v2501
        %v2618 = vpack.c.b16 %v2506, %v2502
        %v2619 = vpack.c.b16 %v2507, %v2503
        %v2620 = vpack.c.b16 %v2508, %v2504
        %v2621 = vpack.c.b16 %v2513, %v2509
        %v2622 = vpack.c.b16 %v2514, %v2510
        %v2623 = vpack.c.b16 %v2515, %v2511
        %v2624 = vpack.c.b16 %v2516, %v2512
        %v2625 = vpack.c.b16 %v2521, %v2517
        %v2626 = vpack.c.b16 %v2522, %v2518
        %v2627 = vpack.c.b16 %v2523, %v2519
        %v2628 = vpack.c.b16 %v2524, %v2520
        %v2629 = vpack.c.b16 %v2529, %v2525
        %v2630 = vpack.c.b16 %v2530, %v2526
        %v2631 = vpack.c.b16 %v2531, %v2527
        %v2632 = vpack.c.b16 %v2532, %v2528
        %v2633 = vpack.c.b16 %v2537, %v2533
        %v2634 = vpack.c.b16 %v2538, %v2534
        %v2635 = vpack.c.b16 %v2539, %v2535
        %v2636 = vpack.c.b16 %v2540, %v2536
        %2733 = vmatprep.subr.bf16.mxu0 %v2542
        %2734 = vmatpush1.bf16.msra.mxu0 %v2541
        %2735 = vmatprep.subr.bf16.mxu0 %v2546
        %2736 = vmatpush1.bf16.msra.mxu0 %v2545
        %2737 = vmatprep.subr.bf16.mxu0 %v2550
        %2738 = vmatpush1.bf16.msra.mxu0 %v2549
        %2739 = vmatprep.subr.bf16.mxu0 %v2554
        %2740 = vmatpush1.bf16.msra.mxu0 %v2553
        %2741 = vmatprep.subr.bf16.mxu0 %v2558
        %2742 = vmatpush1.bf16.msra.mxu0 %v2557
        %2743 = vmatprep.subr.bf16.mxu0 %v2562
        %2744 = vmatpush1.bf16.msra.mxu0 %v2561
        %2745 = vmatprep.subr.bf16.mxu0 %v2566
        %2746 = vmatpush1.bf16.msra.mxu0 %v2565
        %2747 = vmatprep.subr.bf16.mxu0 %v2570
        %2748 = vmatpush1.bf16.msra.mxu0 %v2569
        %2749 = vmatprep.subr.bf16.mxu0 %v2574
        %2750 = vmatpush1.bf16.msra.mxu0 %v2573
        %2751 = vmatprep.subr.bf16.mxu0 %v2578
        %2752 = vmatpush1.bf16.msra.mxu0 %v2577
        %2753 = vmatprep.subr.bf16.mxu0 %v2582
        %2754 = vmatpush1.bf16.msra.mxu0 %v2581
        %2755 = vmatprep.subr.bf16.mxu0 %v2586
        %2756 = vmatpush1.bf16.msra.mxu0 %v2585
        %2757 = vmatprep.subr.bf16.mxu0 %v2590
        %2758 = vmatpush1.bf16.msra.mxu0 %v2589
        %2759 = vmatprep.subr.bf16.mxu0 %v2594
        %2760 = vmatpush1.bf16.msra.mxu0 %v2593
        %2761 = vmatprep.subr.bf16.mxu0 %v2598
        %2762 = vmatpush1.bf16.msra.mxu0 %v2597
        %2763 = vmatprep.subr.bf16.mxu0 %v2602
        %2764 = vmatpush1.bf16.msra.mxu0 %v2601
        %2765 = vmatprep.mubr.bf16.mxu0 %v398
        %2766 = vmatmul.mubr.bf16.gmra.mrb[0].mxu0 %v397
        %v2767 = vpop.f32.mrb[0].mxu0
        %v2768 = vadd.f32 %v2236, %v2767
        %v2769 = vpop.f32.mrb[0].mxu0
        %v2770 = vadd.f32 %v2240, %v2769
        %v2771 = vpop.f32.mrb[0].mxu0
        %v2772 = vadd.f32 %v2236, %v2771
        %v2773 = vpop.f32.mrb[0].mxu0
        %v2774 = vadd.f32 %v2240, %v2773
        %2775 = vmatprep.mubr.bf16.mxu0 %v401
        %2776 = vmatmul.mubr.bf16.gmra.mrb[0].mxu0 %v400
        %v2777 = vpop.f32.mrb[0].mxu0
        %v2778 = vadd.f32 %v2236, %v2777
        %v2779 = vpop.f32.mrb[0].mxu0
        %v2780 = vadd.f32 %v2240, %v2779
        %v2781 = vpop.f32.mrb[0].mxu0
        %v2782 = vadd.f32 %v2236, %v2781
        %v2783 = vpop.f32.mrb[0].mxu0
        %v2784 = vadd.f32 %v2240, %v2783
        %2785 = vmatprep.mubr.bf16.mxu0 %v404
        %2786 = vmatmul.mubr.bf16.gmra.mrb[0].mxu0 %v403
        %v2787 = vpop.f32.mrb[0].mxu0
        %v2788 = vadd.f32 %v2236, %v2787
        %v2789 = vpop.f32.mrb[0].mxu0
        %v2790 = vadd.f32 %v2240, %v2789
        %v2791 = vpop.f32.mrb[0].mxu0
        %v2792 = vadd.f32 %v2236, %v2791
        %v2793 = vpop.f32.mrb[0].mxu0
        %v2794 = vadd.f32 %v2240, %v2793
        %2795 = vmatprep.mubr.bf16.mxu0 %v407
        %2796 = vmatmul.mubr.bf16.gmra.mrb[0].mxu0 %v406
        %v2797 = vpop.f32.mrb[0].mxu0
        %v2798 = vadd.f32 %v2236, %v2797
        %v2799 = vpop.f32.mrb[0].mxu0
        %v2800 = vadd.f32 %v2240, %v2799
        %v2801 = vpop.f32.mrb[0].mxu0
        %v2802 = vadd.f32 %v2236, %v2801
        %v2803 = vpop.f32.mrb[0].mxu0
        %v2804 = vadd.f32 %v2240, %v2803
        %2805 = vmatprep.mubr.bf16.mxu0 %v410
        %2806 = vmatmul.mubr.bf16.gmra.mrb[0].mxu0 %v409
        %v2807 = vpop.f32.mrb[0].mxu0
        %v2808 = vadd.f32 %v2236, %v2807
        %v2809 = vpop.f32.mrb[0].mxu0
        %v2810 = vadd.f32 %v2240, %v2809
        %v2811 = vpop.f32.mrb[0].mxu0
        %v2812 = vadd.f32 %v2236, %v2811
        %v2813 = vpop.f32.mrb[0].mxu0
        %v2814 = vadd.f32 %v2240, %v2813
        %2815 = vmatprep.mubr.bf16.mxu0 %v413
        %2816 = vmatmul.mubr.bf16.gmra.mrb[0].mxu0 %v412
        %v2817 = vpop.f32.mrb[0].mxu0
        %v2818 = vadd.f32 %v2236, %v2817
        %v2819 = vpop.f32.mrb[0].mxu0
        %v2820 = vadd.f32 %v2240, %v2819
        %v2821 = vpop.f32.mrb[0].mxu0
        %v2822 = vadd.f32 %v2236, %v2821
        %v2823 = vpop.f32.mrb[0].mxu0
        %v2824 = vadd.f32 %v2240, %v2823
        %2825 = vmatprep.mubr.bf16.mxu0 %v416
        %2826 = vmatmul.mubr.bf16.gmra.mrb[0].mxu0 %v415
        %v2827 = vpop.f32.mrb[0].mxu0
        %v2828 = vadd.f32 %v2236, %v2827
        %v2829 = vpop.f32.mrb[0].mxu0
        %v2830 = vadd.f32 %v2240, %v2829
        %v2831 = vpop.f32.mrb[0].mxu0
        %v2832 = vadd.f32 %v2236, %v2831
        %v2833 = vpop.f32.mrb[0].mxu0
        %v2834 = vadd.f32 %v2240, %v2833
        %2835 = vmatprep.mubr.bf16.mxu0 %v419
        %2836 = vmatmul.mubr.bf16.gmra.mrb[0].mxu0 %v418
        %v2837 = vpop.f32.mrb[0].mxu0
        %v2838 = vadd.f32 %v2236, %v2837
        %v2839 = vpop.f32.mrb[0].mxu0
        %v2840 = vadd.f32 %v2240, %v2839
        %v2841 = vpop.f32.mrb[0].mxu0
        %v2842 = vadd.f32 %v2236, %v2841
        %v2843 = vpop.f32.mrb[0].mxu0
        %v2844 = vadd.f32 %v2240, %v2843
        %2845 = vmatprep.mubr.bf16.mxu0 %v422
        %2846 = vmatmul.mubr.bf16.gmra.mrb[0].mxu0 %v421
        %v2847 = vpop.f32.mrb[0].mxu0
        %v2848 = vadd.f32 %v2236, %v2847
        %v2849 = vpop.f32.mrb[0].mxu0
        %v2850 = vadd.f32 %v2240, %v2849
        %v2851 = vpop.f32.mrb[0].mxu0
        %v2852 = vadd.f32 %v2236, %v2851
        %v2853 = vpop.f32.mrb[0].mxu0
        %v2854 = vadd.f32 %v2240, %v2853
        %2855 = vmatprep.mubr.bf16.mxu0 %v425
        %2856 = vmatmul.mubr.bf16.gmra.mrb[0].mxu0 %v424
        %v2857 = vpop.f32.mrb[0].mxu0
        %v2858 = vadd.f32 %v2236, %v2857
        %v2859 = vpop.f32.mrb[0].mxu0
        %v2860 = vadd.f32 %v2240, %v2859
        %v2861 = vpop.f32.mrb[0].mxu0
        %v2862 = vadd.f32 %v2236, %v2861
        %v2863 = vpop.f32.mrb[0].mxu0
        %v2864 = vadd.f32 %v2240, %v2863
        %2865 = vmatprep.mubr.bf16.mxu0 %v428
        %2866 = vmatmul.mubr.bf16.gmra.mrb[0].mxu0 %v427
        %v2867 = vpop.f32.mrb[0].mxu0
        %v2868 = vadd.f32 %v2236, %v2867
        %v2869 = vpop.f32.mrb[0].mxu0
        %v2870 = vadd.f32 %v2240, %v2869
        %v2871 = vpop.f32.mrb[0].mxu0
        %v2872 = vadd.f32 %v2236, %v2871
        %v2873 = vpop.f32.mrb[0].mxu0
        %v2874 = vadd.f32 %v2240, %v2873
        %2875 = vmatprep.mubr.bf16.mxu0 %v431
        %2876 = vmatmul.mubr.bf16.gmra.mrb[0].mxu0 %v430
        %v2877 = vpop.f32.mrb[0].mxu0
        %v2878 = vadd.f32 %v2236, %v2877
        %v2879 = vpop.f32.mrb[0].mxu0
        %v2880 = vadd.f32 %v2240, %v2879
        %v2881 = vpop.f32.mrb[0].mxu0
        %v2882 = vadd.f32 %v2236, %v2881
        %v2883 = vpop.f32.mrb[0].mxu0
        %v2884 = vadd.f32 %v2240, %v2883
        %2885 = vmatprep.mubr.bf16.mxu0 %v434
        %2886 = vmatmul.mubr.bf16.gmra.mrb[0].mxu0 %v433
        %v2887 = vpop.f32.mrb[0].mxu0
        %v2888 = vadd.f32 %v2236, %v2887
        %v2889 = vpop.f32.mrb[0].mxu0
        %v2890 = vadd.f32 %v2240, %v2889
        %v2891 = vpop.f32.mrb[0].mxu0
        %v2892 = vadd.f32 %v2236, %v2891
        %v2893 = vpop.f32.mrb[0].mxu0
        %v2894 = vadd.f32 %v2240, %v2893
        %2895 = vmatprep.mubr.bf16.mxu0 %v437
        %2896 = vmatmul.mubr.bf16.gmra.mrb[0].mxu0 %v436
        %v2897 = vpop.f32.mrb[0].mxu0
        %v2898 = vadd.f32 %v2236, %v2897
        %v2899 = vpop.f32.mrb[0].mxu0
        %v2900 = vadd.f32 %v2240, %v2899
        %v2901 = vpop.f32.mrb[0].mxu0
        %v2902 = vadd.f32 %v2236, %v2901
        %v2903 = vpop.f32.mrb[0].mxu0
        %v2904 = vadd.f32 %v2240, %v2903
        %2905 = vmatprep.mubr.bf16.mxu0 %v440
        %2906 = vmatmul.mubr.bf16.gmra.mrb[0].mxu0 %v439
        %v2907 = vpop.f32.mrb[0].mxu0
        %v2908 = vadd.f32 %v2236, %v2907
        %v2909 = vpop.f32.mrb[0].mxu0
        %v2910 = vadd.f32 %v2240, %v2909
        %v2911 = vpop.f32.mrb[0].mxu0
        %v2912 = vadd.f32 %v2236, %v2911
        %v2913 = vpop.f32.mrb[0].mxu0
        %v2914 = vadd.f32 %v2240, %v2913
        %2915 = vmatprep.mubr.bf16.mxu0 %v443
        %2916 = vmatmul.mubr.bf16.gmra.mrb[0].mxu0 %v442
        %v2917 = vpop.f32.mrb[0].mxu0
        %v2918 = vadd.f32 %v2236, %v2917
        %v2919 = vpop.f32.mrb[0].mxu0
        %v2920 = vadd.f32 %v2240, %v2919
        %v2921 = vpop.f32.mrb[0].mxu0
        %v2922 = vadd.f32 %v2236, %v2921
        %v2923 = vpop.f32.mrb[0].mxu0
        %v2924 = vadd.f32 %v2240, %v2923
        %2925 = vdwg.mxu0
        %2926 = vmatprep.subr.bf16.mxu0 %v2606
        %2927 = vmatpush1.bf16.msra.mxu0 %v2605
        %2928 = vmatprep.subr.bf16.mxu0 %v2610
        %2929 = vmatpush1.bf16.msra.mxu0 %v2609
        %2930 = vmatprep.subr.bf16.mxu0 %v2614
        %2931 = vmatpush1.bf16.msra.mxu0 %v2613
        %2932 = vmatprep.subr.bf16.mxu0 %v2618
        %2933 = vmatpush1.bf16.msra.mxu0 %v2617
        %2934 = vmatprep.subr.bf16.mxu0 %v2622
        %2935 = vmatpush1.bf16.msra.mxu0 %v2621
        %2936 = vmatprep.subr.bf16.mxu0 %v2626
        %2937 = vmatpush1.bf16.msra.mxu0 %v2625
        %2938 = vmatprep.subr.bf16.mxu0 %v2630
        %2939 = vmatpush1.bf16.msra.mxu0 %v2629
        %2940 = vmatprep.subr.bf16.mxu0 %v2634
        %2941 = vmatpush1.bf16.msra.mxu0 %v2633
        %2942 = vmatprep.subr.bf16.mxu0 0
        %2943 = vmatpush1.bf16.msra.mxu0 0
        %2944 = vmatprep.subr.bf16.mxu0 0
        %2945 = vmatpush1.bf16.msra.mxu0 0
        %2946 = vmatprep.subr.bf16.mxu0 0
        %2947 = vmatpush1.bf16.msra.mxu0 0
        %2948 = vmatprep.subr.bf16.mxu0 0
        %2949 = vmatpush1.bf16.msra.mxu0 0
        %2950 = vmatprep.subr.bf16.mxu0 0
        %2951 = vmatpush1.bf16.msra.mxu0 0
        %2952 = vmatprep.subr.bf16.mxu0 0
        %2953 = vmatpush1.bf16.msra.mxu0 0
        %2954 = vmatprep.subr.bf16.mxu0 0
        %2955 = vmatpush1.bf16.msra.mxu0 0
        %2956 = vmatprep.subr.bf16.mxu0 0
        %2957 = vmatpush1.bf16.msra.mxu0 0
        %2958 = vmatprep.mubr.bf16.mxu0 0
        %2959 = vmatmul.mubr.bf16.gmra.mrb[0].mxu0 %v399
        %v2960 = vpop.f32.mrb[0].mxu0
        %v2961 = vadd.f32 %v2768, %v2960
        %v2962 = vpop.f32.mrb[0].mxu0
        %v2963 = vadd.f32 %v2770, %v2962
        %v2964 = vpop.f32.mrb[0].mxu0
        %v2965 = vadd.f32 %v2772, %v2964
        %v2966 = vpop.f32.mrb[0].mxu0
        %v2967 = vadd.f32 %v2774, %v2966
        %2968 = vmatprep.mubr.bf16.mxu0 0
        %2969 = vmatmul.mubr.bf16.gmra.mrb[0].mxu0 %v402
        %v2970 = vpop.f32.mrb[0].mxu0
        %v2971 = vadd.f32 %v2778, %v2970
        %v2972 = vpop.f32.mrb[0].mxu0
        %v2973 = vadd.f32 %v2780, %v2972
        %v2974 = vpop.f32.mrb[0].mxu0
        %v2975 = vadd.f32 %v2782, %v2974
        %v2976 = vpop.f32.mrb[0].mxu0
        %v2977 = vadd.f32 %v2784, %v2976
        %2978 = vmatprep.mubr.bf16.mxu0 0
        %2979 = vmatmul.mubr.bf16.gmra.mrb[0].mxu0 %v405
        %v2980 = vpop.f32.mrb[0].mxu0
        %v2981 = vadd.f32 %v2788, %v2980
        %v2982 = vpop.f32.mrb[0].mxu0
        %v2983 = vadd.f32 %v2790, %v2982
        %v2984 = vpop.f32.mrb[0].mxu0
        %v2985 = vadd.f32 %v2792, %v2984
        %v2986 = vpop.f32.mrb[0].mxu0
        %v2987 = vadd.f32 %v2794, %v2986
        %2988 = vmatprep.mubr.bf16.mxu0 0
        %2989 = vmatmul.mubr.bf16.gmra.mrb[0].mxu0 %v408
        %v2990 = vpop.f32.mrb[0].mxu0
        %v2991 = vadd.f32 %v2798, %v2990
        %v2992 = vpop.f32.mrb[0].mxu0
        %v2993 = vadd.f32 %v2800, %v2992
        %v2994 = vpop.f32.mrb[0].mxu0
        %v2995 = vadd.f32 %v2802, %v2994
        %v2996 = vpop.f32.mrb[0].mxu0
        %v2997 = vadd.f32 %v2804, %v2996
        %2998 = vmatprep.mubr.bf16.mxu0 0
        %2999 = vmatmul.mubr.bf16.gmra.mrb[0].mxu0 %v411
        %v3000 = vpop.f32.mrb[0].mxu0
        %v3001 = vadd.f32 %v2808, %v3000
        %v3002 = vpop.f32.mrb[0].mxu0
        %v3003 = vadd.f32 %v2810, %v3002
        %v3004 = vpop.f32.mrb[0].mxu0
        %v3005 = vadd.f32 %v2812, %v3004
        %v3006 = vpop.f32.mrb[0].mxu0
        %v3007 = vadd.f32 %v2814, %v3006
        %3008 = vmatprep.mubr.bf16.mxu0 0
        %3009 = vmatmul.mubr.bf16.gmra.mrb[0].mxu0 %v414
        %v3010 = vpop.f32.mrb[0].mxu0
        %v3011 = vadd.f32 %v2818, %v3010
        %v3012 = vpop.f32.mrb[0].mxu0
        %v3013 = vadd.f32 %v2820, %v3012
        %v3014 = vpop.f32.mrb[0].mxu0
        %v3015 = vadd.f32 %v2822, %v3014
        %v3016 = vpop.f32.mrb[0].mxu0
        %v3017 = vadd.f32 %v2824, %v3016
        %3018 = vmatprep.mubr.bf16.mxu0 0
        %3019 = vmatmul.mubr.bf16.gmra.mrb[0].mxu0 %v417
        %v3020 = vpop.f32.mrb[0].mxu0
        %v3021 = vadd.f32 %v2828, %v3020
        %v3022 = vpop.f32.mrb[0].mxu0
        %v3023 = vadd.f32 %v2830, %v3022
        %v3024 = vpop.f32.mrb[0].mxu0
        %v3025 = vadd.f32 %v2832, %v3024
        %v3026 = vpop.f32.mrb[0].mxu0
        %v3027 = vadd.f32 %v2834, %v3026
        %3028 = vmatprep.mubr.bf16.mxu0 0
        %3029 = vmatmul.mubr.bf16.gmra.mrb[0].mxu0 %v420
        %v3030 = vpop.f32.mrb[0].mxu0
        %v3031 = vadd.f32 %v2838, %v3030
        %v3032 = vpop.f32.mrb[0].mxu0
        %v3033 = vadd.f32 %v2840, %v3032
        %v3034 = vpop.f32.mrb[0].mxu0
        %v3035 = vadd.f32 %v2842, %v3034
        %v3036 = vpop.f32.mrb[0].mxu0
        %v3037 = vadd.f32 %v2844, %v3036
        %3038 = vmatprep.mubr.bf16.mxu0 0
        %3039 = vmatmul.mubr.bf16.gmra.mrb[0].mxu0 %v423
        %v3040 = vpop.f32.mrb[0].mxu0
        %v3041 = vadd.f32 %v2848, %v3040
        %v3042 = vpop.f32.mrb[0].mxu0
        %v3043 = vadd.f32 %v2850, %v3042
        %v3044 = vpop.f32.mrb[0].mxu0
        %v3045 = vadd.f32 %v2852, %v3044
        %v3046 = vpop.f32.mrb[0].mxu0
        %v3047 = vadd.f32 %v2854, %v3046
        %3048 = vmatprep.mubr.bf16.mxu0 0
        %3049 = vmatmul.mubr.bf16.gmra.mrb[0].mxu0 %v426
        %v3050 = vpop.f32.mrb[0].mxu0
        %v3051 = vadd.f32 %v2858, %v3050
        %v3052 = vpop.f32.mrb[0].mxu0
        %v3053 = vadd.f32 %v2860, %v3052
        %v3054 = vpop.f32.mrb[0].mxu0
        %v3055 = vadd.f32 %v2862, %v3054
        %v3056 = vpop.f32.mrb[0].mxu0
        %v3057 = vadd.f32 %v2864, %v3056
        %3058 = vmatprep.mubr.bf16.mxu0 0
        %3059 = vmatmul.mubr.bf16.gmra.mrb[0].mxu0 %v429
        %v3060 = vpop.f32.mrb[0].mxu0
        %v3061 = vadd.f32 %v2868, %v3060
        %v3062 = vpop.f32.mrb[0].mxu0
        %v3063 = vadd.f32 %v2870, %v3062
        %v3064 = vpop.f32.mrb[0].mxu0
        %v3065 = vadd.f32 %v2872, %v3064
        %v3066 = vpop.f32.mrb[0].mxu0
        %v3067 = vadd.f32 %v2874, %v3066
        %3068 = vmatprep.mubr.bf16.mxu0 0
        %3069 = vmatmul.mubr.bf16.gmra.mrb[0].mxu0 %v432
        %v3070 = vpop.f32.mrb[0].mxu0
        %v3071 = vadd.f32 %v2878, %v3070
        %v3072 = vpop.f32.mrb[0].mxu0
        %v3073 = vadd.f32 %v2880, %v3072
        %v3074 = vpop.f32.mrb[0].mxu0
        %v3075 = vadd.f32 %v2882, %v3074
        %v3076 = vpop.f32.mrb[0].mxu0
        %v3077 = vadd.f32 %v2884, %v3076
        %3078 = vmatprep.mubr.bf16.mxu0 0
        %3079 = vmatmul.mubr.bf16.gmra.mrb[0].mxu0 %v435
        %v3080 = vpop.f32.mrb[0].mxu0
        %v3081 = vadd.f32 %v2888, %v3080
        %v3082 = vpop.f32.mrb[0].mxu0
        %v3083 = vadd.f32 %v2890, %v3082
        %v3084 = vpop.f32.mrb[0].mxu0
        %v3085 = vadd.f32 %v2892, %v3084
        %v3086 = vpop.f32.mrb[0].mxu0
        %v3087 = vadd.f32 %v2894, %v3086
        %3088 = vmatprep.mubr.bf16.mxu0 0
        %3089 = vmatmul.mubr.bf16.gmra.mrb[0].mxu0 %v438
        %v3090 = vpop.f32.mrb[0].mxu0
        %v3091 = vadd.f32 %v2898, %v3090
        %v3092 = vpop.f32.mrb[0].mxu0
        %v3093 = vadd.f32 %v2900, %v3092
        %v3094 = vpop.f32.mrb[0].mxu0
        %v3095 = vadd.f32 %v2902, %v3094
        %v3096 = vpop.f32.mrb[0].mxu0
        %v3097 = vadd.f32 %v2904, %v3096
        %3098 = vmatprep.mubr.bf16.mxu0 0
        %3099 = vmatmul.mubr.bf16.gmra.mrb[0].mxu0 %v441
        %v3100 = vpop.f32.mrb[0].mxu0
        %v3101 = vadd.f32 %v2908, %v3100
        %v3102 = vpop.f32.mrb[0].mxu0
        %v3103 = vadd.f32 %v2910, %v3102
        %v3104 = vpop.f32.mrb[0].mxu0
        %v3105 = vadd.f32 %v2912, %v3104
        %v3106 = vpop.f32.mrb[0].mxu0
        %v3107 = vadd.f32 %v2914, %v3106
        %3108 = vmatprep.mubr.bf16.mxu0 0
        %3109 = vmatmul.mubr.bf16.gmra.mrb[0].mxu0 %v444
        %v3110 = vpop.f32.mrb[0].mxu0
        %v3111 = vadd.f32 %v2918, %v3110
        %v3112 = vpop.f32.mrb[0].mxu0
        %v3113 = vadd.f32 %v2920, %v3112
        %v3114 = vpop.f32.mrb[0].mxu0
        %v3115 = vadd.f32 %v2922, %v3114
        %v3116 = vpop.f32.mrb[0].mxu0
        %v3117 = vadd.f32 %v2924, %v3116
        %3118 = vdwg.mxu0
        %3119 = vmatprep.subr.bf16.mxu0 %v2544
        %3120 = vmatpush1.bf16.msra.mxu0 %v2543
        %3121 = vmatprep.subr.bf16.mxu0 %v2548
        %3122 = vmatpush1.bf16.msra.mxu0 %v2547
        %3123 = vmatprep.subr.bf16.mxu0 %v2552
        %3124 = vmatpush1.bf16.msra.mxu0 %v2551
        %3125 = vmatprep.subr.bf16.mxu0 %v2556
        %3126 = vmatpush1.bf16.msra.mxu0 %v2555
        %3127 = vmatprep.subr.bf16.mxu0 %v2560
        %3128 = vmatpush1.bf16.msra.mxu0 %v2559
        %3129 = vmatprep.subr.bf16.mxu0 %v2564
        %3130 = vmatpush1.bf16.msra.mxu0 %v2563
        %3131 = vmatprep.subr.bf16.mxu0 %v2568
        %3132 = vmatpush1.bf16.msra.mxu0 %v2567
        %3133 = vmatprep.subr.bf16.mxu0 %v2572
        %3134 = vmatpush1.bf16.msra.mxu0 %v2571
        %3135 = vmatprep.subr.bf16.mxu0 %v2576
        %3136 = vmatpush1.bf16.msra.mxu0 %v2575
        %3137 = vmatprep.subr.bf16.mxu0 %v2580
        %3138 = vmatpush1.bf16.msra.mxu0 %v2579
        %3139 = vmatprep.subr.bf16.mxu0 %v2584
        %3140 = vmatpush1.bf16.msra.mxu0 %v2583
        %3141 = vmatprep.subr.bf16.mxu0 %v2588
        %3142 = vmatpush1.bf16.msra.mxu0 %v2587
        %3143 = vmatprep.subr.bf16.mxu0 %v2592
        %3144 = vmatpush1.bf16.msra.mxu0 %v2591
        %3145 = vmatprep.subr.bf16.mxu0 %v2596
        %3146 = vmatpush1.bf16.msra.mxu0 %v2595
        %3147 = vmatprep.subr.bf16.mxu0 %v2600
        %3148 = vmatpush1.bf16.msra.mxu0 %v2599
        %3149 = vmatprep.subr.bf16.mxu0 %v2604
        %3150 = vmatpush1.bf16.msra.mxu0 %v2603
        %3151 = vmatprep.mubr.bf16.mxu0 %v398
        %3152 = vmatmul.mubr.bf16.gmra.mrb[0].mxu0 %v397
        %v3153 = vpop.f32.mrb[0].mxu0
        %v3154 = vadd.f32 %v2244, %v3153
        %v3155 = vpop.f32.mrb[0].mxu0
        %v3156 = vadd.f32 %v2248, %v3155
        %v3157 = vpop.f32.mrb[0].mxu0
        %v3158 = vadd.f32 %v2244, %v3157
        %v3159 = vpop.f32.mrb[0].mxu0
        %v3160 = vadd.f32 %v2248, %v3159
        %3161 = vmatprep.mubr.bf16.mxu0 %v401
        %3162 = vmatmul.mubr.bf16.gmra.mrb[0].mxu0 %v400
        %v3163 = vpop.f32.mrb[0].mxu0
        %v3164 = vadd.f32 %v2244, %v3163
        %v3165 = vpop.f32.mrb[0].mxu0
        %v3166 = vadd.f32 %v2248, %v3165
        %v3167 = vpop.f32.mrb[0].mxu0
        %v3168 = vadd.f32 %v2244, %v3167
        %v3169 = vpop.f32.mrb[0].mxu0
        %v3170 = vadd.f32 %v2248, %v3169
        %3171 = vmatprep.mubr.bf16.mxu0 %v404
        %3172 = vmatmul.mubr.bf16.gmra.mrb[0].mxu0 %v403
        %v3173 = vpop.f32.mrb[0].mxu0
        %v3174 = vadd.f32 %v2244, %v3173
        %v3175 = vpop.f32.mrb[0].mxu0
        %v3176 = vadd.f32 %v2248, %v3175
        %v3177 = vpop.f32.mrb[0].mxu0
        %v3178 = vadd.f32 %v2244, %v3177
        %v3179 = vpop.f32.mrb[0].mxu0
        %v3180 = vadd.f32 %v2248, %v3179
        %3181 = vmatprep.mubr.bf16.mxu0 %v407
        %3182 = vmatmul.mubr.bf16.gmra.mrb[0].mxu0 %v406
        %v3183 = vpop.f32.mrb[0].mxu0
        %v3184 = vadd.f32 %v2244, %v3183
        %v3185 = vpop.f32.mrb[0].mxu0
        %v3186 = vadd.f32 %v2248, %v3185
        %v3187 = vpop.f32.mrb[0].mxu0
        %v3188 = vadd.f32 %v2244, %v3187
        %v3189 = vpop.f32.mrb[0].mxu0
        %v3190 = vadd.f32 %v2248, %v3189
        %3191 = vmatprep.mubr.bf16.mxu0 %v410
        %3192 = vmatmul.mubr.bf16.gmra.mrb[0].mxu0 %v409
        %v3193 = vpop.f32.mrb[0].mxu0
        %v3194 = vadd.f32 %v2244, %v3193
        %v3195 = vpop.f32.mrb[0].mxu0
        %v3196 = vadd.f32 %v2248, %v3195
        %v3197 = vpop.f32.mrb[0].mxu0
        %v3198 = vadd.f32 %v2244, %v3197
        %v3199 = vpop.f32.mrb[0].mxu0
        %v3200 = vadd.f32 %v2248, %v3199
        %3201 = vmatprep.mubr.bf16.mxu0 %v413
        %3202 = vmatmul.mubr.bf16.gmra.mrb[0].mxu0 %v412
        %v3203 = vpop.f32.mrb[0].mxu0
        %v3204 = vadd.f32 %v2244, %v3203
        %v3205 = vpop.f32.mrb[0].mxu0
        %v3206 = vadd.f32 %v2248, %v3205
        %v3207 = vpop.f32.mrb[0].mxu0
        %v3208 = vadd.f32 %v2244, %v3207
        %v3209 = vpop.f32.mrb[0].mxu0
        %v3210 = vadd.f32 %v2248, %v3209
        %3211 = vmatprep.mubr.bf16.mxu0 %v416
        %3212 = vmatmul.mubr.bf16.gmra.mrb[0].mxu0 %v415
        %v3213 = vpop.f32.mrb[0].mxu0
        %v3214 = vadd.f32 %v2244, %v3213
        %v3215 = vpop.f32.mrb[0].mxu0
        %v3216 = vadd.f32 %v2248, %v3215
        %v3217 = vpop.f32.mrb[0].mxu0
        %v3218 = vadd.f32 %v2244, %v3217
        %v3219 = vpop.f32.mrb[0].mxu0
        %v3220 = vadd.f32 %v2248, %v3219
        %3221 = vmatprep.mubr.bf16.mxu0 %v419
        %3222 = vmatmul.mubr.bf16.gmra.mrb[0].mxu0 %v418
        %v3223 = vpop.f32.mrb[0].mxu0
        %v3224 = vadd.f32 %v2244, %v3223
        %v3225 = vpop.f32.mrb[0].mxu0
        %v3226 = vadd.f32 %v2248, %v3225
        %v3227 = vpop.f32.mrb[0].mxu0
        %v3228 = vadd.f32 %v2244, %v3227
        %v3229 = vpop.f32.mrb[0].mxu0
        %v3230 = vadd.f32 %v2248, %v3229
        %3231 = vmatprep.mubr.bf16.mxu0 %v422
        %3232 = vmatmul.mubr.bf16.gmra.mrb[0].mxu0 %v421
        %v3233 = vpop.f32.mrb[0].mxu0
        %v3234 = vadd.f32 %v2244, %v3233
        %v3235 = vpop.f32.mrb[0].mxu0
        %v3236 = vadd.f32 %v2248, %v3235
        %v3237 = vpop.f32.mrb[0].mxu0
        %v3238 = vadd.f32 %v2244, %v3237
        %v3239 = vpop.f32.mrb[0].mxu0
        %v3240 = vadd.f32 %v2248, %v3239
        %3241 = vmatprep.mubr.bf16.mxu0 %v425
        %3242 = vmatmul.mubr.bf16.gmra.mrb[0].mxu0 %v424
        %v3243 = vpop.f32.mrb[0].mxu0
        %v3244 = vadd.f32 %v2244, %v3243
        %v3245 = vpop.f32.mrb[0].mxu0
        %v3246 = vadd.f32 %v2248, %v3245
        %v3247 = vpop.f32.mrb[0].mxu0
        %v3248 = vadd.f32 %v2244, %v3247
        %v3249 = vpop.f32.mrb[0].mxu0
        %v3250 = vadd.f32 %v2248, %v3249
        %3251 = vmatprep.mubr.bf16.mxu0 %v428
        %3252 = vmatmul.mubr.bf16.gmra.mrb[0].mxu0 %v427
        %v3253 = vpop.f32.mrb[0].mxu0
        %v3254 = vadd.f32 %v2244, %v3253
        %v3255 = vpop.f32.mrb[0].mxu0
        %v3256 = vadd.f32 %v2248, %v3255
        %v3257 = vpop.f32.mrb[0].mxu0
        %v3258 = vadd.f32 %v2244, %v3257
        %v3259 = vpop.f32.mrb[0].mxu0
        %v3260 = vadd.f32 %v2248, %v3259
        %3261 = vmatprep.mubr.bf16.mxu0 %v431
        %3262 = vmatmul.mubr.bf16.gmra.mrb[0].mxu0 %v430
        %v3263 = vpop.f32.mrb[0].mxu0
        %v3264 = vadd.f32 %v2244, %v3263
        %v3265 = vpop.f32.mrb[0].mxu0
        %v3266 = vadd.f32 %v2248, %v3265
        %v3267 = vpop.f32.mrb[0].mxu0
        %v3268 = vadd.f32 %v2244, %v3267
        %v3269 = vpop.f32.mrb[0].mxu0
        %v3270 = vadd.f32 %v2248, %v3269
        %3271 = vmatprep.mubr.bf16.mxu0 %v434
        %3272 = vmatmul.mubr.bf16.gmra.mrb[0].mxu0 %v433
        %v3273 = vpop.f32.mrb[0].mxu0
        %v3274 = vadd.f32 %v2244, %v3273
        %v3275 = vpop.f32.mrb[0].mxu0
        %v3276 = vadd.f32 %v2248, %v3275
        %v3277 = vpop.f32.mrb[0].mxu0
        %v3278 = vadd.f32 %v2244, %v3277
        %v3279 = vpop.f32.mrb[0].mxu0
        %v3280 = vadd.f32 %v2248, %v3279
        %3281 = vmatprep.mubr.bf16.mxu0 %v437
        %3282 = vmatmul.mubr.bf16.gmra.mrb[0].mxu0 %v436
        %v3283 = vpop.f32.mrb[0].mxu0
        %v3284 = vadd.f32 %v2244, %v3283
        %v3285 = vpop.f32.mrb[0].mxu0
        %v3286 = vadd.f32 %v2248, %v3285
        %v3287 = vpop.f32.mrb[0].mxu0
        %v3288 = vadd.f32 %v2244, %v3287
        %v3289 = vpop.f32.mrb[0].mxu0
        %v3290 = vadd.f32 %v2248, %v3289
        %3291 = vmatprep.mubr.bf16.mxu0 %v440
        %3292 = vmatmul.mubr.bf16.gmra.mrb[0].mxu0 %v439
        %v3293 = vpop.f32.mrb[0].mxu0
        %v3294 = vadd.f32 %v2244, %v3293
        %v3295 = vpop.f32.mrb[0].mxu0
        %v3296 = vadd.f32 %v2248, %v3295
        %v3297 = vpop.f32.mrb[0].mxu0
        %v3298 = vadd.f32 %v2244, %v3297
        %v3299 = vpop.f32.mrb[0].mxu0
        %v3300 = vadd.f32 %v2248, %v3299
        %3301 = vmatprep.mubr.bf16.mxu0 %v443
        %3302 = vmatmul.mubr.bf16.gmra.mrb[0].mxu0 %v442
        %v3303 = vpop.f32.mrb[0].mxu0
        %v3304 = vadd.f32 %v2244, %v3303
        %v3305 = vpop.f32.mrb[0].mxu0
        %v3306 = vadd.f32 %v2248, %v3305
        %v3307 = vpop.f32.mrb[0].mxu0
        %v3308 = vadd.f32 %v2244, %v3307
        %v3309 = vpop.f32.mrb[0].mxu0
        %v3310 = vadd.f32 %v2248, %v3309
        %3311 = vdwg.mxu0
        %3312 = vmatprep.subr.bf16.mxu0 %v2608
        %3313 = vmatpush1.bf16.msra.mxu0 %v2607
        %3314 = vmatprep.subr.bf16.mxu0 %v2612
        %3315 = vmatpush1.bf16.msra.mxu0 %v2611
        %3316 = vmatprep.subr.bf16.mxu0 %v2616
        %3317 = vmatpush1.bf16.msra.mxu0 %v2615
        %3318 = vmatprep.subr.bf16.mxu0 %v2620
        %3319 = vmatpush1.bf16.msra.mxu0 %v2619
        %3320 = vmatprep.subr.bf16.mxu0 %v2624
        %3321 = vmatpush1.bf16.msra.mxu0 %v2623
        %3322 = vmatprep.subr.bf16.mxu0 %v2628
        %3323 = vmatpush1.bf16.msra.mxu0 %v2627
        %3324 = vmatprep.subr.bf16.mxu0 %v2632
        %3325 = vmatpush1.bf16.msra.mxu0 %v2631
        %3326 = vmatprep.subr.bf16.mxu0 %v2636
        %3327 = vmatpush1.bf16.msra.mxu0 %v2635
        %3328 = vmatprep.subr.bf16.mxu0 0
        %3329 = vmatpush1.bf16.msra.mxu0 0
        %3330 = vmatprep.subr.bf16.mxu0 0
        %3331 = vmatpush1.bf16.msra.mxu0 0
        %3332 = vmatprep.subr.bf16.mxu0 0
        %3333 = vmatpush1.bf16.msra.mxu0 0
        %3334 = vmatprep.subr.bf16.mxu0 0
        %3335 = vmatpush1.bf16.msra.mxu0 0
        %3336 = vmatprep.subr.bf16.mxu0 0
        %3337 = vmatpush1.bf16.msra.mxu0 0
        %3338 = vmatprep.subr.bf16.mxu0 0
        %3339 = vmatpush1.bf16.msra.mxu0 0
        %3340 = vmatprep.subr.bf16.mxu0 0
        %3341 = vmatpush1.bf16.msra.mxu0 0
        %3342 = vmatprep.subr.bf16.mxu0 0
        %3343 = vmatpush1.bf16.msra.mxu0 0
        %3344 = vmatprep.mubr.bf16.mxu0 0
        %3345 = vmatmul.mubr.bf16.gmra.mrb[0].mxu0 %v399
        %v3346 = vpop.f32.mrb[0].mxu0
        %v3347 = vadd.f32 %v3154, %v3346
        %v3348 = vpop.f32.mrb[0].mxu0
        %v3349 = vadd.f32 %v3156, %v3348
        %v3350 = vpop.f32.mrb[0].mxu0
        %v3351 = vadd.f32 %v3158, %v3350
        %v3352 = vpop.f32.mrb[0].mxu0
        %v3353 = vadd.f32 %v3160, %v3352
        %3354 = vmatprep.mubr.bf16.mxu0 0
        %3355 = vmatmul.mubr.bf16.gmra.mrb[0].mxu0 %v402
        %v3356 = vpop.f32.mrb[0].mxu0
        %v3357 = vadd.f32 %v3164, %v3356
        %v3358 = vpop.f32.mrb[0].mxu0
        %v3359 = vadd.f32 %v3166, %v3358
        %v3360 = vpop.f32.mrb[0].mxu0
        %v3361 = vadd.f32 %v3168, %v3360
        %v3362 = vpop.f32.mrb[0].mxu0
        %v3363 = vadd.f32 %v3170, %v3362
        %3364 = vmatprep.mubr.bf16.mxu0 0
        %3365 = vmatmul.mubr.bf16.gmra.mrb[0].mxu0 %v405
        %v3366 = vpop.f32.mrb[0].mxu0
        %v3367 = vadd.f32 %v3174, %v3366
        %v3368 = vpop.f32.mrb[0].mxu0
        %v3369 = vadd.f32 %v3176, %v3368
        %v3370 = vpop.f32.mrb[0].mxu0
        %v3371 = vadd.f32 %v3178, %v3370
        %v3372 = vpop.f32.mrb[0].mxu0
        %v3373 = vadd.f32 %v3180, %v3372
        %3374 = vmatprep.mubr.bf16.mxu0 0
        %3375 = vmatmul.mubr.bf16.gmra.mrb[0].mxu0 %v408
        %v3376 = vpop.f32.mrb[0].mxu0
        %v3377 = vadd.f32 %v3184, %v3376
        %v3378 = vpop.f32.mrb[0].mxu0
        %v3379 = vadd.f32 %v3186, %v3378
        %v3380 = vpop.f32.mrb[0].mxu0
        %v3381 = vadd.f32 %v3188, %v3380
        %v3382 = vpop.f32.mrb[0].mxu0
        %v3383 = vadd.f32 %v3190, %v3382
        %3384 = vmatprep.mubr.bf16.mxu0 0
        %3385 = vmatmul.mubr.bf16.gmra.mrb[0].mxu0 %v411
        %v3386 = vpop.f32.mrb[0].mxu0
        %v3387 = vadd.f32 %v3194, %v3386
        %v3388 = vpop.f32.mrb[0].mxu0
        %v3389 = vadd.f32 %v3196, %v3388
        %v3390 = vpop.f32.mrb[0].mxu0
        %v3391 = vadd.f32 %v3198, %v3390
        %v3392 = vpop.f32.mrb[0].mxu0
        %v3393 = vadd.f32 %v3200, %v3392
        %3394 = vmatprep.mubr.bf16.mxu0 0
        %3395 = vmatmul.mubr.bf16.gmra.mrb[0].mxu0 %v414
        %v3396 = vpop.f32.mrb[0].mxu0
        %v3397 = vadd.f32 %v3204, %v3396
        %v3398 = vpop.f32.mrb[0].mxu0
        %v3399 = vadd.f32 %v3206, %v3398
        %v3400 = vpop.f32.mrb[0].mxu0
        %v3401 = vadd.f32 %v3208, %v3400
        %v3402 = vpop.f32.mrb[0].mxu0
        %v3403 = vadd.f32 %v3210, %v3402
        %3404 = vmatprep.mubr.bf16.mxu0 0
        %3405 = vmatmul.mubr.bf16.gmra.mrb[0].mxu0 %v417
        %v3406 = vpop.f32.mrb[0].mxu0
        %v3407 = vadd.f32 %v3214, %v3406
        %v3408 = vpop.f32.mrb[0].mxu0
        %v3409 = vadd.f32 %v3216, %v3408
        %v3410 = vpop.f32.mrb[0].mxu0
        %v3411 = vadd.f32 %v3218, %v3410
        %v3412 = vpop.f32.mrb[0].mxu0
        %v3413 = vadd.f32 %v3220, %v3412
        %3414 = vmatprep.mubr.bf16.mxu0 0
        %3415 = vmatmul.mubr.bf16.gmra.mrb[0].mxu0 %v420
        %v3416 = vpop.f32.mrb[0].mxu0
        %v3417 = vadd.f32 %v3224, %v3416
        %v3418 = vpop.f32.mrb[0].mxu0
        %v3419 = vadd.f32 %v3226, %v3418
        %v3420 = vpop.f32.mrb[0].mxu0
        %v3421 = vadd.f32 %v3228, %v3420
        %v3422 = vpop.f32.mrb[0].mxu0
        %v3423 = vadd.f32 %v3230, %v3422
        %3424 = vmatprep.mubr.bf16.mxu0 0
        %3425 = vmatmul.mubr.bf16.gmra.mrb[0].mxu0 %v423
        %v3426 = vpop.f32.mrb[0].mxu0
        %v3427 = vadd.f32 %v3234, %v3426
        %v3428 = vpop.f32.mrb[0].mxu0
        %v3429 = vadd.f32 %v3236, %v3428
        %v3430 = vpop.f32.mrb[0].mxu0
        %v3431 = vadd.f32 %v3238, %v3430
        %v3432 = vpop.f32.mrb[0].mxu0
        %v3433 = vadd.f32 %v3240, %v3432
        %3434 = vmatprep.mubr.bf16.mxu0 0
        %3435 = vmatmul.mubr.bf16.gmra.mrb[0].mxu0 %v426
        %v3436 = vpop.f32.mrb[0].mxu0
        %v3437 = vadd.f32 %v3244, %v3436
        %v3438 = vpop.f32.mrb[0].mxu0
        %v3439 = vadd.f32 %v3246, %v3438
        %v3440 = vpop.f32.mrb[0].mxu0
        %v3441 = vadd.f32 %v3248, %v3440
        %v3442 = vpop.f32.mrb[0].mxu0
        %v3443 = vadd.f32 %v3250, %v3442
        %3444 = vmatprep.mubr.bf16.mxu0 0
        %3445 = vmatmul.mubr.bf16.gmra.mrb[0].mxu0 %v429
        %v3446 = vpop.f32.mrb[0].mxu0
        %v3447 = vadd.f32 %v3254, %v3446
        %v3448 = vpop.f32.mrb[0].mxu0
        %v3449 = vadd.f32 %v3256, %v3448
        %v3450 = vpop.f32.mrb[0].mxu0
        %v3451 = vadd.f32 %v3258, %v3450
        %v3452 = vpop.f32.mrb[0].mxu0
        %v3453 = vadd.f32 %v3260, %v3452
        %3454 = vmatprep.mubr.bf16.mxu0 0
        %3455 = vmatmul.mubr.bf16.gmra.mrb[0].mxu0 %v432
        %v3456 = vpop.f32.mrb[0].mxu0
        %v3457 = vadd.f32 %v3264, %v3456
        %v3458 = vpop.f32.mrb[0].mxu0
        %v3459 = vadd.f32 %v3266, %v3458
        %v3460 = vpop.f32.mrb[0].mxu0
        %v3461 = vadd.f32 %v3268, %v3460
        %v3462 = vpop.f32.mrb[0].mxu0
        %v3463 = vadd.f32 %v3270, %v3462
        %3464 = vmatprep.mubr.bf16.mxu0 0
        %3465 = vmatmul.mubr.bf16.gmra.mrb[0].mxu0 %v435
        %v3466 = vpop.f32.mrb[0].mxu0
        %v3467 = vadd.f32 %v3274, %v3466
        %v3468 = vpop.f32.mrb[0].mxu0
        %v3469 = vadd.f32 %v3276, %v3468
        %v3470 = vpop.f32.mrb[0].mxu0
        %v3471 = vadd.f32 %v3278, %v3470
        %v3472 = vpop.f32.mrb[0].mxu0
        %v3473 = vadd.f32 %v3280, %v3472
        %3474 = vmatprep.mubr.bf16.mxu0 0
        %3475 = vmatmul.mubr.bf16.gmra.mrb[0].mxu0 %v438
        %v3476 = vpop.f32.mrb[0].mxu0
        %v3477 = vadd.f32 %v3284, %v3476
        %v3478 = vpop.f32.mrb[0].mxu0
        %v3479 = vadd.f32 %v3286, %v3478
        %v3480 = vpop.f32.mrb[0].mxu0
        %v3481 = vadd.f32 %v3288, %v3480
        %v3482 = vpop.f32.mrb[0].mxu0
        %v3483 = vadd.f32 %v3290, %v3482
        %3484 = vmatprep.mubr.bf16.mxu0 0
        %3485 = vmatmul.mubr.bf16.gmra.mrb[0].mxu0 %v441
        %v3486 = vpop.f32.mrb[0].mxu0
        %v3487 = vadd.f32 %v3294, %v3486
        %v3488 = vpop.f32.mrb[0].mxu0
        %v3489 = vadd.f32 %v3296, %v3488
        %v3490 = vpop.f32.mrb[0].mxu0
        %v3491 = vadd.f32 %v3298, %v3490
        %v3492 = vpop.f32.mrb[0].mxu0
        %v3493 = vadd.f32 %v3300, %v3492
        %3494 = vmatprep.mubr.bf16.mxu0 0
        %3495 = vmatmul.mubr.bf16.gmra.mrb[0].mxu0 %v444
        %v3496 = vpop.f32.mrb[0].mxu0
        %v3497 = vadd.f32 %v3304, %v3496
        %v3498 = vpop.f32.mrb[0].mxu0
        %v3499 = vadd.f32 %v3306, %v3498
        %v3500 = vpop.f32.mrb[0].mxu0
        %v3501 = vadd.f32 %v3308, %v3500
        %v3502 = vpop.f32.mrb[0].mxu0
        %v3503 = vadd.f32 %v3310, %v3502
        %3504 = vdwg.mxu0
        %v3505 = vmax.f32 %v2961, 0.0
        %v3506 = vmax.f32 %v2963, 0.0
        %v3507 = vmax.f32 %v3347, 0.0
        %v3508 = vmax.f32 %v3349, 0.0
        %v3509 = vmax.f32 %v2965, 0.0
        %v3510 = vmax.f32 %v2967, 0.0
        %v3511 = vmax.f32 %v3351, 0.0
        %v3512 = vmax.f32 %v3353, 0.0
        %v3513 = vmax.f32 %v2971, 0.0
        %v3514 = vmax.f32 %v2973, 0.0
        %v3515 = vmax.f32 %v3357, 0.0
        %v3516 = vmax.f32 %v3359, 0.0
        %v3517 = vmax.f32 %v2975, 0.0
        %v3518 = vmax.f32 %v2977, 0.0
        %v3519 = vmax.f32 %v3361, 0.0
        %v3520 = vmax.f32 %v3363, 0.0
        %v3521 = vmax.f32 %v2981, 0.0
        %v3522 = vmax.f32 %v2983, 0.0
        %v3523 = vmax.f32 %v3367, 0.0
        %v3524 = vmax.f32 %v3369, 0.0
        %v3525 = vmax.f32 %v2985, 0.0
        %v3526 = vmax.f32 %v2987, 0.0
        %v3527 = vmax.f32 %v3371, 0.0
        %v3528 = vmax.f32 %v3373, 0.0
        %v3529 = vmax.f32 %v2991, 0.0
        %v3530 = vmax.f32 %v2993, 0.0
        %v3531 = vmax.f32 %v3377, 0.0
        %v3532 = vmax.f32 %v3379, 0.0
        %v3533 = vmax.f32 %v2995, 0.0
        %v3534 = vmax.f32 %v2997, 0.0
        %v3535 = vmax.f32 %v3381, 0.0
        %v3536 = vmax.f32 %v3383, 0.0
        %v3537 = vmax.f32 %v3001, 0.0
        %v3538 = vmax.f32 %v3003, 0.0
        %v3539 = vmax.f32 %v3387, 0.0
        %v3540 = vmax.f32 %v3389, 0.0
        %v3541 = vmax.f32 %v3005, 0.0
        %v3542 = vmax.f32 %v3007, 0.0
        %v3543 = vmax.f32 %v3391, 0.0
        %v3544 = vmax.f32 %v3393, 0.0
        %v3545 = vmax.f32 %v3011, 0.0
        %v3546 = vmax.f32 %v3013, 0.0
        %v3547 = vmax.f32 %v3397, 0.0
        %v3548 = vmax.f32 %v3399, 0.0
        %v3549 = vmax.f32 %v3015, 0.0
        %v3550 = vmax.f32 %v3017, 0.0
        %v3551 = vmax.f32 %v3401, 0.0
        %v3552 = vmax.f32 %v3403, 0.0
        %v3553 = vmax.f32 %v3021, 0.0
        %v3554 = vmax.f32 %v3023, 0.0
        %v3555 = vmax.f32 %v3407, 0.0
        %v3556 = vmax.f32 %v3409, 0.0
        %v3557 = vmax.f32 %v3025, 0.0
        %v3558 = vmax.f32 %v3027, 0.0
        %v3559 = vmax.f32 %v3411, 0.0
        %v3560 = vmax.f32 %v3413, 0.0
        %v3561 = vmax.f32 %v3031, 0.0
        %v3562 = vmax.f32 %v3033, 0.0
        %v3563 = vmax.f32 %v3417, 0.0
        %v3564 = vmax.f32 %v3419, 0.0
        %v3565 = vmax.f32 %v3035, 0.0
        %v3566 = vmax.f32 %v3037, 0.0
        %v3567 = vmax.f32 %v3421, 0.0
        %v3568 = vmax.f32 %v3423, 0.0
        %v3569 = vmax.f32 %v3041, 0.0
        %v3570 = vmax.f32 %v3043, 0.0
        %v3571 = vmax.f32 %v3427, 0.0
        %v3572 = vmax.f32 %v3429, 0.0
        %v3573 = vmax.f32 %v3045, 0.0
        %v3574 = vmax.f32 %v3047, 0.0
        %v3575 = vmax.f32 %v3431, 0.0
        %v3576 = vmax.f32 %v3433, 0.0
        %v3577 = vmax.f32 %v3051, 0.0
        %v3578 = vmax.f32 %v3053, 0.0
        %v3579 = vmax.f32 %v3437, 0.0
        %v3580 = vmax.f32 %v3439, 0.0
        %v3581 = vmax.f32 %v3055, 0.0
        %v3582 = vmax.f32 %v3057, 0.0
        %v3583 = vmax.f32 %v3441, 0.0
        %v3584 = vmax.f32 %v3443, 0.0
        %v3585 = vmax.f32 %v3061, 0.0
        %v3586 = vmax.f32 %v3063, 0.0
        %v3587 = vmax.f32 %v3447, 0.0
        %v3588 = vmax.f32 %v3449, 0.0
        %v3589 = vmax.f32 %v3065, 0.0
        %v3590 = vmax.f32 %v3067, 0.0
        %v3591 = vmax.f32 %v3451, 0.0
        %v3592 = vmax.f32 %v3453, 0.0
        %v3593 = vmax.f32 %v3071, 0.0
        %v3594 = vmax.f32 %v3073, 0.0
        %v3595 = vmax.f32 %v3457, 0.0
        %v3596 = vmax.f32 %v3459, 0.0
        %v3597 = vmax.f32 %v3075, 0.0
        %v3598 = vmax.f32 %v3077, 0.0
        %v3599 = vmax.f32 %v3461, 0.0
        %v3600 = vmax.f32 %v3463, 0.0
        %v3601 = vmax.f32 %v3081, 0.0
        %v3602 = vmax.f32 %v3083, 0.0
        %v3603 = vmax.f32 %v3467, 0.0
        %v3604 = vmax.f32 %v3469, 0.0
        %v3605 = vmax.f32 %v3085, 0.0
        %v3606 = vmax.f32 %v3087, 0.0
        %v3607 = vmax.f32 %v3471, 0.0
        %v3608 = vmax.f32 %v3473, 0.0
        %v3609 = vmax.f32 %v3091, 0.0
        %v3610 = vmax.f32 %v3093, 0.0
        %v3611 = vmax.f32 %v3477, 0.0
        %v3612 = vmax.f32 %v3479, 0.0
        %v3613 = vmax.f32 %v3095, 0.0
        %v3614 = vmax.f32 %v3097, 0.0
        %v3615 = vmax.f32 %v3481, 0.0
        %v3616 = vmax.f32 %v3483, 0.0
        %v3617 = vmax.f32 %v3101, 0.0
        %v3618 = vmax.f32 %v3103, 0.0
        %v3619 = vmax.f32 %v3487, 0.0
        %v3620 = vmax.f32 %v3489, 0.0
        %v3621 = vmax.f32 %v3105, 0.0
        %v3622 = vmax.f32 %v3107, 0.0
        %v3623 = vmax.f32 %v3491, 0.0
        %v3624 = vmax.f32 %v3493, 0.0
        %v3625 = vmax.f32 %v3111, 0.0
        %v3626 = vmax.f32 %v3113, 0.0
        %v3627 = vmax.f32 %v3497, 0.0
        %v3628 = vmax.f32 %v3499, 0.0
        %v3629 = vmax.f32 %v3115, 0.0
        %v3630 = vmax.f32 %v3117, 0.0
        %v3631 = vmax.f32 %v3501, 0.0
        %v3632 = vmax.f32 %v3503, 0.0
        %v3633 = vpack.c.bf16 %v3509, %v3505
        %v3634 = vpack.c.bf16 %v3510, %v3506
        %v3635 = vpack.c.bf16 %v3511, %v3507
        %v3636 = vpack.c.bf16 %v3512, %v3508
        %v3637 = vpack.c.bf16 %v3517, %v3513
        %v3638 = vpack.c.bf16 %v3518, %v3514
        %v3639 = vpack.c.bf16 %v3519, %v3515
        %v3640 = vpack.c.bf16 %v3520, %v3516
        %v3641 = vpack.c.bf16 %v3525, %v3521
        %v3642 = vpack.c.bf16 %v3526, %v3522
        %v3643 = vpack.c.bf16 %v3527, %v3523
        %v3644 = vpack.c.bf16 %v3528, %v3524
        %v3645 = vpack.c.bf16 %v3533, %v3529
        %v3646 = vpack.c.bf16 %v3534, %v3530
        %v3647 = vpack.c.bf16 %v3535, %v3531
        %v3648 = vpack.c.bf16 %v3536, %v3532
        %v3649 = vpack.c.bf16 %v3541, %v3537
        %v3650 = vpack.c.bf16 %v3542, %v3538
        %v3651 = vpack.c.bf16 %v3543, %v3539
        %v3652 = vpack.c.bf16 %v3544, %v3540
        %v3653 = vpack.c.bf16 %v3549, %v3545
        %v3654 = vpack.c.bf16 %v3550, %v3546
        %v3655 = vpack.c.bf16 %v3551, %v3547
        %v3656 = vpack.c.bf16 %v3552, %v3548
        %v3657 = vpack.c.bf16 %v3557, %v3553
        %v3658 = vpack.c.bf16 %v3558, %v3554
        %v3659 = vpack.c.bf16 %v3559, %v3555
        %v3660 = vpack.c.bf16 %v3560, %v3556
        %v3661 = vpack.c.bf16 %v3565, %v3561
        %v3662 = vpack.c.bf16 %v3566, %v3562
        %v3663 = vpack.c.bf16 %v3567, %v3563
        %v3664 = vpack.c.bf16 %v3568, %v3564
        %v3665 = vpack.c.bf16 %v3573, %v3569
        %v3666 = vpack.c.bf16 %v3574, %v3570
        %v3667 = vpack.c.bf16 %v3575, %v3571
        %v3668 = vpack.c.bf16 %v3576, %v3572
        %v3669 = vpack.c.bf16 %v3581, %v3577
        %v3670 = vpack.c.bf16 %v3582, %v3578
        %v3671 = vpack.c.bf16 %v3583, %v3579
        %v3672 = vpack.c.bf16 %v3584, %v3580
        %v3673 = vpack.c.bf16 %v3589, %v3585
        %v3674 = vpack.c.bf16 %v3590, %v3586
        %v3675 = vpack.c.bf16 %v3591, %v3587
        %v3676 = vpack.c.bf16 %v3592, %v3588
        %v3677 = vpack.c.bf16 %v3597, %v3593
        %v3678 = vpack.c.bf16 %v3598, %v3594
        %v3679 = vpack.c.bf16 %v3599, %v3595
        %v3680 = vpack.c.bf16 %v3600, %v3596
        %v3681 = vpack.c.bf16 %v3605, %v3601
        %v3682 = vpack.c.bf16 %v3606, %v3602
        %v3683 = vpack.c.bf16 %v3607, %v3603
        %v3684 = vpack.c.bf16 %v3608, %v3604
        %v3685 = vpack.c.bf16 %v3613, %v3609
        %v3686 = vpack.c.bf16 %v3614, %v3610
        %v3687 = vpack.c.bf16 %v3615, %v3611
        %v3688 = vpack.c.bf16 %v3616, %v3612
        %v3689 = vpack.c.bf16 %v3621, %v3617
        %v3690 = vpack.c.bf16 %v3622, %v3618
        %v3691 = vpack.c.bf16 %v3623, %v3619
        %v3692 = vpack.c.bf16 %v3624, %v3620
        %v3693 = vpack.c.bf16 %v3629, %v3625
        %v3694 = vpack.c.bf16 %v3630, %v3626
        %v3695 = vpack.c.bf16 %v3631, %v3627
        %v3696 = vpack.c.bf16 %v3632, %v3628
        %v3697 = vld [vmem:[#allocation8 + $0x300] sm:$0xff]
        %v3698 = vld [vmem:[#allocation8 + $0x308] sm:$0xf]
        %v3699 = vld [vmem:[#allocation8 + $0x30c] sm:$0xff]
        %v3700 = vld [vmem:[#allocation8 + $0x314] sm:$0xf]
        %v3701 = vld [vmem:[#allocation8 + $0x318] sm:$0xff]
        %v3702 = vld [vmem:[#allocation8 + $0x320] sm:$0xf]
        %v3703 = vld [vmem:[#allocation8 + $0x324] sm:$0xff]
        %v3704 = vld [vmem:[#allocation8 + $0x32c] sm:$0xf]
        %v3705 = vld [vmem:[#allocation8 + $0x330] sm:$0xff]
        %v3706 = vld [vmem:[#allocation8 + $0x338] sm:$0xf]
        %v3707 = vld [vmem:[#allocation8 + $0x33c] sm:$0xff]
        %v3708 = vld [vmem:[#allocation8 + $0x344] sm:$0xf]
        %v3709 = vld [vmem:[#allocation8 + $0x348] sm:$0xff]
        %v3710 = vld [vmem:[#allocation8 + $0x350] sm:$0xf]
        %v3711 = vld [vmem:[#allocation8 + $0x354] sm:$0xff]
        %v3712 = vld [vmem:[#allocation8 + $0x35c] sm:$0xf]
        %v3713 = vld [vmem:[#allocation8 + $0x360] sm:$0xff]
        %v3714 = vld [vmem:[#allocation8 + $0x368] sm:$0xf]
        %v3715 = vld [vmem:[#allocation8 + $0x36c] sm:$0xff]
        %v3716 = vld [vmem:[#allocation8 + $0x374] sm:$0xf]
        %v3717 = vld [vmem:[#allocation8 + $0x378] sm:$0xff]
        %v3718 = vld [vmem:[#allocation8 + $0x380] sm:$0xf]
        %v3719 = vld [vmem:[#allocation8 + $0x384] sm:$0xff]
        %v3720 = vld [vmem:[#allocation8 + $0x38c] sm:$0xf]
        %v3721 = vld [vmem:[#allocation8 + $0x390] sm:$0xff]
        %v3722 = vld [vmem:[#allocation8 + $0x398] sm:$0xf]
        %v3723 = vld [vmem:[#allocation8 + $0x39c] sm:$0xff]
        %v3724 = vld [vmem:[#allocation8 + $0x3a4] sm:$0xf]
        %v3725 = vld [vmem:[#allocation8 + $0x3a8] sm:$0xff]
        %v3726 = vld [vmem:[#allocation8 + $0x3b0] sm:$0xf]
        %v3727 = vld [vmem:[#allocation8 + $0x3b4] sm:$0xff]
        %v3728 = vld [vmem:[#allocation8 + $0x3bc] sm:$0xf]
        %v3729 = vld [vmem:[#allocation8 + $0x3c0] sm:$0xff]
        %v3730 = vld [vmem:[#allocation8 + $0x3c8] sm:$0xf]
        %v3731 = vld [vmem:[#allocation8 + $0x3cc] sm:$0xff]
        %v3732 = vld [vmem:[#allocation8 + $0x3d4] sm:$0xf]
        %v3733 = vld [vmem:[#allocation8 + $0x3d8] sm:$0xff]
        %v3734 = vld [vmem:[#allocation8 + $0x3e0] sm:$0xf]
        %v3735 = vld [vmem:[#allocation8 + $0x3e4] sm:$0xff]
        %v3736 = vld [vmem:[#allocation8 + $0x3ec] sm:$0xf]
        %v3737 = vld [vmem:[#allocation8 + $0x3f0] sm:$0xff]
        %v3738 = vld [vmem:[#allocation8 + $0x3f8] sm:$0xf]
        %v3739 = vld [vmem:[#allocation8 + $0x3fc] sm:$0xff]
        %v3740 = vld [vmem:[#allocation8 + $0x404] sm:$0xf]
        %v3741 = vld [vmem:[#allocation8 + $0x408] sm:$0xff]
        %v3742 = vld [vmem:[#allocation8 + $0x410] sm:$0xf]
        %v3743 = vld [vmem:[#allocation8 + $0x414] sm:$0xff]
        %v3744 = vld [vmem:[#allocation8 + $0x41c] sm:$0xf]
        %v3745 = vld [vmem:[#allocation8 + $0x420] sm:$0xff]
        %v3746 = vld [vmem:[#allocation8 + $0x428] sm:$0xf]
        %v3747 = vld [vmem:[#allocation8 + $0x42c] sm:$0xff]
        %v3748 = vld [vmem:[#allocation8 + $0x434] sm:$0xf]
        %v3749 = vld [vmem:[#allocation8 + $0x438] sm:$0xff]
        %v3750 = vld [vmem:[#allocation8 + $0x440] sm:$0xf]
        %v3751 = vld [vmem:[#allocation8 + $0x444] sm:$0xff]
        %v3752 = vld [vmem:[#allocation8 + $0x44c] sm:$0xf]
        %v3753 = vld [vmem:[#allocation8 + $0x450] sm:$0xff]
        %v3754 = vld [vmem:[#allocation8 + $0x458] sm:$0xf]
        %v3755 = vld [vmem:[#allocation8 + $0x45c] sm:$0xff]
        %v3756 = vld [vmem:[#allocation8 + $0x464] sm:$0xf]
        %v3757 = vld [vmem:[#allocation8 + $0x468] sm:$0xff]
        %v3758 = vld [vmem:[#allocation8 + $0x470] sm:$0xf]
        %v3759 = vld [vmem:[#allocation8 + $0x474] sm:$0xff]
        %v3760 = vld [vmem:[#allocation8 + $0x47c] sm:$0xf]
        %v3761 = vld [vmem:[#allocation8 + $0x480] sm:$0xff]
        %v3762 = vld [vmem:[#allocation8 + $0x488] sm:$0xf]
        %v3763 = vld [vmem:[#allocation8 + $0x48c] sm:$0xff]
        %v3764 = vld [vmem:[#allocation8 + $0x494] sm:$0xf]
        %v3765 = vld [vmem:[#allocation8 + $0x498] sm:$0xff]
        %v3766 = vld [vmem:[#allocation8 + $0x4a0] sm:$0xf]
        %v3767 = vld [vmem:[#allocation8 + $0x4a4] sm:$0xff]
        %v3768 = vld [vmem:[#allocation8 + $0x4ac] sm:$0xf]
        %v3769 = vld [vmem:[#allocation8 + $0x4b0] sm:$0xff]
        %v3770 = vld [vmem:[#allocation8 + $0x4b8] sm:$0xf]
        %v3771 = vld [vmem:[#allocation8 + $0x4bc] sm:$0xff]
        %v3772 = vld [vmem:[#allocation8 + $0x4c4] sm:$0xf]
        %v3773 = vld [vmem:[#allocation8 + $0x4c8] sm:$0xff]
        %v3774 = vld [vmem:[#allocation8 + $0x4d0] sm:$0xf]
        %v3775 = vld [vmem:[#allocation8 + $0x4d4] sm:$0xff]
        %v3776 = vld [vmem:[#allocation8 + $0x4dc] sm:$0xf]
        %v3777 = vld [vmem:[#allocation8 + $0x4e0] sm:$0xff]
        %v3778 = vld [vmem:[#allocation8 + $0x4e8] sm:$0xf]
        %v3779 = vld [vmem:[#allocation8 + $0x4ec] sm:$0xff]
        %v3780 = vld [vmem:[#allocation8 + $0x4f4] sm:$0xf]
        %v3781 = vld [vmem:[#allocation8 + $0x4f8] sm:$0xff]
        %v3782 = vld [vmem:[#allocation8 + $0x500] sm:$0xf]
        %v3783 = vld [vmem:[#allocation8 + $0x504] sm:$0xff]
        %v3784 = vld [vmem:[#allocation8 + $0x50c] sm:$0xf]
        %v3785 = vld [vmem:[#allocation8 + $0x510] sm:$0xff]
        %v3786 = vld [vmem:[#allocation8 + $0x518] sm:$0xf]
        %v3787 = vld [vmem:[#allocation8 + $0x51c] sm:$0xff]
        %v3788 = vld [vmem:[#allocation8 + $0x524] sm:$0xf]
        %v3789 = vld [vmem:[#allocation8 + $0x528] sm:$0xff]
        %v3790 = vld [vmem:[#allocation8 + $0x530] sm:$0xf]
        %v3791 = vld [vmem:[#allocation8 + $0x534] sm:$0xff]
        %v3792 = vld [vmem:[#allocation8 + $0x53c] sm:$0xf]
        %v3793 = vld [vmem:[#allocation8 + $0x540] sm:$0xff]
        %v3794 = vld [vmem:[#allocation8 + $0x548] sm:$0xf]
        %v3795 = vld [vmem:[#allocation8 + $0x54c] sm:$0xff]
        %v3796 = vld [vmem:[#allocation8 + $0x554] sm:$0xf]
        %v3797 = vld [vmem:[#allocation8 + $0x558] sm:$0xff]
        %v3798 = vld [vmem:[#allocation8 + $0x560] sm:$0xf]
        %v3799 = vld [vmem:[#allocation8 + $0x564] sm:$0xff]
        %v3800 = vld [vmem:[#allocation8 + $0x56c] sm:$0xf]
        %v3801 = vld [vmem:[#allocation8 + $0x570] sm:$0xff]
        %v3802 = vld [vmem:[#allocation8 + $0x578] sm:$0xf]
        %v3803 = vld [vmem:[#allocation8 + $0x57c] sm:$0xff]
        %v3804 = vld [vmem:[#allocation8 + $0x584] sm:$0xf]
        %v3805 = vld [vmem:[#allocation8 + $0x588] sm:$0xff]
        %v3806 = vld [vmem:[#allocation8 + $0x590] sm:$0xf]
        %v3807 = vld [vmem:[#allocation8 + $0x594] sm:$0xff]
        %v3808 = vld [vmem:[#allocation8 + $0x59c] sm:$0xf]
        %v3809 = vld [vmem:[#allocation8 + $0x5a0] sm:$0xff]
        %v3810 = vld [vmem:[#allocation8 + $0x5a8] sm:$0xf]
        %v3811 = vld [vmem:[#allocation8 + $0x5ac] sm:$0xff]
        %v3812 = vld [vmem:[#allocation8 + $0x5b4] sm:$0xf]
        %v3813 = vld [vmem:[#allocation8 + $0x5b8] sm:$0xff]
        %v3814 = vld [vmem:[#allocation8 + $0x5c0] sm:$0xf]
        %v3815 = vld [vmem:[#allocation8 + $0x5c4] sm:$0xff]
        %v3816 = vld [vmem:[#allocation8 + $0x5cc] sm:$0xf]
        %v3817 = vld [vmem:[#allocation8 + $0x5d0] sm:$0xff]
        %v3818 = vld [vmem:[#allocation8 + $0x5d8] sm:$0xf]
        %v3819 = vld [vmem:[#allocation8 + $0x5dc] sm:$0xff]
        %v3820 = vld [vmem:[#allocation8 + $0x5e4] sm:$0xf]
        %v3821 = vld [vmem:[#allocation8 + $0x5e8] sm:$0xff]
        %v3822 = vld [vmem:[#allocation8 + $0x5f0] sm:$0xf]
        %v3823 = vld [vmem:[#allocation8 + $0x5f4] sm:$0xff]
        %v3824 = vld [vmem:[#allocation8 + $0x5fc] sm:$0xf]
        %v3953 = vunpack.c.l.b16 %v3697
        %v3954 = vunpack.c.h.b16 %v3697
        %v3955 = vunpack.c.l.b16 %v3698
        %v3956 = vunpack.c.l.b16 %v3699
        %v3957 = vunpack.c.h.b16 %v3699
        %v3958 = vunpack.c.l.b16 %v3700
        %v3959 = vunpack.c.l.b16 %v3701
        %v3960 = vunpack.c.h.b16 %v3701
        %v3961 = vunpack.c.l.b16 %v3702
        %v3962 = vunpack.c.l.b16 %v3703
        %v3963 = vunpack.c.h.b16 %v3703
        %v3964 = vunpack.c.l.b16 %v3704
        %v3965 = vunpack.c.l.b16 %v3705
        %v3966 = vunpack.c.h.b16 %v3705
        %v3967 = vunpack.c.l.b16 %v3706
        %v3968 = vunpack.c.l.b16 %v3707
        %v3969 = vunpack.c.h.b16 %v3707
        %v3970 = vunpack.c.l.b16 %v3708
        %v3971 = vunpack.c.l.b16 %v3709
        %v3972 = vunpack.c.h.b16 %v3709
        %v3973 = vunpack.c.l.b16 %v3710
        %v3974 = vunpack.c.l.b16 %v3711
        %v3975 = vunpack.c.h.b16 %v3711
        %v3976 = vunpack.c.l.b16 %v3712
        %v3977 = vunpack.c.l.b16 %v3713
        %v3978 = vunpack.c.h.b16 %v3713
        %v3979 = vunpack.c.l.b16 %v3714
        %v3980 = vunpack.c.l.b16 %v3715
        %v3981 = vunpack.c.h.b16 %v3715
        %v3982 = vunpack.c.l.b16 %v3716
        %v3983 = vunpack.c.l.b16 %v3717
        %v3984 = vunpack.c.h.b16 %v3717
        %v3985 = vunpack.c.l.b16 %v3718
        %v3986 = vunpack.c.l.b16 %v3719
        %v3987 = vunpack.c.h.b16 %v3719
        %v3988 = vunpack.c.l.b16 %v3720
        %v3989 = vunpack.c.l.b16 %v3721
        %v3990 = vunpack.c.h.b16 %v3721
        %v3991 = vunpack.c.l.b16 %v3722
        %v3992 = vunpack.c.l.b16 %v3723
        %v3993 = vunpack.c.h.b16 %v3723
        %v3994 = vunpack.c.l.b16 %v3724
        %v3995 = vunpack.c.l.b16 %v3725
        %v3996 = vunpack.c.h.b16 %v3725
        %v3997 = vunpack.c.l.b16 %v3726
        %v3998 = vunpack.c.l.b16 %v3727
        %v3999 = vunpack.c.h.b16 %v3727
        %v4000 = vunpack.c.l.b16 %v3728
        %v4001 = vunpack.c.l.b16 %v3729
        %v4002 = vunpack.c.h.b16 %v3729
        %v4003 = vunpack.c.l.b16 %v3730
        %v4004 = vunpack.c.l.b16 %v3731
        %v4005 = vunpack.c.h.b16 %v3731
        %v4006 = vunpack.c.l.b16 %v3732
        %v4007 = vunpack.c.l.b16 %v3733
        %v4008 = vunpack.c.h.b16 %v3733
        %v4009 = vunpack.c.l.b16 %v3734
        %v4010 = vunpack.c.l.b16 %v3735
        %v4011 = vunpack.c.h.b16 %v3735
        %v4012 = vunpack.c.l.b16 %v3736
        %v4013 = vunpack.c.l.b16 %v3737
        %v4014 = vunpack.c.h.b16 %v3737
        %v4015 = vunpack.c.l.b16 %v3738
        %v4016 = vunpack.c.l.b16 %v3739
        %v4017 = vunpack.c.h.b16 %v3739
        %v4018 = vunpack.c.l.b16 %v3740
        %v4019 = vunpack.c.l.b16 %v3741
        %v4020 = vunpack.c.h.b16 %v3741
        %v4021 = vunpack.c.l.b16 %v3742
        %v4022 = vunpack.c.l.b16 %v3743
        %v4023 = vunpack.c.h.b16 %v3743
        %v4024 = vunpack.c.l.b16 %v3744
        %v4025 = vunpack.c.l.b16 %v3745
        %v4026 = vunpack.c.h.b16 %v3745
        %v4027 = vunpack.c.l.b16 %v3746
        %v4028 = vunpack.c.l.b16 %v3747
        %v4029 = vunpack.c.h.b16 %v3747
        %v4030 = vunpack.c.l.b16 %v3748
        %v4031 = vunpack.c.l.b16 %v3749
        %v4032 = vunpack.c.h.b16 %v3749
        %v4033 = vunpack.c.l.b16 %v3750
        %v4034 = vunpack.c.l.b16 %v3751
        %v4035 = vunpack.c.h.b16 %v3751
        %v4036 = vunpack.c.l.b16 %v3752
        %v4037 = vunpack.c.l.b16 %v3753
        %v4038 = vunpack.c.h.b16 %v3753
        %v4039 = vunpack.c.l.b16 %v3754
        %v4040 = vunpack.c.l.b16 %v3755
        %v4041 = vunpack.c.h.b16 %v3755
        %v4042 = vunpack.c.l.b16 %v3756
        %v4043 = vunpack.c.l.b16 %v3757
        %v4044 = vunpack.c.h.b16 %v3757
        %v4045 = vunpack.c.l.b16 %v3758
        %v4046 = vunpack.c.l.b16 %v3759
        %v4047 = vunpack.c.h.b16 %v3759
        %v4048 = vunpack.c.l.b16 %v3760
        %v4049 = vunpack.c.l.b16 %v3761
        %v4050 = vunpack.c.h.b16 %v3761
        %v4051 = vunpack.c.l.b16 %v3762
        %v4052 = vunpack.c.l.b16 %v3763
        %v4053 = vunpack.c.h.b16 %v3763
        %v4054 = vunpack.c.l.b16 %v3764
        %v4055 = vunpack.c.l.b16 %v3765
        %v4056 = vunpack.c.h.b16 %v3765
        %v4057 = vunpack.c.l.b16 %v3766
        %v4058 = vunpack.c.l.b16 %v3767
        %v4059 = vunpack.c.h.b16 %v3767
        %v4060 = vunpack.c.l.b16 %v3768
        %v4061 = vunpack.c.l.b16 %v3769
        %v4062 = vunpack.c.h.b16 %v3769
        %v4063 = vunpack.c.l.b16 %v3770
        %v4064 = vunpack.c.l.b16 %v3771
        %v4065 = vunpack.c.h.b16 %v3771
        %v4066 = vunpack.c.l.b16 %v3772
        %v4067 = vunpack.c.l.b16 %v3773
        %v4068 = vunpack.c.h.b16 %v3773
        %v4069 = vunpack.c.l.b16 %v3774
        %v4070 = vunpack.c.l.b16 %v3775
        %v4071 = vunpack.c.h.b16 %v3775
        %v4072 = vunpack.c.l.b16 %v3776
        %v4073 = vunpack.c.l.b16 %v3777
        %v4074 = vunpack.c.h.b16 %v3777
        %v4075 = vunpack.c.l.b16 %v3778
        %v4076 = vunpack.c.l.b16 %v3779
        %v4077 = vunpack.c.h.b16 %v3779
        %v4078 = vunpack.c.l.b16 %v3780
        %v4079 = vunpack.c.l.b16 %v3781
        %v4080 = vunpack.c.h.b16 %v3781
        %v4081 = vunpack.c.l.b16 %v3782
        %v4082 = vunpack.c.l.b16 %v3783
        %v4083 = vunpack.c.h.b16 %v3783
        %v4084 = vunpack.c.l.b16 %v3784
        %v4085 = vunpack.c.l.b16 %v3785
        %v4086 = vunpack.c.h.b16 %v3785
        %v4087 = vunpack.c.l.b16 %v3786
        %v4088 = vunpack.c.l.b16 %v3787
        %v4089 = vunpack.c.h.b16 %v3787
        %v4090 = vunpack.c.l.b16 %v3788
        %v4091 = vunpack.c.l.b16 %v3789
        %v4092 = vunpack.c.h.b16 %v3789
        %v4093 = vunpack.c.l.b16 %v3790
        %v4094 = vunpack.c.l.b16 %v3791
        %v4095 = vunpack.c.h.b16 %v3791
        %v4096 = vunpack.c.l.b16 %v3792
        %v4097 = vunpack.c.l.b16 %v3793
        %v4098 = vunpack.c.h.b16 %v3793
        %v4099 = vunpack.c.l.b16 %v3794
        %v4100 = vunpack.c.l.b16 %v3795
        %v4101 = vunpack.c.h.b16 %v3795
        %v4102 = vunpack.c.l.b16 %v3796
        %v4103 = vunpack.c.l.b16 %v3797
        %v4104 = vunpack.c.h.b16 %v3797
        %v4105 = vunpack.c.l.b16 %v3798
        %v4106 = vunpack.c.l.b16 %v3799
        %v4107 = vunpack.c.h.b16 %v3799
        %v4108 = vunpack.c.l.b16 %v3800
        %v4109 = vunpack.c.l.b16 %v3801
        %v4110 = vunpack.c.h.b16 %v3801
        %v4111 = vunpack.c.l.b16 %v3802
        %v4112 = vunpack.c.l.b16 %v3803
        %v4113 = vunpack.c.h.b16 %v3803
        %v4114 = vunpack.c.l.b16 %v3804
        %v4115 = vunpack.c.l.b16 %v3805
        %v4116 = vunpack.c.h.b16 %v3805
        %v4117 = vunpack.c.l.b16 %v3806
        %v4118 = vunpack.c.l.b16 %v3807
        %v4119 = vunpack.c.h.b16 %v3807
        %v4120 = vunpack.c.l.b16 %v3808
        %v4121 = vunpack.c.l.b16 %v3809
        %v4122 = vunpack.c.h.b16 %v3809
        %v4123 = vunpack.c.l.b16 %v3810
        %v4124 = vunpack.c.l.b16 %v3811
        %v4125 = vunpack.c.h.b16 %v3811
        %v4126 = vunpack.c.l.b16 %v3812
        %v4127 = vunpack.c.l.b16 %v3813
        %v4128 = vunpack.c.h.b16 %v3813
        %v4129 = vunpack.c.l.b16 %v3814
        %v4130 = vunpack.c.l.b16 %v3815
        %v4131 = vunpack.c.h.b16 %v3815
        %v4132 = vunpack.c.l.b16 %v3816
        %v4133 = vunpack.c.l.b16 %v3817
        %v4134 = vunpack.c.h.b16 %v3817
        %v4135 = vunpack.c.l.b16 %v3818
        %v4136 = vunpack.c.l.b16 %v3819
        %v4137 = vunpack.c.h.b16 %v3819
        %v4138 = vunpack.c.l.b16 %v3820
        %v4139 = vunpack.c.l.b16 %v3821
        %v4140 = vunpack.c.h.b16 %v3821
        %v4141 = vunpack.c.l.b16 %v3822
        %v4142 = vunpack.c.l.b16 %v3823
        %v4143 = vunpack.c.h.b16 %v3823
        %v4144 = vunpack.c.l.b16 %v3824
        %v4145 = vpack.c.b16 %v3956, %v3953
        %v4146 = vpack.c.b16 %v3957, %v3954
        %v4147 = vpack.c.b16 %v3958, %v3955
        %v4148 = vpack.c.b16 %v3962, %v3959
        %v4149 = vpack.c.b16 %v3963, %v3960
        %v4150 = vpack.c.b16 %v3964, %v3961
        %v4151 = vpack.c.b16 %v3968, %v3965
        %v4152 = vpack.c.b16 %v3969, %v3966
        %v4153 = vpack.c.b16 %v3970, %v3967
        %v4154 = vpack.c.b16 %v3974, %v3971
        %v4155 = vpack.c.b16 %v3975, %v3972
        %v4156 = vpack.c.b16 %v3976, %v3973
        %v4157 = vpack.c.b16 %v3980, %v3977
        %v4158 = vpack.c.b16 %v3981, %v3978
        %v4159 = vpack.c.b16 %v3982, %v3979
        %v4160 = vpack.c.b16 %v3986, %v3983
        %v4161 = vpack.c.b16 %v3987, %v3984
        %v4162 = vpack.c.b16 %v3988, %v3985
        %v4163 = vpack.c.b16 %v3992, %v3989
        %v4164 = vpack.c.b16 %v3993, %v3990
        %v4165 = vpack.c.b16 %v3994, %v3991
        %v4166 = vpack.c.b16 %v3998, %v3995
        %v4167 = vpack.c.b16 %v3999, %v3996
        %v4168 = vpack.c.b16 %v4000, %v3997
        %v4169 = vpack.c.b16 %v4004, %v4001
        %v4170 = vpack.c.b16 %v4005, %v4002
        %v4171 = vpack.c.b16 %v4006, %v4003
        %v4172 = vpack.c.b16 %v4010, %v4007
        %v4173 = vpack.c.b16 %v4011, %v4008
        %v4174 = vpack.c.b16 %v4012, %v4009
        %v4175 = vpack.c.b16 %v4016, %v4013
        %v4176 = vpack.c.b16 %v4017, %v4014
        %v4177 = vpack.c.b16 %v4018, %v4015
        %v4178 = vpack.c.b16 %v4022, %v4019
        %v4179 = vpack.c.b16 %v4023, %v4020
        %v4180 = vpack.c.b16 %v4024, %v4021
        %v4181 = vpack.c.b16 %v4028, %v4025
        %v4182 = vpack.c.b16 %v4029, %v4026
        %v4183 = vpack.c.b16 %v4030, %v4027
        %v4184 = vpack.c.b16 %v4034, %v4031
        %v4185 = vpack.c.b16 %v4035, %v4032
        %v4186 = vpack.c.b16 %v4036, %v4033
        %v4187 = vpack.c.b16 %v4040, %v4037
        %v4188 = vpack.c.b16 %v4041, %v4038
        %v4189 = vpack.c.b16 %v4042, %v4039
        %v4190 = vpack.c.b16 %v4046, %v4043
        %v4191 = vpack.c.b16 %v4047, %v4044
        %v4192 = vpack.c.b16 %v4048, %v4045
        %v4193 = vpack.c.b16 %v4052, %v4049
        %v4194 = vpack.c.b16 %v4053, %v4050
        %v4195 = vpack.c.b16 %v4054, %v4051
        %v4196 = vpack.c.b16 %v4058, %v4055
        %v4197 = vpack.c.b16 %v4059, %v4056
        %v4198 = vpack.c.b16 %v4060, %v4057
        %v4199 = vpack.c.b16 %v4064, %v4061
        %v4200 = vpack.c.b16 %v4065, %v4062
        %v4201 = vpack.c.b16 %v4066, %v4063
        %v4202 = vpack.c.b16 %v4070, %v4067
        %v4203 = vpack.c.b16 %v4071, %v4068
        %v4204 = vpack.c.b16 %v4072, %v4069
        %v4205 = vpack.c.b16 %v4076, %v4073
        %v4206 = vpack.c.b16 %v4077, %v4074
        %v4207 = vpack.c.b16 %v4078, %v4075
        %v4208 = vpack.c.b16 %v4082, %v4079
        %v4209 = vpack.c.b16 %v4083, %v4080
        %v4210 = vpack.c.b16 %v4084, %v4081
        %v4211 = vpack.c.b16 %v4088, %v4085
        %v4212 = vpack.c.b16 %v4089, %v4086
        %v4213 = vpack.c.b16 %v4090, %v4087
        %v4214 = vpack.c.b16 %v4094, %v4091
        %v4215 = vpack.c.b16 %v4095, %v4092
        %v4216 = vpack.c.b16 %v4096, %v4093
        %v4217 = vpack.c.b16 %v4100, %v4097
        %v4218 = vpack.c.b16 %v4101, %v4098
        %v4219 = vpack.c.b16 %v4102, %v4099
        %v4220 = vpack.c.b16 %v4106, %v4103
        %v4221 = vpack.c.b16 %v4107, %v4104
        %v4222 = vpack.c.b16 %v4108, %v4105
        %v4223 = vpack.c.b16 %v4112, %v4109
        %v4224 = vpack.c.b16 %v4113, %v4110
        %v4225 = vpack.c.b16 %v4114, %v4111
        %v4226 = vpack.c.b16 %v4118, %v4115
        %v4227 = vpack.c.b16 %v4119, %v4116
        %v4228 = vpack.c.b16 %v4120, %v4117
        %v4229 = vpack.c.b16 %v4124, %v4121
        %v4230 = vpack.c.b16 %v4125, %v4122
        %v4231 = vpack.c.b16 %v4126, %v4123
        %v4232 = vpack.c.b16 %v4130, %v4127
        %v4233 = vpack.c.b16 %v4131, %v4128
        %v4234 = vpack.c.b16 %v4132, %v4129
        %v4235 = vpack.c.b16 %v4136, %v4133
        %v4236 = vpack.c.b16 %v4137, %v4134
        %v4237 = vpack.c.b16 %v4138, %v4135
        %v4238 = vpack.c.b16 %v4142, %v4139
        %v4239 = vpack.c.b16 %v4143, %v4140
        %v4240 = vpack.c.b16 %v4144, %v4141
        %4337 = vmatprep.subr.bf16.mxu0 %v4146
        %4338 = vmatpush1.bf16.msra.mxu0 %v4145
        %4339 = vmatprep.subr.bf16.mxu0 %v4149
        %4340 = vmatpush1.bf16.msra.mxu0 %v4148
        %4341 = vmatprep.subr.bf16.mxu0 %v4152
        %4342 = vmatpush1.bf16.msra.mxu0 %v4151
        %4343 = vmatprep.subr.bf16.mxu0 %v4155
        %4344 = vmatpush1.bf16.msra.mxu0 %v4154
        %4345 = vmatprep.subr.bf16.mxu0 %v4158
        %4346 = vmatpush1.bf16.msra.mxu0 %v4157
        %4347 = vmatprep.subr.bf16.mxu0 %v4161
        %4348 = vmatpush1.bf16.msra.mxu0 %v4160
        %4349 = vmatprep.subr.bf16.mxu0 %v4164
        %4350 = vmatpush1.bf16.msra.mxu0 %v4163
        %4351 = vmatprep.subr.bf16.mxu0 %v4167
        %4352 = vmatpush1.bf16.msra.mxu0 %v4166
        %4353 = vmatprep.subr.bf16.mxu0 %v4170
        %4354 = vmatpush1.bf16.msra.mxu0 %v4169
        %4355 = vmatprep.subr.bf16.mxu0 %v4173
        %4356 = vmatpush1.bf16.msra.mxu0 %v4172
        %4357 = vmatprep.subr.bf16.mxu0 %v4176
        %4358 = vmatpush1.bf16.msra.mxu0 %v4175
        %4359 = vmatprep.subr.bf16.mxu0 %v4179
        %4360 = vmatpush1.bf16.msra.mxu0 %v4178
        %4361 = vmatprep.subr.bf16.mxu0 %v4182
        %4362 = vmatpush1.bf16.msra.mxu0 %v4181
        %4363 = vmatprep.subr.bf16.mxu0 %v4185
        %4364 = vmatpush1.bf16.msra.mxu0 %v4184
        %4365 = vmatprep.subr.bf16.mxu0 %v4188
        %4366 = vmatpush1.bf16.msra.mxu0 %v4187
        %4367 = vmatprep.subr.bf16.mxu0 %v4191
        %4368 = vmatpush1.bf16.msra.mxu0 %v4190
        %4369 = vmatprep.mubr.bf16.mxu0 %v3634
        %4370 = vmatmul.mubr.bf16.gmra.mrb[0].mxu0 %v3633
        %v4371 = vpop.f32.mrb[0].mxu0
        %v4372 = vadd.f32 0.0, %v4371
        %v4373 = vpop.f32.mrb[0].mxu0
        %v4374 = vadd.f32 0.0, %v4373
        %v4375 = vpop.f32.mrb[0].mxu0
        %v4376 = vadd.f32 0.0, %v4375
        %v4377 = vpop.f32.mrb[0].mxu0
        %v4378 = vadd.f32 0.0, %v4377
        %4379 = vmatprep.mubr.bf16.mxu0 %v3638
        %4380 = vmatmul.mubr.bf16.gmra.mrb[0].mxu0 %v3637
        %v4381 = vpop.f32.mrb[0].mxu0
        %v4382 = vadd.f32 0.0, %v4381
        %v4383 = vpop.f32.mrb[0].mxu0
        %v4384 = vadd.f32 0.0, %v4383
        %v4385 = vpop.f32.mrb[0].mxu0
        %v4386 = vadd.f32 0.0, %v4385
        %v4387 = vpop.f32.mrb[0].mxu0
        %v4388 = vadd.f32 0.0, %v4387
        %4389 = vmatprep.mubr.bf16.mxu0 %v3642
        %4390 = vmatmul.mubr.bf16.gmra.mrb[0].mxu0 %v3641
        %v4391 = vpop.f32.mrb[0].mxu0
        %v4392 = vadd.f32 0.0, %v4391
        %v4393 = vpop.f32.mrb[0].mxu0
        %v4394 = vadd.f32 0.0, %v4393
        %v4395 = vpop.f32.mrb[0].mxu0
        %v4396 = vadd.f32 0.0, %v4395
        %v4397 = vpop.f32.mrb[0].mxu0
        %v4398 = vadd.f32 0.0, %v4397
        %4399 = vmatprep.mubr.bf16.mxu0 %v3646
        %4400 = vmatmul.mubr.bf16.gmra.mrb[0].mxu0 %v3645
        %v4401 = vpop.f32.mrb[0].mxu0
        %v4402 = vadd.f32 0.0, %v4401
        %v4403 = vpop.f32.mrb[0].mxu0
        %v4404 = vadd.f32 0.0, %v4403
        %v4405 = vpop.f32.mrb[0].mxu0
        %v4406 = vadd.f32 0.0, %v4405
        %v4407 = vpop.f32.mrb[0].mxu0
        %v4408 = vadd.f32 0.0, %v4407
        %4409 = vmatprep.mubr.bf16.mxu0 %v3650
        %4410 = vmatmul.mubr.bf16.gmra.mrb[0].mxu0 %v3649
        %v4411 = vpop.f32.mrb[0].mxu0
        %v4412 = vadd.f32 0.0, %v4411
        %v4413 = vpop.f32.mrb[0].mxu0
        %v4414 = vadd.f32 0.0, %v4413
        %v4415 = vpop.f32.mrb[0].mxu0
        %v4416 = vadd.f32 0.0, %v4415
        %v4417 = vpop.f32.mrb[0].mxu0
        %v4418 = vadd.f32 0.0, %v4417
        %4419 = vmatprep.mubr.bf16.mxu0 %v3654
        %4420 = vmatmul.mubr.bf16.gmra.mrb[0].mxu0 %v3653
        %v4421 = vpop.f32.mrb[0].mxu0
        %v4422 = vadd.f32 0.0, %v4421
        %v4423 = vpop.f32.mrb[0].mxu0
        %v4424 = vadd.f32 0.0, %v4423
        %v4425 = vpop.f32.mrb[0].mxu0
        %v4426 = vadd.f32 0.0, %v4425
        %v4427 = vpop.f32.mrb[0].mxu0
        %v4428 = vadd.f32 0.0, %v4427
        %4429 = vmatprep.mubr.bf16.mxu0 %v3658
        %4430 = vmatmul.mubr.bf16.gmra.mrb[0].mxu0 %v3657
        %v4431 = vpop.f32.mrb[0].mxu0
        %v4432 = vadd.f32 0.0, %v4431
        %v4433 = vpop.f32.mrb[0].mxu0
        %v4434 = vadd.f32 0.0, %v4433
        %v4435 = vpop.f32.mrb[0].mxu0
        %v4436 = vadd.f32 0.0, %v4435
        %v4437 = vpop.f32.mrb[0].mxu0
        %v4438 = vadd.f32 0.0, %v4437
        %4439 = vmatprep.mubr.bf16.mxu0 %v3662
        %4440 = vmatmul.mubr.bf16.gmra.mrb[0].mxu0 %v3661
        %v4441 = vpop.f32.mrb[0].mxu0
        %v4442 = vadd.f32 0.0, %v4441
        %v4443 = vpop.f32.mrb[0].mxu0
        %v4444 = vadd.f32 0.0, %v4443
        %v4445 = vpop.f32.mrb[0].mxu0
        %v4446 = vadd.f32 0.0, %v4445
        %v4447 = vpop.f32.mrb[0].mxu0
        %v4448 = vadd.f32 0.0, %v4447
        %4449 = vmatprep.mubr.bf16.mxu0 %v3666
        %4450 = vmatmul.mubr.bf16.gmra.mrb[0].mxu0 %v3665
        %v4451 = vpop.f32.mrb[0].mxu0
        %v4452 = vadd.f32 0.0, %v4451
        %v4453 = vpop.f32.mrb[0].mxu0
        %v4454 = vadd.f32 0.0, %v4453
        %v4455 = vpop.f32.mrb[0].mxu0
        %v4456 = vadd.f32 0.0, %v4455
        %v4457 = vpop.f32.mrb[0].mxu0
        %v4458 = vadd.f32 0.0, %v4457
        %4459 = vmatprep.mubr.bf16.mxu0 %v3670
        %4460 = vmatmul.mubr.bf16.gmra.mrb[0].mxu0 %v3669
        %v4461 = vpop.f32.mrb[0].mxu0
        %v4462 = vadd.f32 0.0, %v4461
        %v4463 = vpop.f32.mrb[0].mxu0
        %v4464 = vadd.f32 0.0, %v4463
        %v4465 = vpop.f32.mrb[0].mxu0
        %v4466 = vadd.f32 0.0, %v4465
        %v4467 = vpop.f32.mrb[0].mxu0
        %v4468 = vadd.f32 0.0, %v4467
        %4469 = vmatprep.mubr.bf16.mxu0 %v3674
        %4470 = vmatmul.mubr.bf16.gmra.mrb[0].mxu0 %v3673
        %v4471 = vpop.f32.mrb[0].mxu0
        %v4472 = vadd.f32 0.0, %v4471
        %v4473 = vpop.f32.mrb[0].mxu0
        %v4474 = vadd.f32 0.0, %v4473
        %v4475 = vpop.f32.mrb[0].mxu0
        %v4476 = vadd.f32 0.0, %v4475
        %v4477 = vpop.f32.mrb[0].mxu0
        %v4478 = vadd.f32 0.0, %v4477
        %4479 = vmatprep.mubr.bf16.mxu0 %v3678
        %4480 = vmatmul.mubr.bf16.gmra.mrb[0].mxu0 %v3677
        %v4481 = vpop.f32.mrb[0].mxu0
        %v4482 = vadd.f32 0.0, %v4481
        %v4483 = vpop.f32.mrb[0].mxu0
        %v4484 = vadd.f32 0.0, %v4483
        %v4485 = vpop.f32.mrb[0].mxu0
        %v4486 = vadd.f32 0.0, %v4485
        %v4487 = vpop.f32.mrb[0].mxu0
        %v4488 = vadd.f32 0.0, %v4487
        %4489 = vmatprep.mubr.bf16.mxu0 %v3682
        %4490 = vmatmul.mubr.bf16.gmra.mrb[0].mxu0 %v3681
        %v4491 = vpop.f32.mrb[0].mxu0
        %v4492 = vadd.f32 0.0, %v4491
        %v4493 = vpop.f32.mrb[0].mxu0
        %v4494 = vadd.f32 0.0, %v4493
        %v4495 = vpop.f32.mrb[0].mxu0
        %v4496 = vadd.f32 0.0, %v4495
        %v4497 = vpop.f32.mrb[0].mxu0
        %v4498 = vadd.f32 0.0, %v4497
        %4499 = vmatprep.mubr.bf16.mxu0 %v3686
        %4500 = vmatmul.mubr.bf16.gmra.mrb[0].mxu0 %v3685
        %v4501 = vpop.f32.mrb[0].mxu0
        %v4502 = vadd.f32 0.0, %v4501
        %v4503 = vpop.f32.mrb[0].mxu0
        %v4504 = vadd.f32 0.0, %v4503
        %v4505 = vpop.f32.mrb[0].mxu0
        %v4506 = vadd.f32 0.0, %v4505
        %v4507 = vpop.f32.mrb[0].mxu0
        %v4508 = vadd.f32 0.0, %v4507
        %4509 = vmatprep.mubr.bf16.mxu0 %v3690
        %4510 = vmatmul.mubr.bf16.gmra.mrb[0].mxu0 %v3689
        %v4511 = vpop.f32.mrb[0].mxu0
        %v4512 = vadd.f32 0.0, %v4511
        %v4513 = vpop.f32.mrb[0].mxu0
        %v4514 = vadd.f32 0.0, %v4513
        %v4515 = vpop.f32.mrb[0].mxu0
        %v4516 = vadd.f32 0.0, %v4515
        %v4517 = vpop.f32.mrb[0].mxu0
        %v4518 = vadd.f32 0.0, %v4517
        %4519 = vmatprep.mubr.bf16.mxu0 %v3694
        %4520 = vmatmul.mubr.bf16.gmra.mrb[0].mxu0 %v3693
        %v4521 = vpop.f32.mrb[0].mxu0
        %v4522 = vadd.f32 0.0, %v4521
        %v4523 = vpop.f32.mrb[0].mxu0
        %v4524 = vadd.f32 0.0, %v4523
        %v4525 = vpop.f32.mrb[0].mxu0
        %v4526 = vadd.f32 0.0, %v4525
        %v4527 = vpop.f32.mrb[0].mxu0
        %v4528 = vadd.f32 0.0, %v4527
        %4529 = vdwg.mxu0
        %4530 = vmatprep.subr.bf16.mxu0 %v4194
        %4531 = vmatpush1.bf16.msra.mxu0 %v4193
        %4532 = vmatprep.subr.bf16.mxu0 %v4197
        %4533 = vmatpush1.bf16.msra.mxu0 %v4196
        %4534 = vmatprep.subr.bf16.mxu0 %v4200
        %4535 = vmatpush1.bf16.msra.mxu0 %v4199
        %4536 = vmatprep.subr.bf16.mxu0 %v4203
        %4537 = vmatpush1.bf16.msra.mxu0 %v4202
        %4538 = vmatprep.subr.bf16.mxu0 %v4206
        %4539 = vmatpush1.bf16.msra.mxu0 %v4205
        %4540 = vmatprep.subr.bf16.mxu0 %v4209
        %4541 = vmatpush1.bf16.msra.mxu0 %v4208
        %4542 = vmatprep.subr.bf16.mxu0 %v4212
        %4543 = vmatpush1.bf16.msra.mxu0 %v4211
        %4544 = vmatprep.subr.bf16.mxu0 %v4215
        %4545 = vmatpush1.bf16.msra.mxu0 %v4214
        %4546 = vmatprep.subr.bf16.mxu0 %v4218
        %4547 = vmatpush1.bf16.msra.mxu0 %v4217
        %4548 = vmatprep.subr.bf16.mxu0 %v4221
        %4549 = vmatpush1.bf16.msra.mxu0 %v4220
        %4550 = vmatprep.subr.bf16.mxu0 %v4224
        %4551 = vmatpush1.bf16.msra.mxu0 %v4223
        %4552 = vmatprep.subr.bf16.mxu0 %v4227
        %4553 = vmatpush1.bf16.msra.mxu0 %v4226
        %4554 = vmatprep.subr.bf16.mxu0 %v4230
        %4555 = vmatpush1.bf16.msra.mxu0 %v4229
        %4556 = vmatprep.subr.bf16.mxu0 %v4233
        %4557 = vmatpush1.bf16.msra.mxu0 %v4232
        %4558 = vmatprep.subr.bf16.mxu0 %v4236
        %4559 = vmatpush1.bf16.msra.mxu0 %v4235
        %4560 = vmatprep.subr.bf16.mxu0 %v4239
        %4561 = vmatpush1.bf16.msra.mxu0 %v4238
        %4562 = vmatprep.mubr.bf16.mxu0 %v3636
        %4563 = vmatmul.mubr.bf16.gmra.mrb[0].mxu0 %v3635
        %v4564 = vpop.f32.mrb[0].mxu0
        %v4565 = vadd.f32 %v4372, %v4564
        %v4566 = vpop.f32.mrb[0].mxu0
        %v4567 = vadd.f32 %v4374, %v4566
        %v4568 = vpop.f32.mrb[0].mxu0
        %v4569 = vadd.f32 %v4376, %v4568
        %v4570 = vpop.f32.mrb[0].mxu0
        %v4571 = vadd.f32 %v4378, %v4570
        %4572 = vmatprep.mubr.bf16.mxu0 %v3640
        %4573 = vmatmul.mubr.bf16.gmra.mrb[0].mxu0 %v3639
        %v4574 = vpop.f32.mrb[0].mxu0
        %v4575 = vadd.f32 %v4382, %v4574
        %v4576 = vpop.f32.mrb[0].mxu0
        %v4577 = vadd.f32 %v4384, %v4576
        %v4578 = vpop.f32.mrb[0].mxu0
        %v4579 = vadd.f32 %v4386, %v4578
        %v4580 = vpop.f32.mrb[0].mxu0
        %v4581 = vadd.f32 %v4388, %v4580
        %4582 = vmatprep.mubr.bf16.mxu0 %v3644
        %4583 = vmatmul.mubr.bf16.gmra.mrb[0].mxu0 %v3643
        %v4584 = vpop.f32.mrb[0].mxu0
        %v4585 = vadd.f32 %v4392, %v4584
        %v4586 = vpop.f32.mrb[0].mxu0
        %v4587 = vadd.f32 %v4394, %v4586
        %v4588 = vpop.f32.mrb[0].mxu0
        %v4589 = vadd.f32 %v4396, %v4588
        %v4590 = vpop.f32.mrb[0].mxu0
        %v4591 = vadd.f32 %v4398, %v4590
        %4592 = vmatprep.mubr.bf16.mxu0 %v3648
        %4593 = vmatmul.mubr.bf16.gmra.mrb[0].mxu0 %v3647
        %v4594 = vpop.f32.mrb[0].mxu0
        %v4595 = vadd.f32 %v4402, %v4594
        %v4596 = vpop.f32.mrb[0].mxu0
        %v4597 = vadd.f32 %v4404, %v4596
        %v4598 = vpop.f32.mrb[0].mxu0
        %v4599 = vadd.f32 %v4406, %v4598
        %v4600 = vpop.f32.mrb[0].mxu0
        %v4601 = vadd.f32 %v4408, %v4600
        %4602 = vmatprep.mubr.bf16.mxu0 %v3652
        %4603 = vmatmul.mubr.bf16.gmra.mrb[0].mxu0 %v3651
        %v4604 = vpop.f32.mrb[0].mxu0
        %v4605 = vadd.f32 %v4412, %v4604
        %v4606 = vpop.f32.mrb[0].mxu0
        %v4607 = vadd.f32 %v4414, %v4606
        %v4608 = vpop.f32.mrb[0].mxu0
        %v4609 = vadd.f32 %v4416, %v4608
        %v4610 = vpop.f32.mrb[0].mxu0
        %v4611 = vadd.f32 %v4418, %v4610
        %4612 = vmatprep.mubr.bf16.mxu0 %v3656
        %4613 = vmatmul.mubr.bf16.gmra.mrb[0].mxu0 %v3655
        %v4614 = vpop.f32.mrb[0].mxu0
        %v4615 = vadd.f32 %v4422, %v4614
        %v4616 = vpop.f32.mrb[0].mxu0
        %v4617 = vadd.f32 %v4424, %v4616
        %v4618 = vpop.f32.mrb[0].mxu0
        %v4619 = vadd.f32 %v4426, %v4618
        %v4620 = vpop.f32.mrb[0].mxu0
        %v4621 = vadd.f32 %v4428, %v4620
        %4622 = vmatprep.mubr.bf16.mxu0 %v3660
        %4623 = vmatmul.mubr.bf16.gmra.mrb[0].mxu0 %v3659
        %v4624 = vpop.f32.mrb[0].mxu0
        %v4625 = vadd.f32 %v4432, %v4624
        %v4626 = vpop.f32.mrb[0].mxu0
        %v4627 = vadd.f32 %v4434, %v4626
        %v4628 = vpop.f32.mrb[0].mxu0
        %v4629 = vadd.f32 %v4436, %v4628
        %v4630 = vpop.f32.mrb[0].mxu0
        %v4631 = vadd.f32 %v4438, %v4630
        %4632 = vmatprep.mubr.bf16.mxu0 %v3664
        %4633 = vmatmul.mubr.bf16.gmra.mrb[0].mxu0 %v3663
        %v4634 = vpop.f32.mrb[0].mxu0
        %v4635 = vadd.f32 %v4442, %v4634
        %v4636 = vpop.f32.mrb[0].mxu0
        %v4637 = vadd.f32 %v4444, %v4636
        %v4638 = vpop.f32.mrb[0].mxu0
        %v4639 = vadd.f32 %v4446, %v4638
        %v4640 = vpop.f32.mrb[0].mxu0
        %v4641 = vadd.f32 %v4448, %v4640
        %4642 = vmatprep.mubr.bf16.mxu0 %v3668
        %4643 = vmatmul.mubr.bf16.gmra.mrb[0].mxu0 %v3667
        %v4644 = vpop.f32.mrb[0].mxu0
        %v4645 = vadd.f32 %v4452, %v4644
        %v4646 = vpop.f32.mrb[0].mxu0
        %v4647 = vadd.f32 %v4454, %v4646
        %v4648 = vpop.f32.mrb[0].mxu0
        %v4649 = vadd.f32 %v4456, %v4648
        %v4650 = vpop.f32.mrb[0].mxu0
        %v4651 = vadd.f32 %v4458, %v4650
        %4652 = vmatprep.mubr.bf16.mxu0 %v3672
        %4653 = vmatmul.mubr.bf16.gmra.mrb[0].mxu0 %v3671
        %v4654 = vpop.f32.mrb[0].mxu0
        %v4655 = vadd.f32 %v4462, %v4654
        %v4656 = vpop.f32.mrb[0].mxu0
        %v4657 = vadd.f32 %v4464, %v4656
        %v4658 = vpop.f32.mrb[0].mxu0
        %v4659 = vadd.f32 %v4466, %v4658
        %v4660 = vpop.f32.mrb[0].mxu0
        %v4661 = vadd.f32 %v4468, %v4660
        %4662 = vmatprep.mubr.bf16.mxu0 %v3676
        %4663 = vmatmul.mubr.bf16.gmra.mrb[0].mxu0 %v3675
        %v4664 = vpop.f32.mrb[0].mxu0
        %v4665 = vadd.f32 %v4472, %v4664
        %v4666 = vpop.f32.mrb[0].mxu0
        %v4667 = vadd.f32 %v4474, %v4666
        %v4668 = vpop.f32.mrb[0].mxu0
        %v4669 = vadd.f32 %v4476, %v4668
        %v4670 = vpop.f32.mrb[0].mxu0
        %v4671 = vadd.f32 %v4478, %v4670
        %4672 = vmatprep.mubr.bf16.mxu0 %v3680
        %4673 = vmatmul.mubr.bf16.gmra.mrb[0].mxu0 %v3679
        %v4674 = vpop.f32.mrb[0].mxu0
        %v4675 = vadd.f32 %v4482, %v4674
        %v4676 = vpop.f32.mrb[0].mxu0
        %v4677 = vadd.f32 %v4484, %v4676
        %v4678 = vpop.f32.mrb[0].mxu0
        %v4679 = vadd.f32 %v4486, %v4678
        %v4680 = vpop.f32.mrb[0].mxu0
        %v4681 = vadd.f32 %v4488, %v4680
        %4682 = vmatprep.mubr.bf16.mxu0 %v3684
        %4683 = vmatmul.mubr.bf16.gmra.mrb[0].mxu0 %v3683
        %v4684 = vpop.f32.mrb[0].mxu0
        %v4685 = vadd.f32 %v4492, %v4684
        %v4686 = vpop.f32.mrb[0].mxu0
        %v4687 = vadd.f32 %v4494, %v4686
        %v4688 = vpop.f32.mrb[0].mxu0
        %v4689 = vadd.f32 %v4496, %v4688
        %v4690 = vpop.f32.mrb[0].mxu0
        %v4691 = vadd.f32 %v4498, %v4690
        %4692 = vmatprep.mubr.bf16.mxu0 %v3688
        %4693 = vmatmul.mubr.bf16.gmra.mrb[0].mxu0 %v3687
        %v4694 = vpop.f32.mrb[0].mxu0
        %v4695 = vadd.f32 %v4502, %v4694
        %v4696 = vpop.f32.mrb[0].mxu0
        %v4697 = vadd.f32 %v4504, %v4696
        %v4698 = vpop.f32.mrb[0].mxu0
        %v4699 = vadd.f32 %v4506, %v4698
        %v4700 = vpop.f32.mrb[0].mxu0
        %v4701 = vadd.f32 %v4508, %v4700
        %4702 = vmatprep.mubr.bf16.mxu0 %v3692
        %4703 = vmatmul.mubr.bf16.gmra.mrb[0].mxu0 %v3691
        %v4704 = vpop.f32.mrb[0].mxu0
        %v4705 = vadd.f32 %v4512, %v4704
        %v4706 = vpop.f32.mrb[0].mxu0
        %v4707 = vadd.f32 %v4514, %v4706
        %v4708 = vpop.f32.mrb[0].mxu0
        %v4709 = vadd.f32 %v4516, %v4708
        %v4710 = vpop.f32.mrb[0].mxu0
        %v4711 = vadd.f32 %v4518, %v4710
        %4712 = vmatprep.mubr.bf16.mxu0 %v3696
        %4713 = vmatmul.mubr.bf16.gmra.mrb[0].mxu0 %v3695
        %v4714 = vpop.f32.mrb[0].mxu0
        %v4715 = vadd.f32 %v4522, %v4714
        %v4716 = vpop.f32.mrb[0].mxu0
        %v4717 = vadd.f32 %v4524, %v4716
        %v4718 = vpop.f32.mrb[0].mxu0
        %v4719 = vadd.f32 %v4526, %v4718
        %v4720 = vpop.f32.mrb[0].mxu0
        %v4721 = vadd.f32 %v4528, %v4720
        %4722 = vdwg.mxu0
        %4723 = vmatprep.subr.bf16.mxu0 0
        %4724 = vmatpush1.bf16.msra.mxu0 %v4147
        %4725 = vmatprep.subr.bf16.mxu0 0
        %4726 = vmatpush1.bf16.msra.mxu0 %v4150
        %4727 = vmatprep.subr.bf16.mxu0 0
        %4728 = vmatpush1.bf16.msra.mxu0 %v4153
        %4729 = vmatprep.subr.bf16.mxu0 0
        %4730 = vmatpush1.bf16.msra.mxu0 %v4156
        %4731 = vmatprep.subr.bf16.mxu0 0
        %4732 = vmatpush1.bf16.msra.mxu0 %v4159
        %4733 = vmatprep.subr.bf16.mxu0 0
        %4734 = vmatpush1.bf16.msra.mxu0 %v4162
        %4735 = vmatprep.subr.bf16.mxu0 0
        %4736 = vmatpush1.bf16.msra.mxu0 %v4165
        %4737 = vmatprep.subr.bf16.mxu0 0
        %4738 = vmatpush1.bf16.msra.mxu0 %v4168
        %4739 = vmatprep.subr.bf16.mxu0 0
        %4740 = vmatpush1.bf16.msra.mxu0 %v4171
        %4741 = vmatprep.subr.bf16.mxu0 0
        %4742 = vmatpush1.bf16.msra.mxu0 %v4174
        %4743 = vmatprep.subr.bf16.mxu0 0
        %4744 = vmatpush1.bf16.msra.mxu0 %v4177
        %4745 = vmatprep.subr.bf16.mxu0 0
        %4746 = vmatpush1.bf16.msra.mxu0 %v4180
        %4747 = vmatprep.subr.bf16.mxu0 0
        %4748 = vmatpush1.bf16.msra.mxu0 %v4183
        %4749 = vmatprep.subr.bf16.mxu0 0
        %4750 = vmatpush1.bf16.msra.mxu0 %v4186
        %4751 = vmatprep.subr.bf16.mxu0 0
        %4752 = vmatpush1.bf16.msra.mxu0 %v4189
        %4753 = vmatprep.subr.bf16.mxu0 0
        %4754 = vmatpush1.bf16.msra.mxu0 %v4192
        %4755 = vmatprep.mubr.bf16.mxu0 %v3634
        %4756 = vmatmul.mubr.bf16.gmra.mrb[0].mxu0 %v3633
        %v4757 = vpop.f32.mrb[0].mxu0
        %v4758 = vadd.f32 0.0, %v4757
        %v4759 = vpop.f32.mrb[0].mxu0
        %v4760 = vpop.f32.mrb[0].mxu0
        %v4761 = vadd.f32 0.0, %v4760
        %v4762 = vpop.f32.mrb[0].mxu0
        %4763 = vmatprep.mubr.bf16.mxu0 %v3638
        %4764 = vmatmul.mubr.bf16.gmra.mrb[0].mxu0 %v3637
        %v4765 = vpop.f32.mrb[0].mxu0
        %v4766 = vadd.f32 0.0, %v4765
        %v4767 = vpop.f32.mrb[0].mxu0
        %v4768 = vpop.f32.mrb[0].mxu0
        %v4769 = vadd.f32 0.0, %v4768
        %v4770 = vpop.f32.mrb[0].mxu0
        %4771 = vmatprep.mubr.bf16.mxu0 %v3642
        %4772 = vmatmul.mubr.bf16.gmra.mrb[0].mxu0 %v3641
        %v4773 = vpop.f32.mrb[0].mxu0
        %v4774 = vadd.f32 0.0, %v4773
        %v4775 = vpop.f32.mrb[0].mxu0
        %v4776 = vpop.f32.mrb[0].mxu0
        %v4777 = vadd.f32 0.0, %v4776
        %v4778 = vpop.f32.mrb[0].mxu0
        %4779 = vmatprep.mubr.bf16.mxu0 %v3646
        %4780 = vmatmul.mubr.bf16.gmra.mrb[0].mxu0 %v3645
        %v4781 = vpop.f32.mrb[0].mxu0
        %v4782 = vadd.f32 0.0, %v4781
        %v4783 = vpop.f32.mrb[0].mxu0
        %v4784 = vpop.f32.mrb[0].mxu0
        %v4785 = vadd.f32 0.0, %v4784
        %v4786 = vpop.f32.mrb[0].mxu0
        %4787 = vmatprep.mubr.bf16.mxu0 %v3650
        %4788 = vmatmul.mubr.bf16.gmra.mrb[0].mxu0 %v3649
        %v4789 = vpop.f32.mrb[0].mxu0
        %v4790 = vadd.f32 0.0, %v4789
        %v4791 = vpop.f32.mrb[0].mxu0
        %v4792 = vpop.f32.mrb[0].mxu0
        %v4793 = vadd.f32 0.0, %v4792
        %v4794 = vpop.f32.mrb[0].mxu0
        %4795 = vmatprep.mubr.bf16.mxu0 %v3654
        %4796 = vmatmul.mubr.bf16.gmra.mrb[0].mxu0 %v3653
        %v4797 = vpop.f32.mrb[0].mxu0
        %v4798 = vadd.f32 0.0, %v4797
        %v4799 = vpop.f32.mrb[0].mxu0
        %v4800 = vpop.f32.mrb[0].mxu0
        %v4801 = vadd.f32 0.0, %v4800
        %v4802 = vpop.f32.mrb[0].mxu0
        %4803 = vmatprep.mubr.bf16.mxu0 %v3658
        %4804 = vmatmul.mubr.bf16.gmra.mrb[0].mxu0 %v3657
        %v4805 = vpop.f32.mrb[0].mxu0
        %v4806 = vadd.f32 0.0, %v4805
        %v4807 = vpop.f32.mrb[0].mxu0
        %v4808 = vpop.f32.mrb[0].mxu0
        %v4809 = vadd.f32 0.0, %v4808
        %v4810 = vpop.f32.mrb[0].mxu0
        %4811 = vmatprep.mubr.bf16.mxu0 %v3662
        %4812 = vmatmul.mubr.bf16.gmra.mrb[0].mxu0 %v3661
        %v4813 = vpop.f32.mrb[0].mxu0
        %v4814 = vadd.f32 0.0, %v4813
        %v4815 = vpop.f32.mrb[0].mxu0
        %v4816 = vpop.f32.mrb[0].mxu0
        %v4817 = vadd.f32 0.0, %v4816
        %v4818 = vpop.f32.mrb[0].mxu0
        %4819 = vmatprep.mubr.bf16.mxu0 %v3666
        %4820 = vmatmul.mubr.bf16.gmra.mrb[0].mxu0 %v3665
        %v4821 = vpop.f32.mrb[0].mxu0
        %v4822 = vadd.f32 0.0, %v4821
        %v4823 = vpop.f32.mrb[0].mxu0
        %v4824 = vpop.f32.mrb[0].mxu0
        %v4825 = vadd.f32 0.0, %v4824
        %v4826 = vpop.f32.mrb[0].mxu0
        %4827 = vmatprep.mubr.bf16.mxu0 %v3670
        %4828 = vmatmul.mubr.bf16.gmra.mrb[0].mxu0 %v3669
        %v4829 = vpop.f32.mrb[0].mxu0
        %v4830 = vadd.f32 0.0, %v4829
        %v4831 = vpop.f32.mrb[0].mxu0
        %v4832 = vpop.f32.mrb[0].mxu0
        %v4833 = vadd.f32 0.0, %v4832
        %v4834 = vpop.f32.mrb[0].mxu0
        %4835 = vmatprep.mubr.bf16.mxu0 %v3674
        %4836 = vmatmul.mubr.bf16.gmra.mrb[0].mxu0 %v3673
        %v4837 = vpop.f32.mrb[0].mxu0
        %v4838 = vadd.f32 0.0, %v4837
        %v4839 = vpop.f32.mrb[0].mxu0
        %v4840 = vpop.f32.mrb[0].mxu0
        %v4841 = vadd.f32 0.0, %v4840
        %v4842 = vpop.f32.mrb[0].mxu0
        %4843 = vmatprep.mubr.bf16.mxu0 %v3678
        %4844 = vmatmul.mubr.bf16.gmra.mrb[0].mxu0 %v3677
        %v4845 = vpop.f32.mrb[0].mxu0
        %v4846 = vadd.f32 0.0, %v4845
        %v4847 = vpop.f32.mrb[0].mxu0
        %v4848 = vpop.f32.mrb[0].mxu0
        %v4849 = vadd.f32 0.0, %v4848
        %v4850 = vpop.f32.mrb[0].mxu0
        %4851 = vmatprep.mubr.bf16.mxu0 %v3682
        %4852 = vmatmul.mubr.bf16.gmra.mrb[0].mxu0 %v3681
        %v4853 = vpop.f32.mrb[0].mxu0
        %v4854 = vadd.f32 0.0, %v4853
        %v4855 = vpop.f32.mrb[0].mxu0
        %v4856 = vpop.f32.mrb[0].mxu0
        %v4857 = vadd.f32 0.0, %v4856
        %v4858 = vpop.f32.mrb[0].mxu0
        %4859 = vmatprep.mubr.bf16.mxu0 %v3686
        %4860 = vmatmul.mubr.bf16.gmra.mrb[0].mxu0 %v3685
        %v4861 = vpop.f32.mrb[0].mxu0
        %v4862 = vadd.f32 0.0, %v4861
        %v4863 = vpop.f32.mrb[0].mxu0
        %v4864 = vpop.f32.mrb[0].mxu0
        %v4865 = vadd.f32 0.0, %v4864
        %v4866 = vpop.f32.mrb[0].mxu0
        %4867 = vmatprep.mubr.bf16.mxu0 %v3690
        %4868 = vmatmul.mubr.bf16.gmra.mrb[0].mxu0 %v3689
        %v4869 = vpop.f32.mrb[0].mxu0
        %v4870 = vadd.f32 0.0, %v4869
        %v4871 = vpop.f32.mrb[0].mxu0
        %v4872 = vpop.f32.mrb[0].mxu0
        %v4873 = vadd.f32 0.0, %v4872
        %v4874 = vpop.f32.mrb[0].mxu0
        %4875 = vmatprep.mubr.bf16.mxu0 %v3694
        %4876 = vmatmul.mubr.bf16.gmra.mrb[0].mxu0 %v3693
        %v4877 = vpop.f32.mrb[0].mxu0
        %v4878 = vadd.f32 0.0, %v4877
        %v4879 = vpop.f32.mrb[0].mxu0
        %v4880 = vpop.f32.mrb[0].mxu0
        %v4881 = vadd.f32 0.0, %v4880
        %v4882 = vpop.f32.mrb[0].mxu0
        %4883 = vdwg.mxu0
        %4884 = vmatprep.subr.bf16.mxu0 0
        %4885 = vmatpush1.bf16.msra.mxu0 %v4195
        %4886 = vmatprep.subr.bf16.mxu0 0
        %4887 = vmatpush1.bf16.msra.mxu0 %v4198
        %4888 = vmatprep.subr.bf16.mxu0 0
        %4889 = vmatpush1.bf16.msra.mxu0 %v4201
        %4890 = vmatprep.subr.bf16.mxu0 0
        %4891 = vmatpush1.bf16.msra.mxu0 %v4204
        %4892 = vmatprep.subr.bf16.mxu0 0
        %4893 = vmatpush1.bf16.msra.mxu0 %v4207
        %4894 = vmatprep.subr.bf16.mxu0 0
        %4895 = vmatpush1.bf16.msra.mxu0 %v4210
        %4896 = vmatprep.subr.bf16.mxu0 0
        %4897 = vmatpush1.bf16.msra.mxu0 %v4213
        %4898 = vmatprep.subr.bf16.mxu0 0
        %4899 = vmatpush1.bf16.msra.mxu0 %v4216
        %4900 = vmatprep.subr.bf16.mxu0 0
        %4901 = vmatpush1.bf16.msra.mxu0 %v4219
        %4902 = vmatprep.subr.bf16.mxu0 0
        %4903 = vmatpush1.bf16.msra.mxu0 %v4222
        %4904 = vmatprep.subr.bf16.mxu0 0
        %4905 = vmatpush1.bf16.msra.mxu0 %v4225
        %4906 = vmatprep.subr.bf16.mxu0 0
        %4907 = vmatpush1.bf16.msra.mxu0 %v4228
        %4908 = vmatprep.subr.bf16.mxu0 0
        %4909 = vmatpush1.bf16.msra.mxu0 %v4231
        %4910 = vmatprep.subr.bf16.mxu0 0
        %4911 = vmatpush1.bf16.msra.mxu0 %v4234
        %4912 = vmatprep.subr.bf16.mxu0 0
        %4913 = vmatpush1.bf16.msra.mxu0 %v4237
        %4914 = vmatprep.subr.bf16.mxu0 0
        %4915 = vmatpush1.bf16.msra.mxu0 %v4240
        %4916 = vmatprep.mubr.bf16.mxu0 %v3636
        %4917 = vmatmul.mubr.bf16.gmra.mrb[0].mxu0 %v3635
        %v4918 = vpop.f32.mrb[0].mxu0
        %v4919 = vadd.f32 %v4758, %v4918
        %v4920 = vpop.f32.mrb[0].mxu0
        %v4921 = vpop.f32.mrb[0].mxu0
        %v4922 = vadd.f32 %v4761, %v4921
        %v4923 = vpop.f32.mrb[0].mxu0
        %4924 = vmatprep.mubr.bf16.mxu0 %v3640
        %4925 = vmatmul.mubr.bf16.gmra.mrb[0].mxu0 %v3639
        %v4926 = vpop.f32.mrb[0].mxu0
        %v4927 = vadd.f32 %v4766, %v4926
        %v4928 = vpop.f32.mrb[0].mxu0
        %v4929 = vpop.f32.mrb[0].mxu0
        %v4930 = vadd.f32 %v4769, %v4929
        %v4931 = vpop.f32.mrb[0].mxu0
        %4932 = vmatprep.mubr.bf16.mxu0 %v3644
        %4933 = vmatmul.mubr.bf16.gmra.mrb[0].mxu0 %v3643
        %v4934 = vpop.f32.mrb[0].mxu0
        %v4935 = vadd.f32 %v4774, %v4934
        %v4936 = vpop.f32.mrb[0].mxu0
        %v4937 = vpop.f32.mrb[0].mxu0
        %v4938 = vadd.f32 %v4777, %v4937
        %v4939 = vpop.f32.mrb[0].mxu0
        %4940 = vmatprep.mubr.bf16.mxu0 %v3648
        %4941 = vmatmul.mubr.bf16.gmra.mrb[0].mxu0 %v3647
        %v4942 = vpop.f32.mrb[0].mxu0
        %v4943 = vadd.f32 %v4782, %v4942
        %v4944 = vpop.f32.mrb[0].mxu0
        %v4945 = vpop.f32.mrb[0].mxu0
        %v4946 = vadd.f32 %v4785, %v4945
        %v4947 = vpop.f32.mrb[0].mxu0
        %4948 = vmatprep.mubr.bf16.mxu0 %v3652
        %4949 = vmatmul.mubr.bf16.gmra.mrb[0].mxu0 %v3651
        %v4950 = vpop.f32.mrb[0].mxu0
        %v4951 = vadd.f32 %v4790, %v4950
        %v4952 = vpop.f32.mrb[0].mxu0
        %v4953 = vpop.f32.mrb[0].mxu0
        %v4954 = vadd.f32 %v4793, %v4953
        %v4955 = vpop.f32.mrb[0].mxu0
        %4956 = vmatprep.mubr.bf16.mxu0 %v3656
        %4957 = vmatmul.mubr.bf16.gmra.mrb[0].mxu0 %v3655
        %v4958 = vpop.f32.mrb[0].mxu0
        %v4959 = vadd.f32 %v4798, %v4958
        %v4960 = vpop.f32.mrb[0].mxu0
        %v4961 = vpop.f32.mrb[0].mxu0
        %v4962 = vadd.f32 %v4801, %v4961
        %v4963 = vpop.f32.mrb[0].mxu0
        %4964 = vmatprep.mubr.bf16.mxu0 %v3660
        %4965 = vmatmul.mubr.bf16.gmra.mrb[0].mxu0 %v3659
        %v4966 = vpop.f32.mrb[0].mxu0
        %v4967 = vadd.f32 %v4806, %v4966
        %v4968 = vpop.f32.mrb[0].mxu0
        %v4969 = vpop.f32.mrb[0].mxu0
        %v4970 = vadd.f32 %v4809, %v4969
        %v4971 = vpop.f32.mrb[0].mxu0
        %4972 = vmatprep.mubr.bf16.mxu0 %v3664
        %4973 = vmatmul.mubr.bf16.gmra.mrb[0].mxu0 %v3663
        %v4974 = vpop.f32.mrb[0].mxu0
        %v4975 = vadd.f32 %v4814, %v4974
        %v4976 = vpop.f32.mrb[0].mxu0
        %v4977 = vpop.f32.mrb[0].mxu0
        %v4978 = vadd.f32 %v4817, %v4977
        %v4979 = vpop.f32.mrb[0].mxu0
        %4980 = vmatprep.mubr.bf16.mxu0 %v3668
        %4981 = vmatmul.mubr.bf16.gmra.mrb[0].mxu0 %v3667
        %v4982 = vpop.f32.mrb[0].mxu0
        %v4983 = vadd.f32 %v4822, %v4982
        %v4984 = vpop.f32.mrb[0].mxu0
        %v4985 = vpop.f32.mrb[0].mxu0
        %v4986 = vadd.f32 %v4825, %v4985
        %v4987 = vpop.f32.mrb[0].mxu0
        %4988 = vmatprep.mubr.bf16.mxu0 %v3672
        %4989 = vmatmul.mubr.bf16.gmra.mrb[0].mxu0 %v3671
        %v4990 = vpop.f32.mrb[0].mxu0
        %v4991 = vadd.f32 %v4830, %v4990
        %v4992 = vpop.f32.mrb[0].mxu0
        %v4993 = vpop.f32.mrb[0].mxu0
        %v4994 = vadd.f32 %v4833, %v4993
        %v4995 = vpop.f32.mrb[0].mxu0
        %4996 = vmatprep.mubr.bf16.mxu0 %v3676
        %4997 = vmatmul.mubr.bf16.gmra.mrb[0].mxu0 %v3675
        %v4998 = vpop.f32.mrb[0].mxu0
        %v4999 = vadd.f32 %v4838, %v4998
        %v5000 = vpop.f32.mrb[0].mxu0
        %v5001 = vpop.f32.mrb[0].mxu0
        %v5002 = vadd.f32 %v4841, %v5001
        %v5003 = vpop.f32.mrb[0].mxu0
        %5004 = vmatprep.mubr.bf16.mxu0 %v3680
        %5005 = vmatmul.mubr.bf16.gmra.mrb[0].mxu0 %v3679
        %v5006 = vpop.f32.mrb[0].mxu0
        %v5007 = vadd.f32 %v4846, %v5006
        %v5008 = vpop.f32.mrb[0].mxu0
        %v5009 = vpop.f32.mrb[0].mxu0
        %v5010 = vadd.f32 %v4849, %v5009
        %v5011 = vpop.f32.mrb[0].mxu0
        %5012 = vmatprep.mubr.bf16.mxu0 %v3684
        %5013 = vmatmul.mubr.bf16.gmra.mrb[0].mxu0 %v3683
        %v5014 = vpop.f32.mrb[0].mxu0
        %v5015 = vadd.f32 %v4854, %v5014
        %v5016 = vpop.f32.mrb[0].mxu0
        %v5017 = vpop.f32.mrb[0].mxu0
        %v5018 = vadd.f32 %v4857, %v5017
        %v5019 = vpop.f32.mrb[0].mxu0
        %5020 = vmatprep.mubr.bf16.mxu0 %v3688
        %5021 = vmatmul.mubr.bf16.gmra.mrb[0].mxu0 %v3687
        %v5022 = vpop.f32.mrb[0].mxu0
        %v5023 = vadd.f32 %v4862, %v5022
        %v5024 = vpop.f32.mrb[0].mxu0
        %v5025 = vpop.f32.mrb[0].mxu0
        %v5026 = vadd.f32 %v4865, %v5025
        %v5027 = vpop.f32.mrb[0].mxu0
        %5028 = vmatprep.mubr.bf16.mxu0 %v3692
        %5029 = vmatmul.mubr.bf16.gmra.mrb[0].mxu0 %v3691
        %v5030 = vpop.f32.mrb[0].mxu0
        %v5031 = vadd.f32 %v4870, %v5030
        %v5032 = vpop.f32.mrb[0].mxu0
        %v5033 = vpop.f32.mrb[0].mxu0
        %v5034 = vadd.f32 %v4873, %v5033
        %v5035 = vpop.f32.mrb[0].mxu0
        %5036 = vmatprep.mubr.bf16.mxu0 %v3696
        %5037 = vmatmul.mubr.bf16.gmra.mrb[0].mxu0 %v3695
        %v5038 = vpop.f32.mrb[0].mxu0
        %v5039 = vadd.f32 %v4878, %v5038
        %v5040 = vpop.f32.mrb[0].mxu0
        %v5041 = vpop.f32.mrb[0].mxu0
        %v5042 = vadd.f32 %v4881, %v5041
        %v5043 = vpop.f32.mrb[0].mxu0
        %5044 = vdwg.mxu0
        %v5173 = vunpack.c.l.b16 %v2007
        %v5174 = vunpack.c.h.b16 %v2007
        %v5175 = vunpack.c.l.b16 %v2008
        %v5176 = vunpack.c.l.b16 %v2009
        %v5177 = vunpack.c.h.b16 %v2009
        %v5178 = vunpack.c.l.b16 %v2010
        %v5179 = vunpack.c.l.b16 %v2011
        %v5180 = vunpack.c.h.b16 %v2011
        %v5181 = vunpack.c.l.b16 %v2012
        %v5182 = vunpack.c.l.b16 %v2013
        %v5183 = vunpack.c.h.b16 %v2013
        %v5184 = vunpack.c.l.b16 %v2014
        %v5185 = vunpack.c.l.b16 %v2015
        %v5186 = vunpack.c.h.b16 %v2015
        %v5187 = vunpack.c.l.b16 %v2016
        %v5188 = vunpack.c.l.b16 %v2017
        %v5189 = vunpack.c.h.b16 %v2017
        %v5190 = vunpack.c.l.b16 %v2018
        %v5191 = vunpack.c.l.b16 %v2019
        %v5192 = vunpack.c.h.b16 %v2019
        %v5193 = vunpack.c.l.b16 %v2020
        %v5194 = vunpack.c.l.b16 %v2021
        %v5195 = vunpack.c.h.b16 %v2021
        %v5196 = vunpack.c.l.b16 %v2022
        %v5197 = vunpack.c.l.b16 %v2023
        %v5198 = vunpack.c.h.b16 %v2023
        %v5199 = vunpack.c.l.b16 %v2024
        %v5200 = vunpack.c.l.b16 %v2025
        %v5201 = vunpack.c.h.b16 %v2025
        %v5202 = vunpack.c.l.b16 %v2026
        %v5203 = vunpack.c.l.b16 %v2027
        %v5204 = vunpack.c.h.b16 %v2027
        %v5205 = vunpack.c.l.b16 %v2028
        %v5206 = vunpack.c.l.b16 %v2029
        %v5207 = vunpack.c.h.b16 %v2029
        %v5208 = vunpack.c.l.b16 %v2030
        %v5209 = vunpack.c.l.b16 %v2031
        %v5210 = vunpack.c.h.b16 %v2031
        %v5211 = vunpack.c.l.b16 %v2032
        %v5212 = vunpack.c.l.b16 %v2033
        %v5213 = vunpack.c.h.b16 %v2033
        %v5214 = vunpack.c.l.b16 %v2034
        %v5215 = vunpack.c.l.b16 %v2035
        %v5216 = vunpack.c.h.b16 %v2035
        %v5217 = vunpack.c.l.b16 %v2036
        %v5218 = vunpack.c.l.b16 %v2037
        %v5219 = vunpack.c.h.b16 %v2037
        %v5220 = vunpack.c.l.b16 %v2038
        %v5221 = vunpack.c.l.b16 %v2039
        %v5222 = vunpack.c.h.b16 %v2039
        %v5223 = vunpack.c.l.b16 %v2040
        %v5224 = vunpack.c.l.b16 %v2041
        %v5225 = vunpack.c.h.b16 %v2041
        %v5226 = vunpack.c.l.b16 %v2042
        %v5227 = vunpack.c.l.b16 %v2043
        %v5228 = vunpack.c.h.b16 %v2043
        %v5229 = vunpack.c.l.b16 %v2044
        %v5230 = vunpack.c.l.b16 %v2045
        %v5231 = vunpack.c.h.b16 %v2045
        %v5232 = vunpack.c.l.b16 %v2046
        %v5233 = vunpack.c.l.b16 %v2047
        %v5234 = vunpack.c.h.b16 %v2047
        %v5235 = vunpack.c.l.b16 %v2048
        %v5236 = vunpack.c.l.b16 %v2049
        %v5237 = vunpack.c.h.b16 %v2049
        %v5238 = vunpack.c.l.b16 %v2050
        %v5239 = vunpack.c.l.b16 %v2051
        %v5240 = vunpack.c.h.b16 %v2051
        %v5241 = vunpack.c.l.b16 %v2052
        %v5242 = vunpack.c.l.b16 %v2053
        %v5243 = vunpack.c.h.b16 %v2053
        %v5244 = vunpack.c.l.b16 %v2054
        %v5245 = vunpack.c.l.b16 %v2055
        %v5246 = vunpack.c.h.b16 %v2055
        %v5247 = vunpack.c.l.b16 %v2056
        %v5248 = vunpack.c.l.b16 %v2057
        %v5249 = vunpack.c.h.b16 %v2057
        %v5250 = vunpack.c.l.b16 %v2058
        %v5251 = vunpack.c.l.b16 %v2059
        %v5252 = vunpack.c.h.b16 %v2059
        %v5253 = vunpack.c.l.b16 %v2060
        %v5254 = vunpack.c.l.b16 %v2061
        %v5255 = vunpack.c.h.b16 %v2061
        %v5256 = vunpack.c.l.b16 %v2062
        %v5257 = vunpack.c.l.b16 %v2063
        %v5258 = vunpack.c.h.b16 %v2063
        %v5259 = vunpack.c.l.b16 %v2064
        %v5260 = vunpack.c.l.b16 %v2065
        %v5261 = vunpack.c.h.b16 %v2065
        %v5262 = vunpack.c.l.b16 %v2066
        %v5263 = vunpack.c.l.b16 %v2067
        %v5264 = vunpack.c.h.b16 %v2067
        %v5265 = vunpack.c.l.b16 %v2068
        %v5266 = vunpack.c.l.b16 %v2069
        %v5267 = vunpack.c.h.b16 %v2069
        %v5268 = vunpack.c.l.b16 %v2070
        %v5269 = vunpack.c.l.b16 %v2071
        %v5270 = vunpack.c.h.b16 %v2071
        %v5271 = vunpack.c.l.b16 %v2072
        %v5272 = vunpack.c.l.b16 %v2073
        %v5273 = vunpack.c.h.b16 %v2073
        %v5274 = vunpack.c.l.b16 %v2074
        %v5275 = vunpack.c.l.b16 %v2075
        %v5276 = vunpack.c.h.b16 %v2075
        %v5277 = vunpack.c.l.b16 %v2076
        %v5278 = vunpack.c.l.b16 %v2077
        %v5279 = vunpack.c.h.b16 %v2077
        %v5280 = vunpack.c.l.b16 %v2078
        %v5281 = vunpack.c.l.b16 %v2079
        %v5282 = vunpack.c.h.b16 %v2079
        %v5283 = vunpack.c.l.b16 %v2080
        %v5284 = vunpack.c.l.b16 %v2081
        %v5285 = vunpack.c.h.b16 %v2081
        %v5286 = vunpack.c.l.b16 %v2082
        %v5287 = vunpack.c.l.b16 %v2083
        %v5288 = vunpack.c.h.b16 %v2083
        %v5289 = vunpack.c.l.b16 %v2084
        %v5290 = vunpack.c.l.b16 %v2085
        %v5291 = vunpack.c.h.b16 %v2085
        %v5292 = vunpack.c.l.b16 %v2086
        %v5293 = vunpack.c.l.b16 %v2087
        %v5294 = vunpack.c.h.b16 %v2087
        %v5295 = vunpack.c.l.b16 %v2088
        %v5296 = vunpack.c.l.b16 %v2089
        %v5297 = vunpack.c.h.b16 %v2089
        %v5298 = vunpack.c.l.b16 %v2090
        %v5299 = vunpack.c.l.b16 %v2091
        %v5300 = vunpack.c.h.b16 %v2091
        %v5301 = vunpack.c.l.b16 %v2092
        %v5302 = vunpack.c.l.b16 %v2093
        %v5303 = vunpack.c.h.b16 %v2093
        %v5304 = vunpack.c.l.b16 %v2094
        %v5305 = vunpack.c.l.b16 %v2095
        %v5306 = vunpack.c.h.b16 %v2095
        %v5307 = vunpack.c.l.b16 %v2096
        %v5308 = vunpack.c.l.b16 %v2097
        %v5309 = vunpack.c.h.b16 %v2097
        %v5310 = vunpack.c.l.b16 %v2098
        %v5311 = vunpack.c.l.b16 %v2099
        %v5312 = vunpack.c.h.b16 %v2099
        %v5313 = vunpack.c.l.b16 %v2100
        %v5314 = vunpack.c.l.b16 %v2101
        %v5315 = vunpack.c.h.b16 %v2101
        %v5316 = vunpack.c.l.b16 %v2102
        %v5317 = vunpack.c.l.b16 %v2103
        %v5318 = vunpack.c.h.b16 %v2103
        %v5319 = vunpack.c.l.b16 %v2104
        %v5320 = vunpack.c.l.b16 %v2105
        %v5321 = vunpack.c.h.b16 %v2105
        %v5322 = vunpack.c.l.b16 %v2106
        %v5323 = vunpack.c.l.b16 %v2107
        %v5324 = vunpack.c.h.b16 %v2107
        %v5325 = vunpack.c.l.b16 %v2108
        %v5326 = vunpack.c.l.b16 %v2109
        %v5327 = vunpack.c.h.b16 %v2109
        %v5328 = vunpack.c.l.b16 %v2110
        %v5329 = vunpack.c.l.b16 %v2111
        %v5330 = vunpack.c.h.b16 %v2111
        %v5331 = vunpack.c.l.b16 %v2112
        %v5332 = vunpack.c.l.b16 %v2113
        %v5333 = vunpack.c.h.b16 %v2113
        %v5334 = vunpack.c.l.b16 %v2114
        %v5335 = vunpack.c.l.b16 %v2115
        %v5336 = vunpack.c.h.b16 %v2115
        %v5337 = vunpack.c.l.b16 %v2116
        %v5338 = vunpack.c.l.b16 %v2117
        %v5339 = vunpack.c.h.b16 %v2117
        %v5340 = vunpack.c.l.b16 %v2118
        %v5341 = vunpack.c.l.b16 %v2119
        %v5342 = vunpack.c.h.b16 %v2119
        %v5343 = vunpack.c.l.b16 %v2120
        %v5344 = vunpack.c.l.b16 %v2121
        %v5345 = vunpack.c.h.b16 %v2121
        %v5346 = vunpack.c.l.b16 %v2122
        %v5347 = vunpack.c.l.b16 %v2123
        %v5348 = vunpack.c.h.b16 %v2123
        %v5349 = vunpack.c.l.b16 %v2124
        %v5350 = vunpack.c.l.b16 %v2125
        %v5351 = vunpack.c.h.b16 %v2125
        %v5352 = vunpack.c.l.b16 %v2126
        %v5353 = vunpack.c.l.b16 %v2127
        %v5354 = vunpack.c.h.b16 %v2127
        %v5355 = vunpack.c.l.b16 %v2128
        %v5356 = vunpack.c.l.b16 %v2129
        %v5357 = vunpack.c.h.b16 %v2129
        %v5358 = vunpack.c.l.b16 %v2130
        %v5359 = vunpack.c.l.b16 %v2131
        %v5360 = vunpack.c.h.b16 %v2131
        %v5361 = vunpack.c.l.b16 %v2132
        %v5362 = vunpack.c.l.b16 %v2133
        %v5363 = vunpack.c.h.b16 %v2133
        %v5364 = vunpack.c.l.b16 %v2134
        %v5365 = vpack.c.b16 %v5176, %v5173
        %v5366 = vpack.c.b16 %v5177, %v5174
        %v5367 = vpack.c.b16 %v5178, %v5175
        %v5368 = vpack.c.b16 %v5182, %v5179
        %v5369 = vpack.c.b16 %v5183, %v5180
        %v5370 = vpack.c.b16 %v5184, %v5181
        %v5371 = vpack.c.b16 %v5188, %v5185
        %v5372 = vpack.c.b16 %v5189, %v5186
        %v5373 = vpack.c.b16 %v5190, %v5187
        %v5374 = vpack.c.b16 %v5194, %v5191
        %v5375 = vpack.c.b16 %v5195, %v5192
        %v5376 = vpack.c.b16 %v5196, %v5193
        %v5377 = vpack.c.b16 %v5200, %v5197
        %v5378 = vpack.c.b16 %v5201, %v5198
        %v5379 = vpack.c.b16 %v5202, %v5199
        %v5380 = vpack.c.b16 %v5206, %v5203
        %v5381 = vpack.c.b16 %v5207, %v5204
        %v5382 = vpack.c.b16 %v5208, %v5205
        %v5383 = vpack.c.b16 %v5212, %v5209
        %v5384 = vpack.c.b16 %v5213, %v5210
        %v5385 = vpack.c.b16 %v5214, %v5211
        %v5386 = vpack.c.b16 %v5218, %v5215
        %v5387 = vpack.c.b16 %v5219, %v5216
        %v5388 = vpack.c.b16 %v5220, %v5217
        %v5389 = vpack.c.b16 %v5224, %v5221
        %v5390 = vpack.c.b16 %v5225, %v5222
        %v5391 = vpack.c.b16 %v5226, %v5223
        %v5392 = vpack.c.b16 %v5230, %v5227
        %v5393 = vpack.c.b16 %v5231, %v5228
        %v5394 = vpack.c.b16 %v5232, %v5229
        %v5395 = vpack.c.b16 %v5236, %v5233
        %v5396 = vpack.c.b16 %v5237, %v5234
        %v5397 = vpack.c.b16 %v5238, %v5235
        %v5398 = vpack.c.b16 %v5242, %v5239
        %v5399 = vpack.c.b16 %v5243, %v5240
        %v5400 = vpack.c.b16 %v5244, %v5241
        %v5401 = vpack.c.b16 %v5248, %v5245
        %v5402 = vpack.c.b16 %v5249, %v5246
        %v5403 = vpack.c.b16 %v5250, %v5247
        %v5404 = vpack.c.b16 %v5254, %v5251
        %v5405 = vpack.c.b16 %v5255, %v5252
        %v5406 = vpack.c.b16 %v5256, %v5253
        %v5407 = vpack.c.b16 %v5260, %v5257
        %v5408 = vpack.c.b16 %v5261, %v5258
        %v5409 = vpack.c.b16 %v5262, %v5259
        %v5410 = vpack.c.b16 %v5266, %v5263
        %v5411 = vpack.c.b16 %v5267, %v5264
        %v5412 = vpack.c.b16 %v5268, %v5265
        %v5413 = vpack.c.b16 %v5272, %v5269
        %v5414 = vpack.c.b16 %v5273, %v5270
        %v5415 = vpack.c.b16 %v5274, %v5271
        %v5416 = vpack.c.b16 %v5278, %v5275
        %v5417 = vpack.c.b16 %v5279, %v5276
        %v5418 = vpack.c.b16 %v5280, %v5277
        %v5419 = vpack.c.b16 %v5284, %v5281
        %v5420 = vpack.c.b16 %v5285, %v5282
        %v5421 = vpack.c.b16 %v5286, %v5283
        %v5422 = vpack.c.b16 %v5290, %v5287
        %v5423 = vpack.c.b16 %v5291, %v5288
        %v5424 = vpack.c.b16 %v5292, %v5289
        %v5425 = vpack.c.b16 %v5296, %v5293
        %v5426 = vpack.c.b16 %v5297, %v5294
        %v5427 = vpack.c.b16 %v5298, %v5295
        %v5428 = vpack.c.b16 %v5302, %v5299
        %v5429 = vpack.c.b16 %v5303, %v5300
        %v5430 = vpack.c.b16 %v5304, %v5301
        %v5431 = vpack.c.b16 %v5308, %v5305
        %v5432 = vpack.c.b16 %v5309, %v5306
        %v5433 = vpack.c.b16 %v5310, %v5307
        %v5434 = vpack.c.b16 %v5314, %v5311
        %v5435 = vpack.c.b16 %v5315, %v5312
        %v5436 = vpack.c.b16 %v5316, %v5313
        %v5437 = vpack.c.b16 %v5320, %v5317
        %v5438 = vpack.c.b16 %v5321, %v5318
        %v5439 = vpack.c.b16 %v5322, %v5319
        %v5440 = vpack.c.b16 %v5326, %v5323
        %v5441 = vpack.c.b16 %v5327, %v5324
        %v5442 = vpack.c.b16 %v5328, %v5325
        %v5443 = vpack.c.b16 %v5332, %v5329
        %v5444 = vpack.c.b16 %v5333, %v5330
        %v5445 = vpack.c.b16 %v5334, %v5331
        %v5446 = vpack.c.b16 %v5338, %v5335
        %v5447 = vpack.c.b16 %v5339, %v5336
        %v5448 = vpack.c.b16 %v5340, %v5337
        %v5449 = vpack.c.b16 %v5344, %v5341
        %v5450 = vpack.c.b16 %v5345, %v5342
        %v5451 = vpack.c.b16 %v5346, %v5343
        %v5452 = vpack.c.b16 %v5350, %v5347
        %v5453 = vpack.c.b16 %v5351, %v5348
        %v5454 = vpack.c.b16 %v5352, %v5349
        %v5455 = vpack.c.b16 %v5356, %v5353
        %v5456 = vpack.c.b16 %v5357, %v5354
        %v5457 = vpack.c.b16 %v5358, %v5355
        %v5458 = vpack.c.b16 %v5362, %v5359
        %v5459 = vpack.c.b16 %v5363, %v5360
        %v5460 = vpack.c.b16 %v5364, %v5361
        %5557 = vmatprep.subr.bf16.mxu0 %v5366
        %5558 = vmatpush1.bf16.msra.mxu0 %v5365
        %5559 = vmatprep.subr.bf16.mxu0 %v5369
        %5560 = vmatpush1.bf16.msra.mxu0 %v5368
        %5561 = vmatprep.subr.bf16.mxu0 %v5372
        %5562 = vmatpush1.bf16.msra.mxu0 %v5371
        %5563 = vmatprep.subr.bf16.mxu0 %v5375
        %5564 = vmatpush1.bf16.msra.mxu0 %v5374
        %5565 = vmatprep.subr.bf16.mxu0 %v5378
        %5566 = vmatpush1.bf16.msra.mxu0 %v5377
        %5567 = vmatprep.subr.bf16.mxu0 %v5381
        %5568 = vmatpush1.bf16.msra.mxu0 %v5380
        %5569 = vmatprep.subr.bf16.mxu0 %v5384
        %5570 = vmatpush1.bf16.msra.mxu0 %v5383
        %5571 = vmatprep.subr.bf16.mxu0 %v5387
        %5572 = vmatpush1.bf16.msra.mxu0 %v5386
        %5573 = vmatprep.subr.bf16.mxu0 %v5390
        %5574 = vmatpush1.bf16.msra.mxu0 %v5389
        %5575 = vmatprep.subr.bf16.mxu0 %v5393
        %5576 = vmatpush1.bf16.msra.mxu0 %v5392
        %5577 = vmatprep.subr.bf16.mxu0 %v5396
        %5578 = vmatpush1.bf16.msra.mxu0 %v5395
        %5579 = vmatprep.subr.bf16.mxu0 %v5399
        %5580 = vmatpush1.bf16.msra.mxu0 %v5398
        %5581 = vmatprep.subr.bf16.mxu0 %v5402
        %5582 = vmatpush1.bf16.msra.mxu0 %v5401
        %5583 = vmatprep.subr.bf16.mxu0 %v5405
        %5584 = vmatpush1.bf16.msra.mxu0 %v5404
        %5585 = vmatprep.subr.bf16.mxu0 %v5408
        %5586 = vmatpush1.bf16.msra.mxu0 %v5407
        %5587 = vmatprep.subr.bf16.mxu0 %v5411
        %5588 = vmatpush1.bf16.msra.mxu0 %v5410
        %5589 = vmatprep.mubr.bf16.mxu0 %v1944
        %5590 = vmatmul.mubr.bf16.gmra.mrb[0].mxu0 %v1943
        %v5591 = vpop.f32.mrb[0].mxu0
        %v5592 = vadd.f32 %v4565, %v5591
        %v5593 = vpop.f32.mrb[0].mxu0
        %v5594 = vadd.f32 %v4567, %v5593
        %v5595 = vpop.f32.mrb[0].mxu0
        %v5596 = vadd.f32 %v4569, %v5595
        %v5597 = vpop.f32.mrb[0].mxu0
        %v5598 = vadd.f32 %v4571, %v5597
        %5599 = vmatprep.mubr.bf16.mxu0 %v1948
        %5600 = vmatmul.mubr.bf16.gmra.mrb[0].mxu0 %v1947
        %v5601 = vpop.f32.mrb[0].mxu0
        %v5602 = vadd.f32 %v4575, %v5601
        %v5603 = vpop.f32.mrb[0].mxu0
        %v5604 = vadd.f32 %v4577, %v5603
        %v5605 = vpop.f32.mrb[0].mxu0
        %v5606 = vadd.f32 %v4579, %v5605
        %v5607 = vpop.f32.mrb[0].mxu0
        %v5608 = vadd.f32 %v4581, %v5607
        %5609 = vmatprep.mubr.bf16.mxu0 %v1952
        %5610 = vmatmul.mubr.bf16.gmra.mrb[0].mxu0 %v1951
        %v5611 = vpop.f32.mrb[0].mxu0
        %v5612 = vadd.f32 %v4585, %v5611
        %v5613 = vpop.f32.mrb[0].mxu0
        %v5614 = vadd.f32 %v4587, %v5613
        %v5615 = vpop.f32.mrb[0].mxu0
        %v5616 = vadd.f32 %v4589, %v5615
        %v5617 = vpop.f32.mrb[0].mxu0
        %v5618 = vadd.f32 %v4591, %v5617
        %5619 = vmatprep.mubr.bf16.mxu0 %v1956
        %5620 = vmatmul.mubr.bf16.gmra.mrb[0].mxu0 %v1955
        %v5621 = vpop.f32.mrb[0].mxu0
        %v5622 = vadd.f32 %v4595, %v5621
        %v5623 = vpop.f32.mrb[0].mxu0
        %v5624 = vadd.f32 %v4597, %v5623
        %v5625 = vpop.f32.mrb[0].mxu0
        %v5626 = vadd.f32 %v4599, %v5625
        %v5627 = vpop.f32.mrb[0].mxu0
        %v5628 = vadd.f32 %v4601, %v5627
        %5629 = vmatprep.mubr.bf16.mxu0 %v1960
        %5630 = vmatmul.mubr.bf16.gmra.mrb[0].mxu0 %v1959
        %v5631 = vpop.f32.mrb[0].mxu0
        %v5632 = vadd.f32 %v4605, %v5631
        %v5633 = vpop.f32.mrb[0].mxu0
        %v5634 = vadd.f32 %v4607, %v5633
        %v5635 = vpop.f32.mrb[0].mxu0
        %v5636 = vadd.f32 %v4609, %v5635
        %v5637 = vpop.f32.mrb[0].mxu0
        %v5638 = vadd.f32 %v4611, %v5637
        %5639 = vmatprep.mubr.bf16.mxu0 %v1964
        %5640 = vmatmul.mubr.bf16.gmra.mrb[0].mxu0 %v1963
        %v5641 = vpop.f32.mrb[0].mxu0
        %v5642 = vadd.f32 %v4615, %v5641
        %v5643 = vpop.f32.mrb[0].mxu0
        %v5644 = vadd.f32 %v4617, %v5643
        %v5645 = vpop.f32.mrb[0].mxu0
        %v5646 = vadd.f32 %v4619, %v5645
        %v5647 = vpop.f32.mrb[0].mxu0
        %v5648 = vadd.f32 %v4621, %v5647
        %5649 = vmatprep.mubr.bf16.mxu0 %v1968
        %5650 = vmatmul.mubr.bf16.gmra.mrb[0].mxu0 %v1967
        %v5651 = vpop.f32.mrb[0].mxu0
        %v5652 = vadd.f32 %v4625, %v5651
        %v5653 = vpop.f32.mrb[0].mxu0
        %v5654 = vadd.f32 %v4627, %v5653
        %v5655 = vpop.f32.mrb[0].mxu0
        %v5656 = vadd.f32 %v4629, %v5655
        %v5657 = vpop.f32.mrb[0].mxu0
        %v5658 = vadd.f32 %v4631, %v5657
        %5659 = vmatprep.mubr.bf16.mxu0 %v1972
        %5660 = vmatmul.mubr.bf16.gmra.mrb[0].mxu0 %v1971
        %v5661 = vpop.f32.mrb[0].mxu0
        %v5662 = vadd.f32 %v4635, %v5661
        %v5663 = vpop.f32.mrb[0].mxu0
        %v5664 = vadd.f32 %v4637, %v5663
        %v5665 = vpop.f32.mrb[0].mxu0
        %v5666 = vadd.f32 %v4639, %v5665
        %v5667 = vpop.f32.mrb[0].mxu0
        %v5668 = vadd.f32 %v4641, %v5667
        %5669 = vmatprep.mubr.bf16.mxu0 %v1976
        %5670 = vmatmul.mubr.bf16.gmra.mrb[0].mxu0 %v1975
        %v5671 = vpop.f32.mrb[0].mxu0
        %v5672 = vadd.f32 %v4645, %v5671
        %v5673 = vpop.f32.mrb[0].mxu0
        %v5674 = vadd.f32 %v4647, %v5673
        %v5675 = vpop.f32.mrb[0].mxu0
        %v5676 = vadd.f32 %v4649, %v5675
        %v5677 = vpop.f32.mrb[0].mxu0
        %v5678 = vadd.f32 %v4651, %v5677
        %5679 = vmatprep.mubr.bf16.mxu0 %v1980
        %5680 = vmatmul.mubr.bf16.gmra.mrb[0].mxu0 %v1979
        %v5681 = vpop.f32.mrb[0].mxu0
        %v5682 = vadd.f32 %v4655, %v5681
        %v5683 = vpop.f32.mrb[0].mxu0
        %v5684 = vadd.f32 %v4657, %v5683
        %v5685 = vpop.f32.mrb[0].mxu0
        %v5686 = vadd.f32 %v4659, %v5685
        %v5687 = vpop.f32.mrb[0].mxu0
        %v5688 = vadd.f32 %v4661, %v5687
        %5689 = vmatprep.mubr.bf16.mxu0 %v1984
        %5690 = vmatmul.mubr.bf16.gmra.mrb[0].mxu0 %v1983
        %v5691 = vpop.f32.mrb[0].mxu0
        %v5692 = vadd.f32 %v4665, %v5691
        %v5693 = vpop.f32.mrb[0].mxu0
        %v5694 = vadd.f32 %v4667, %v5693
        %v5695 = vpop.f32.mrb[0].mxu0
        %v5696 = vadd.f32 %v4669, %v5695
        %v5697 = vpop.f32.mrb[0].mxu0
        %v5698 = vadd.f32 %v4671, %v5697
        %5699 = vmatprep.mubr.bf16.mxu0 %v1988
        %5700 = vmatmul.mubr.bf16.gmra.mrb[0].mxu0 %v1987
        %v5701 = vpop.f32.mrb[0].mxu0
        %v5702 = vadd.f32 %v4675, %v5701
        %v5703 = vpop.f32.mrb[0].mxu0
        %v5704 = vadd.f32 %v4677, %v5703
        %v5705 = vpop.f32.mrb[0].mxu0
        %v5706 = vadd.f32 %v4679, %v5705
        %v5707 = vpop.f32.mrb[0].mxu0
        %v5708 = vadd.f32 %v4681, %v5707
        %5709 = vmatprep.mubr.bf16.mxu0 %v1992
        %5710 = vmatmul.mubr.bf16.gmra.mrb[0].mxu0 %v1991
        %v5711 = vpop.f32.mrb[0].mxu0
        %v5712 = vadd.f32 %v4685, %v5711
        %v5713 = vpop.f32.mrb[0].mxu0
        %v5714 = vadd.f32 %v4687, %v5713
        %v5715 = vpop.f32.mrb[0].mxu0
        %v5716 = vadd.f32 %v4689, %v5715
        %v5717 = vpop.f32.mrb[0].mxu0
        %v5718 = vadd.f32 %v4691, %v5717
        %5719 = vmatprep.mubr.bf16.mxu0 %v1996
        %5720 = vmatmul.mubr.bf16.gmra.mrb[0].mxu0 %v1995
        %v5721 = vpop.f32.mrb[0].mxu0
        %v5722 = vadd.f32 %v4695, %v5721
        %v5723 = vpop.f32.mrb[0].mxu0
        %v5724 = vadd.f32 %v4697, %v5723
        %v5725 = vpop.f32.mrb[0].mxu0
        %v5726 = vadd.f32 %v4699, %v5725
        %v5727 = vpop.f32.mrb[0].mxu0
        %v5728 = vadd.f32 %v4701, %v5727
        %5729 = vmatprep.mubr.bf16.mxu0 %v2000
        %5730 = vmatmul.mubr.bf16.gmra.mrb[0].mxu0 %v1999
        %v5731 = vpop.f32.mrb[0].mxu0
        %v5732 = vadd.f32 %v4705, %v5731
        %v5733 = vpop.f32.mrb[0].mxu0
        %v5734 = vadd.f32 %v4707, %v5733
        %v5735 = vpop.f32.mrb[0].mxu0
        %v5736 = vadd.f32 %v4709, %v5735
        %v5737 = vpop.f32.mrb[0].mxu0
        %v5738 = vadd.f32 %v4711, %v5737
        %5739 = vmatprep.mubr.bf16.mxu0 %v2004
        %5740 = vmatmul.mubr.bf16.gmra.mrb[0].mxu0 %v2003
        %v5741 = vpop.f32.mrb[0].mxu0
        %v5742 = vadd.f32 %v4715, %v5741
        %v5743 = vpop.f32.mrb[0].mxu0
        %v5744 = vadd.f32 %v4717, %v5743
        %v5745 = vpop.f32.mrb[0].mxu0
        %v5746 = vadd.f32 %v4719, %v5745
        %v5747 = vpop.f32.mrb[0].mxu0
        %v5748 = vadd.f32 %v4721, %v5747
        %5749 = vdwg.mxu0
        %5750 = vmatprep.subr.bf16.mxu0 %v5414
        %5751 = vmatpush1.bf16.msra.mxu0 %v5413
        %5752 = vmatprep.subr.bf16.mxu0 %v5417
        %5753 = vmatpush1.bf16.msra.mxu0 %v5416
        %5754 = vmatprep.subr.bf16.mxu0 %v5420
        %5755 = vmatpush1.bf16.msra.mxu0 %v5419
        %5756 = vmatprep.subr.bf16.mxu0 %v5423
        %5757 = vmatpush1.bf16.msra.mxu0 %v5422
        %5758 = vmatprep.subr.bf16.mxu0 %v5426
        %5759 = vmatpush1.bf16.msra.mxu0 %v5425
        %5760 = vmatprep.subr.bf16.mxu0 %v5429
        %5761 = vmatpush1.bf16.msra.mxu0 %v5428
        %5762 = vmatprep.subr.bf16.mxu0 %v5432
        %5763 = vmatpush1.bf16.msra.mxu0 %v5431
        %5764 = vmatprep.subr.bf16.mxu0 %v5435
        %5765 = vmatpush1.bf16.msra.mxu0 %v5434
        %5766 = vmatprep.subr.bf16.mxu0 %v5438
        %5767 = vmatpush1.bf16.msra.mxu0 %v5437
        %5768 = vmatprep.subr.bf16.mxu0 %v5441
        %5769 = vmatpush1.bf16.msra.mxu0 %v5440
        %5770 = vmatprep.subr.bf16.mxu0 %v5444
        %5771 = vmatpush1.bf16.msra.mxu0 %v5443
        %5772 = vmatprep.subr.bf16.mxu0 %v5447
        %5773 = vmatpush1.bf16.msra.mxu0 %v5446
        %5774 = vmatprep.subr.bf16.mxu0 %v5450
        %5775 = vmatpush1.bf16.msra.mxu0 %v5449
        %5776 = vmatprep.subr.bf16.mxu0 %v5453
        %5777 = vmatpush1.bf16.msra.mxu0 %v5452
        %5778 = vmatprep.subr.bf16.mxu0 %v5456
        %5779 = vmatpush1.bf16.msra.mxu0 %v5455
        %5780 = vmatprep.subr.bf16.mxu0 %v5459
        %5781 = vmatpush1.bf16.msra.mxu0 %v5458
        %5782 = vmatprep.mubr.bf16.mxu0 %v1946
        %5783 = vmatmul.mubr.bf16.gmra.mrb[0].mxu0 %v1945
        %v5784 = vpop.f32.mrb[0].mxu0
        %v5785 = vadd.f32 %v5592, %v5784
        %v5786 = vpop.f32.mrb[0].mxu0
        %v5787 = vadd.f32 %v5594, %v5786
        %v5788 = vpop.f32.mrb[0].mxu0
        %v5789 = vadd.f32 %v5596, %v5788
        %v5790 = vpop.f32.mrb[0].mxu0
        %v5791 = vadd.f32 %v5598, %v5790
        %5792 = vmatprep.mubr.bf16.mxu0 %v1950
        %5793 = vmatmul.mubr.bf16.gmra.mrb[0].mxu0 %v1949
        %v5794 = vpop.f32.mrb[0].mxu0
        %v5795 = vadd.f32 %v5602, %v5794
        %v5796 = vpop.f32.mrb[0].mxu0
        %v5797 = vadd.f32 %v5604, %v5796
        %v5798 = vpop.f32.mrb[0].mxu0
        %v5799 = vadd.f32 %v5606, %v5798
        %v5800 = vpop.f32.mrb[0].mxu0
        %v5801 = vadd.f32 %v5608, %v5800
        %5802 = vmatprep.mubr.bf16.mxu0 %v1954
        %5803 = vmatmul.mubr.bf16.gmra.mrb[0].mxu0 %v1953
        %v5804 = vpop.f32.mrb[0].mxu0
        %v5805 = vadd.f32 %v5612, %v5804
        %v5806 = vpop.f32.mrb[0].mxu0
        %v5807 = vadd.f32 %v5614, %v5806
        %v5808 = vpop.f32.mrb[0].mxu0
        %v5809 = vadd.f32 %v5616, %v5808
        %v5810 = vpop.f32.mrb[0].mxu0
        %v5811 = vadd.f32 %v5618, %v5810
        %5812 = vmatprep.mubr.bf16.mxu0 %v1958
        %5813 = vmatmul.mubr.bf16.gmra.mrb[0].mxu0 %v1957
        %v5814 = vpop.f32.mrb[0].mxu0
        %v5815 = vadd.f32 %v5622, %v5814
        %v5816 = vpop.f32.mrb[0].mxu0
        %v5817 = vadd.f32 %v5624, %v5816
        %v5818 = vpop.f32.mrb[0].mxu0
        %v5819 = vadd.f32 %v5626, %v5818
        %v5820 = vpop.f32.mrb[0].mxu0
        %v5821 = vadd.f32 %v5628, %v5820
        %5822 = vmatprep.mubr.bf16.mxu0 %v1962
        %5823 = vmatmul.mubr.bf16.gmra.mrb[0].mxu0 %v1961
        %v5824 = vpop.f32.mrb[0].mxu0
        %v5825 = vadd.f32 %v5632, %v5824
        %v5826 = vpop.f32.mrb[0].mxu0
        %v5827 = vadd.f32 %v5634, %v5826
        %v5828 = vpop.f32.mrb[0].mxu0
        %v5829 = vadd.f32 %v5636, %v5828
        %v5830 = vpop.f32.mrb[0].mxu0
        %v5831 = vadd.f32 %v5638, %v5830
        %5832 = vmatprep.mubr.bf16.mxu0 %v1966
        %5833 = vmatmul.mubr.bf16.gmra.mrb[0].mxu0 %v1965
        %v5834 = vpop.f32.mrb[0].mxu0
        %v5835 = vadd.f32 %v5642, %v5834
        %v5836 = vpop.f32.mrb[0].mxu0
        %v5837 = vadd.f32 %v5644, %v5836
        %v5838 = vpop.f32.mrb[0].mxu0
        %v5839 = vadd.f32 %v5646, %v5838
        %v5840 = vpop.f32.mrb[0].mxu0
        %v5841 = vadd.f32 %v5648, %v5840
        %5842 = vmatprep.mubr.bf16.mxu0 %v1970
        %5843 = vmatmul.mubr.bf16.gmra.mrb[0].mxu0 %v1969
        %v5844 = vpop.f32.mrb[0].mxu0
        %v5845 = vadd.f32 %v5652, %v5844
        %v5846 = vpop.f32.mrb[0].mxu0
        %v5847 = vadd.f32 %v5654, %v5846
        %v5848 = vpop.f32.mrb[0].mxu0
        %v5849 = vadd.f32 %v5656, %v5848
        %v5850 = vpop.f32.mrb[0].mxu0
        %v5851 = vadd.f32 %v5658, %v5850
        %5852 = vmatprep.mubr.bf16.mxu0 %v1974
        %5853 = vmatmul.mubr.bf16.gmra.mrb[0].mxu0 %v1973
        %v5854 = vpop.f32.mrb[0].mxu0
        %v5855 = vadd.f32 %v5662, %v5854
        %v5856 = vpop.f32.mrb[0].mxu0
        %v5857 = vadd.f32 %v5664, %v5856
        %v5858 = vpop.f32.mrb[0].mxu0
        %v5859 = vadd.f32 %v5666, %v5858
        %v5860 = vpop.f32.mrb[0].mxu0
        %v5861 = vadd.f32 %v5668, %v5860
        %5862 = vmatprep.mubr.bf16.mxu0 %v1978
        %5863 = vmatmul.mubr.bf16.gmra.mrb[0].mxu0 %v1977
        %v5864 = vpop.f32.mrb[0].mxu0
        %v5865 = vadd.f32 %v5672, %v5864
        %v5866 = vpop.f32.mrb[0].mxu0
        %v5867 = vadd.f32 %v5674, %v5866
        %v5868 = vpop.f32.mrb[0].mxu0
        %v5869 = vadd.f32 %v5676, %v5868
        %v5870 = vpop.f32.mrb[0].mxu0
        %v5871 = vadd.f32 %v5678, %v5870
        %5872 = vmatprep.mubr.bf16.mxu0 %v1982
        %5873 = vmatmul.mubr.bf16.gmra.mrb[0].mxu0 %v1981
        %v5874 = vpop.f32.mrb[0].mxu0
        %v5875 = vadd.f32 %v5682, %v5874
        %v5876 = vpop.f32.mrb[0].mxu0
        %v5877 = vadd.f32 %v5684, %v5876
        %v5878 = vpop.f32.mrb[0].mxu0
        %v5879 = vadd.f32 %v5686, %v5878
        %v5880 = vpop.f32.mrb[0].mxu0
        %v5881 = vadd.f32 %v5688, %v5880
        %5882 = vmatprep.mubr.bf16.mxu0 %v1986
        %5883 = vmatmul.mubr.bf16.gmra.mrb[0].mxu0 %v1985
        %v5884 = vpop.f32.mrb[0].mxu0
        %v5885 = vadd.f32 %v5692, %v5884
        %v5886 = vpop.f32.mrb[0].mxu0
        %v5887 = vadd.f32 %v5694, %v5886
        %v5888 = vpop.f32.mrb[0].mxu0
        %v5889 = vadd.f32 %v5696, %v5888
        %v5890 = vpop.f32.mrb[0].mxu0
        %v5891 = vadd.f32 %v5698, %v5890
        %5892 = vmatprep.mubr.bf16.mxu0 %v1990
        %5893 = vmatmul.mubr.bf16.gmra.mrb[0].mxu0 %v1989
        %v5894 = vpop.f32.mrb[0].mxu0
        %v5895 = vadd.f32 %v5702, %v5894
        %v5896 = vpop.f32.mrb[0].mxu0
        %v5897 = vadd.f32 %v5704, %v5896
        %v5898 = vpop.f32.mrb[0].mxu0
        %v5899 = vadd.f32 %v5706, %v5898
        %v5900 = vpop.f32.mrb[0].mxu0
        %v5901 = vadd.f32 %v5708, %v5900
        %5902 = vmatprep.mubr.bf16.mxu0 %v1994
        %5903 = vmatmul.mubr.bf16.gmra.mrb[0].mxu0 %v1993
        %v5904 = vpop.f32.mrb[0].mxu0
        %v5905 = vadd.f32 %v5712, %v5904
        %v5906 = vpop.f32.mrb[0].mxu0
        %v5907 = vadd.f32 %v5714, %v5906
        %v5908 = vpop.f32.mrb[0].mxu0
        %v5909 = vadd.f32 %v5716, %v5908
        %v5910 = vpop.f32.mrb[0].mxu0
        %v5911 = vadd.f32 %v5718, %v5910
        %5912 = vmatprep.mubr.bf16.mxu0 %v1998
        %5913 = vmatmul.mubr.bf16.gmra.mrb[0].mxu0 %v1997
        %v5914 = vpop.f32.mrb[0].mxu0
        %v5915 = vadd.f32 %v5722, %v5914
        %v5916 = vpop.f32.mrb[0].mxu0
        %v5917 = vadd.f32 %v5724, %v5916
        %v5918 = vpop.f32.mrb[0].mxu0
        %v5919 = vadd.f32 %v5726, %v5918
        %v5920 = vpop.f32.mrb[0].mxu0
        %v5921 = vadd.f32 %v5728, %v5920
        %5922 = vmatprep.mubr.bf16.mxu0 %v2002
        %5923 = vmatmul.mubr.bf16.gmra.mrb[0].mxu0 %v2001
        %v5924 = vpop.f32.mrb[0].mxu0
        %v5925 = vadd.f32 %v5732, %v5924
        %v5926 = vpop.f32.mrb[0].mxu0
        %v5927 = vadd.f32 %v5734, %v5926
        %v5928 = vpop.f32.mrb[0].mxu0
        %v5929 = vadd.f32 %v5736, %v5928
        %v5930 = vpop.f32.mrb[0].mxu0
        %v5931 = vadd.f32 %v5738, %v5930
        %5932 = vmatprep.mubr.bf16.mxu0 %v2006
        %5933 = vmatmul.mubr.bf16.gmra.mrb[0].mxu0 %v2005
        %v5934 = vpop.f32.mrb[0].mxu0
        %v5935 = vadd.f32 %v5742, %v5934
        %v5936 = vpop.f32.mrb[0].mxu0
        %v5937 = vadd.f32 %v5744, %v5936
        %v5938 = vpop.f32.mrb[0].mxu0
        %v5939 = vadd.f32 %v5746, %v5938
        %v5940 = vpop.f32.mrb[0].mxu0
        %v5941 = vadd.f32 %v5748, %v5940
        %5942 = vdwg.mxu0
        %5943 = vmatprep.subr.bf16.mxu0 0
        %5944 = vmatpush1.bf16.msra.mxu0 %v5367
        %5945 = vmatprep.subr.bf16.mxu0 0
        %5946 = vmatpush1.bf16.msra.mxu0 %v5370
        %5947 = vmatprep.subr.bf16.mxu0 0
        %5948 = vmatpush1.bf16.msra.mxu0 %v5373
        %5949 = vmatprep.subr.bf16.mxu0 0
        %5950 = vmatpush1.bf16.msra.mxu0 %v5376
        %5951 = vmatprep.subr.bf16.mxu0 0
        %5952 = vmatpush1.bf16.msra.mxu0 %v5379
        %5953 = vmatprep.subr.bf16.mxu0 0
        %5954 = vmatpush1.bf16.msra.mxu0 %v5382
        %5955 = vmatprep.subr.bf16.mxu0 0
        %5956 = vmatpush1.bf16.msra.mxu0 %v5385
        %5957 = vmatprep.subr.bf16.mxu0 0
        %5958 = vmatpush1.bf16.msra.mxu0 %v5388
        %5959 = vmatprep.subr.bf16.mxu0 0
        %5960 = vmatpush1.bf16.msra.mxu0 %v5391
        %5961 = vmatprep.subr.bf16.mxu0 0
        %5962 = vmatpush1.bf16.msra.mxu0 %v5394
        %5963 = vmatprep.subr.bf16.mxu0 0
        %5964 = vmatpush1.bf16.msra.mxu0 %v5397
        %5965 = vmatprep.subr.bf16.mxu0 0
        %5966 = vmatpush1.bf16.msra.mxu0 %v5400
        %5967 = vmatprep.subr.bf16.mxu0 0
        %5968 = vmatpush1.bf16.msra.mxu0 %v5403
        %5969 = vmatprep.subr.bf16.mxu0 0
        %5970 = vmatpush1.bf16.msra.mxu0 %v5406
        %5971 = vmatprep.subr.bf16.mxu0 0
        %5972 = vmatpush1.bf16.msra.mxu0 %v5409
        %5973 = vmatprep.subr.bf16.mxu0 0
        %5974 = vmatpush1.bf16.msra.mxu0 %v5412
        %5975 = vmatprep.mubr.bf16.mxu0 %v1944
        %5976 = vmatmul.mubr.bf16.gmra.mrb[0].mxu0 %v1943
        %v5977 = vpop.f32.mrb[0].mxu0
        %v5978 = vadd.f32 %v4919, %v5977
        %v5979 = vpop.f32.mrb[0].mxu0
        %v5980 = vpop.f32.mrb[0].mxu0
        %v5981 = vadd.f32 %v4922, %v5980
        %v5982 = vpop.f32.mrb[0].mxu0
        %5983 = vmatprep.mubr.bf16.mxu0 %v1948
        %5984 = vmatmul.mubr.bf16.gmra.mrb[0].mxu0 %v1947
        %v5985 = vpop.f32.mrb[0].mxu0
        %v5986 = vadd.f32 %v4927, %v5985
        %v5987 = vpop.f32.mrb[0].mxu0
        %v5988 = vpop.f32.mrb[0].mxu0
        %v5989 = vadd.f32 %v4930, %v5988
        %v5990 = vpop.f32.mrb[0].mxu0
        %5991 = vmatprep.mubr.bf16.mxu0 %v1952
        %5992 = vmatmul.mubr.bf16.gmra.mrb[0].mxu0 %v1951
        %v5993 = vpop.f32.mrb[0].mxu0
        %v5994 = vadd.f32 %v4935, %v5993
        %v5995 = vpop.f32.mrb[0].mxu0
        %v5996 = vpop.f32.mrb[0].mxu0
        %v5997 = vadd.f32 %v4938, %v5996
        %v5998 = vpop.f32.mrb[0].mxu0
        %5999 = vmatprep.mubr.bf16.mxu0 %v1956
        %6000 = vmatmul.mubr.bf16.gmra.mrb[0].mxu0 %v1955
        %v6001 = vpop.f32.mrb[0].mxu0
        %v6002 = vadd.f32 %v4943, %v6001
        %v6003 = vpop.f32.mrb[0].mxu0
        %v6004 = vpop.f32.mrb[0].mxu0
        %v6005 = vadd.f32 %v4946, %v6004
        %v6006 = vpop.f32.mrb[0].mxu0
        %6007 = vmatprep.mubr.bf16.mxu0 %v1960
        %6008 = vmatmul.mubr.bf16.gmra.mrb[0].mxu0 %v1959
        %v6009 = vpop.f32.mrb[0].mxu0
        %v6010 = vadd.f32 %v4951, %v6009
        %v6011 = vpop.f32.mrb[0].mxu0
        %v6012 = vpop.f32.mrb[0].mxu0
        %v6013 = vadd.f32 %v4954, %v6012
        %v6014 = vpop.f32.mrb[0].mxu0
        %6015 = vmatprep.mubr.bf16.mxu0 %v1964
        %6016 = vmatmul.mubr.bf16.gmra.mrb[0].mxu0 %v1963
        %v6017 = vpop.f32.mrb[0].mxu0
        %v6018 = vadd.f32 %v4959, %v6017
        %v6019 = vpop.f32.mrb[0].mxu0
        %v6020 = vpop.f32.mrb[0].mxu0
        %v6021 = vadd.f32 %v4962, %v6020
        %v6022 = vpop.f32.mrb[0].mxu0
        %6023 = vmatprep.mubr.bf16.mxu0 %v1968
        %6024 = vmatmul.mubr.bf16.gmra.mrb[0].mxu0 %v1967
        %v6025 = vpop.f32.mrb[0].mxu0
        %v6026 = vadd.f32 %v4967, %v6025
        %v6027 = vpop.f32.mrb[0].mxu0
        %v6028 = vpop.f32.mrb[0].mxu0
        %v6029 = vadd.f32 %v4970, %v6028
        %v6030 = vpop.f32.mrb[0].mxu0
        %6031 = vmatprep.mubr.bf16.mxu0 %v1972
        %6032 = vmatmul.mubr.bf16.gmra.mrb[0].mxu0 %v1971
        %v6033 = vpop.f32.mrb[0].mxu0
        %v6034 = vadd.f32 %v4975, %v6033
        %v6035 = vpop.f32.mrb[0].mxu0
        %v6036 = vpop.f32.mrb[0].mxu0
        %v6037 = vadd.f32 %v4978, %v6036
        %v6038 = vpop.f32.mrb[0].mxu0
        %6039 = vmatprep.mubr.bf16.mxu0 %v1976
        %6040 = vmatmul.mubr.bf16.gmra.mrb[0].mxu0 %v1975
        %v6041 = vpop.f32.mrb[0].mxu0
        %v6042 = vadd.f32 %v4983, %v6041
        %v6043 = vpop.f32.mrb[0].mxu0
        %v6044 = vpop.f32.mrb[0].mxu0
        %v6045 = vadd.f32 %v4986, %v6044
        %v6046 = vpop.f32.mrb[0].mxu0
        %6047 = vmatprep.mubr.bf16.mxu0 %v1980
        %6048 = vmatmul.mubr.bf16.gmra.mrb[0].mxu0 %v1979
        %v6049 = vpop.f32.mrb[0].mxu0
        %v6050 = vadd.f32 %v4991, %v6049
        %v6051 = vpop.f32.mrb[0].mxu0
        %v6052 = vpop.f32.mrb[0].mxu0
        %v6053 = vadd.f32 %v4994, %v6052
        %v6054 = vpop.f32.mrb[0].mxu0
        %6055 = vmatprep.mubr.bf16.mxu0 %v1984
        %6056 = vmatmul.mubr.bf16.gmra.mrb[0].mxu0 %v1983
        %v6057 = vpop.f32.mrb[0].mxu0
        %v6058 = vadd.f32 %v4999, %v6057
        %v6059 = vpop.f32.mrb[0].mxu0
        %v6060 = vpop.f32.mrb[0].mxu0
        %v6061 = vadd.f32 %v5002, %v6060
        %v6062 = vpop.f32.mrb[0].mxu0
        %6063 = vmatprep.mubr.bf16.mxu0 %v1988
        %6064 = vmatmul.mubr.bf16.gmra.mrb[0].mxu0 %v1987
        %v6065 = vpop.f32.mrb[0].mxu0
        %v6066 = vadd.f32 %v5007, %v6065
        %v6067 = vpop.f32.mrb[0].mxu0
        %v6068 = vpop.f32.mrb[0].mxu0
        %v6069 = vadd.f32 %v5010, %v6068
        %v6070 = vpop.f32.mrb[0].mxu0
        %6071 = vmatprep.mubr.bf16.mxu0 %v1992
        %6072 = vmatmul.mubr.bf16.gmra.mrb[0].mxu0 %v1991
        %v6073 = vpop.f32.mrb[0].mxu0
        %v6074 = vadd.f32 %v5015, %v6073
        %v6075 = vpop.f32.mrb[0].mxu0
        %v6076 = vpop.f32.mrb[0].mxu0
        %v6077 = vadd.f32 %v5018, %v6076
        %v6078 = vpop.f32.mrb[0].mxu0
        %6079 = vmatprep.mubr.bf16.mxu0 %v1996
        %6080 = vmatmul.mubr.bf16.gmra.mrb[0].mxu0 %v1995
        %v6081 = vpop.f32.mrb[0].mxu0
        %v6082 = vadd.f32 %v5023, %v6081
        %v6083 = vpop.f32.mrb[0].mxu0
        %v6084 = vpop.f32.mrb[0].mxu0
        %v6085 = vadd.f32 %v5026, %v6084
        %v6086 = vpop.f32.mrb[0].mxu0
        %6087 = vmatprep.mubr.bf16.mxu0 %v2000
        %6088 = vmatmul.mubr.bf16.gmra.mrb[0].mxu0 %v1999
        %v6089 = vpop.f32.mrb[0].mxu0
        %v6090 = vadd.f32 %v5031, %v6089
        %v6091 = vpop.f32.mrb[0].mxu0
        %v6092 = vpop.f32.mrb[0].mxu0
        %v6093 = vadd.f32 %v5034, %v6092
        %v6094 = vpop.f32.mrb[0].mxu0
        %6095 = vmatprep.mubr.bf16.mxu0 %v2004
        %6096 = vmatmul.mubr.bf16.gmra.mrb[0].mxu0 %v2003
        %v6097 = vpop.f32.mrb[0].mxu0
        %v6098 = vadd.f32 %v5039, %v6097
        %v6099 = vpop.f32.mrb[0].mxu0
        %v6100 = vpop.f32.mrb[0].mxu0
        %v6101 = vadd.f32 %v5042, %v6100
        %v6102 = vpop.f32.mrb[0].mxu0
        %6103 = vdwg.mxu0
        %6104 = vmatprep.subr.bf16.mxu0 0
        %6105 = vmatpush1.bf16.msra.mxu0 %v5415
        %6106 = vmatprep.subr.bf16.mxu0 0
        %6107 = vmatpush1.bf16.msra.mxu0 %v5418
        %6108 = vmatprep.subr.bf16.mxu0 0
        %6109 = vmatpush1.bf16.msra.mxu0 %v5421
        %6110 = vmatprep.subr.bf16.mxu0 0
        %6111 = vmatpush1.bf16.msra.mxu0 %v5424
        %6112 = vmatprep.subr.bf16.mxu0 0
        %6113 = vmatpush1.bf16.msra.mxu0 %v5427
        %6114 = vmatprep.subr.bf16.mxu0 0
        %6115 = vmatpush1.bf16.msra.mxu0 %v5430
        %6116 = vmatprep.subr.bf16.mxu0 0
        %6117 = vmatpush1.bf16.msra.mxu0 %v5433
        %6118 = vmatprep.subr.bf16.mxu0 0
        %6119 = vmatpush1.bf16.msra.mxu0 %v5436
        %6120 = vmatprep.subr.bf16.mxu0 0
        %6121 = vmatpush1.bf16.msra.mxu0 %v5439
        %6122 = vmatprep.subr.bf16.mxu0 0
        %6123 = vmatpush1.bf16.msra.mxu0 %v5442
        %6124 = vmatprep.subr.bf16.mxu0 0
        %6125 = vmatpush1.bf16.msra.mxu0 %v5445
        %6126 = vmatprep.subr.bf16.mxu0 0
        %6127 = vmatpush1.bf16.msra.mxu0 %v5448
        %6128 = vmatprep.subr.bf16.mxu0 0
        %6129 = vmatpush1.bf16.msra.mxu0 %v5451
        %6130 = vmatprep.subr.bf16.mxu0 0
        %6131 = vmatpush1.bf16.msra.mxu0 %v5454
        %6132 = vmatprep.subr.bf16.mxu0 0
        %6133 = vmatpush1.bf16.msra.mxu0 %v5457
        %6134 = vmatprep.subr.bf16.mxu0 0
        %6135 = vmatpush1.bf16.msra.mxu0 %v5460
        %6136 = vmatprep.mubr.bf16.mxu0 %v1946
        %6137 = vmatmul.mubr.bf16.gmra.mrb[0].mxu0 %v1945
        %v6138 = vpop.f32.mrb[0].mxu0
        %v6139 = vadd.f32 %v5978, %v6138
        %v6140 = vpop.f32.mrb[0].mxu0
        %v6141 = vpop.f32.mrb[0].mxu0
        %v6142 = vadd.f32 %v5981, %v6141
        %v6143 = vpop.f32.mrb[0].mxu0
        %6144 = vmatprep.mubr.bf16.mxu0 %v1950
        %6145 = vmatmul.mubr.bf16.gmra.mrb[0].mxu0 %v1949
        %v6146 = vpop.f32.mrb[0].mxu0
        %v6147 = vadd.f32 %v5986, %v6146
        %v6148 = vpop.f32.mrb[0].mxu0
        %v6149 = vpop.f32.mrb[0].mxu0
        %v6150 = vadd.f32 %v5989, %v6149
        %v6151 = vpop.f32.mrb[0].mxu0
        %6152 = vmatprep.mubr.bf16.mxu0 %v1954
        %6153 = vmatmul.mubr.bf16.gmra.mrb[0].mxu0 %v1953
        %v6154 = vpop.f32.mrb[0].mxu0
        %v6155 = vadd.f32 %v5994, %v6154
        %v6156 = vpop.f32.mrb[0].mxu0
        %v6157 = vpop.f32.mrb[0].mxu0
        %v6158 = vadd.f32 %v5997, %v6157
        %v6159 = vpop.f32.mrb[0].mxu0
        %6160 = vmatprep.mubr.bf16.mxu0 %v1958
        %6161 = vmatmul.mubr.bf16.gmra.mrb[0].mxu0 %v1957
        %v6162 = vpop.f32.mrb[0].mxu0
        %v6163 = vadd.f32 %v6002, %v6162
        %v6164 = vpop.f32.mrb[0].mxu0
        %v6165 = vpop.f32.mrb[0].mxu0
        %v6166 = vadd.f32 %v6005, %v6165
        %v6167 = vpop.f32.mrb[0].mxu0
        %6168 = vmatprep.mubr.bf16.mxu0 %v1962
        %6169 = vmatmul.mubr.bf16.gmra.mrb[0].mxu0 %v1961
        %v6170 = vpop.f32.mrb[0].mxu0
        %v6171 = vadd.f32 %v6010, %v6170
        %v6172 = vpop.f32.mrb[0].mxu0
        %v6173 = vpop.f32.mrb[0].mxu0
        %v6174 = vadd.f32 %v6013, %v6173
        %v6175 = vpop.f32.mrb[0].mxu0
        %6176 = vmatprep.mubr.bf16.mxu0 %v1966
        %6177 = vmatmul.mubr.bf16.gmra.mrb[0].mxu0 %v1965
        %v6178 = vpop.f32.mrb[0].mxu0
        %v6179 = vadd.f32 %v6018, %v6178
        %v6180 = vpop.f32.mrb[0].mxu0
        %v6181 = vpop.f32.mrb[0].mxu0
        %v6182 = vadd.f32 %v6021, %v6181
        %v6183 = vpop.f32.mrb[0].mxu0
        %6184 = vmatprep.mubr.bf16.mxu0 %v1970
        %6185 = vmatmul.mubr.bf16.gmra.mrb[0].mxu0 %v1969
        %v6186 = vpop.f32.mrb[0].mxu0
        %v6187 = vadd.f32 %v6026, %v6186
        %v6188 = vpop.f32.mrb[0].mxu0
        %v6189 = vpop.f32.mrb[0].mxu0
        %v6190 = vadd.f32 %v6029, %v6189
        %v6191 = vpop.f32.mrb[0].mxu0
        %6192 = vmatprep.mubr.bf16.mxu0 %v1974
        %6193 = vmatmul.mubr.bf16.gmra.mrb[0].mxu0 %v1973
        %v6194 = vpop.f32.mrb[0].mxu0
        %v6195 = vadd.f32 %v6034, %v6194
        %v6196 = vpop.f32.mrb[0].mxu0
        %v6197 = vpop.f32.mrb[0].mxu0
        %v6198 = vadd.f32 %v6037, %v6197
        %v6199 = vpop.f32.mrb[0].mxu0
        %6200 = vmatprep.mubr.bf16.mxu0 %v1978
        %6201 = vmatmul.mubr.bf16.gmra.mrb[0].mxu0 %v1977
        %v6202 = vpop.f32.mrb[0].mxu0
        %v6203 = vadd.f32 %v6042, %v6202
        %v6204 = vpop.f32.mrb[0].mxu0
        %v6205 = vpop.f32.mrb[0].mxu0
        %v6206 = vadd.f32 %v6045, %v6205
        %v6207 = vpop.f32.mrb[0].mxu0
        %6208 = vmatprep.mubr.bf16.mxu0 %v1982
        %6209 = vmatmul.mubr.bf16.gmra.mrb[0].mxu0 %v1981
        %v6210 = vpop.f32.mrb[0].mxu0
        %v6211 = vadd.f32 %v6050, %v6210
        %v6212 = vpop.f32.mrb[0].mxu0
        %v6213 = vpop.f32.mrb[0].mxu0
        %v6214 = vadd.f32 %v6053, %v6213
        %v6215 = vpop.f32.mrb[0].mxu0
        %6216 = vmatprep.mubr.bf16.mxu0 %v1986
        %6217 = vmatmul.mubr.bf16.gmra.mrb[0].mxu0 %v1985
        %v6218 = vpop.f32.mrb[0].mxu0
        %v6219 = vadd.f32 %v6058, %v6218
        %v6220 = vpop.f32.mrb[0].mxu0
        %v6221 = vpop.f32.mrb[0].mxu0
        %v6222 = vadd.f32 %v6061, %v6221
        %v6223 = vpop.f32.mrb[0].mxu0
        %6224 = vmatprep.mubr.bf16.mxu0 %v1990
        %6225 = vmatmul.mubr.bf16.gmra.mrb[0].mxu0 %v1989
        %v6226 = vpop.f32.mrb[0].mxu0
        %v6227 = vadd.f32 %v6066, %v6226
        %v6228 = vpop.f32.mrb[0].mxu0
        %v6229 = vpop.f32.mrb[0].mxu0
        %v6230 = vadd.f32 %v6069, %v6229
        %v6231 = vpop.f32.mrb[0].mxu0
        %6232 = vmatprep.mubr.bf16.mxu0 %v1994
        %6233 = vmatmul.mubr.bf16.gmra.mrb[0].mxu0 %v1993
        %v6234 = vpop.f32.mrb[0].mxu0
        %v6235 = vadd.f32 %v6074, %v6234
        %v6236 = vpop.f32.mrb[0].mxu0
        %v6237 = vpop.f32.mrb[0].mxu0
        %v6238 = vadd.f32 %v6077, %v6237
        %v6239 = vpop.f32.mrb[0].mxu0
        %6240 = vmatprep.mubr.bf16.mxu0 %v1998
        %6241 = vmatmul.mubr.bf16.gmra.mrb[0].mxu0 %v1997
        %v6242 = vpop.f32.mrb[0].mxu0
        %v6243 = vadd.f32 %v6082, %v6242
        %v6244 = vpop.f32.mrb[0].mxu0
        %v6245 = vpop.f32.mrb[0].mxu0
        %v6246 = vadd.f32 %v6085, %v6245
        %v6247 = vpop.f32.mrb[0].mxu0
        %6248 = vmatprep.mubr.bf16.mxu0 %v2002
        %6249 = vmatmul.mubr.bf16.gmra.mrb[0].mxu0 %v2001
        %v6250 = vpop.f32.mrb[0].mxu0
        %v6251 = vadd.f32 %v6090, %v6250
        %v6252 = vpop.f32.mrb[0].mxu0
        %v6253 = vpop.f32.mrb[0].mxu0
        %v6254 = vadd.f32 %v6093, %v6253
        %v6255 = vpop.f32.mrb[0].mxu0
        %6256 = vmatprep.mubr.bf16.mxu0 %v2006
        %6257 = vmatmul.mubr.bf16.gmra.mrb[0].mxu0 %v2005
        %v6258 = vpop.f32.mrb[0].mxu0
        %v6259 = vadd.f32 %v6098, %v6258
        %v6260 = vpop.f32.mrb[0].mxu0
        %v6261 = vpop.f32.mrb[0].mxu0
        %v6262 = vadd.f32 %v6101, %v6261
        %v6263 = vpop.f32.mrb[0].mxu0
        %6264 = vdwg.mxu0
        %v6265 = vld [vmem:[#allocation5 + $0x20] sm:$0xff]
        %v6266 = vld [vmem:[#allocation5 + $0x28] sm:$0xff]
        %v6267 = vld [vmem:[#allocation5 + $0x50] sm:$0xff]
        %v6268 = vld [vmem:[#allocation5 + $0x58] sm:$0xff]
        %v6269 = vld [vmem:[#allocation5 + $0x80] sm:$0xff]
        %v6270 = vld [vmem:[#allocation5 + $0x88] sm:$0xff]
        %v6271 = vld [vmem:[#allocation5 + $0xb0] sm:$0xff]
        %v6272 = vld [vmem:[#allocation5 + $0xb8] sm:$0xff]
        %v6273 = vld [vmem:[#allocation5 + $0xe0] sm:$0xff]
        %v6274 = vld [vmem:[#allocation5 + $0xe8] sm:$0xff]
        %v6275 = vld [vmem:[#allocation5 + $0x110] sm:$0xff]
        %v6276 = vld [vmem:[#allocation5 + $0x118] sm:$0xff]
        %v6277 = vld [vmem:[#allocation5 + $0x140] sm:$0xff]
        %v6278 = vld [vmem:[#allocation5 + $0x148] sm:$0xff]
        %v6279 = vld [vmem:[#allocation5 + $0x170] sm:$0xff]
        %v6280 = vld [vmem:[#allocation5 + $0x178] sm:$0xff]
        %v6281 = vld [vmem:[#allocation5 + $0x1a0] sm:$0xff]
        %v6282 = vld [vmem:[#allocation5 + $0x1a8] sm:$0xff]
        %v6283 = vld [vmem:[#allocation5 + $0x1d0] sm:$0xff]
        %v6284 = vld [vmem:[#allocation5 + $0x1d8] sm:$0xff]
        %v6285 = vld [vmem:[#allocation5 + $0x200] sm:$0xff]
        %v6286 = vld [vmem:[#allocation5 + $0x208] sm:$0xff]
        %v6287 = vld [vmem:[#allocation5 + $0x230] sm:$0xff]
        %v6288 = vld [vmem:[#allocation5 + $0x238] sm:$0xff]
        %v6289 = vld [vmem:[#allocation5 + $0x260] sm:$0xff]
        %v6290 = vld [vmem:[#allocation5 + $0x268] sm:$0xff]
        %v6291 = vld [vmem:[#allocation5 + $0x290] sm:$0xff]
        %v6292 = vld [vmem:[#allocation5 + $0x298] sm:$0xff]
        %v6293 = vld [vmem:[#allocation5 + $0x2c0] sm:$0xff]
        %v6294 = vld [vmem:[#allocation5 + $0x2c8] sm:$0xff]
        %v6295 = vld [vmem:[#allocation5 + $0x2f0] sm:$0xff]
        %v6296 = vld [vmem:[#allocation5 + $0x2f8] sm:$0xff]
        %v6297 = vld [vmem:[#allocation5 + $0x320] sm:$0xff]
        %v6298 = vld [vmem:[#allocation5 + $0x328] sm:$0xff]
        %v6299 = vld [vmem:[#allocation5 + $0x350] sm:$0xff]
        %v6300 = vld [vmem:[#allocation5 + $0x358] sm:$0xff]
        %v6301 = vld [vmem:[#allocation5 + $0x380] sm:$0xff]
        %v6302 = vld [vmem:[#allocation5 + $0x388] sm:$0xff]
        %v6303 = vld [vmem:[#allocation5 + $0x3b0] sm:$0xff]
        %v6304 = vld [vmem:[#allocation5 + $0x3b8] sm:$0xff]
        %v6305 = vld [vmem:[#allocation5 + $0x3e0] sm:$0xff]
        %v6306 = vld [vmem:[#allocation5 + $0x3e8] sm:$0xff]
        %v6307 = vld [vmem:[#allocation5 + $0x410] sm:$0xff]
        %v6308 = vld [vmem:[#allocation5 + $0x418] sm:$0xff]
        %v6309 = vld [vmem:[#allocation5 + $0x440] sm:$0xff]
        %v6310 = vld [vmem:[#allocation5 + $0x448] sm:$0xff]
        %v6311 = vld [vmem:[#allocation5 + $0x470] sm:$0xff]
        %v6312 = vld [vmem:[#allocation5 + $0x478] sm:$0xff]
        %v6313 = vld [vmem:[#allocation5 + $0x4a0] sm:$0xff]
        %v6314 = vld [vmem:[#allocation5 + $0x4a8] sm:$0xff]
        %v6315 = vld [vmem:[#allocation5 + $0x4d0] sm:$0xff]
        %v6316 = vld [vmem:[#allocation5 + $0x4d8] sm:$0xff]
        %v6317 = vld [vmem:[#allocation5 + $0x500] sm:$0xff]
        %v6318 = vld [vmem:[#allocation5 + $0x508] sm:$0xff]
        %v6319 = vld [vmem:[#allocation5 + $0x530] sm:$0xff]
        %v6320 = vld [vmem:[#allocation5 + $0x538] sm:$0xff]
        %v6321 = vld [vmem:[#allocation5 + $0x560] sm:$0xff]
        %v6322 = vld [vmem:[#allocation5 + $0x568] sm:$0xff]
        %v6323 = vld [vmem:[#allocation5 + $0x590] sm:$0xff]
        %v6324 = vld [vmem:[#allocation5 + $0x598] sm:$0xff]
        %v6325 = vld [vmem:[#allocation5 + $0x5c0] sm:$0xff]
        %v6326 = vld [vmem:[#allocation5 + $0x5c8] sm:$0xff]
        %v6327 = vld [vmem:[#allocation5 + $0x5f0] sm:$0xff]
        %v6328 = vld [vmem:[#allocation5 + $0x5f8] sm:$0xff]
        %v6329 = vld [vmem:[#allocation5 + $0x620] sm:$0xff]
        %v6330 = vld [vmem:[#allocation5 + $0x628] sm:$0xff]
        %v6331 = vld [vmem:[#allocation5 + $0x650] sm:$0xff]
        %v6332 = vld [vmem:[#allocation5 + $0x658] sm:$0xff]
        %v6333 = vld [vmem:[#allocation5 + $0x680] sm:$0xff]
        %v6334 = vld [vmem:[#allocation5 + $0x688] sm:$0xff]
        %v6335 = vld [vmem:[#allocation5 + $0x6b0] sm:$0xff]
        %v6336 = vld [vmem:[#allocation5 + $0x6b8] sm:$0xff]
        %v6337 = vld [vmem:[#allocation5 + $0x6e0] sm:$0xff]
        %v6338 = vld [vmem:[#allocation5 + $0x6e8] sm:$0xff]
        %v6339 = vld [vmem:[#allocation5 + $0x710] sm:$0xff]
        %v6340 = vld [vmem:[#allocation5 + $0x718] sm:$0xff]
        %v6341 = vld [vmem:[#allocation5 + $0x740] sm:$0xff]
        %v6342 = vld [vmem:[#allocation5 + $0x748] sm:$0xff]
        %v6343 = vld [vmem:[#allocation5 + $0x770] sm:$0xff]
        %v6344 = vld [vmem:[#allocation5 + $0x778] sm:$0xff]
        %v6345 = vld [vmem:[#allocation5 + $0x7a0] sm:$0xff]
        %v6346 = vld [vmem:[#allocation5 + $0x7a8] sm:$0xff]
        %v6347 = vld [vmem:[#allocation5 + $0x7d0] sm:$0xff]
        %v6348 = vld [vmem:[#allocation5 + $0x7d8] sm:$0xff]
        %v6349 = vld [vmem:[#allocation5 + $0x800] sm:$0xff]
        %v6350 = vld [vmem:[#allocation5 + $0x808] sm:$0xff]
        %v6351 = vld [vmem:[#allocation5 + $0x830] sm:$0xff]
        %v6352 = vld [vmem:[#allocation5 + $0x838] sm:$0xff]
        %v6353 = vld [vmem:[#allocation5 + $0x860] sm:$0xff]
        %v6354 = vld [vmem:[#allocation5 + $0x868] sm:$0xff]
        %v6355 = vld [vmem:[#allocation5 + $0x890] sm:$0xff]
        %v6356 = vld [vmem:[#allocation5 + $0x898] sm:$0xff]
        %v6357 = vld [vmem:[#allocation5 + $0x8c0] sm:$0xff]
        %v6358 = vld [vmem:[#allocation5 + $0x8c8] sm:$0xff]
        %v6359 = vld [vmem:[#allocation5 + $0x8f0] sm:$0xff]
        %v6360 = vld [vmem:[#allocation5 + $0x8f8] sm:$0xff]
        %v6361 = vld [vmem:[#allocation7 + $0x8] sm:$0xf]
        %v6363 = vlaneseq
        %v6364 = vshrl.u32 %v6363, 7
        %v6365 = vsub.s32 0, %v6364
        %v6366 = vrot.slane %v6361, %v6365
        %v6367 = vlaneseq
        %v6368 = vshrl.u32 %v6367, 7
        %v6369 = vsub.s32 1, %v6368
        %v6370 = vrot.slane %v6361, %v6369
        %v6371 = vlaneseq
        %v6372 = vshrl.u32 %v6371, 7
        %v6373 = vsub.s32 2, %v6372
        %v6374 = vrot.slane %v6361, %v6373
        %v6375 = vlaneseq
        %v6376 = vshrl.u32 %v6375, 7
        %v6377 = vsub.s32 3, %v6376
        %v6378 = vrot.slane %v6361, %v6377
        %v6479 = vunpack.c.l.b16 %v6265
        %v6480 = vunpack.c.h.b16 %v6265
        %v6481 = vunpack.c.l.b16 %v6266
        %v6482 = vunpack.c.h.b16 %v6266
        %v6483 = vunpack.c.l.b16 %v6267
        %v6484 = vunpack.c.h.b16 %v6267
        %v6485 = vunpack.c.l.b16 %v6268
        %v6486 = vunpack.c.h.b16 %v6268
        %v6487 = vunpack.c.l.b16 %v6269
        %v6488 = vunpack.c.h.b16 %v6269
        %v6489 = vunpack.c.l.b16 %v6270
        %v6490 = vunpack.c.h.b16 %v6270
        %v6491 = vunpack.c.l.b16 %v6271
        %v6492 = vunpack.c.h.b16 %v6271
        %v6493 = vunpack.c.l.b16 %v6272
        %v6494 = vunpack.c.h.b16 %v6272
        %v6495 = vunpack.c.l.b16 %v6273
        %v6496 = vunpack.c.h.b16 %v6273
        %v6497 = vunpack.c.l.b16 %v6274
        %v6498 = vunpack.c.h.b16 %v6274
        %v6499 = vunpack.c.l.b16 %v6275
        %v6500 = vunpack.c.h.b16 %v6275
        %v6501 = vunpack.c.l.b16 %v6276
        %v6502 = vunpack.c.h.b16 %v6276
        %v6503 = vunpack.c.l.b16 %v6277
        %v6504 = vunpack.c.h.b16 %v6277
        %v6505 = vunpack.c.l.b16 %v6278
        %v6506 = vunpack.c.h.b16 %v6278
        %v6507 = vunpack.c.l.b16 %v6279
        %v6508 = vunpack.c.h.b16 %v6279
        %v6509 = vunpack.c.l.b16 %v6280
        %v6510 = vunpack.c.h.b16 %v6280
        %v6511 = vunpack.c.l.b16 %v6281
        %v6512 = vunpack.c.h.b16 %v6281
        %v6513 = vunpack.c.l.b16 %v6282
        %v6514 = vunpack.c.h.b16 %v6282
        %v6515 = vunpack.c.l.b16 %v6283
        %v6516 = vunpack.c.h.b16 %v6283
        %v6517 = vunpack.c.l.b16 %v6284
        %v6518 = vunpack.c.h.b16 %v6284
        %v6519 = vunpack.c.l.b16 %v6285
        %v6520 = vunpack.c.h.b16 %v6285
        %v6521 = vunpack.c.l.b16 %v6286
        %v6522 = vunpack.c.h.b16 %v6286
        %v6523 = vunpack.c.l.b16 %v6287
        %v6524 = vunpack.c.h.b16 %v6287
        %v6525 = vunpack.c.l.b16 %v6288
        %v6526 = vunpack.c.h.b16 %v6288
        %v6527 = vunpack.c.l.b16 %v6289
        %v6528 = vunpack.c.h.b16 %v6289
        %v6529 = vunpack.c.l.b16 %v6290
        %v6530 = vunpack.c.h.b16 %v6290
        %v6531 = vunpack.c.l.b16 %v6291
        %v6532 = vunpack.c.h.b16 %v6291
        %v6533 = vunpack.c.l.b16 %v6292
        %v6534 = vunpack.c.h.b16 %v6292
        %v6535 = vunpack.c.l.b16 %v6293
        %v6536 = vunpack.c.h.b16 %v6293
        %v6537 = vunpack.c.l.b16 %v6294
        %v6538 = vunpack.c.h.b16 %v6294
        %v6539 = vunpack.c.l.b16 %v6295
        %v6540 = vunpack.c.h.b16 %v6295
        %v6541 = vunpack.c.l.b16 %v6296
        %v6542 = vunpack.c.h.b16 %v6296
        %v6543 = vunpack.c.l.b16 %v6297
        %v6544 = vunpack.c.h.b16 %v6297
        %v6545 = vunpack.c.l.b16 %v6298
        %v6546 = vunpack.c.h.b16 %v6298
        %v6547 = vunpack.c.l.b16 %v6299
        %v6548 = vunpack.c.h.b16 %v6299
        %v6549 = vunpack.c.l.b16 %v6300
        %v6550 = vunpack.c.h.b16 %v6300
        %v6551 = vunpack.c.l.b16 %v6301
        %v6552 = vunpack.c.h.b16 %v6301
        %v6553 = vunpack.c.l.b16 %v6302
        %v6554 = vunpack.c.h.b16 %v6302
        %v6555 = vunpack.c.l.b16 %v6303
        %v6556 = vunpack.c.h.b16 %v6303
        %v6557 = vunpack.c.l.b16 %v6304
        %v6558 = vunpack.c.h.b16 %v6304
        %v6559 = vunpack.c.l.b16 %v6305
        %v6560 = vunpack.c.h.b16 %v6305
        %v6561 = vunpack.c.l.b16 %v6306
        %v6562 = vunpack.c.h.b16 %v6306
        %v6563 = vunpack.c.l.b16 %v6307
        %v6564 = vunpack.c.h.b16 %v6307
        %v6565 = vunpack.c.l.b16 %v6308
        %v6566 = vunpack.c.h.b16 %v6308
        %v6567 = vunpack.c.l.b16 %v6309
        %v6568 = vunpack.c.h.b16 %v6309
        %v6569 = vunpack.c.l.b16 %v6310
        %v6570 = vunpack.c.h.b16 %v6310
        %v6571 = vunpack.c.l.b16 %v6311
        %v6572 = vunpack.c.h.b16 %v6311
        %v6573 = vunpack.c.l.b16 %v6312
        %v6574 = vunpack.c.h.b16 %v6312
        %v6575 = vunpack.c.l.b16 %v6313
        %v6576 = vunpack.c.h.b16 %v6313
        %v6577 = vunpack.c.l.b16 %v6314
        %v6578 = vunpack.c.h.b16 %v6314
        %v6579 = vunpack.c.l.b16 %v6315
        %v6580 = vunpack.c.h.b16 %v6315
        %v6581 = vunpack.c.l.b16 %v6316
        %v6582 = vunpack.c.h.b16 %v6316
        %v6583 = vunpack.c.l.b16 %v6317
        %v6584 = vunpack.c.h.b16 %v6317
        %v6585 = vunpack.c.l.b16 %v6318
        %v6586 = vunpack.c.h.b16 %v6318
        %v6587 = vunpack.c.l.b16 %v6319
        %v6588 = vunpack.c.h.b16 %v6319
        %v6589 = vunpack.c.l.b16 %v6320
        %v6590 = vunpack.c.h.b16 %v6320
        %v6591 = vunpack.c.l.b16 %v6321
        %v6592 = vunpack.c.h.b16 %v6321
        %v6593 = vunpack.c.l.b16 %v6322
        %v6594 = vunpack.c.h.b16 %v6322
        %v6595 = vunpack.c.l.b16 %v6323
        %v6596 = vunpack.c.h.b16 %v6323
        %v6597 = vunpack.c.l.b16 %v6324
        %v6598 = vunpack.c.h.b16 %v6324
        %v6599 = vunpack.c.l.b16 %v6325
        %v6600 = vunpack.c.h.b16 %v6325
        %v6601 = vunpack.c.l.b16 %v6326
        %v6602 = vunpack.c.h.b16 %v6326
        %v6603 = vunpack.c.l.b16 %v6327
        %v6604 = vunpack.c.h.b16 %v6327
        %v6605 = vunpack.c.l.b16 %v6328
        %v6606 = vunpack.c.h.b16 %v6328
        %v6607 = vunpack.c.l.b16 %v6329
        %v6608 = vunpack.c.h.b16 %v6329
        %v6609 = vunpack.c.l.b16 %v6330
        %v6610 = vunpack.c.h.b16 %v6330
        %v6611 = vunpack.c.l.b16 %v6331
        %v6612 = vunpack.c.h.b16 %v6331
        %v6613 = vunpack.c.l.b16 %v6332
        %v6614 = vunpack.c.h.b16 %v6332
        %v6615 = vunpack.c.l.b16 %v6333
        %v6616 = vunpack.c.h.b16 %v6333
        %v6617 = vunpack.c.l.b16 %v6334
        %v6618 = vunpack.c.h.b16 %v6334
        %v6619 = vunpack.c.l.b16 %v6335
        %v6620 = vunpack.c.h.b16 %v6335
        %v6621 = vunpack.c.l.b16 %v6336
        %v6622 = vunpack.c.h.b16 %v6336
        %v6623 = vunpack.c.l.b16 %v6337
        %v6624 = vunpack.c.h.b16 %v6337
        %v6625 = vunpack.c.l.b16 %v6338
        %v6626 = vunpack.c.h.b16 %v6338
        %v6627 = vunpack.c.l.b16 %v6339
        %v6628 = vunpack.c.h.b16 %v6339
        %v6629 = vunpack.c.l.b16 %v6340
        %v6630 = vunpack.c.h.b16 %v6340
        %v6631 = vunpack.c.l.b16 %v6341
        %v6632 = vunpack.c.h.b16 %v6341
        %v6633 = vunpack.c.l.b16 %v6342
        %v6634 = vunpack.c.h.b16 %v6342
        %v6635 = vunpack.c.l.b16 %v6343
        %v6636 = vunpack.c.h.b16 %v6343
        %v6637 = vunpack.c.l.b16 %v6344
        %v6638 = vunpack.c.h.b16 %v6344
        %v6639 = vunpack.c.l.b16 %v6345
        %v6640 = vunpack.c.h.b16 %v6345
        %v6641 = vunpack.c.l.b16 %v6346
        %v6642 = vunpack.c.h.b16 %v6346
        %v6643 = vunpack.c.l.b16 %v6347
        %v6644 = vunpack.c.h.b16 %v6347
        %v6645 = vunpack.c.l.b16 %v6348
        %v6646 = vunpack.c.h.b16 %v6348
        %v6647 = vunpack.c.l.b16 %v6349
        %v6648 = vunpack.c.h.b16 %v6349
        %v6649 = vunpack.c.l.b16 %v6350
        %v6650 = vunpack.c.h.b16 %v6350
        %v6651 = vunpack.c.l.b16 %v6351
        %v6652 = vunpack.c.h.b16 %v6351
        %v6653 = vunpack.c.l.b16 %v6352
        %v6654 = vunpack.c.h.b16 %v6352
        %v6655 = vunpack.c.l.b16 %v6353
        %v6656 = vunpack.c.h.b16 %v6353
        %v6657 = vunpack.c.l.b16 %v6354
        %v6658 = vunpack.c.h.b16 %v6354
        %v6659 = vunpack.c.l.b16 %v6355
        %v6660 = vunpack.c.h.b16 %v6355
        %v6661 = vunpack.c.l.b16 %v6356
        %v6662 = vunpack.c.h.b16 %v6356
        %v6663 = vunpack.c.l.b16 %v6357
        %v6664 = vunpack.c.h.b16 %v6357
        %v6665 = vunpack.c.l.b16 %v6358
        %v6666 = vunpack.c.h.b16 %v6358
        %v6667 = vunpack.c.l.b16 %v6359
        %v6668 = vunpack.c.h.b16 %v6359
        %v6669 = vunpack.c.l.b16 %v6360
        %v6670 = vunpack.c.h.b16 %v6360
        %v6671 = vpack.c.b16 %v6483, %v6479
        %v6672 = vpack.c.b16 %v6484, %v6480
        %v6673 = vpack.c.b16 %v6485, %v6481
        %v6674 = vpack.c.b16 %v6486, %v6482
        %v6675 = vpack.c.b16 %v6491, %v6487
        %v6676 = vpack.c.b16 %v6492, %v6488
        %v6677 = vpack.c.b16 %v6493, %v6489
        %v6678 = vpack.c.b16 %v6494, %v6490
        %v6679 = vpack.c.b16 %v6499, %v6495
        %v6680 = vpack.c.b16 %v6500, %v6496
        %v6681 = vpack.c.b16 %v6501, %v6497
        %v6682 = vpack.c.b16 %v6502, %v6498
        %v6683 = vpack.c.b16 %v6507, %v6503
        %v6684 = vpack.c.b16 %v6508, %v6504
        %v6685 = vpack.c.b16 %v6509, %v6505
        %v6686 = vpack.c.b16 %v6510, %v6506
        %v6687 = vpack.c.b16 %v6515, %v6511
        %v6688 = vpack.c.b16 %v6516, %v6512
        %v6689 = vpack.c.b16 %v6517, %v6513
        %v6690 = vpack.c.b16 %v6518, %v6514
        %v6691 = vpack.c.b16 %v6523, %v6519
        %v6692 = vpack.c.b16 %v6524, %v6520
        %v6693 = vpack.c.b16 %v6525, %v6521
        %v6694 = vpack.c.b16 %v6526, %v6522
        %v6695 = vpack.c.b16 %v6531, %v6527
        %v6696 = vpack.c.b16 %v6532, %v6528
        %v6697 = vpack.c.b16 %v6533, %v6529
        %v6698 = vpack.c.b16 %v6534, %v6530
        %v6699 = vpack.c.b16 %v6539, %v6535
        %v6700 = vpack.c.b16 %v6540, %v6536
        %v6701 = vpack.c.b16 %v6541, %v6537
        %v6702 = vpack.c.b16 %v6542, %v6538
        %v6703 = vpack.c.b16 %v6547, %v6543
        %v6704 = vpack.c.b16 %v6548, %v6544
        %v6705 = vpack.c.b16 %v6549, %v6545
        %v6706 = vpack.c.b16 %v6550, %v6546
        %v6707 = vpack.c.b16 %v6555, %v6551
        %v6708 = vpack.c.b16 %v6556, %v6552
        %v6709 = vpack.c.b16 %v6557, %v6553
        %v6710 = vpack.c.b16 %v6558, %v6554
        %v6711 = vpack.c.b16 %v6563, %v6559
        %v6712 = vpack.c.b16 %v6564, %v6560
        %v6713 = vpack.c.b16 %v6565, %v6561
        %v6714 = vpack.c.b16 %v6566, %v6562
        %v6715 = vpack.c.b16 %v6571, %v6567
        %v6716 = vpack.c.b16 %v6572, %v6568
        %v6717 = vpack.c.b16 %v6573, %v6569
        %v6718 = vpack.c.b16 %v6574, %v6570
        %v6719 = vpack.c.b16 %v6579, %v6575
        %v6720 = vpack.c.b16 %v6580, %v6576
        %v6721 = vpack.c.b16 %v6581, %v6577
        %v6722 = vpack.c.b16 %v6582, %v6578
        %v6723 = vpack.c.b16 %v6587, %v6583
        %v6724 = vpack.c.b16 %v6588, %v6584
        %v6725 = vpack.c.b16 %v6589, %v6585
        %v6726 = vpack.c.b16 %v6590, %v6586
        %v6727 = vpack.c.b16 %v6595, %v6591
        %v6728 = vpack.c.b16 %v6596, %v6592
        %v6729 = vpack.c.b16 %v6597, %v6593
        %v6730 = vpack.c.b16 %v6598, %v6594
        %v6731 = vpack.c.b16 %v6603, %v6599
        %v6732 = vpack.c.b16 %v6604, %v6600
        %v6733 = vpack.c.b16 %v6605, %v6601
        %v6734 = vpack.c.b16 %v6606, %v6602
        %v6735 = vpack.c.b16 %v6611, %v6607
        %v6736 = vpack.c.b16 %v6612, %v6608
        %v6737 = vpack.c.b16 %v6613, %v6609
        %v6738 = vpack.c.b16 %v6614, %v6610
        %v6739 = vpack.c.b16 %v6619, %v6615
        %v6740 = vpack.c.b16 %v6620, %v6616
        %v6741 = vpack.c.b16 %v6621, %v6617
        %v6742 = vpack.c.b16 %v6622, %v6618
        %v6743 = vpack.c.b16 %v6627, %v6623
        %v6744 = vpack.c.b16 %v6628, %v6624
        %v6745 = vpack.c.b16 %v6629, %v6625
        %v6746 = vpack.c.b16 %v6630, %v6626
        %v6747 = vpack.c.b16 %v6635, %v6631
        %v6748 = vpack.c.b16 %v6636, %v6632
        %v6749 = vpack.c.b16 %v6637, %v6633
        %v6750 = vpack.c.b16 %v6638, %v6634
        %v6751 = vpack.c.b16 %v6643, %v6639
        %v6752 = vpack.c.b16 %v6644, %v6640
        %v6753 = vpack.c.b16 %v6645, %v6641
        %v6754 = vpack.c.b16 %v6646, %v6642
        %v6755 = vpack.c.b16 %v6651, %v6647
        %v6756 = vpack.c.b16 %v6652, %v6648
        %v6757 = vpack.c.b16 %v6653, %v6649
        %v6758 = vpack.c.b16 %v6654, %v6650
        %v6759 = vpack.c.b16 %v6659, %v6655
        %v6760 = vpack.c.b16 %v6660, %v6656
        %v6761 = vpack.c.b16 %v6661, %v6657
        %v6762 = vpack.c.b16 %v6662, %v6658
        %v6763 = vpack.c.b16 %v6667, %v6663
        %v6764 = vpack.c.b16 %v6668, %v6664
        %v6765 = vpack.c.b16 %v6669, %v6665
        %v6766 = vpack.c.b16 %v6670, %v6666
        %6863 = vmatprep.subr.bf16.mxu0 %v6672
        %6864 = vmatpush1.bf16.msra.mxu0 %v6671
        %6865 = vmatprep.subr.bf16.mxu0 %v6676
        %6866 = vmatpush1.bf16.msra.mxu0 %v6675
        %6867 = vmatprep.subr.bf16.mxu0 %v6680
        %6868 = vmatpush1.bf16.msra.mxu0 %v6679
        %6869 = vmatprep.subr.bf16.mxu0 %v6684
        %6870 = vmatpush1.bf16.msra.mxu0 %v6683
        %6871 = vmatprep.subr.bf16.mxu0 %v6688
        %6872 = vmatpush1.bf16.msra.mxu0 %v6687
        %6873 = vmatprep.subr.bf16.mxu0 %v6692
        %6874 = vmatpush1.bf16.msra.mxu0 %v6691
        %6875 = vmatprep.subr.bf16.mxu0 %v6696
        %6876 = vmatpush1.bf16.msra.mxu0 %v6695
        %6877 = vmatprep.subr.bf16.mxu0 %v6700
        %6878 = vmatpush1.bf16.msra.mxu0 %v6699
        %6879 = vmatprep.subr.bf16.mxu0 %v6704
        %6880 = vmatpush1.bf16.msra.mxu0 %v6703
        %6881 = vmatprep.subr.bf16.mxu0 %v6708
        %6882 = vmatpush1.bf16.msra.mxu0 %v6707
        %6883 = vmatprep.subr.bf16.mxu0 %v6712
        %6884 = vmatpush1.bf16.msra.mxu0 %v6711
        %6885 = vmatprep.subr.bf16.mxu0 %v6716
        %6886 = vmatpush1.bf16.msra.mxu0 %v6715
        %6887 = vmatprep.subr.bf16.mxu0 %v6720
        %6888 = vmatpush1.bf16.msra.mxu0 %v6719
        %6889 = vmatprep.subr.bf16.mxu0 %v6724
        %6890 = vmatpush1.bf16.msra.mxu0 %v6723
        %6891 = vmatprep.subr.bf16.mxu0 %v6728
        %6892 = vmatpush1.bf16.msra.mxu0 %v6727
        %6893 = vmatprep.subr.bf16.mxu0 %v6732
        %6894 = vmatpush1.bf16.msra.mxu0 %v6731
        %6895 = vmatprep.mubr.bf16.mxu0 %v398
        %6896 = vmatmul.mubr.bf16.gmra.mrb[0].mxu0 %v397
        %v6897 = vpop.f32.mrb[0].mxu0
        %v6898 = vadd.f32 %v6366, %v6897
        %v6899 = vpop.f32.mrb[0].mxu0
        %v6900 = vadd.f32 %v6370, %v6899
        %v6901 = vpop.f32.mrb[0].mxu0
        %v6902 = vadd.f32 %v6366, %v6901
        %v6903 = vpop.f32.mrb[0].mxu0
        %v6904 = vadd.f32 %v6370, %v6903
        %6905 = vmatprep.mubr.bf16.mxu0 %v401
        %6906 = vmatmul.mubr.bf16.gmra.mrb[0].mxu0 %v400
        %v6907 = vpop.f32.mrb[0].mxu0
        %v6908 = vadd.f32 %v6366, %v6907
        %v6909 = vpop.f32.mrb[0].mxu0
        %v6910 = vadd.f32 %v6370, %v6909
        %v6911 = vpop.f32.mrb[0].mxu0
        %v6912 = vadd.f32 %v6366, %v6911
        %v6913 = vpop.f32.mrb[0].mxu0
        %v6914 = vadd.f32 %v6370, %v6913
        %6915 = vmatprep.mubr.bf16.mxu0 %v404
        %6916 = vmatmul.mubr.bf16.gmra.mrb[0].mxu0 %v403
        %v6917 = vpop.f32.mrb[0].mxu0
        %v6918 = vadd.f32 %v6366, %v6917
        %v6919 = vpop.f32.mrb[0].mxu0
        %v6920 = vadd.f32 %v6370, %v6919
        %v6921 = vpop.f32.mrb[0].mxu0
        %v6922 = vadd.f32 %v6366, %v6921
        %v6923 = vpop.f32.mrb[0].mxu0
        %v6924 = vadd.f32 %v6370, %v6923
        %6925 = vmatprep.mubr.bf16.mxu0 %v407
        %6926 = vmatmul.mubr.bf16.gmra.mrb[0].mxu0 %v406
        %v6927 = vpop.f32.mrb[0].mxu0
        %v6928 = vadd.f32 %v6366, %v6927
        %v6929 = vpop.f32.mrb[0].mxu0
        %v6930 = vadd.f32 %v6370, %v6929
        %v6931 = vpop.f32.mrb[0].mxu0
        %v6932 = vadd.f32 %v6366, %v6931
        %v6933 = vpop.f32.mrb[0].mxu0
        %v6934 = vadd.f32 %v6370, %v6933
        %6935 = vmatprep.mubr.bf16.mxu0 %v410
        %6936 = vmatmul.mubr.bf16.gmra.mrb[0].mxu0 %v409
        %v6937 = vpop.f32.mrb[0].mxu0
        %v6938 = vadd.f32 %v6366, %v6937
        %v6939 = vpop.f32.mrb[0].mxu0
        %v6940 = vadd.f32 %v6370, %v6939
        %v6941 = vpop.f32.mrb[0].mxu0
        %v6942 = vadd.f32 %v6366, %v6941
        %v6943 = vpop.f32.mrb[0].mxu0
        %v6944 = vadd.f32 %v6370, %v6943
        %6945 = vmatprep.mubr.bf16.mxu0 %v413
        %6946 = vmatmul.mubr.bf16.gmra.mrb[0].mxu0 %v412
        %v6947 = vpop.f32.mrb[0].mxu0
        %v6948 = vadd.f32 %v6366, %v6947
        %v6949 = vpop.f32.mrb[0].mxu0
        %v6950 = vadd.f32 %v6370, %v6949
        %v6951 = vpop.f32.mrb[0].mxu0
        %v6952 = vadd.f32 %v6366, %v6951
        %v6953 = vpop.f32.mrb[0].mxu0
        %v6954 = vadd.f32 %v6370, %v6953
        %6955 = vmatprep.mubr.bf16.mxu0 %v416
        %6956 = vmatmul.mubr.bf16.gmra.mrb[0].mxu0 %v415
        %v6957 = vpop.f32.mrb[0].mxu0
        %v6958 = vadd.f32 %v6366, %v6957
        %v6959 = vpop.f32.mrb[0].mxu0
        %v6960 = vadd.f32 %v6370, %v6959
        %v6961 = vpop.f32.mrb[0].mxu0
        %v6962 = vadd.f32 %v6366, %v6961
        %v6963 = vpop.f32.mrb[0].mxu0
        %v6964 = vadd.f32 %v6370, %v6963
        %6965 = vmatprep.mubr.bf16.mxu0 %v419
        %6966 = vmatmul.mubr.bf16.gmra.mrb[0].mxu0 %v418
        %v6967 = vpop.f32.mrb[0].mxu0
        %v6968 = vadd.f32 %v6366, %v6967
        %v6969 = vpop.f32.mrb[0].mxu0
        %v6970 = vadd.f32 %v6370, %v6969
        %v6971 = vpop.f32.mrb[0].mxu0
        %v6972 = vadd.f32 %v6366, %v6971
        %v6973 = vpop.f32.mrb[0].mxu0
        %v6974 = vadd.f32 %v6370, %v6973
        %6975 = vmatprep.mubr.bf16.mxu0 %v422
        %6976 = vmatmul.mubr.bf16.gmra.mrb[0].mxu0 %v421
        %v6977 = vpop.f32.mrb[0].mxu0
        %v6978 = vadd.f32 %v6366, %v6977
        %v6979 = vpop.f32.mrb[0].mxu0
        %v6980 = vadd.f32 %v6370, %v6979
        %v6981 = vpop.f32.mrb[0].mxu0
        %v6982 = vadd.f32 %v6366, %v6981
        %v6983 = vpop.f32.mrb[0].mxu0
        %v6984 = vadd.f32 %v6370, %v6983
        %6985 = vmatprep.mubr.bf16.mxu0 %v425
        %6986 = vmatmul.mubr.bf16.gmra.mrb[0].mxu0 %v424
        %v6987 = vpop.f32.mrb[0].mxu0
        %v6988 = vadd.f32 %v6366, %v6987
        %v6989 = vpop.f32.mrb[0].mxu0
        %v6990 = vadd.f32 %v6370, %v6989
        %v6991 = vpop.f32.mrb[0].mxu0
        %v6992 = vadd.f32 %v6366, %v6991
        %v6993 = vpop.f32.mrb[0].mxu0
        %v6994 = vadd.f32 %v6370, %v6993
        %6995 = vmatprep.mubr.bf16.mxu0 %v428
        %6996 = vmatmul.mubr.bf16.gmra.mrb[0].mxu0 %v427
        %v6997 = vpop.f32.mrb[0].mxu0
        %v6998 = vadd.f32 %v6366, %v6997
        %v6999 = vpop.f32.mrb[0].mxu0
        %v7000 = vadd.f32 %v6370, %v6999
        %v7001 = vpop.f32.mrb[0].mxu0
        %v7002 = vadd.f32 %v6366, %v7001
        %v7003 = vpop.f32.mrb[0].mxu0
        %v7004 = vadd.f32 %v6370, %v7003
        %7005 = vmatprep.mubr.bf16.mxu0 %v431
        %7006 = vmatmul.mubr.bf16.gmra.mrb[0].mxu0 %v430
        %v7007 = vpop.f32.mrb[0].mxu0
        %v7008 = vadd.f32 %v6366, %v7007
        %v7009 = vpop.f32.mrb[0].mxu0
        %v7010 = vadd.f32 %v6370, %v7009
        %v7011 = vpop.f32.mrb[0].mxu0
        %v7012 = vadd.f32 %v6366, %v7011
        %v7013 = vpop.f32.mrb[0].mxu0
        %v7014 = vadd.f32 %v6370, %v7013
        %7015 = vmatprep.mubr.bf16.mxu0 %v434
        %7016 = vmatmul.mubr.bf16.gmra.mrb[0].mxu0 %v433
        %v7017 = vpop.f32.mrb[0].mxu0
        %v7018 = vadd.f32 %v6366, %v7017
        %v7019 = vpop.f32.mrb[0].mxu0
        %v7020 = vadd.f32 %v6370, %v7019
        %v7021 = vpop.f32.mrb[0].mxu0
        %v7022 = vadd.f32 %v6366, %v7021
        %v7023 = vpop.f32.mrb[0].mxu0
        %v7024 = vadd.f32 %v6370, %v7023
        %7025 = vmatprep.mubr.bf16.mxu0 %v437
        %7026 = vmatmul.mubr.bf16.gmra.mrb[0].mxu0 %v436
        %v7027 = vpop.f32.mrb[0].mxu0
        %v7028 = vadd.f32 %v6366, %v7027
        %v7029 = vpop.f32.mrb[0].mxu0
        %v7030 = vadd.f32 %v6370, %v7029
        %v7031 = vpop.f32.mrb[0].mxu0
        %v7032 = vadd.f32 %v6366, %v7031
        %v7033 = vpop.f32.mrb[0].mxu0
        %v7034 = vadd.f32 %v6370, %v7033
        %7035 = vmatprep.mubr.bf16.mxu0 %v440
        %7036 = vmatmul.mubr.bf16.gmra.mrb[0].mxu0 %v439
        %v7037 = vpop.f32.mrb[0].mxu0
        %v7038 = vadd.f32 %v6366, %v7037
        %v7039 = vpop.f32.mrb[0].mxu0
        %v7040 = vadd.f32 %v6370, %v7039
        %v7041 = vpop.f32.mrb[0].mxu0
        %v7042 = vadd.f32 %v6366, %v7041
        %v7043 = vpop.f32.mrb[0].mxu0
        %v7044 = vadd.f32 %v6370, %v7043
        %7045 = vmatprep.mubr.bf16.mxu0 %v443
        %7046 = vmatmul.mubr.bf16.gmra.mrb[0].mxu0 %v442
        %v7047 = vpop.f32.mrb[0].mxu0
        %v7048 = vadd.f32 %v6366, %v7047
        %v7049 = vpop.f32.mrb[0].mxu0
        %v7050 = vadd.f32 %v6370, %v7049
        %v7051 = vpop.f32.mrb[0].mxu0
        %v7052 = vadd.f32 %v6366, %v7051
        %v7053 = vpop.f32.mrb[0].mxu0
        %v7054 = vadd.f32 %v6370, %v7053
        %7055 = vdwg.mxu0
        %7056 = vmatprep.subr.bf16.mxu0 %v6736
        %7057 = vmatpush1.bf16.msra.mxu0 %v6735
        %7058 = vmatprep.subr.bf16.mxu0 %v6740
        %7059 = vmatpush1.bf16.msra.mxu0 %v6739
        %7060 = vmatprep.subr.bf16.mxu0 %v6744
        %7061 = vmatpush1.bf16.msra.mxu0 %v6743
        %7062 = vmatprep.subr.bf16.mxu0 %v6748
        %7063 = vmatpush1.bf16.msra.mxu0 %v6747
        %7064 = vmatprep.subr.bf16.mxu0 %v6752
        %7065 = vmatpush1.bf16.msra.mxu0 %v6751
        %7066 = vmatprep.subr.bf16.mxu0 %v6756
        %7067 = vmatpush1.bf16.msra.mxu0 %v6755
        %7068 = vmatprep.subr.bf16.mxu0 %v6760
        %7069 = vmatpush1.bf16.msra.mxu0 %v6759
        %7070 = vmatprep.subr.bf16.mxu0 %v6764
        %7071 = vmatpush1.bf16.msra.mxu0 %v6763
        %7072 = vmatprep.subr.bf16.mxu0 0
        %7073 = vmatpush1.bf16.msra.mxu0 0
        %7074 = vmatprep.subr.bf16.mxu0 0
        %7075 = vmatpush1.bf16.msra.mxu0 0
        %7076 = vmatprep.subr.bf16.mxu0 0
        %7077 = vmatpush1.bf16.msra.mxu0 0
        %7078 = vmatprep.subr.bf16.mxu0 0
        %7079 = vmatpush1.bf16.msra.mxu0 0
        %7080 = vmatprep.subr.bf16.mxu0 0
        %7081 = vmatpush1.bf16.msra.mxu0 0
        %7082 = vmatprep.subr.bf16.mxu0 0
        %7083 = vmatpush1.bf16.msra.mxu0 0
        %7084 = vmatprep.subr.bf16.mxu0 0
        %7085 = vmatpush1.bf16.msra.mxu0 0
        %7086 = vmatprep.subr.bf16.mxu0 0
        %7087 = vmatpush1.bf16.msra.mxu0 0
        %7088 = vmatprep.mubr.bf16.mxu0 0
        %7089 = vmatmul.mubr.bf16.gmra.mrb[0].mxu0 %v399
        %v7090 = vpop.f32.mrb[0].mxu0
        %v7091 = vadd.f32 %v6898, %v7090
        %v7092 = vpop.f32.mrb[0].mxu0
        %v7093 = vadd.f32 %v6900, %v7092
        %v7094 = vpop.f32.mrb[0].mxu0
        %v7095 = vadd.f32 %v6902, %v7094
        %v7096 = vpop.f32.mrb[0].mxu0
        %v7097 = vadd.f32 %v6904, %v7096
        %7098 = vmatprep.mubr.bf16.mxu0 0
        %7099 = vmatmul.mubr.bf16.gmra.mrb[0].mxu0 %v402
        %v7100 = vpop.f32.mrb[0].mxu0
        %v7101 = vadd.f32 %v6908, %v7100
        %v7102 = vpop.f32.mrb[0].mxu0
        %v7103 = vadd.f32 %v6910, %v7102
        %v7104 = vpop.f32.mrb[0].mxu0
        %v7105 = vadd.f32 %v6912, %v7104
        %v7106 = vpop.f32.mrb[0].mxu0
        %v7107 = vadd.f32 %v6914, %v7106
        %7108 = vmatprep.mubr.bf16.mxu0 0
        %7109 = vmatmul.mubr.bf16.gmra.mrb[0].mxu0 %v405
        %v7110 = vpop.f32.mrb[0].mxu0
        %v7111 = vadd.f32 %v6918, %v7110
        %v7112 = vpop.f32.mrb[0].mxu0
        %v7113 = vadd.f32 %v6920, %v7112
        %v7114 = vpop.f32.mrb[0].mxu0
        %v7115 = vadd.f32 %v6922, %v7114
        %v7116 = vpop.f32.mrb[0].mxu0
        %v7117 = vadd.f32 %v6924, %v7116
        %7118 = vmatprep.mubr.bf16.mxu0 0
        %7119 = vmatmul.mubr.bf16.gmra.mrb[0].mxu0 %v408
        %v7120 = vpop.f32.mrb[0].mxu0
        %v7121 = vadd.f32 %v6928, %v7120
        %v7122 = vpop.f32.mrb[0].mxu0
        %v7123 = vadd.f32 %v6930, %v7122
        %v7124 = vpop.f32.mrb[0].mxu0
        %v7125 = vadd.f32 %v6932, %v7124
        %v7126 = vpop.f32.mrb[0].mxu0
        %v7127 = vadd.f32 %v6934, %v7126
        %7128 = vmatprep.mubr.bf16.mxu0 0
        %7129 = vmatmul.mubr.bf16.gmra.mrb[0].mxu0 %v411
        %v7130 = vpop.f32.mrb[0].mxu0
        %v7131 = vadd.f32 %v6938, %v7130
        %v7132 = vpop.f32.mrb[0].mxu0
        %v7133 = vadd.f32 %v6940, %v7132
        %v7134 = vpop.f32.mrb[0].mxu0
        %v7135 = vadd.f32 %v6942, %v7134
        %v7136 = vpop.f32.mrb[0].mxu0
        %v7137 = vadd.f32 %v6944, %v7136
        %7138 = vmatprep.mubr.bf16.mxu0 0
        %7139 = vmatmul.mubr.bf16.gmra.mrb[0].mxu0 %v414
        %v7140 = vpop.f32.mrb[0].mxu0
        %v7141 = vadd.f32 %v6948, %v7140
        %v7142 = vpop.f32.mrb[0].mxu0
        %v7143 = vadd.f32 %v6950, %v7142
        %v7144 = vpop.f32.mrb[0].mxu0
        %v7145 = vadd.f32 %v6952, %v7144
        %v7146 = vpop.f32.mrb[0].mxu0
        %v7147 = vadd.f32 %v6954, %v7146
        %7148 = vmatprep.mubr.bf16.mxu0 0
        %7149 = vmatmul.mubr.bf16.gmra.mrb[0].mxu0 %v417
        %v7150 = vpop.f32.mrb[0].mxu0
        %v7151 = vadd.f32 %v6958, %v7150
        %v7152 = vpop.f32.mrb[0].mxu0
        %v7153 = vadd.f32 %v6960, %v7152
        %v7154 = vpop.f32.mrb[0].mxu0
        %v7155 = vadd.f32 %v6962, %v7154
        %v7156 = vpop.f32.mrb[0].mxu0
        %v7157 = vadd.f32 %v6964, %v7156
        %7158 = vmatprep.mubr.bf16.mxu0 0
        %7159 = vmatmul.mubr.bf16.gmra.mrb[0].mxu0 %v420
        %v7160 = vpop.f32.mrb[0].mxu0
        %v7161 = vadd.f32 %v6968, %v7160
        %v7162 = vpop.f32.mrb[0].mxu0
        %v7163 = vadd.f32 %v6970, %v7162
        %v7164 = vpop.f32.mrb[0].mxu0
        %v7165 = vadd.f32 %v6972, %v7164
        %v7166 = vpop.f32.mrb[0].mxu0
        %v7167 = vadd.f32 %v6974, %v7166
        %7168 = vmatprep.mubr.bf16.mxu0 0
        %7169 = vmatmul.mubr.bf16.gmra.mrb[0].mxu0 %v423
        %v7170 = vpop.f32.mrb[0].mxu0
        %v7171 = vadd.f32 %v6978, %v7170
        %v7172 = vpop.f32.mrb[0].mxu0
        %v7173 = vadd.f32 %v6980, %v7172
        %v7174 = vpop.f32.mrb[0].mxu0
        %v7175 = vadd.f32 %v6982, %v7174
        %v7176 = vpop.f32.mrb[0].mxu0
        %v7177 = vadd.f32 %v6984, %v7176
        %7178 = vmatprep.mubr.bf16.mxu0 0
        %7179 = vmatmul.mubr.bf16.gmra.mrb[0].mxu0 %v426
        %v7180 = vpop.f32.mrb[0].mxu0
        %v7181 = vadd.f32 %v6988, %v7180
        %v7182 = vpop.f32.mrb[0].mxu0
        %v7183 = vadd.f32 %v6990, %v7182
        %v7184 = vpop.f32.mrb[0].mxu0
        %v7185 = vadd.f32 %v6992, %v7184
        %v7186 = vpop.f32.mrb[0].mxu0
        %v7187 = vadd.f32 %v6994, %v7186
        %7188 = vmatprep.mubr.bf16.mxu0 0
        %7189 = vmatmul.mubr.bf16.gmra.mrb[0].mxu0 %v429
        %v7190 = vpop.f32.mrb[0].mxu0
        %v7191 = vadd.f32 %v6998, %v7190
        %v7192 = vpop.f32.mrb[0].mxu0
        %v7193 = vadd.f32 %v7000, %v7192
        %v7194 = vpop.f32.mrb[0].mxu0
        %v7195 = vadd.f32 %v7002, %v7194
        %v7196 = vpop.f32.mrb[0].mxu0
        %v7197 = vadd.f32 %v7004, %v7196
        %7198 = vmatprep.mubr.bf16.mxu0 0
        %7199 = vmatmul.mubr.bf16.gmra.mrb[0].mxu0 %v432
        %v7200 = vpop.f32.mrb[0].mxu0
        %v7201 = vadd.f32 %v7008, %v7200
        %v7202 = vpop.f32.mrb[0].mxu0
        %v7203 = vadd.f32 %v7010, %v7202
        %v7204 = vpop.f32.mrb[0].mxu0
        %v7205 = vadd.f32 %v7012, %v7204
        %v7206 = vpop.f32.mrb[0].mxu0
        %v7207 = vadd.f32 %v7014, %v7206
        %7208 = vmatprep.mubr.bf16.mxu0 0
        %7209 = vmatmul.mubr.bf16.gmra.mrb[0].mxu0 %v435
        %v7210 = vpop.f32.mrb[0].mxu0
        %v7211 = vadd.f32 %v7018, %v7210
        %v7212 = vpop.f32.mrb[0].mxu0
        %v7213 = vadd.f32 %v7020, %v7212
        %v7214 = vpop.f32.mrb[0].mxu0
        %v7215 = vadd.f32 %v7022, %v7214
        %v7216 = vpop.f32.mrb[0].mxu0
        %v7217 = vadd.f32 %v7024, %v7216
        %7218 = vmatprep.mubr.bf16.mxu0 0
        %7219 = vmatmul.mubr.bf16.gmra.mrb[0].mxu0 %v438
        %v7220 = vpop.f32.mrb[0].mxu0
        %v7221 = vadd.f32 %v7028, %v7220
        %v7222 = vpop.f32.mrb[0].mxu0
        %v7223 = vadd.f32 %v7030, %v7222
        %v7224 = vpop.f32.mrb[0].mxu0
        %v7225 = vadd.f32 %v7032, %v7224
        %v7226 = vpop.f32.mrb[0].mxu0
        %v7227 = vadd.f32 %v7034, %v7226
        %7228 = vmatprep.mubr.bf16.mxu0 0
        %7229 = vmatmul.mubr.bf16.gmra.mrb[0].mxu0 %v441
        %v7230 = vpop.f32.mrb[0].mxu0
        %v7231 = vadd.f32 %v7038, %v7230
        %v7232 = vpop.f32.mrb[0].mxu0
        %v7233 = vadd.f32 %v7040, %v7232
        %v7234 = vpop.f32.mrb[0].mxu0
        %v7235 = vadd.f32 %v7042, %v7234
        %v7236 = vpop.f32.mrb[0].mxu0
        %v7237 = vadd.f32 %v7044, %v7236
        %7238 = vmatprep.mubr.bf16.mxu0 0
        %7239 = vmatmul.mubr.bf16.gmra.mrb[0].mxu0 %v444
        %v7240 = vpop.f32.mrb[0].mxu0
        %v7241 = vadd.f32 %v7048, %v7240
        %v7242 = vpop.f32.mrb[0].mxu0
        %v7243 = vadd.f32 %v7050, %v7242
        %v7244 = vpop.f32.mrb[0].mxu0
        %v7245 = vadd.f32 %v7052, %v7244
        %v7246 = vpop.f32.mrb[0].mxu0
        %v7247 = vadd.f32 %v7054, %v7246
        %7248 = vdwg.mxu0
        %7249 = vmatprep.subr.bf16.mxu0 %v6674
        %7250 = vmatpush1.bf16.msra.mxu0 %v6673
        %7251 = vmatprep.subr.bf16.mxu0 %v6678
        %7252 = vmatpush1.bf16.msra.mxu0 %v6677
        %7253 = vmatprep.subr.bf16.mxu0 %v6682
        %7254 = vmatpush1.bf16.msra.mxu0 %v6681
        %7255 = vmatprep.subr.bf16.mxu0 %v6686
        %7256 = vmatpush1.bf16.msra.mxu0 %v6685
        %7257 = vmatprep.subr.bf16.mxu0 %v6690
        %7258 = vmatpush1.bf16.msra.mxu0 %v6689
        %7259 = vmatprep.subr.bf16.mxu0 %v6694
        %7260 = vmatpush1.bf16.msra.mxu0 %v6693
        %7261 = vmatprep.subr.bf16.mxu0 %v6698
        %7262 = vmatpush1.bf16.msra.mxu0 %v6697
        %7263 = vmatprep.subr.bf16.mxu0 %v6702
        %7264 = vmatpush1.bf16.msra.mxu0 %v6701
        %7265 = vmatprep.subr.bf16.mxu0 %v6706
        %7266 = vmatpush1.bf16.msra.mxu0 %v6705
        %7267 = vmatprep.subr.bf16.mxu0 %v6710
        %7268 = vmatpush1.bf16.msra.mxu0 %v6709
        %7269 = vmatprep.subr.bf16.mxu0 %v6714
        %7270 = vmatpush1.bf16.msra.mxu0 %v6713
        %7271 = vmatprep.subr.bf16.mxu0 %v6718
        %7272 = vmatpush1.bf16.msra.mxu0 %v6717
        %7273 = vmatprep.subr.bf16.mxu0 %v6722
        %7274 = vmatpush1.bf16.msra.mxu0 %v6721
        %7275 = vmatprep.subr.bf16.mxu0 %v6726
        %7276 = vmatpush1.bf16.msra.mxu0 %v6725
        %7277 = vmatprep.subr.bf16.mxu0 %v6730
        %7278 = vmatpush1.bf16.msra.mxu0 %v6729
        %7279 = vmatprep.subr.bf16.mxu0 %v6734
        %7280 = vmatpush1.bf16.msra.mxu0 %v6733
        %7281 = vmatprep.mubr.bf16.mxu0 %v398
        %7282 = vmatmul.mubr.bf16.gmra.mrb[0].mxu0 %v397
        %v7283 = vpop.f32.mrb[0].mxu0
        %v7284 = vadd.f32 %v6374, %v7283
        %v7285 = vpop.f32.mrb[0].mxu0
        %v7286 = vadd.f32 %v6378, %v7285
        %v7287 = vpop.f32.mrb[0].mxu0
        %v7288 = vadd.f32 %v6374, %v7287
        %v7289 = vpop.f32.mrb[0].mxu0
        %v7290 = vadd.f32 %v6378, %v7289
        %7291 = vmatprep.mubr.bf16.mxu0 %v401
        %7292 = vmatmul.mubr.bf16.gmra.mrb[0].mxu0 %v400
        %v7293 = vpop.f32.mrb[0].mxu0
        %v7294 = vadd.f32 %v6374, %v7293
        %v7295 = vpop.f32.mrb[0].mxu0
        %v7296 = vadd.f32 %v6378, %v7295
        %v7297 = vpop.f32.mrb[0].mxu0
        %v7298 = vadd.f32 %v6374, %v7297
        %v7299 = vpop.f32.mrb[0].mxu0
        %v7300 = vadd.f32 %v6378, %v7299
        %7301 = vmatprep.mubr.bf16.mxu0 %v404
        %7302 = vmatmul.mubr.bf16.gmra.mrb[0].mxu0 %v403
        %v7303 = vpop.f32.mrb[0].mxu0
        %v7304 = vadd.f32 %v6374, %v7303
        %v7305 = vpop.f32.mrb[0].mxu0
        %v7306 = vadd.f32 %v6378, %v7305
        %v7307 = vpop.f32.mrb[0].mxu0
        %v7308 = vadd.f32 %v6374, %v7307
        %v7309 = vpop.f32.mrb[0].mxu0
        %v7310 = vadd.f32 %v6378, %v7309
        %7311 = vmatprep.mubr.bf16.mxu0 %v407
        %7312 = vmatmul.mubr.bf16.gmra.mrb[0].mxu0 %v406
        %v7313 = vpop.f32.mrb[0].mxu0
        %v7314 = vadd.f32 %v6374, %v7313
        %v7315 = vpop.f32.mrb[0].mxu0
        %v7316 = vadd.f32 %v6378, %v7315
        %v7317 = vpop.f32.mrb[0].mxu0
        %v7318 = vadd.f32 %v6374, %v7317
        %v7319 = vpop.f32.mrb[0].mxu0
        %v7320 = vadd.f32 %v6378, %v7319
        %7321 = vmatprep.mubr.bf16.mxu0 %v410
        %7322 = vmatmul.mubr.bf16.gmra.mrb[0].mxu0 %v409
        %v7323 = vpop.f32.mrb[0].mxu0
        %v7324 = vadd.f32 %v6374, %v7323
        %v7325 = vpop.f32.mrb[0].mxu0
        %v7326 = vadd.f32 %v6378, %v7325
        %v7327 = vpop.f32.mrb[0].mxu0
        %v7328 = vadd.f32 %v6374, %v7327
        %v7329 = vpop.f32.mrb[0].mxu0
        %v7330 = vadd.f32 %v6378, %v7329
        %7331 = vmatprep.mubr.bf16.mxu0 %v413
        %7332 = vmatmul.mubr.bf16.gmra.mrb[0].mxu0 %v412
        %v7333 = vpop.f32.mrb[0].mxu0
        %v7334 = vadd.f32 %v6374, %v7333
        %v7335 = vpop.f32.mrb[0].mxu0
        %v7336 = vadd.f32 %v6378, %v7335
        %v7337 = vpop.f32.mrb[0].mxu0
        %v7338 = vadd.f32 %v6374, %v7337
        %v7339 = vpop.f32.mrb[0].mxu0
        %v7340 = vadd.f32 %v6378, %v7339
        %7341 = vmatprep.mubr.bf16.mxu0 %v416
        %7342 = vmatmul.mubr.bf16.gmra.mrb[0].mxu0 %v415
        %v7343 = vpop.f32.mrb[0].mxu0
        %v7344 = vadd.f32 %v6374, %v7343
        %v7345 = vpop.f32.mrb[0].mxu0
        %v7346 = vadd.f32 %v6378, %v7345
        %v7347 = vpop.f32.mrb[0].mxu0
        %v7348 = vadd.f32 %v6374, %v7347
        %v7349 = vpop.f32.mrb[0].mxu0
        %v7350 = vadd.f32 %v6378, %v7349
        %7351 = vmatprep.mubr.bf16.mxu0 %v419
        %7352 = vmatmul.mubr.bf16.gmra.mrb[0].mxu0 %v418
        %v7353 = vpop.f32.mrb[0].mxu0
        %v7354 = vadd.f32 %v6374, %v7353
        %v7355 = vpop.f32.mrb[0].mxu0
        %v7356 = vadd.f32 %v6378, %v7355
        %v7357 = vpop.f32.mrb[0].mxu0
        %v7358 = vadd.f32 %v6374, %v7357
        %v7359 = vpop.f32.mrb[0].mxu0
        %v7360 = vadd.f32 %v6378, %v7359
        %7361 = vmatprep.mubr.bf16.mxu0 %v422
        %7362 = vmatmul.mubr.bf16.gmra.mrb[0].mxu0 %v421
        %v7363 = vpop.f32.mrb[0].mxu0
        %v7364 = vadd.f32 %v6374, %v7363
        %v7365 = vpop.f32.mrb[0].mxu0
        %v7366 = vadd.f32 %v6378, %v7365
        %v7367 = vpop.f32.mrb[0].mxu0
        %v7368 = vadd.f32 %v6374, %v7367
        %v7369 = vpop.f32.mrb[0].mxu0
        %v7370 = vadd.f32 %v6378, %v7369
        %7371 = vmatprep.mubr.bf16.mxu0 %v425
        %7372 = vmatmul.mubr.bf16.gmra.mrb[0].mxu0 %v424
        %v7373 = vpop.f32.mrb[0].mxu0
        %v7374 = vadd.f32 %v6374, %v7373
        %v7375 = vpop.f32.mrb[0].mxu0
        %v7376 = vadd.f32 %v6378, %v7375
        %v7377 = vpop.f32.mrb[0].mxu0
        %v7378 = vadd.f32 %v6374, %v7377
        %v7379 = vpop.f32.mrb[0].mxu0
        %v7380 = vadd.f32 %v6378, %v7379
        %7381 = vmatprep.mubr.bf16.mxu0 %v428
        %7382 = vmatmul.mubr.bf16.gmra.mrb[0].mxu0 %v427
        %v7383 = vpop.f32.mrb[0].mxu0
        %v7384 = vadd.f32 %v6374, %v7383
        %v7385 = vpop.f32.mrb[0].mxu0
        %v7386 = vadd.f32 %v6378, %v7385
        %v7387 = vpop.f32.mrb[0].mxu0
        %v7388 = vadd.f32 %v6374, %v7387
        %v7389 = vpop.f32.mrb[0].mxu0
        %v7390 = vadd.f32 %v6378, %v7389
        %7391 = vmatprep.mubr.bf16.mxu0 %v431
        %7392 = vmatmul.mubr.bf16.gmra.mrb[0].mxu0 %v430
        %v7393 = vpop.f32.mrb[0].mxu0
        %v7394 = vadd.f32 %v6374, %v7393
        %v7395 = vpop.f32.mrb[0].mxu0
        %v7396 = vadd.f32 %v6378, %v7395
        %v7397 = vpop.f32.mrb[0].mxu0
        %v7398 = vadd.f32 %v6374, %v7397
        %v7399 = vpop.f32.mrb[0].mxu0
        %v7400 = vadd.f32 %v6378, %v7399
        %7401 = vmatprep.mubr.bf16.mxu0 %v434
        %7402 = vmatmul.mubr.bf16.gmra.mrb[0].mxu0 %v433
        %v7403 = vpop.f32.mrb[0].mxu0
        %v7404 = vadd.f32 %v6374, %v7403
        %v7405 = vpop.f32.mrb[0].mxu0
        %v7406 = vadd.f32 %v6378, %v7405
        %v7407 = vpop.f32.mrb[0].mxu0
        %v7408 = vadd.f32 %v6374, %v7407
        %v7409 = vpop.f32.mrb[0].mxu0
        %v7410 = vadd.f32 %v6378, %v7409
        %7411 = vmatprep.mubr.bf16.mxu0 %v437
        %7412 = vmatmul.mubr.bf16.gmra.mrb[0].mxu0 %v436
        %v7413 = vpop.f32.mrb[0].mxu0
        %v7414 = vadd.f32 %v6374, %v7413
        %v7415 = vpop.f32.mrb[0].mxu0
        %v7416 = vadd.f32 %v6378, %v7415
        %v7417 = vpop.f32.mrb[0].mxu0
        %v7418 = vadd.f32 %v6374, %v7417
        %v7419 = vpop.f32.mrb[0].mxu0
        %v7420 = vadd.f32 %v6378, %v7419
        %7421 = vmatprep.mubr.bf16.mxu0 %v440
        %7422 = vmatmul.mubr.bf16.gmra.mrb[0].mxu0 %v439
        %v7423 = vpop.f32.mrb[0].mxu0
        %v7424 = vadd.f32 %v6374, %v7423
        %v7425 = vpop.f32.mrb[0].mxu0
        %v7426 = vadd.f32 %v6378, %v7425
        %v7427 = vpop.f32.mrb[0].mxu0
        %v7428 = vadd.f32 %v6374, %v7427
        %v7429 = vpop.f32.mrb[0].mxu0
        %v7430 = vadd.f32 %v6378, %v7429
        %7431 = vmatprep.mubr.bf16.mxu0 %v443
        %7432 = vmatmul.mubr.bf16.gmra.mrb[0].mxu0 %v442
        %v7433 = vpop.f32.mrb[0].mxu0
        %v7434 = vadd.f32 %v6374, %v7433
        %v7435 = vpop.f32.mrb[0].mxu0
        %v7436 = vadd.f32 %v6378, %v7435
        %v7437 = vpop.f32.mrb[0].mxu0
        %v7438 = vadd.f32 %v6374, %v7437
        %v7439 = vpop.f32.mrb[0].mxu0
        %v7440 = vadd.f32 %v6378, %v7439
        %7441 = vdwg.mxu0
        %7442 = vmatprep.subr.bf16.mxu0 %v6738
        %7443 = vmatpush1.bf16.msra.mxu0 %v6737
        %7444 = vmatprep.subr.bf16.mxu0 %v6742
        %7445 = vmatpush1.bf16.msra.mxu0 %v6741
        %7446 = vmatprep.subr.bf16.mxu0 %v6746
        %7447 = vmatpush1.bf16.msra.mxu0 %v6745
        %7448 = vmatprep.subr.bf16.mxu0 %v6750
        %7449 = vmatpush1.bf16.msra.mxu0 %v6749
        %7450 = vmatprep.subr.bf16.mxu0 %v6754
        %7451 = vmatpush1.bf16.msra.mxu0 %v6753
        %7452 = vmatprep.subr.bf16.mxu0 %v6758
        %7453 = vmatpush1.bf16.msra.mxu0 %v6757
        %7454 = vmatprep.subr.bf16.mxu0 %v6762
        %7455 = vmatpush1.bf16.msra.mxu0 %v6761
        %7456 = vmatprep.subr.bf16.mxu0 %v6766
        %7457 = vmatpush1.bf16.msra.mxu0 %v6765
        %7458 = vmatprep.subr.bf16.mxu0 0
        %7459 = vmatpush1.bf16.msra.mxu0 0
        %7460 = vmatprep.subr.bf16.mxu0 0
        %7461 = vmatpush1.bf16.msra.mxu0 0
        %7462 = vmatprep.subr.bf16.mxu0 0
        %7463 = vmatpush1.bf16.msra.mxu0 0
        %7464 = vmatprep.subr.bf16.mxu0 0
        %7465 = vmatpush1.bf16.msra.mxu0 0
        %7466 = vmatprep.subr.bf16.mxu0 0
        %7467 = vmatpush1.bf16.msra.mxu0 0
        %7468 = vmatprep.subr.bf16.mxu0 0
        %7469 = vmatpush1.bf16.msra.mxu0 0
        %7470 = vmatprep.subr.bf16.mxu0 0
        %7471 = vmatpush1.bf16.msra.mxu0 0
        %7472 = vmatprep.subr.bf16.mxu0 0
        %7473 = vmatpush1.bf16.msra.mxu0 0
        %7474 = vmatprep.mubr.bf16.mxu0 0
        %7475 = vmatmul.mubr.bf16.gmra.mrb[0].mxu0 %v399
        %v7476 = vpop.f32.mrb[0].mxu0
        %v7477 = vadd.f32 %v7284, %v7476
        %v7478 = vpop.f32.mrb[0].mxu0
        %v7479 = vadd.f32 %v7286, %v7478
        %v7480 = vpop.f32.mrb[0].mxu0
        %v7481 = vadd.f32 %v7288, %v7480
        %v7482 = vpop.f32.mrb[0].mxu0
        %v7483 = vadd.f32 %v7290, %v7482
        %7484 = vmatprep.mubr.bf16.mxu0 0
        %7485 = vmatmul.mubr.bf16.gmra.mrb[0].mxu0 %v402
        %v7486 = vpop.f32.mrb[0].mxu0
        %v7487 = vadd.f32 %v7294, %v7486
        %v7488 = vpop.f32.mrb[0].mxu0
        %v7489 = vadd.f32 %v7296, %v7488
        %v7490 = vpop.f32.mrb[0].mxu0
        %v7491 = vadd.f32 %v7298, %v7490
        %v7492 = vpop.f32.mrb[0].mxu0
        %v7493 = vadd.f32 %v7300, %v7492
        %7494 = vmatprep.mubr.bf16.mxu0 0
        %7495 = vmatmul.mubr.bf16.gmra.mrb[0].mxu0 %v405
        %v7496 = vpop.f32.mrb[0].mxu0
        %v7497 = vadd.f32 %v7304, %v7496
        %v7498 = vpop.f32.mrb[0].mxu0
        %v7499 = vadd.f32 %v7306, %v7498
        %v7500 = vpop.f32.mrb[0].mxu0
        %v7501 = vadd.f32 %v7308, %v7500
        %v7502 = vpop.f32.mrb[0].mxu0
        %v7503 = vadd.f32 %v7310, %v7502
        %7504 = vmatprep.mubr.bf16.mxu0 0
        %7505 = vmatmul.mubr.bf16.gmra.mrb[0].mxu0 %v408
        %v7506 = vpop.f32.mrb[0].mxu0
        %v7507 = vadd.f32 %v7314, %v7506
        %v7508 = vpop.f32.mrb[0].mxu0
        %v7509 = vadd.f32 %v7316, %v7508
        %v7510 = vpop.f32.mrb[0].mxu0
        %v7511 = vadd.f32 %v7318, %v7510
        %v7512 = vpop.f32.mrb[0].mxu0
        %v7513 = vadd.f32 %v7320, %v7512
        %7514 = vmatprep.mubr.bf16.mxu0 0
        %7515 = vmatmul.mubr.bf16.gmra.mrb[0].mxu0 %v411
        %v7516 = vpop.f32.mrb[0].mxu0
        %v7517 = vadd.f32 %v7324, %v7516
        %v7518 = vpop.f32.mrb[0].mxu0
        %v7519 = vadd.f32 %v7326, %v7518
        %v7520 = vpop.f32.mrb[0].mxu0
        %v7521 = vadd.f32 %v7328, %v7520
        %v7522 = vpop.f32.mrb[0].mxu0
        %v7523 = vadd.f32 %v7330, %v7522
        %7524 = vmatprep.mubr.bf16.mxu0 0
        %7525 = vmatmul.mubr.bf16.gmra.mrb[0].mxu0 %v414
        %v7526 = vpop.f32.mrb[0].mxu0
        %v7527 = vadd.f32 %v7334, %v7526
        %v7528 = vpop.f32.mrb[0].mxu0
        %v7529 = vadd.f32 %v7336, %v7528
        %v7530 = vpop.f32.mrb[0].mxu0
        %v7531 = vadd.f32 %v7338, %v7530
        %v7532 = vpop.f32.mrb[0].mxu0
        %v7533 = vadd.f32 %v7340, %v7532
        %7534 = vmatprep.mubr.bf16.mxu0 0
        %7535 = vmatmul.mubr.bf16.gmra.mrb[0].mxu0 %v417
        %v7536 = vpop.f32.mrb[0].mxu0
        %v7537 = vadd.f32 %v7344, %v7536
        %v7538 = vpop.f32.mrb[0].mxu0
        %v7539 = vadd.f32 %v7346, %v7538
        %v7540 = vpop.f32.mrb[0].mxu0
        %v7541 = vadd.f32 %v7348, %v7540
        %v7542 = vpop.f32.mrb[0].mxu0
        %v7543 = vadd.f32 %v7350, %v7542
        %7544 = vmatprep.mubr.bf16.mxu0 0
        %7545 = vmatmul.mubr.bf16.gmra.mrb[0].mxu0 %v420
        %v7546 = vpop.f32.mrb[0].mxu0
        %v7547 = vadd.f32 %v7354, %v7546
        %v7548 = vpop.f32.mrb[0].mxu0
        %v7549 = vadd.f32 %v7356, %v7548
        %v7550 = vpop.f32.mrb[0].mxu0
        %v7551 = vadd.f32 %v7358, %v7550
        %v7552 = vpop.f32.mrb[0].mxu0
        %v7553 = vadd.f32 %v7360, %v7552
        %7554 = vmatprep.mubr.bf16.mxu0 0
        %7555 = vmatmul.mubr.bf16.gmra.mrb[0].mxu0 %v423
        %v7556 = vpop.f32.mrb[0].mxu0
        %v7557 = vadd.f32 %v7364, %v7556
        %v7558 = vpop.f32.mrb[0].mxu0
        %v7559 = vadd.f32 %v7366, %v7558
        %v7560 = vpop.f32.mrb[0].mxu0
        %v7561 = vadd.f32 %v7368, %v7560
        %v7562 = vpop.f32.mrb[0].mxu0
        %v7563 = vadd.f32 %v7370, %v7562
        %7564 = vmatprep.mubr.bf16.mxu0 0
        %7565 = vmatmul.mubr.bf16.gmra.mrb[0].mxu0 %v426
        %v7566 = vpop.f32.mrb[0].mxu0
        %v7567 = vadd.f32 %v7374, %v7566
        %v7568 = vpop.f32.mrb[0].mxu0
        %v7569 = vadd.f32 %v7376, %v7568
        %v7570 = vpop.f32.mrb[0].mxu0
        %v7571 = vadd.f32 %v7378, %v7570
        %v7572 = vpop.f32.mrb[0].mxu0
        %v7573 = vadd.f32 %v7380, %v7572
        %7574 = vmatprep.mubr.bf16.mxu0 0
        %7575 = vmatmul.mubr.bf16.gmra.mrb[0].mxu0 %v429
        %v7576 = vpop.f32.mrb[0].mxu0
        %v7577 = vadd.f32 %v7384, %v7576
        %v7578 = vpop.f32.mrb[0].mxu0
        %v7579 = vadd.f32 %v7386, %v7578
        %v7580 = vpop.f32.mrb[0].mxu0
        %v7581 = vadd.f32 %v7388, %v7580
        %v7582 = vpop.f32.mrb[0].mxu0
        %v7583 = vadd.f32 %v7390, %v7582
        %7584 = vmatprep.mubr.bf16.mxu0 0
        %7585 = vmatmul.mubr.bf16.gmra.mrb[0].mxu0 %v432
        %v7586 = vpop.f32.mrb[0].mxu0
        %v7587 = vadd.f32 %v7394, %v7586
        %v7588 = vpop.f32.mrb[0].mxu0
        %v7589 = vadd.f32 %v7396, %v7588
        %v7590 = vpop.f32.mrb[0].mxu0
        %v7591 = vadd.f32 %v7398, %v7590
        %v7592 = vpop.f32.mrb[0].mxu0
        %v7593 = vadd.f32 %v7400, %v7592
        %7594 = vmatprep.mubr.bf16.mxu0 0
        %7595 = vmatmul.mubr.bf16.gmra.mrb[0].mxu0 %v435
        %v7596 = vpop.f32.mrb[0].mxu0
        %v7597 = vadd.f32 %v7404, %v7596
        %v7598 = vpop.f32.mrb[0].mxu0
        %v7599 = vadd.f32 %v7406, %v7598
        %v7600 = vpop.f32.mrb[0].mxu0
        %v7601 = vadd.f32 %v7408, %v7600
        %v7602 = vpop.f32.mrb[0].mxu0
        %v7603 = vadd.f32 %v7410, %v7602
        %7604 = vmatprep.mubr.bf16.mxu0 0
        %7605 = vmatmul.mubr.bf16.gmra.mrb[0].mxu0 %v438
        %v7606 = vpop.f32.mrb[0].mxu0
        %v7607 = vadd.f32 %v7414, %v7606
        %v7608 = vpop.f32.mrb[0].mxu0
        %v7609 = vadd.f32 %v7416, %v7608
        %v7610 = vpop.f32.mrb[0].mxu0
        %v7611 = vadd.f32 %v7418, %v7610
        %v7612 = vpop.f32.mrb[0].mxu0
        %v7613 = vadd.f32 %v7420, %v7612
        %7614 = vmatprep.mubr.bf16.mxu0 0
        %7615 = vmatmul.mubr.bf16.gmra.mrb[0].mxu0 %v441
        %v7616 = vpop.f32.mrb[0].mxu0
        %v7617 = vadd.f32 %v7424, %v7616
        %v7618 = vpop.f32.mrb[0].mxu0
        %v7619 = vadd.f32 %v7426, %v7618
        %v7620 = vpop.f32.mrb[0].mxu0
        %v7621 = vadd.f32 %v7428, %v7620
        %v7622 = vpop.f32.mrb[0].mxu0
        %v7623 = vadd.f32 %v7430, %v7622
        %7624 = vmatprep.mubr.bf16.mxu0 0
        %7625 = vmatmul.mubr.bf16.gmra.mrb[0].mxu0 %v444
        %v7626 = vpop.f32.mrb[0].mxu0
        %v7627 = vadd.f32 %v7434, %v7626
        %v7628 = vpop.f32.mrb[0].mxu0
        %v7629 = vadd.f32 %v7436, %v7628
        %v7630 = vpop.f32.mrb[0].mxu0
        %v7631 = vadd.f32 %v7438, %v7630
        %v7632 = vpop.f32.mrb[0].mxu0
        %v7633 = vadd.f32 %v7440, %v7632
        %7634 = vdwg.mxu0
        %v7635 = vmax.f32 %v7091, 0.0
        %v7636 = vmax.f32 %v7093, 0.0
        %v7637 = vmax.f32 %v7477, 0.0
        %v7638 = vmax.f32 %v7479, 0.0
        %v7639 = vmax.f32 %v7095, 0.0
        %v7640 = vmax.f32 %v7097, 0.0
        %v7641 = vmax.f32 %v7481, 0.0
        %v7642 = vmax.f32 %v7483, 0.0
        %v7643 = vmax.f32 %v7101, 0.0
        %v7644 = vmax.f32 %v7103, 0.0
        %v7645 = vmax.f32 %v7487, 0.0
        %v7646 = vmax.f32 %v7489, 0.0
        %v7647 = vmax.f32 %v7105, 0.0
        %v7648 = vmax.f32 %v7107, 0.0
        %v7649 = vmax.f32 %v7491, 0.0
        %v7650 = vmax.f32 %v7493, 0.0
        %v7651 = vmax.f32 %v7111, 0.0
        %v7652 = vmax.f32 %v7113, 0.0
        %v7653 = vmax.f32 %v7497, 0.0
        %v7654 = vmax.f32 %v7499, 0.0
        %v7655 = vmax.f32 %v7115, 0.0
        %v7656 = vmax.f32 %v7117, 0.0
        %v7657 = vmax.f32 %v7501, 0.0
        %v7658 = vmax.f32 %v7503, 0.0
        %v7659 = vmax.f32 %v7121, 0.0
        %v7660 = vmax.f32 %v7123, 0.0
        %v7661 = vmax.f32 %v7507, 0.0
        %v7662 = vmax.f32 %v7509, 0.0
        %v7663 = vmax.f32 %v7125, 0.0
        %v7664 = vmax.f32 %v7127, 0.0
        %v7665 = vmax.f32 %v7511, 0.0
        %v7666 = vmax.f32 %v7513, 0.0
        %v7667 = vmax.f32 %v7131, 0.0
        %v7668 = vmax.f32 %v7133, 0.0
        %v7669 = vmax.f32 %v7517, 0.0
        %v7670 = vmax.f32 %v7519, 0.0
        %v7671 = vmax.f32 %v7135, 0.0
        %v7672 = vmax.f32 %v7137, 0.0
        %v7673 = vmax.f32 %v7521, 0.0
        %v7674 = vmax.f32 %v7523, 0.0
        %v7675 = vmax.f32 %v7141, 0.0
        %v7676 = vmax.f32 %v7143, 0.0
        %v7677 = vmax.f32 %v7527, 0.0
        %v7678 = vmax.f32 %v7529, 0.0
        %v7679 = vmax.f32 %v7145, 0.0
        %v7680 = vmax.f32 %v7147, 0.0
        %v7681 = vmax.f32 %v7531, 0.0
        %v7682 = vmax.f32 %v7533, 0.0
        %v7683 = vmax.f32 %v7151, 0.0
        %v7684 = vmax.f32 %v7153, 0.0
        %v7685 = vmax.f32 %v7537, 0.0
        %v7686 = vmax.f32 %v7539, 0.0
        %v7687 = vmax.f32 %v7155, 0.0
        %v7688 = vmax.f32 %v7157, 0.0
        %v7689 = vmax.f32 %v7541, 0.0
        %v7690 = vmax.f32 %v7543, 0.0
        %v7691 = vmax.f32 %v7161, 0.0
        %v7692 = vmax.f32 %v7163, 0.0
        %v7693 = vmax.f32 %v7547, 0.0
        %v7694 = vmax.f32 %v7549, 0.0
        %v7695 = vmax.f32 %v7165, 0.0
        %v7696 = vmax.f32 %v7167, 0.0
        %v7697 = vmax.f32 %v7551, 0.0
        %v7698 = vmax.f32 %v7553, 0.0
        %v7699 = vmax.f32 %v7171, 0.0
        %v7700 = vmax.f32 %v7173, 0.0
        %v7701 = vmax.f32 %v7557, 0.0
        %v7702 = vmax.f32 %v7559, 0.0
        %v7703 = vmax.f32 %v7175, 0.0
        %v7704 = vmax.f32 %v7177, 0.0
        %v7705 = vmax.f32 %v7561, 0.0
        %v7706 = vmax.f32 %v7563, 0.0
        %v7707 = vmax.f32 %v7181, 0.0
        %v7708 = vmax.f32 %v7183, 0.0
        %v7709 = vmax.f32 %v7567, 0.0
        %v7710 = vmax.f32 %v7569, 0.0
        %v7711 = vmax.f32 %v7185, 0.0
        %v7712 = vmax.f32 %v7187, 0.0
        %v7713 = vmax.f32 %v7571, 0.0
        %v7714 = vmax.f32 %v7573, 0.0
        %v7715 = vmax.f32 %v7191, 0.0
        %v7716 = vmax.f32 %v7193, 0.0
        %v7717 = vmax.f32 %v7577, 0.0
        %v7718 = vmax.f32 %v7579, 0.0
        %v7719 = vmax.f32 %v7195, 0.0
        %v7720 = vmax.f32 %v7197, 0.0
        %v7721 = vmax.f32 %v7581, 0.0
        %v7722 = vmax.f32 %v7583, 0.0
        %v7723 = vmax.f32 %v7201, 0.0
        %v7724 = vmax.f32 %v7203, 0.0
        %v7725 = vmax.f32 %v7587, 0.0
        %v7726 = vmax.f32 %v7589, 0.0
        %v7727 = vmax.f32 %v7205, 0.0
        %v7728 = vmax.f32 %v7207, 0.0
        %v7729 = vmax.f32 %v7591, 0.0
        %v7730 = vmax.f32 %v7593, 0.0
        %v7731 = vmax.f32 %v7211, 0.0
        %v7732 = vmax.f32 %v7213, 0.0
        %v7733 = vmax.f32 %v7597, 0.0
        %v7734 = vmax.f32 %v7599, 0.0
        %v7735 = vmax.f32 %v7215, 0.0
        %v7736 = vmax.f32 %v7217, 0.0
        %v7737 = vmax.f32 %v7601, 0.0
        %v7738 = vmax.f32 %v7603, 0.0
        %v7739 = vmax.f32 %v7221, 0.0
        %v7740 = vmax.f32 %v7223, 0.0
        %v7741 = vmax.f32 %v7607, 0.0
        %v7742 = vmax.f32 %v7609, 0.0
        %v7743 = vmax.f32 %v7225, 0.0
        %v7744 = vmax.f32 %v7227, 0.0
        %v7745 = vmax.f32 %v7611, 0.0
        %v7746 = vmax.f32 %v7613, 0.0
        %v7747 = vmax.f32 %v7231, 0.0
        %v7748 = vmax.f32 %v7233, 0.0
        %v7749 = vmax.f32 %v7617, 0.0
        %v7750 = vmax.f32 %v7619, 0.0
        %v7751 = vmax.f32 %v7235, 0.0
        %v7752 = vmax.f32 %v7237, 0.0
        %v7753 = vmax.f32 %v7621, 0.0
        %v7754 = vmax.f32 %v7623, 0.0
        %v7755 = vmax.f32 %v7241, 0.0
        %v7756 = vmax.f32 %v7243, 0.0
        %v7757 = vmax.f32 %v7627, 0.0
        %v7758 = vmax.f32 %v7629, 0.0
        %v7759 = vmax.f32 %v7245, 0.0
        %v7760 = vmax.f32 %v7247, 0.0
        %v7761 = vmax.f32 %v7631, 0.0
        %v7762 = vmax.f32 %v7633, 0.0
        %v7763 = vpack.c.bf16 %v7639, %v7635
        %v7764 = vpack.c.bf16 %v7640, %v7636
        %v7765 = vpack.c.bf16 %v7641, %v7637
        %v7766 = vpack.c.bf16 %v7642, %v7638
        %v7767 = vpack.c.bf16 %v7647, %v7643
        %v7768 = vpack.c.bf16 %v7648, %v7644
        %v7769 = vpack.c.bf16 %v7649, %v7645
        %v7770 = vpack.c.bf16 %v7650, %v7646
        %v7771 = vpack.c.bf16 %v7655, %v7651
        %v7772 = vpack.c.bf16 %v7656, %v7652
        %v7773 = vpack.c.bf16 %v7657, %v7653
        %v7774 = vpack.c.bf16 %v7658, %v7654
        %v7775 = vpack.c.bf16 %v7663, %v7659
        %v7776 = vpack.c.bf16 %v7664, %v7660
        %v7777 = vpack.c.bf16 %v7665, %v7661
        %v7778 = vpack.c.bf16 %v7666, %v7662
        %v7779 = vpack.c.bf16 %v7671, %v7667
        %v7780 = vpack.c.bf16 %v7672, %v7668
        %v7781 = vpack.c.bf16 %v7673, %v7669
        %v7782 = vpack.c.bf16 %v7674, %v7670
        %v7783 = vpack.c.bf16 %v7679, %v7675
        %v7784 = vpack.c.bf16 %v7680, %v7676
        %v7785 = vpack.c.bf16 %v7681, %v7677
        %v7786 = vpack.c.bf16 %v7682, %v7678
        %v7787 = vpack.c.bf16 %v7687, %v7683
        %v7788 = vpack.c.bf16 %v7688, %v7684
        %v7789 = vpack.c.bf16 %v7689, %v7685
        %v7790 = vpack.c.bf16 %v7690, %v7686
        %v7791 = vpack.c.bf16 %v7695, %v7691
        %v7792 = vpack.c.bf16 %v7696, %v7692
        %v7793 = vpack.c.bf16 %v7697, %v7693
        %v7794 = vpack.c.bf16 %v7698, %v7694
        %v7795 = vpack.c.bf16 %v7703, %v7699
        %v7796 = vpack.c.bf16 %v7704, %v7700
        %v7797 = vpack.c.bf16 %v7705, %v7701
        %v7798 = vpack.c.bf16 %v7706, %v7702
        %v7799 = vpack.c.bf16 %v7711, %v7707
        %v7800 = vpack.c.bf16 %v7712, %v7708
        %v7801 = vpack.c.bf16 %v7713, %v7709
        %v7802 = vpack.c.bf16 %v7714, %v7710
        %v7803 = vpack.c.bf16 %v7719, %v7715
        %v7804 = vpack.c.bf16 %v7720, %v7716
        %v7805 = vpack.c.bf16 %v7721, %v7717
        %v7806 = vpack.c.bf16 %v7722, %v7718
        %v7807 = vpack.c.bf16 %v7727, %v7723
        %v7808 = vpack.c.bf16 %v7728, %v7724
        %v7809 = vpack.c.bf16 %v7729, %v7725
        %v7810 = vpack.c.bf16 %v7730, %v7726
        %v7811 = vpack.c.bf16 %v7735, %v7731
        %v7812 = vpack.c.bf16 %v7736, %v7732
        %v7813 = vpack.c.bf16 %v7737, %v7733
        %v7814 = vpack.c.bf16 %v7738, %v7734
        %v7815 = vpack.c.bf16 %v7743, %v7739
        %v7816 = vpack.c.bf16 %v7744, %v7740
        %v7817 = vpack.c.bf16 %v7745, %v7741
        %v7818 = vpack.c.bf16 %v7746, %v7742
        %v7819 = vpack.c.bf16 %v7751, %v7747
        %v7820 = vpack.c.bf16 %v7752, %v7748
        %v7821 = vpack.c.bf16 %v7753, %v7749
        %v7822 = vpack.c.bf16 %v7754, %v7750
        %v7823 = vpack.c.bf16 %v7759, %v7755
        %v7824 = vpack.c.bf16 %v7760, %v7756
        %v7825 = vpack.c.bf16 %v7761, %v7757
        %v7826 = vpack.c.bf16 %v7762, %v7758
        %v7827 = vld [vmem:[#allocation8 + $0x600] sm:$0xff]
        %v7828 = vld [vmem:[#allocation8 + $0x608] sm:$0xf]
        %v7829 = vld [vmem:[#allocation8 + $0x60c] sm:$0xff]
        %v7830 = vld [vmem:[#allocation8 + $0x614] sm:$0xf]
        %v7831 = vld [vmem:[#allocation8 + $0x618] sm:$0xff]
        %v7832 = vld [vmem:[#allocation8 + $0x620] sm:$0xf]
        %v7833 = vld [vmem:[#allocation8 + $0x624] sm:$0xff]
        %v7834 = vld [vmem:[#allocation8 + $0x62c] sm:$0xf]
        %v7835 = vld [vmem:[#allocation8 + $0x630] sm:$0xff]
        %v7836 = vld [vmem:[#allocation8 + $0x638] sm:$0xf]
        %v7837 = vld [vmem:[#allocation8 + $0x63c] sm:$0xff]
        %v7838 = vld [vmem:[#allocation8 + $0x644] sm:$0xf]
        %v7839 = vld [vmem:[#allocation8 + $0x648] sm:$0xff]
        %v7840 = vld [vmem:[#allocation8 + $0x650] sm:$0xf]
        %v7841 = vld [vmem:[#allocation8 + $0x654] sm:$0xff]
        %v7842 = vld [vmem:[#allocation8 + $0x65c] sm:$0xf]
        %v7843 = vld [vmem:[#allocation8 + $0x660] sm:$0xff]
        %v7844 = vld [vmem:[#allocation8 + $0x668] sm:$0xf]
        %v7845 = vld [vmem:[#allocation8 + $0x66c] sm:$0xff]
        %v7846 = vld [vmem:[#allocation8 + $0x674] sm:$0xf]
        %v7847 = vld [vmem:[#allocation8 + $0x678] sm:$0xff]
        %v7848 = vld [vmem:[#allocation8 + $0x680] sm:$0xf]
        %v7849 = vld [vmem:[#allocation8 + $0x684] sm:$0xff]
        %v7850 = vld [vmem:[#allocation8 + $0x68c] sm:$0xf]
        %v7851 = vld [vmem:[#allocation8 + $0x690] sm:$0xff]
        %v7852 = vld [vmem:[#allocation8 + $0x698] sm:$0xf]
        %v7853 = vld [vmem:[#allocation8 + $0x69c] sm:$0xff]
        %v7854 = vld [vmem:[#allocation8 + $0x6a4] sm:$0xf]
        %v7855 = vld [vmem:[#allocation8 + $0x6a8] sm:$0xff]
        %v7856 = vld [vmem:[#allocation8 + $0x6b0] sm:$0xf]
        %v7857 = vld [vmem:[#allocation8 + $0x6b4] sm:$0xff]
        %v7858 = vld [vmem:[#allocation8 + $0x6bc] sm:$0xf]
        %v7859 = vld [vmem:[#allocation8 + $0x6c0] sm:$0xff]
        %v7860 = vld [vmem:[#allocation8 + $0x6c8] sm:$0xf]
        %v7861 = vld [vmem:[#allocation8 + $0x6cc] sm:$0xff]
        %v7862 = vld [vmem:[#allocation8 + $0x6d4] sm:$0xf]
        %v7863 = vld [vmem:[#allocation8 + $0x6d8] sm:$0xff]
        %v7864 = vld [vmem:[#allocation8 + $0x6e0] sm:$0xf]
        %v7865 = vld [vmem:[#allocation8 + $0x6e4] sm:$0xff]
        %v7866 = vld [vmem:[#allocation8 + $0x6ec] sm:$0xf]
        %v7867 = vld [vmem:[#allocation8 + $0x6f0] sm:$0xff]
        %v7868 = vld [vmem:[#allocation8 + $0x6f8] sm:$0xf]
        %v7869 = vld [vmem:[#allocation8 + $0x6fc] sm:$0xff]
        %v7870 = vld [vmem:[#allocation8 + $0x704] sm:$0xf]
        %v7871 = vld [vmem:[#allocation8 + $0x708] sm:$0xff]
        %v7872 = vld [vmem:[#allocation8 + $0x710] sm:$0xf]
        %v7873 = vld [vmem:[#allocation8 + $0x714] sm:$0xff]
        %v7874 = vld [vmem:[#allocation8 + $0x71c] sm:$0xf]
        %v7875 = vld [vmem:[#allocation8 + $0x720] sm:$0xff]
        %v7876 = vld [vmem:[#allocation8 + $0x728] sm:$0xf]
        %v7877 = vld [vmem:[#allocation8 + $0x72c] sm:$0xff]
        %v7878 = vld [vmem:[#allocation8 + $0x734] sm:$0xf]
        %v7879 = vld [vmem:[#allocation8 + $0x738] sm:$0xff]
        %v7880 = vld [vmem:[#allocation8 + $0x740] sm:$0xf]
        %v7881 = vld [vmem:[#allocation8 + $0x744] sm:$0xff]
        %v7882 = vld [vmem:[#allocation8 + $0x74c] sm:$0xf]
        %v7883 = vld [vmem:[#allocation8 + $0x750] sm:$0xff]
        %v7884 = vld [vmem:[#allocation8 + $0x758] sm:$0xf]
        %v7885 = vld [vmem:[#allocation8 + $0x75c] sm:$0xff]
        %v7886 = vld [vmem:[#allocation8 + $0x764] sm:$0xf]
        %v7887 = vld [vmem:[#allocation8 + $0x768] sm:$0xff]
        %v7888 = vld [vmem:[#allocation8 + $0x770] sm:$0xf]
        %v7889 = vld [vmem:[#allocation8 + $0x774] sm:$0xff]
        %v7890 = vld [vmem:[#allocation8 + $0x77c] sm:$0xf]
        %v7891 = vld [vmem:[#allocation8 + $0x780] sm:$0xff]
        %v7892 = vld [vmem:[#allocation8 + $0x788] sm:$0xf]
        %v7893 = vld [vmem:[#allocation8 + $0x78c] sm:$0xff]
        %v7894 = vld [vmem:[#allocation8 + $0x794] sm:$0xf]
        %v7895 = vld [vmem:[#allocation8 + $0x798] sm:$0xff]
        %v7896 = vld [vmem:[#allocation8 + $0x7a0] sm:$0xf]
        %v7897 = vld [vmem:[#allocation8 + $0x7a4] sm:$0xff]
        %v7898 = vld [vmem:[#allocation8 + $0x7ac] sm:$0xf]
        %v7899 = vld [vmem:[#allocation8 + $0x7b0] sm:$0xff]
        %v7900 = vld [vmem:[#allocation8 + $0x7b8] sm:$0xf]
        %v7901 = vld [vmem:[#allocation8 + $0x7bc] sm:$0xff]
        %v7902 = vld [vmem:[#allocation8 + $0x7c4] sm:$0xf]
        %v7903 = vld [vmem:[#allocation8 + $0x7c8] sm:$0xff]
        %v7904 = vld [vmem:[#allocation8 + $0x7d0] sm:$0xf]
        %v7905 = vld [vmem:[#allocation8 + $0x7d4] sm:$0xff]
        %v7906 = vld [vmem:[#allocation8 + $0x7dc] sm:$0xf]
        %v7907 = vld [vmem:[#allocation8 + $0x7e0] sm:$0xff]
        %v7908 = vld [vmem:[#allocation8 + $0x7e8] sm:$0xf]
        %v7909 = vld [vmem:[#allocation8 + $0x7ec] sm:$0xff]
        %v7910 = vld [vmem:[#allocation8 + $0x7f4] sm:$0xf]
        %v7911 = vld [vmem:[#allocation8 + $0x7f8] sm:$0xff]
        %v7912 = vld [vmem:[#allocation8 + $0x800] sm:$0xf]
        %v7913 = vld [vmem:[#allocation8 + $0x804] sm:$0xff]
        %v7914 = vld [vmem:[#allocation8 + $0x80c] sm:$0xf]
        %v7915 = vld [vmem:[#allocation8 + $0x810] sm:$0xff]
        %v7916 = vld [vmem:[#allocation8 + $0x818] sm:$0xf]
        %v7917 = vld [vmem:[#allocation8 + $0x81c] sm:$0xff]
        %v7918 = vld [vmem:[#allocation8 + $0x824] sm:$0xf]
        %v7919 = vld [vmem:[#allocation8 + $0x828] sm:$0xff]
        %v7920 = vld [vmem:[#allocation8 + $0x830] sm:$0xf]
        %v7921 = vld [vmem:[#allocation8 + $0x834] sm:$0xff]
        %v7922 = vld [vmem:[#allocation8 + $0x83c] sm:$0xf]
        %v7923 = vld [vmem:[#allocation8 + $0x840] sm:$0xff]
        %v7924 = vld [vmem:[#allocation8 + $0x848] sm:$0xf]
        %v7925 = vld [vmem:[#allocation8 + $0x84c] sm:$0xff]
        %v7926 = vld [vmem:[#allocation8 + $0x854] sm:$0xf]
        %v7927 = vld [vmem:[#allocation8 + $0x858] sm:$0xff]
        %v7928 = vld [vmem:[#allocation8 + $0x860] sm:$0xf]
        %v7929 = vld [vmem:[#allocation8 + $0x864] sm:$0xff]
        %v7930 = vld [vmem:[#allocation8 + $0x86c] sm:$0xf]
        %v7931 = vld [vmem:[#allocation8 + $0x870] sm:$0xff]
        %v7932 = vld [vmem:[#allocation8 + $0x878] sm:$0xf]
        %v7933 = vld [vmem:[#allocation8 + $0x87c] sm:$0xff]
        %v7934 = vld [vmem:[#allocation8 + $0x884] sm:$0xf]
        %v7935 = vld [vmem:[#allocation8 + $0x888] sm:$0xff]
        %v7936 = vld [vmem:[#allocation8 + $0x890] sm:$0xf]
        %v7937 = vld [vmem:[#allocation8 + $0x894] sm:$0xff]
        %v7938 = vld [vmem:[#allocation8 + $0x89c] sm:$0xf]
        %v7939 = vld [vmem:[#allocation8 + $0x8a0] sm:$0xff]
        %v7940 = vld [vmem:[#allocation8 + $0x8a8] sm:$0xf]
        %v7941 = vld [vmem:[#allocation8 + $0x8ac] sm:$0xff]
        %v7942 = vld [vmem:[#allocation8 + $0x8b4] sm:$0xf]
        %v7943 = vld [vmem:[#allocation8 + $0x8b8] sm:$0xff]
        %v7944 = vld [vmem:[#allocation8 + $0x8c0] sm:$0xf]
        %v7945 = vld [vmem:[#allocation8 + $0x8c4] sm:$0xff]
        %v7946 = vld [vmem:[#allocation8 + $0x8cc] sm:$0xf]
        %v7947 = vld [vmem:[#allocation8 + $0x8d0] sm:$0xff]
        %v7948 = vld [vmem:[#allocation8 + $0x8d8] sm:$0xf]
        %v7949 = vld [vmem:[#allocation8 + $0x8dc] sm:$0xff]
        %v7950 = vld [vmem:[#allocation8 + $0x8e4] sm:$0xf]
        %v7951 = vld [vmem:[#allocation8 + $0x8e8] sm:$0xff]
        %v7952 = vld [vmem:[#allocation8 + $0x8f0] sm:$0xf]
        %v7953 = vld [vmem:[#allocation8 + $0x8f4] sm:$0xff]
        %v7954 = vld [vmem:[#allocation8 + $0x8fc] sm:$0xf]
        %v8083 = vunpack.c.l.b16 %v7827
        %v8084 = vunpack.c.h.b16 %v7827
        %v8085 = vunpack.c.l.b16 %v7828
        %v8086 = vunpack.c.l.b16 %v7829
        %v8087 = vunpack.c.h.b16 %v7829
        %v8088 = vunpack.c.l.b16 %v7830
        %v8089 = vunpack.c.l.b16 %v7831
        %v8090 = vunpack.c.h.b16 %v7831
        %v8091 = vunpack.c.l.b16 %v7832
        %v8092 = vunpack.c.l.b16 %v7833
        %v8093 = vunpack.c.h.b16 %v7833
        %v8094 = vunpack.c.l.b16 %v7834
        %v8095 = vunpack.c.l.b16 %v7835
        %v8096 = vunpack.c.h.b16 %v7835
        %v8097 = vunpack.c.l.b16 %v7836
        %v8098 = vunpack.c.l.b16 %v7837
        %v8099 = vunpack.c.h.b16 %v7837
        %v8100 = vunpack.c.l.b16 %v7838
        %v8101 = vunpack.c.l.b16 %v7839
        %v8102 = vunpack.c.h.b16 %v7839
        %v8103 = vunpack.c.l.b16 %v7840
        %v8104 = vunpack.c.l.b16 %v7841
        %v8105 = vunpack.c.h.b16 %v7841
        %v8106 = vunpack.c.l.b16 %v7842
        %v8107 = vunpack.c.l.b16 %v7843
        %v8108 = vunpack.c.h.b16 %v7843
        %v8109 = vunpack.c.l.b16 %v7844
        %v8110 = vunpack.c.l.b16 %v7845
        %v8111 = vunpack.c.h.b16 %v7845
        %v8112 = vunpack.c.l.b16 %v7846
        %v8113 = vunpack.c.l.b16 %v7847
        %v8114 = vunpack.c.h.b16 %v7847
        %v8115 = vunpack.c.l.b16 %v7848
        %v8116 = vunpack.c.l.b16 %v7849
        %v8117 = vunpack.c.h.b16 %v7849
        %v8118 = vunpack.c.l.b16 %v7850
        %v8119 = vunpack.c.l.b16 %v7851
        %v8120 = vunpack.c.h.b16 %v7851
        %v8121 = vunpack.c.l.b16 %v7852
        %v8122 = vunpack.c.l.b16 %v7853
        %v8123 = vunpack.c.h.b16 %v7853
        %v8124 = vunpack.c.l.b16 %v7854
        %v8125 = vunpack.c.l.b16 %v7855
        %v8126 = vunpack.c.h.b16 %v7855
        %v8127 = vunpack.c.l.b16 %v7856
        %v8128 = vunpack.c.l.b16 %v7857
        %v8129 = vunpack.c.h.b16 %v7857
        %v8130 = vunpack.c.l.b16 %v7858
        %v8131 = vunpack.c.l.b16 %v7859
        %v8132 = vunpack.c.h.b16 %v7859
        %v8133 = vunpack.c.l.b16 %v7860
        %v8134 = vunpack.c.l.b16 %v7861
        %v8135 = vunpack.c.h.b16 %v7861
        %v8136 = vunpack.c.l.b16 %v7862
        %v8137 = vunpack.c.l.b16 %v7863
        %v8138 = vunpack.c.h.b16 %v7863
        %v8139 = vunpack.c.l.b16 %v7864
        %v8140 = vunpack.c.l.b16 %v7865
        %v8141 = vunpack.c.h.b16 %v7865
        %v8142 = vunpack.c.l.b16 %v7866
        %v8143 = vunpack.c.l.b16 %v7867
        %v8144 = vunpack.c.h.b16 %v7867
        %v8145 = vunpack.c.l.b16 %v7868
        %v8146 = vunpack.c.l.b16 %v7869
        %v8147 = vunpack.c.h.b16 %v7869
        %v8148 = vunpack.c.l.b16 %v7870
        %v8149 = vunpack.c.l.b16 %v7871
        %v8150 = vunpack.c.h.b16 %v7871
        %v8151 = vunpack.c.l.b16 %v7872
        %v8152 = vunpack.c.l.b16 %v7873
        %v8153 = vunpack.c.h.b16 %v7873
        %v8154 = vunpack.c.l.b16 %v7874
        %v8155 = vunpack.c.l.b16 %v7875
        %v8156 = vunpack.c.h.b16 %v7875
        %v8157 = vunpack.c.l.b16 %v7876
        %v8158 = vunpack.c.l.b16 %v7877
        %v8159 = vunpack.c.h.b16 %v7877
        %v8160 = vunpack.c.l.b16 %v7878
        %v8161 = vunpack.c.l.b16 %v7879
        %v8162 = vunpack.c.h.b16 %v7879
        %v8163 = vunpack.c.l.b16 %v7880
        %v8164 = vunpack.c.l.b16 %v7881
        %v8165 = vunpack.c.h.b16 %v7881
        %v8166 = vunpack.c.l.b16 %v7882
        %v8167 = vunpack.c.l.b16 %v7883
        %v8168 = vunpack.c.h.b16 %v7883
        %v8169 = vunpack.c.l.b16 %v7884
        %v8170 = vunpack.c.l.b16 %v7885
        %v8171 = vunpack.c.h.b16 %v7885
        %v8172 = vunpack.c.l.b16 %v7886
        %v8173 = vunpack.c.l.b16 %v7887
        %v8174 = vunpack.c.h.b16 %v7887
        %v8175 = vunpack.c.l.b16 %v7888
        %v8176 = vunpack.c.l.b16 %v7889
        %v8177 = vunpack.c.h.b16 %v7889
        %v8178 = vunpack.c.l.b16 %v7890
        %v8179 = vunpack.c.l.b16 %v7891
        %v8180 = vunpack.c.h.b16 %v7891
        %v8181 = vunpack.c.l.b16 %v7892
        %v8182 = vunpack.c.l.b16 %v7893
        %v8183 = vunpack.c.h.b16 %v7893
        %v8184 = vunpack.c.l.b16 %v7894
        %v8185 = vunpack.c.l.b16 %v7895
        %v8186 = vunpack.c.h.b16 %v7895
        %v8187 = vunpack.c.l.b16 %v7896
        %v8188 = vunpack.c.l.b16 %v7897
        %v8189 = vunpack.c.h.b16 %v7897
        %v8190 = vunpack.c.l.b16 %v7898
        %v8191 = vunpack.c.l.b16 %v7899
        %v8192 = vunpack.c.h.b16 %v7899
        %v8193 = vunpack.c.l.b16 %v7900
        %v8194 = vunpack.c.l.b16 %v7901
        %v8195 = vunpack.c.h.b16 %v7901
        %v8196 = vunpack.c.l.b16 %v7902
        %v8197 = vunpack.c.l.b16 %v7903
        %v8198 = vunpack.c.h.b16 %v7903
        %v8199 = vunpack.c.l.b16 %v7904
        %v8200 = vunpack.c.l.b16 %v7905
        %v8201 = vunpack.c.h.b16 %v7905
        %v8202 = vunpack.c.l.b16 %v7906
        %v8203 = vunpack.c.l.b16 %v7907
        %v8204 = vunpack.c.h.b16 %v7907
        %v8205 = vunpack.c.l.b16 %v7908
        %v8206 = vunpack.c.l.b16 %v7909
        %v8207 = vunpack.c.h.b16 %v7909
        %v8208 = vunpack.c.l.b16 %v7910
        %v8209 = vunpack.c.l.b16 %v7911
        %v8210 = vunpack.c.h.b16 %v7911
        %v8211 = vunpack.c.l.b16 %v7912
        %v8212 = vunpack.c.l.b16 %v7913
        %v8213 = vunpack.c.h.b16 %v7913
        %v8214 = vunpack.c.l.b16 %v7914
        %v8215 = vunpack.c.l.b16 %v7915
        %v8216 = vunpack.c.h.b16 %v7915
        %v8217 = vunpack.c.l.b16 %v7916
        %v8218 = vunpack.c.l.b16 %v7917
        %v8219 = vunpack.c.h.b16 %v7917
        %v8220 = vunpack.c.l.b16 %v7918
        %v8221 = vunpack.c.l.b16 %v7919
        %v8222 = vunpack.c.h.b16 %v7919
        %v8223 = vunpack.c.l.b16 %v7920
        %v8224 = vunpack.c.l.b16 %v7921
        %v8225 = vunpack.c.h.b16 %v7921
        %v8226 = vunpack.c.l.b16 %v7922
        %v8227 = vunpack.c.l.b16 %v7923
        %v8228 = vunpack.c.h.b16 %v7923
        %v8229 = vunpack.c.l.b16 %v7924
        %v8230 = vunpack.c.l.b16 %v7925
        %v8231 = vunpack.c.h.b16 %v7925
        %v8232 = vunpack.c.l.b16 %v7926
        %v8233 = vunpack.c.l.b16 %v7927
        %v8234 = vunpack.c.h.b16 %v7927
        %v8235 = vunpack.c.l.b16 %v7928
        %v8236 = vunpack.c.l.b16 %v7929
        %v8237 = vunpack.c.h.b16 %v7929
        %v8238 = vunpack.c.l.b16 %v7930
        %v8239 = vunpack.c.l.b16 %v7931
        %v8240 = vunpack.c.h.b16 %v7931
        %v8241 = vunpack.c.l.b16 %v7932
        %v8242 = vunpack.c.l.b16 %v7933
        %v8243 = vunpack.c.h.b16 %v7933
        %v8244 = vunpack.c.l.b16 %v7934
        %v8245 = vunpack.c.l.b16 %v7935
        %v8246 = vunpack.c.h.b16 %v7935
        %v8247 = vunpack.c.l.b16 %v7936
        %v8248 = vunpack.c.l.b16 %v7937
        %v8249 = vunpack.c.h.b16 %v7937
        %v8250 = vunpack.c.l.b16 %v7938
        %v8251 = vunpack.c.l.b16 %v7939
        %v8252 = vunpack.c.h.b16 %v7939
        %v8253 = vunpack.c.l.b16 %v7940
        %v8254 = vunpack.c.l.b16 %v7941
        %v8255 = vunpack.c.h.b16 %v7941
        %v8256 = vunpack.c.l.b16 %v7942
        %v8257 = vunpack.c.l.b16 %v7943
        %v8258 = vunpack.c.h.b16 %v7943
        %v8259 = vunpack.c.l.b16 %v7944
        %v8260 = vunpack.c.l.b16 %v7945
        %v8261 = vunpack.c.h.b16 %v7945
        %v8262 = vunpack.c.l.b16 %v7946
        %v8263 = vunpack.c.l.b16 %v7947
        %v8264 = vunpack.c.h.b16 %v7947
        %v8265 = vunpack.c.l.b16 %v7948
        %v8266 = vunpack.c.l.b16 %v7949
        %v8267 = vunpack.c.h.b16 %v7949
        %v8268 = vunpack.c.l.b16 %v7950
        %v8269 = vunpack.c.l.b16 %v7951
        %v8270 = vunpack.c.h.b16 %v7951
        %v8271 = vunpack.c.l.b16 %v7952
        %v8272 = vunpack.c.l.b16 %v7953
        %v8273 = vunpack.c.h.b16 %v7953
        %v8274 = vunpack.c.l.b16 %v7954
        %v8275 = vpack.c.b16 %v8086, %v8083
        %v8276 = vpack.c.b16 %v8087, %v8084
        %v8277 = vpack.c.b16 %v8088, %v8085
        %v8278 = vpack.c.b16 %v8092, %v8089
        %v8279 = vpack.c.b16 %v8093, %v8090
        %v8280 = vpack.c.b16 %v8094, %v8091
        %v8281 = vpack.c.b16 %v8098, %v8095
        %v8282 = vpack.c.b16 %v8099, %v8096
        %v8283 = vpack.c.b16 %v8100, %v8097
        %v8284 = vpack.c.b16 %v8104, %v8101
        %v8285 = vpack.c.b16 %v8105, %v8102
        %v8286 = vpack.c.b16 %v8106, %v8103
        %v8287 = vpack.c.b16 %v8110, %v8107
        %v8288 = vpack.c.b16 %v8111, %v8108
        %v8289 = vpack.c.b16 %v8112, %v8109
        %v8290 = vpack.c.b16 %v8116, %v8113
        %v8291 = vpack.c.b16 %v8117, %v8114
        %v8292 = vpack.c.b16 %v8118, %v8115
        %v8293 = vpack.c.b16 %v8122, %v8119
        %v8294 = vpack.c.b16 %v8123, %v8120
        %v8295 = vpack.c.b16 %v8124, %v8121
        %v8296 = vpack.c.b16 %v8128, %v8125
        %v8297 = vpack.c.b16 %v8129, %v8126
        %v8298 = vpack.c.b16 %v8130, %v8127
        %v8299 = vpack.c.b16 %v8134, %v8131
        %v8300 = vpack.c.b16 %v8135, %v8132
        %v8301 = vpack.c.b16 %v8136, %v8133
        %v8302 = vpack.c.b16 %v8140, %v8137
        %v8303 = vpack.c.b16 %v8141, %v8138
        %v8304 = vpack.c.b16 %v8142, %v8139
        %v8305 = vpack.c.b16 %v8146, %v8143
        %v8306 = vpack.c.b16 %v8147, %v8144
        %v8307 = vpack.c.b16 %v8148, %v8145
        %v8308 = vpack.c.b16 %v8152, %v8149
        %v8309 = vpack.c.b16 %v8153, %v8150
        %v8310 = vpack.c.b16 %v8154, %v8151
        %v8311 = vpack.c.b16 %v8158, %v8155
        %v8312 = vpack.c.b16 %v8159, %v8156
        %v8313 = vpack.c.b16 %v8160, %v8157
        %v8314 = vpack.c.b16 %v8164, %v8161
        %v8315 = vpack.c.b16 %v8165, %v8162
        %v8316 = vpack.c.b16 %v8166, %v8163
        %v8317 = vpack.c.b16 %v8170, %v8167
        %v8318 = vpack.c.b16 %v8171, %v8168
        %v8319 = vpack.c.b16 %v8172, %v8169
        %v8320 = vpack.c.b16 %v8176, %v8173
        %v8321 = vpack.c.b16 %v8177, %v8174
        %v8322 = vpack.c.b16 %v8178, %v8175
        %v8323 = vpack.c.b16 %v8182, %v8179
        %v8324 = vpack.c.b16 %v8183, %v8180
        %v8325 = vpack.c.b16 %v8184, %v8181
        %v8326 = vpack.c.b16 %v8188, %v8185
        %v8327 = vpack.c.b16 %v8189, %v8186
        %v8328 = vpack.c.b16 %v8190, %v8187
        %v8329 = vpack.c.b16 %v8194, %v8191
        %v8330 = vpack.c.b16 %v8195, %v8192
        %v8331 = vpack.c.b16 %v8196, %v8193
        %v8332 = vpack.c.b16 %v8200, %v8197
        %v8333 = vpack.c.b16 %v8201, %v8198
        %v8334 = vpack.c.b16 %v8202, %v8199
        %v8335 = vpack.c.b16 %v8206, %v8203
        %v8336 = vpack.c.b16 %v8207, %v8204
        %v8337 = vpack.c.b16 %v8208, %v8205
        %v8338 = vpack.c.b16 %v8212, %v8209
        %v8339 = vpack.c.b16 %v8213, %v8210
        %v8340 = vpack.c.b16 %v8214, %v8211
        %v8341 = vpack.c.b16 %v8218, %v8215
        %v8342 = vpack.c.b16 %v8219, %v8216
        %v8343 = vpack.c.b16 %v8220, %v8217
        %v8344 = vpack.c.b16 %v8224, %v8221
        %v8345 = vpack.c.b16 %v8225, %v8222
        %v8346 = vpack.c.b16 %v8226, %v8223
        %v8347 = vpack.c.b16 %v8230, %v8227
        %v8348 = vpack.c.b16 %v8231, %v8228
        %v8349 = vpack.c.b16 %v8232, %v8229
        %v8350 = vpack.c.b16 %v8236, %v8233
        %v8351 = vpack.c.b16 %v8237, %v8234
        %v8352 = vpack.c.b16 %v8238, %v8235
        %v8353 = vpack.c.b16 %v8242, %v8239
        %v8354 = vpack.c.b16 %v8243, %v8240
        %v8355 = vpack.c.b16 %v8244, %v8241
        %v8356 = vpack.c.b16 %v8248, %v8245
        %v8357 = vpack.c.b16 %v8249, %v8246
        %v8358 = vpack.c.b16 %v8250, %v8247
        %v8359 = vpack.c.b16 %v8254, %v8251
        %v8360 = vpack.c.b16 %v8255, %v8252
        %v8361 = vpack.c.b16 %v8256, %v8253
        %v8362 = vpack.c.b16 %v8260, %v8257
        %v8363 = vpack.c.b16 %v8261, %v8258
        %v8364 = vpack.c.b16 %v8262, %v8259
        %v8365 = vpack.c.b16 %v8266, %v8263
        %v8366 = vpack.c.b16 %v8267, %v8264
        %v8367 = vpack.c.b16 %v8268, %v8265
        %v8368 = vpack.c.b16 %v8272, %v8269
        %v8369 = vpack.c.b16 %v8273, %v8270
        %v8370 = vpack.c.b16 %v8274, %v8271
        %8467 = vmatprep.subr.bf16.mxu0 %v8276
        %8468 = vmatpush1.bf16.msra.mxu0 %v8275
        %8469 = vmatprep.subr.bf16.mxu0 %v8279
        %8470 = vmatpush1.bf16.msra.mxu0 %v8278
        %8471 = vmatprep.subr.bf16.mxu0 %v8282
        %8472 = vmatpush1.bf16.msra.mxu0 %v8281
        %8473 = vmatprep.subr.bf16.mxu0 %v8285
        %8474 = vmatpush1.bf16.msra.mxu0 %v8284
        %8475 = vmatprep.subr.bf16.mxu0 %v8288
        %8476 = vmatpush1.bf16.msra.mxu0 %v8287
        %8477 = vmatprep.subr.bf16.mxu0 %v8291
        %8478 = vmatpush1.bf16.msra.mxu0 %v8290
        %8479 = vmatprep.subr.bf16.mxu0 %v8294
        %8480 = vmatpush1.bf16.msra.mxu0 %v8293
        %8481 = vmatprep.subr.bf16.mxu0 %v8297
        %8482 = vmatpush1.bf16.msra.mxu0 %v8296
        %8483 = vmatprep.subr.bf16.mxu0 %v8300
        %8484 = vmatpush1.bf16.msra.mxu0 %v8299
        %8485 = vmatprep.subr.bf16.mxu0 %v8303
        %8486 = vmatpush1.bf16.msra.mxu0 %v8302
        %8487 = vmatprep.subr.bf16.mxu0 %v8306
        %8488 = vmatpush1.bf16.msra.mxu0 %v8305
        %8489 = vmatprep.subr.bf16.mxu0 %v8309
        %8490 = vmatpush1.bf16.msra.mxu0 %v8308
        %8491 = vmatprep.subr.bf16.mxu0 %v8312
        %8492 = vmatpush1.bf16.msra.mxu0 %v8311
        %8493 = vmatprep.subr.bf16.mxu0 %v8315
        %8494 = vmatpush1.bf16.msra.mxu0 %v8314
        %8495 = vmatprep.subr.bf16.mxu0 %v8318
        %8496 = vmatpush1.bf16.msra.mxu0 %v8317
        %8497 = vmatprep.subr.bf16.mxu0 %v8321
        %8498 = vmatpush1.bf16.msra.mxu0 %v8320
        %8499 = vmatprep.mubr.bf16.mxu0 %v7764
        %8500 = vmatmul.mubr.bf16.gmra.mrb[0].mxu0 %v7763
        %v8501 = vpop.f32.mrb[0].mxu0
        %v8502 = vadd.f32 0.0, %v8501
        %v8503 = vpop.f32.mrb[0].mxu0
        %v8504 = vadd.f32 0.0, %v8503
        %v8505 = vpop.f32.mrb[0].mxu0
        %v8506 = vadd.f32 0.0, %v8505
        %v8507 = vpop.f32.mrb[0].mxu0
        %v8508 = vadd.f32 0.0, %v8507
        %8509 = vmatprep.mubr.bf16.mxu0 %v7768
        %8510 = vmatmul.mubr.bf16.gmra.mrb[0].mxu0 %v7767
        %v8511 = vpop.f32.mrb[0].mxu0
        %v8512 = vadd.f32 0.0, %v8511
        %v8513 = vpop.f32.mrb[0].mxu0
        %v8514 = vadd.f32 0.0, %v8513
        %v8515 = vpop.f32.mrb[0].mxu0
        %v8516 = vadd.f32 0.0, %v8515
        %v8517 = vpop.f32.mrb[0].mxu0
        %v8518 = vadd.f32 0.0, %v8517
        %8519 = vmatprep.mubr.bf16.mxu0 %v7772
        %8520 = vmatmul.mubr.bf16.gmra.mrb[0].mxu0 %v7771
        %v8521 = vpop.f32.mrb[0].mxu0
        %v8522 = vadd.f32 0.0, %v8521
        %v8523 = vpop.f32.mrb[0].mxu0
        %v8524 = vadd.f32 0.0, %v8523
        %v8525 = vpop.f32.mrb[0].mxu0
        %v8526 = vadd.f32 0.0, %v8525
        %v8527 = vpop.f32.mrb[0].mxu0
        %v8528 = vadd.f32 0.0, %v8527
        %8529 = vmatprep.mubr.bf16.mxu0 %v7776
        %8530 = vmatmul.mubr.bf16.gmra.mrb[0].mxu0 %v7775
        %v8531 = vpop.f32.mrb[0].mxu0
        %v8532 = vadd.f32 0.0, %v8531
        %v8533 = vpop.f32.mrb[0].mxu0
        %v8534 = vadd.f32 0.0, %v8533
        %v8535 = vpop.f32.mrb[0].mxu0
        %v8536 = vadd.f32 0.0, %v8535
        %v8537 = vpop.f32.mrb[0].mxu0
        %v8538 = vadd.f32 0.0, %v8537
        %8539 = vmatprep.mubr.bf16.mxu0 %v7780
        %8540 = vmatmul.mubr.bf16.gmra.mrb[0].mxu0 %v7779
        %v8541 = vpop.f32.mrb[0].mxu0
        %v8542 = vadd.f32 0.0, %v8541
        %v8543 = vpop.f32.mrb[0].mxu0
        %v8544 = vadd.f32 0.0, %v8543
        %v8545 = vpop.f32.mrb[0].mxu0
        %v8546 = vadd.f32 0.0, %v8545
        %v8547 = vpop.f32.mrb[0].mxu0
        %v8548 = vadd.f32 0.0, %v8547
        %8549 = vmatprep.mubr.bf16.mxu0 %v7784
        %8550 = vmatmul.mubr.bf16.gmra.mrb[0].mxu0 %v7783
        %v8551 = vpop.f32.mrb[0].mxu0
        %v8552 = vadd.f32 0.0, %v8551
        %v8553 = vpop.f32.mrb[0].mxu0
        %v8554 = vadd.f32 0.0, %v8553
        %v8555 = vpop.f32.mrb[0].mxu0
        %v8556 = vadd.f32 0.0, %v8555
        %v8557 = vpop.f32.mrb[0].mxu0
        %v8558 = vadd.f32 0.0, %v8557
        %8559 = vmatprep.mubr.bf16.mxu0 %v7788
        %8560 = vmatmul.mubr.bf16.gmra.mrb[0].mxu0 %v7787
        %v8561 = vpop.f32.mrb[0].mxu0
        %v8562 = vadd.f32 0.0, %v8561
        %v8563 = vpop.f32.mrb[0].mxu0
        %v8564 = vadd.f32 0.0, %v8563
        %v8565 = vpop.f32.mrb[0].mxu0
        %v8566 = vadd.f32 0.0, %v8565
        %v8567 = vpop.f32.mrb[0].mxu0
        %v8568 = vadd.f32 0.0, %v8567
        %8569 = vmatprep.mubr.bf16.mxu0 %v7792
        %8570 = vmatmul.mubr.bf16.gmra.mrb[0].mxu0 %v7791
        %v8571 = vpop.f32.mrb[0].mxu0
        %v8572 = vadd.f32 0.0, %v8571
        %v8573 = vpop.f32.mrb[0].mxu0
        %v8574 = vadd.f32 0.0, %v8573
        %v8575 = vpop.f32.mrb[0].mxu0
        %v8576 = vadd.f32 0.0, %v8575
        %v8577 = vpop.f32.mrb[0].mxu0
        %v8578 = vadd.f32 0.0, %v8577
        %8579 = vmatprep.mubr.bf16.mxu0 %v7796
        %8580 = vmatmul.mubr.bf16.gmra.mrb[0].mxu0 %v7795
        %v8581 = vpop.f32.mrb[0].mxu0
        %v8582 = vadd.f32 0.0, %v8581
        %v8583 = vpop.f32.mrb[0].mxu0
        %v8584 = vadd.f32 0.0, %v8583
        %v8585 = vpop.f32.mrb[0].mxu0
        %v8586 = vadd.f32 0.0, %v8585
        %v8587 = vpop.f32.mrb[0].mxu0
        %v8588 = vadd.f32 0.0, %v8587
        %8589 = vmatprep.mubr.bf16.mxu0 %v7800
        %8590 = vmatmul.mubr.bf16.gmra.mrb[0].mxu0 %v7799
        %v8591 = vpop.f32.mrb[0].mxu0
        %v8592 = vadd.f32 0.0, %v8591
        %v8593 = vpop.f32.mrb[0].mxu0
        %v8594 = vadd.f32 0.0, %v8593
        %v8595 = vpop.f32.mrb[0].mxu0
        %v8596 = vadd.f32 0.0, %v8595
        %v8597 = vpop.f32.mrb[0].mxu0
        %v8598 = vadd.f32 0.0, %v8597
        %8599 = vmatprep.mubr.bf16.mxu0 %v7804
        %8600 = vmatmul.mubr.bf16.gmra.mrb[0].mxu0 %v7803
        %v8601 = vpop.f32.mrb[0].mxu0
        %v8602 = vadd.f32 0.0, %v8601
        %v8603 = vpop.f32.mrb[0].mxu0
        %v8604 = vadd.f32 0.0, %v8603
        %v8605 = vpop.f32.mrb[0].mxu0
        %v8606 = vadd.f32 0.0, %v8605
        %v8607 = vpop.f32.mrb[0].mxu0
        %v8608 = vadd.f32 0.0, %v8607
        %8609 = vmatprep.mubr.bf16.mxu0 %v7808
        %8610 = vmatmul.mubr.bf16.gmra.mrb[0].mxu0 %v7807
        %v8611 = vpop.f32.mrb[0].mxu0
        %v8612 = vadd.f32 0.0, %v8611
        %v8613 = vpop.f32.mrb[0].mxu0
        %v8614 = vadd.f32 0.0, %v8613
        %v8615 = vpop.f32.mrb[0].mxu0
        %v8616 = vadd.f32 0.0, %v8615
        %v8617 = vpop.f32.mrb[0].mxu0
        %v8618 = vadd.f32 0.0, %v8617
        %8619 = vmatprep.mubr.bf16.mxu0 %v7812
        %8620 = vmatmul.mubr.bf16.gmra.mrb[0].mxu0 %v7811
        %v8621 = vpop.f32.mrb[0].mxu0
        %v8622 = vadd.f32 0.0, %v8621
        %v8623 = vpop.f32.mrb[0].mxu0
        %v8624 = vadd.f32 0.0, %v8623
        %v8625 = vpop.f32.mrb[0].mxu0
        %v8626 = vadd.f32 0.0, %v8625
        %v8627 = vpop.f32.mrb[0].mxu0
        %v8628 = vadd.f32 0.0, %v8627
        %8629 = vmatprep.mubr.bf16.mxu0 %v7816
        %8630 = vmatmul.mubr.bf16.gmra.mrb[0].mxu0 %v7815
        %v8631 = vpop.f32.mrb[0].mxu0
        %v8632 = vadd.f32 0.0, %v8631
        %v8633 = vpop.f32.mrb[0].mxu0
        %v8634 = vadd.f32 0.0, %v8633
        %v8635 = vpop.f32.mrb[0].mxu0
        %v8636 = vadd.f32 0.0, %v8635
        %v8637 = vpop.f32.mrb[0].mxu0
        %v8638 = vadd.f32 0.0, %v8637
        %8639 = vmatprep.mubr.bf16.mxu0 %v7820
        %8640 = vmatmul.mubr.bf16.gmra.mrb[0].mxu0 %v7819
        %v8641 = vpop.f32.mrb[0].mxu0
        %v8642 = vadd.f32 0.0, %v8641
        %v8643 = vpop.f32.mrb[0].mxu0
        %v8644 = vadd.f32 0.0, %v8643
        %v8645 = vpop.f32.mrb[0].mxu0
        %v8646 = vadd.f32 0.0, %v8645
        %v8647 = vpop.f32.mrb[0].mxu0
        %v8648 = vadd.f32 0.0, %v8647
        %8649 = vmatprep.mubr.bf16.mxu0 %v7824
        %8650 = vmatmul.mubr.bf16.gmra.mrb[0].mxu0 %v7823
        %v8651 = vpop.f32.mrb[0].mxu0
        %v8652 = vadd.f32 0.0, %v8651
        %v8653 = vpop.f32.mrb[0].mxu0
        %v8654 = vadd.f32 0.0, %v8653
        %v8655 = vpop.f32.mrb[0].mxu0
        %v8656 = vadd.f32 0.0, %v8655
        %v8657 = vpop.f32.mrb[0].mxu0
        %v8658 = vadd.f32 0.0, %v8657
        %8659 = vdwg.mxu0
        %8660 = vmatprep.subr.bf16.mxu0 %v8324
        %8661 = vmatpush1.bf16.msra.mxu0 %v8323
        %8662 = vmatprep.subr.bf16.mxu0 %v8327
        %8663 = vmatpush1.bf16.msra.mxu0 %v8326
        %8664 = vmatprep.subr.bf16.mxu0 %v8330
        %8665 = vmatpush1.bf16.msra.mxu0 %v8329
        %8666 = vmatprep.subr.bf16.mxu0 %v8333
        %8667 = vmatpush1.bf16.msra.mxu0 %v8332
        %8668 = vmatprep.subr.bf16.mxu0 %v8336
        %8669 = vmatpush1.bf16.msra.mxu0 %v8335
        %8670 = vmatprep.subr.bf16.mxu0 %v8339
        %8671 = vmatpush1.bf16.msra.mxu0 %v8338
        %8672 = vmatprep.subr.bf16.mxu0 %v8342
        %8673 = vmatpush1.bf16.msra.mxu0 %v8341
        %8674 = vmatprep.subr.bf16.mxu0 %v8345
        %8675 = vmatpush1.bf16.msra.mxu0 %v8344
        %8676 = vmatprep.subr.bf16.mxu0 %v8348
        %8677 = vmatpush1.bf16.msra.mxu0 %v8347
        %8678 = vmatprep.subr.bf16.mxu0 %v8351
        %8679 = vmatpush1.bf16.msra.mxu0 %v8350
        %8680 = vmatprep.subr.bf16.mxu0 %v8354
        %8681 = vmatpush1.bf16.msra.mxu0 %v8353
        %8682 = vmatprep.subr.bf16.mxu0 %v8357
        %8683 = vmatpush1.bf16.msra.mxu0 %v8356
        %8684 = vmatprep.subr.bf16.mxu0 %v8360
        %8685 = vmatpush1.bf16.msra.mxu0 %v8359
        %8686 = vmatprep.subr.bf16.mxu0 %v8363
        %8687 = vmatpush1.bf16.msra.mxu0 %v8362
        %8688 = vmatprep.subr.bf16.mxu0 %v8366
        %8689 = vmatpush1.bf16.msra.mxu0 %v8365
        %8690 = vmatprep.subr.bf16.mxu0 %v8369
        %8691 = vmatpush1.bf16.msra.mxu0 %v8368
        %8692 = vmatprep.mubr.bf16.mxu0 %v7766
        %8693 = vmatmul.mubr.bf16.gmra.mrb[0].mxu0 %v7765
        %v8694 = vpop.f32.mrb[0].mxu0
        %v8695 = vadd.f32 %v8502, %v8694
        %v8696 = vpop.f32.mrb[0].mxu0
        %v8697 = vadd.f32 %v8504, %v8696
        %v8698 = vpop.f32.mrb[0].mxu0
        %v8699 = vadd.f32 %v8506, %v8698
        %v8700 = vpop.f32.mrb[0].mxu0
        %v8701 = vadd.f32 %v8508, %v8700
        %8702 = vmatprep.mubr.bf16.mxu0 %v7770
        %8703 = vmatmul.mubr.bf16.gmra.mrb[0].mxu0 %v7769
        %v8704 = vpop.f32.mrb[0].mxu0
        %v8705 = vadd.f32 %v8512, %v8704
        %v8706 = vpop.f32.mrb[0].mxu0
        %v8707 = vadd.f32 %v8514, %v8706
        %v8708 = vpop.f32.mrb[0].mxu0
        %v8709 = vadd.f32 %v8516, %v8708
        %v8710 = vpop.f32.mrb[0].mxu0
        %v8711 = vadd.f32 %v8518, %v8710
        %8712 = vmatprep.mubr.bf16.mxu0 %v7774
        %8713 = vmatmul.mubr.bf16.gmra.mrb[0].mxu0 %v7773
        %v8714 = vpop.f32.mrb[0].mxu0
        %v8715 = vadd.f32 %v8522, %v8714
        %v8716 = vpop.f32.mrb[0].mxu0
        %v8717 = vadd.f32 %v8524, %v8716
        %v8718 = vpop.f32.mrb[0].mxu0
        %v8719 = vadd.f32 %v8526, %v8718
        %v8720 = vpop.f32.mrb[0].mxu0
        %v8721 = vadd.f32 %v8528, %v8720
        %8722 = vmatprep.mubr.bf16.mxu0 %v7778
        %8723 = vmatmul.mubr.bf16.gmra.mrb[0].mxu0 %v7777
        %v8724 = vpop.f32.mrb[0].mxu0
        %v8725 = vadd.f32 %v8532, %v8724
        %v8726 = vpop.f32.mrb[0].mxu0
        %v8727 = vadd.f32 %v8534, %v8726
        %v8728 = vpop.f32.mrb[0].mxu0
        %v8729 = vadd.f32 %v8536, %v8728
        %v8730 = vpop.f32.mrb[0].mxu0
        %v8731 = vadd.f32 %v8538, %v8730
        %8732 = vmatprep.mubr.bf16.mxu0 %v7782
        %8733 = vmatmul.mubr.bf16.gmra.mrb[0].mxu0 %v7781
        %v8734 = vpop.f32.mrb[0].mxu0
        %v8735 = vadd.f32 %v8542, %v8734
        %v8736 = vpop.f32.mrb[0].mxu0
        %v8737 = vadd.f32 %v8544, %v8736
        %v8738 = vpop.f32.mrb[0].mxu0
        %v8739 = vadd.f32 %v8546, %v8738
        %v8740 = vpop.f32.mrb[0].mxu0
        %v8741 = vadd.f32 %v8548, %v8740
        %8742 = vmatprep.mubr.bf16.mxu0 %v7786
        %8743 = vmatmul.mubr.bf16.gmra.mrb[0].mxu0 %v7785
        %v8744 = vpop.f32.mrb[0].mxu0
        %v8745 = vadd.f32 %v8552, %v8744
        %v8746 = vpop.f32.mrb[0].mxu0
        %v8747 = vadd.f32 %v8554, %v8746
        %v8748 = vpop.f32.mrb[0].mxu0
        %v8749 = vadd.f32 %v8556, %v8748
        %v8750 = vpop.f32.mrb[0].mxu0
        %v8751 = vadd.f32 %v8558, %v8750
        %8752 = vmatprep.mubr.bf16.mxu0 %v7790
        %8753 = vmatmul.mubr.bf16.gmra.mrb[0].mxu0 %v7789
        %v8754 = vpop.f32.mrb[0].mxu0
        %v8755 = vadd.f32 %v8562, %v8754
        %v8756 = vpop.f32.mrb[0].mxu0
        %v8757 = vadd.f32 %v8564, %v8756
        %v8758 = vpop.f32.mrb[0].mxu0
        %v8759 = vadd.f32 %v8566, %v8758
        %v8760 = vpop.f32.mrb[0].mxu0
        %v8761 = vadd.f32 %v8568, %v8760
        %8762 = vmatprep.mubr.bf16.mxu0 %v7794
        %8763 = vmatmul.mubr.bf16.gmra.mrb[0].mxu0 %v7793
        %v8764 = vpop.f32.mrb[0].mxu0
        %v8765 = vadd.f32 %v8572, %v8764
        %v8766 = vpop.f32.mrb[0].mxu0
        %v8767 = vadd.f32 %v8574, %v8766
        %v8768 = vpop.f32.mrb[0].mxu0
        %v8769 = vadd.f32 %v8576, %v8768
        %v8770 = vpop.f32.mrb[0].mxu0
        %v8771 = vadd.f32 %v8578, %v8770
        %8772 = vmatprep.mubr.bf16.mxu0 %v7798
        %8773 = vmatmul.mubr.bf16.gmra.mrb[0].mxu0 %v7797
        %v8774 = vpop.f32.mrb[0].mxu0
        %v8775 = vadd.f32 %v8582, %v8774
        %v8776 = vpop.f32.mrb[0].mxu0
        %v8777 = vadd.f32 %v8584, %v8776
        %v8778 = vpop.f32.mrb[0].mxu0
        %v8779 = vadd.f32 %v8586, %v8778
        %v8780 = vpop.f32.mrb[0].mxu0
        %v8781 = vadd.f32 %v8588, %v8780
        %8782 = vmatprep.mubr.bf16.mxu0 %v7802
        %8783 = vmatmul.mubr.bf16.gmra.mrb[0].mxu0 %v7801
        %v8784 = vpop.f32.mrb[0].mxu0
        %v8785 = vadd.f32 %v8592, %v8784
        %v8786 = vpop.f32.mrb[0].mxu0
        %v8787 = vadd.f32 %v8594, %v8786
        %v8788 = vpop.f32.mrb[0].mxu0
        %v8789 = vadd.f32 %v8596, %v8788
        %v8790 = vpop.f32.mrb[0].mxu0
        %v8791 = vadd.f32 %v8598, %v8790
        %8792 = vmatprep.mubr.bf16.mxu0 %v7806
        %8793 = vmatmul.mubr.bf16.gmra.mrb[0].mxu0 %v7805
        %v8794 = vpop.f32.mrb[0].mxu0
        %v8795 = vadd.f32 %v8602, %v8794
        %v8796 = vpop.f32.mrb[0].mxu0
        %v8797 = vadd.f32 %v8604, %v8796
        %v8798 = vpop.f32.mrb[0].mxu0
        %v8799 = vadd.f32 %v8606, %v8798
        %v8800 = vpop.f32.mrb[0].mxu0
        %v8801 = vadd.f32 %v8608, %v8800
        %8802 = vmatprep.mubr.bf16.mxu0 %v7810
        %8803 = vmatmul.mubr.bf16.gmra.mrb[0].mxu0 %v7809
        %v8804 = vpop.f32.mrb[0].mxu0
        %v8805 = vadd.f32 %v8612, %v8804
        %v8806 = vpop.f32.mrb[0].mxu0
        %v8807 = vadd.f32 %v8614, %v8806
        %v8808 = vpop.f32.mrb[0].mxu0
        %v8809 = vadd.f32 %v8616, %v8808
        %v8810 = vpop.f32.mrb[0].mxu0
        %v8811 = vadd.f32 %v8618, %v8810
        %8812 = vmatprep.mubr.bf16.mxu0 %v7814
        %8813 = vmatmul.mubr.bf16.gmra.mrb[0].mxu0 %v7813
        %v8814 = vpop.f32.mrb[0].mxu0
        %v8815 = vadd.f32 %v8622, %v8814
        %v8816 = vpop.f32.mrb[0].mxu0
        %v8817 = vadd.f32 %v8624, %v8816
        %v8818 = vpop.f32.mrb[0].mxu0
        %v8819 = vadd.f32 %v8626, %v8818
        %v8820 = vpop.f32.mrb[0].mxu0
        %v8821 = vadd.f32 %v8628, %v8820
        %8822 = vmatprep.mubr.bf16.mxu0 %v7818
        %8823 = vmatmul.mubr.bf16.gmra.mrb[0].mxu0 %v7817
        %v8824 = vpop.f32.mrb[0].mxu0
        %v8825 = vadd.f32 %v8632, %v8824
        %v8826 = vpop.f32.mrb[0].mxu0
        %v8827 = vadd.f32 %v8634, %v8826
        %v8828 = vpop.f32.mrb[0].mxu0
        %v8829 = vadd.f32 %v8636, %v8828
        %v8830 = vpop.f32.mrb[0].mxu0
        %v8831 = vadd.f32 %v8638, %v8830
        %8832 = vmatprep.mubr.bf16.mxu0 %v7822
        %8833 = vmatmul.mubr.bf16.gmra.mrb[0].mxu0 %v7821
        %v8834 = vpop.f32.mrb[0].mxu0
        %v8835 = vadd.f32 %v8642, %v8834
        %v8836 = vpop.f32.mrb[0].mxu0
        %v8837 = vadd.f32 %v8644, %v8836
        %v8838 = vpop.f32.mrb[0].mxu0
        %v8839 = vadd.f32 %v8646, %v8838
        %v8840 = vpop.f32.mrb[0].mxu0
        %v8841 = vadd.f32 %v8648, %v8840
        %8842 = vmatprep.mubr.bf16.mxu0 %v7826
        %8843 = vmatmul.mubr.bf16.gmra.mrb[0].mxu0 %v7825
        %v8844 = vpop.f32.mrb[0].mxu0
        %v8845 = vadd.f32 %v8652, %v8844
        %v8846 = vpop.f32.mrb[0].mxu0
        %v8847 = vadd.f32 %v8654, %v8846
        %v8848 = vpop.f32.mrb[0].mxu0
        %v8849 = vadd.f32 %v8656, %v8848
        %v8850 = vpop.f32.mrb[0].mxu0
        %v8851 = vadd.f32 %v8658, %v8850
        %8852 = vdwg.mxu0
        %8853 = vmatprep.subr.bf16.mxu0 0
        %8854 = vmatpush1.bf16.msra.mxu0 %v8277
        %8855 = vmatprep.subr.bf16.mxu0 0
        %8856 = vmatpush1.bf16.msra.mxu0 %v8280
        %8857 = vmatprep.subr.bf16.mxu0 0
        %8858 = vmatpush1.bf16.msra.mxu0 %v8283
        %8859 = vmatprep.subr.bf16.mxu0 0
        %8860 = vmatpush1.bf16.msra.mxu0 %v8286
        %8861 = vmatprep.subr.bf16.mxu0 0
        %8862 = vmatpush1.bf16.msra.mxu0 %v8289
        %8863 = vmatprep.subr.bf16.mxu0 0
        %8864 = vmatpush1.bf16.msra.mxu0 %v8292
        %8865 = vmatprep.subr.bf16.mxu0 0
        %8866 = vmatpush1.bf16.msra.mxu0 %v8295
        %8867 = vmatprep.subr.bf16.mxu0 0
        %8868 = vmatpush1.bf16.msra.mxu0 %v8298
        %8869 = vmatprep.subr.bf16.mxu0 0
        %8870 = vmatpush1.bf16.msra.mxu0 %v8301
        %8871 = vmatprep.subr.bf16.mxu0 0
        %8872 = vmatpush1.bf16.msra.mxu0 %v8304
        %8873 = vmatprep.subr.bf16.mxu0 0
        %8874 = vmatpush1.bf16.msra.mxu0 %v8307
        %8875 = vmatprep.subr.bf16.mxu0 0
        %8876 = vmatpush1.bf16.msra.mxu0 %v8310
        %8877 = vmatprep.subr.bf16.mxu0 0
        %8878 = vmatpush1.bf16.msra.mxu0 %v8313
        %8879 = vmatprep.subr.bf16.mxu0 0
        %8880 = vmatpush1.bf16.msra.mxu0 %v8316
        %8881 = vmatprep.subr.bf16.mxu0 0
        %8882 = vmatpush1.bf16.msra.mxu0 %v8319
        %8883 = vmatprep.subr.bf16.mxu0 0
        %8884 = vmatpush1.bf16.msra.mxu0 %v8322
        %8885 = vmatprep.mubr.bf16.mxu0 %v7764
        %8886 = vmatmul.mubr.bf16.gmra.mrb[0].mxu0 %v7763
        %v8887 = vpop.f32.mrb[0].mxu0
        %v8888 = vadd.f32 0.0, %v8887
        %v8889 = vpop.f32.mrb[0].mxu0
        %v8890 = vpop.f32.mrb[0].mxu0
        %v8891 = vadd.f32 0.0, %v8890
        %v8892 = vpop.f32.mrb[0].mxu0
        %8893 = vmatprep.mubr.bf16.mxu0 %v7768
        %8894 = vmatmul.mubr.bf16.gmra.mrb[0].mxu0 %v7767
        %v8895 = vpop.f32.mrb[0].mxu0
        %v8896 = vadd.f32 0.0, %v8895
        %v8897 = vpop.f32.mrb[0].mxu0
        %v8898 = vpop.f32.mrb[0].mxu0
        %v8899 = vadd.f32 0.0, %v8898
        %v8900 = vpop.f32.mrb[0].mxu0
        %8901 = vmatprep.mubr.bf16.mxu0 %v7772
        %8902 = vmatmul.mubr.bf16.gmra.mrb[0].mxu0 %v7771
        %v8903 = vpop.f32.mrb[0].mxu0
        %v8904 = vadd.f32 0.0, %v8903
        %v8905 = vpop.f32.mrb[0].mxu0
        %v8906 = vpop.f32.mrb[0].mxu0
        %v8907 = vadd.f32 0.0, %v8906
        %v8908 = vpop.f32.mrb[0].mxu0
        %8909 = vmatprep.mubr.bf16.mxu0 %v7776
        %8910 = vmatmul.mubr.bf16.gmra.mrb[0].mxu0 %v7775
        %v8911 = vpop.f32.mrb[0].mxu0
        %v8912 = vadd.f32 0.0, %v8911
        %v8913 = vpop.f32.mrb[0].mxu0
        %v8914 = vpop.f32.mrb[0].mxu0
        %v8915 = vadd.f32 0.0, %v8914
        %v8916 = vpop.f32.mrb[0].mxu0
        %8917 = vmatprep.mubr.bf16.mxu0 %v7780
        %8918 = vmatmul.mubr.bf16.gmra.mrb[0].mxu0 %v7779
        %v8919 = vpop.f32.mrb[0].mxu0
        %v8920 = vadd.f32 0.0, %v8919
        %v8921 = vpop.f32.mrb[0].mxu0
        %v8922 = vpop.f32.mrb[0].mxu0
        %v8923 = vadd.f32 0.0, %v8922
        %v8924 = vpop.f32.mrb[0].mxu0
        %8925 = vmatprep.mubr.bf16.mxu0 %v7784
        %8926 = vmatmul.mubr.bf16.gmra.mrb[0].mxu0 %v7783
        %v8927 = vpop.f32.mrb[0].mxu0
        %v8928 = vadd.f32 0.0, %v8927
        %v8929 = vpop.f32.mrb[0].mxu0
        %v8930 = vpop.f32.mrb[0].mxu0
        %v8931 = vadd.f32 0.0, %v8930
        %v8932 = vpop.f32.mrb[0].mxu0
        %8933 = vmatprep.mubr.bf16.mxu0 %v7788
        %8934 = vmatmul.mubr.bf16.gmra.mrb[0].mxu0 %v7787
        %v8935 = vpop.f32.mrb[0].mxu0
        %v8936 = vadd.f32 0.0, %v8935
        %v8937 = vpop.f32.mrb[0].mxu0
        %v8938 = vpop.f32.mrb[0].mxu0
        %v8939 = vadd.f32 0.0, %v8938
        %v8940 = vpop.f32.mrb[0].mxu0
        %8941 = vmatprep.mubr.bf16.mxu0 %v7792
        %8942 = vmatmul.mubr.bf16.gmra.mrb[0].mxu0 %v7791
        %v8943 = vpop.f32.mrb[0].mxu0
        %v8944 = vadd.f32 0.0, %v8943
        %v8945 = vpop.f32.mrb[0].mxu0
        %v8946 = vpop.f32.mrb[0].mxu0
        %v8947 = vadd.f32 0.0, %v8946
        %v8948 = vpop.f32.mrb[0].mxu0
        %8949 = vmatprep.mubr.bf16.mxu0 %v7796
        %8950 = vmatmul.mubr.bf16.gmra.mrb[0].mxu0 %v7795
        %v8951 = vpop.f32.mrb[0].mxu0
        %v8952 = vadd.f32 0.0, %v8951
        %v8953 = vpop.f32.mrb[0].mxu0
        %v8954 = vpop.f32.mrb[0].mxu0
        %v8955 = vadd.f32 0.0, %v8954
        %v8956 = vpop.f32.mrb[0].mxu0
        %8957 = vmatprep.mubr.bf16.mxu0 %v7800
        %8958 = vmatmul.mubr.bf16.gmra.mrb[0].mxu0 %v7799
        %v8959 = vpop.f32.mrb[0].mxu0
        %v8960 = vadd.f32 0.0, %v8959
        %v8961 = vpop.f32.mrb[0].mxu0
        %v8962 = vpop.f32.mrb[0].mxu0
        %v8963 = vadd.f32 0.0, %v8962
        %v8964 = vpop.f32.mrb[0].mxu0
        %8965 = vmatprep.mubr.bf16.mxu0 %v7804
        %8966 = vmatmul.mubr.bf16.gmra.mrb[0].mxu0 %v7803
        %v8967 = vpop.f32.mrb[0].mxu0
        %v8968 = vadd.f32 0.0, %v8967
        %v8969 = vpop.f32.mrb[0].mxu0
        %v8970 = vpop.f32.mrb[0].mxu0
        %v8971 = vadd.f32 0.0, %v8970
        %v8972 = vpop.f32.mrb[0].mxu0
        %8973 = vmatprep.mubr.bf16.mxu0 %v7808
        %8974 = vmatmul.mubr.bf16.gmra.mrb[0].mxu0 %v7807
        %v8975 = vpop.f32.mrb[0].mxu0
        %v8976 = vadd.f32 0.0, %v8975
        %v8977 = vpop.f32.mrb[0].mxu0
        %v8978 = vpop.f32.mrb[0].mxu0
        %v8979 = vadd.f32 0.0, %v8978
        %v8980 = vpop.f32.mrb[0].mxu0
        %8981 = vmatprep.mubr.bf16.mxu0 %v7812
        %8982 = vmatmul.mubr.bf16.gmra.mrb[0].mxu0 %v7811
        %v8983 = vpop.f32.mrb[0].mxu0
        %v8984 = vadd.f32 0.0, %v8983
        %v8985 = vpop.f32.mrb[0].mxu0
        %v8986 = vpop.f32.mrb[0].mxu0
        %v8987 = vadd.f32 0.0, %v8986
        %v8988 = vpop.f32.mrb[0].mxu0
        %8989 = vmatprep.mubr.bf16.mxu0 %v7816
        %8990 = vmatmul.mubr.bf16.gmra.mrb[0].mxu0 %v7815
        %v8991 = vpop.f32.mrb[0].mxu0
        %v8992 = vadd.f32 0.0, %v8991
        %v8993 = vpop.f32.mrb[0].mxu0
        %v8994 = vpop.f32.mrb[0].mxu0
        %v8995 = vadd.f32 0.0, %v8994
        %v8996 = vpop.f32.mrb[0].mxu0
        %8997 = vmatprep.mubr.bf16.mxu0 %v7820
        %8998 = vmatmul.mubr.bf16.gmra.mrb[0].mxu0 %v7819
        %v8999 = vpop.f32.mrb[0].mxu0
        %v9000 = vadd.f32 0.0, %v8999
        %v9001 = vpop.f32.mrb[0].mxu0
        %v9002 = vpop.f32.mrb[0].mxu0
        %v9003 = vadd.f32 0.0, %v9002
        %v9004 = vpop.f32.mrb[0].mxu0
        %9005 = vmatprep.mubr.bf16.mxu0 %v7824
        %9006 = vmatmul.mubr.bf16.gmra.mrb[0].mxu0 %v7823
        %v9007 = vpop.f32.mrb[0].mxu0
        %v9008 = vadd.f32 0.0, %v9007
        %v9009 = vpop.f32.mrb[0].mxu0
        %v9010 = vpop.f32.mrb[0].mxu0
        %v9011 = vadd.f32 0.0, %v9010
        %v9012 = vpop.f32.mrb[0].mxu0
        %9013 = vdwg.mxu0
        %9014 = vmatprep.subr.bf16.mxu0 0
        %9015 = vmatpush1.bf16.msra.mxu0 %v8325
        %9016 = vmatprep.subr.bf16.mxu0 0
        %9017 = vmatpush1.bf16.msra.mxu0 %v8328
        %9018 = vmatprep.subr.bf16.mxu0 0
        %9019 = vmatpush1.bf16.msra.mxu0 %v8331
        %9020 = vmatprep.subr.bf16.mxu0 0
        %9021 = vmatpush1.bf16.msra.mxu0 %v8334
        %9022 = vmatprep.subr.bf16.mxu0 0
        %9023 = vmatpush1.bf16.msra.mxu0 %v8337
        %9024 = vmatprep.subr.bf16.mxu0 0
        %9025 = vmatpush1.bf16.msra.mxu0 %v8340
        %9026 = vmatprep.subr.bf16.mxu0 0
        %9027 = vmatpush1.bf16.msra.mxu0 %v8343
        %9028 = vmatprep.subr.bf16.mxu0 0
        %9029 = vmatpush1.bf16.msra.mxu0 %v8346
        %9030 = vmatprep.subr.bf16.mxu0 0
        %9031 = vmatpush1.bf16.msra.mxu0 %v8349
        %9032 = vmatprep.subr.bf16.mxu0 0
        %9033 = vmatpush1.bf16.msra.mxu0 %v8352
        %9034 = vmatprep.subr.bf16.mxu0 0
        %9035 = vmatpush1.bf16.msra.mxu0 %v8355
        %9036 = vmatprep.subr.bf16.mxu0 0
        %9037 = vmatpush1.bf16.msra.mxu0 %v8358
        %9038 = vmatprep.subr.bf16.mxu0 0
        %9039 = vmatpush1.bf16.msra.mxu0 %v8361
        %9040 = vmatprep.subr.bf16.mxu0 0
        %9041 = vmatpush1.bf16.msra.mxu0 %v8364
        %9042 = vmatprep.subr.bf16.mxu0 0
        %9043 = vmatpush1.bf16.msra.mxu0 %v8367
        %9044 = vmatprep.subr.bf16.mxu0 0
        %9045 = vmatpush1.bf16.msra.mxu0 %v8370
        %9046 = vmatprep.mubr.bf16.mxu0 %v7766
        %9047 = vmatmul.mubr.bf16.gmra.mrb[0].mxu0 %v7765
        %v9048 = vpop.f32.mrb[0].mxu0
        %v9049 = vadd.f32 %v8888, %v9048
        %v9050 = vpop.f32.mrb[0].mxu0
        %v9051 = vpop.f32.mrb[0].mxu0
        %v9052 = vadd.f32 %v8891, %v9051
        %v9053 = vpop.f32.mrb[0].mxu0
        %9054 = vmatprep.mubr.bf16.mxu0 %v7770
        %9055 = vmatmul.mubr.bf16.gmra.mrb[0].mxu0 %v7769
        %v9056 = vpop.f32.mrb[0].mxu0
        %v9057 = vadd.f32 %v8896, %v9056
        %v9058 = vpop.f32.mrb[0].mxu0
        %v9059 = vpop.f32.mrb[0].mxu0
        %v9060 = vadd.f32 %v8899, %v9059
        %v9061 = vpop.f32.mrb[0].mxu0
        %9062 = vmatprep.mubr.bf16.mxu0 %v7774
        %9063 = vmatmul.mubr.bf16.gmra.mrb[0].mxu0 %v7773
        %v9064 = vpop.f32.mrb[0].mxu0
        %v9065 = vadd.f32 %v8904, %v9064
        %v9066 = vpop.f32.mrb[0].mxu0
        %v9067 = vpop.f32.mrb[0].mxu0
        %v9068 = vadd.f32 %v8907, %v9067
        %v9069 = vpop.f32.mrb[0].mxu0
        %9070 = vmatprep.mubr.bf16.mxu0 %v7778
        %9071 = vmatmul.mubr.bf16.gmra.mrb[0].mxu0 %v7777
        %v9072 = vpop.f32.mrb[0].mxu0
        %v9073 = vadd.f32 %v8912, %v9072
        %v9074 = vpop.f32.mrb[0].mxu0
        %v9075 = vpop.f32.mrb[0].mxu0
        %v9076 = vadd.f32 %v8915, %v9075
        %v9077 = vpop.f32.mrb[0].mxu0
        %9078 = vmatprep.mubr.bf16.mxu0 %v7782
        %9079 = vmatmul.mubr.bf16.gmra.mrb[0].mxu0 %v7781
        %v9080 = vpop.f32.mrb[0].mxu0
        %v9081 = vadd.f32 %v8920, %v9080
        %v9082 = vpop.f32.mrb[0].mxu0
        %v9083 = vpop.f32.mrb[0].mxu0
        %v9084 = vadd.f32 %v8923, %v9083
        %v9085 = vpop.f32.mrb[0].mxu0
        %9086 = vmatprep.mubr.bf16.mxu0 %v7786
        %9087 = vmatmul.mubr.bf16.gmra.mrb[0].mxu0 %v7785
        %v9088 = vpop.f32.mrb[0].mxu0
        %v9089 = vadd.f32 %v8928, %v9088
        %v9090 = vpop.f32.mrb[0].mxu0
        %v9091 = vpop.f32.mrb[0].mxu0
        %v9092 = vadd.f32 %v8931, %v9091
        %v9093 = vpop.f32.mrb[0].mxu0
        %9094 = vmatprep.mubr.bf16.mxu0 %v7790
        %9095 = vmatmul.mubr.bf16.gmra.mrb[0].mxu0 %v7789
        %v9096 = vpop.f32.mrb[0].mxu0
        %v9097 = vadd.f32 %v8936, %v9096
        %v9098 = vpop.f32.mrb[0].mxu0
        %v9099 = vpop.f32.mrb[0].mxu0
        %v9100 = vadd.f32 %v8939, %v9099
        %v9101 = vpop.f32.mrb[0].mxu0
        %9102 = vmatprep.mubr.bf16.mxu0 %v7794
        %9103 = vmatmul.mubr.bf16.gmra.mrb[0].mxu0 %v7793
        %v9104 = vpop.f32.mrb[0].mxu0
        %v9105 = vadd.f32 %v8944, %v9104
        %v9106 = vpop.f32.mrb[0].mxu0
        %v9107 = vpop.f32.mrb[0].mxu0
        %v9108 = vadd.f32 %v8947, %v9107
        %v9109 = vpop.f32.mrb[0].mxu0
        %9110 = vmatprep.mubr.bf16.mxu0 %v7798
        %9111 = vmatmul.mubr.bf16.gmra.mrb[0].mxu0 %v7797
        %v9112 = vpop.f32.mrb[0].mxu0
        %v9113 = vadd.f32 %v8952, %v9112
        %v9114 = vpop.f32.mrb[0].mxu0
        %v9115 = vpop.f32.mrb[0].mxu0
        %v9116 = vadd.f32 %v8955, %v9115
        %v9117 = vpop.f32.mrb[0].mxu0
        %9118 = vmatprep.mubr.bf16.mxu0 %v7802
        %9119 = vmatmul.mubr.bf16.gmra.mrb[0].mxu0 %v7801
        %v9120 = vpop.f32.mrb[0].mxu0
        %v9121 = vadd.f32 %v8960, %v9120
        %v9122 = vpop.f32.mrb[0].mxu0
        %v9123 = vpop.f32.mrb[0].mxu0
        %v9124 = vadd.f32 %v8963, %v9123
        %v9125 = vpop.f32.mrb[0].mxu0
        %9126 = vmatprep.mubr.bf16.mxu0 %v7806
        %9127 = vmatmul.mubr.bf16.gmra.mrb[0].mxu0 %v7805
        %v9128 = vpop.f32.mrb[0].mxu0
        %v9129 = vadd.f32 %v8968, %v9128
        %v9130 = vpop.f32.mrb[0].mxu0
        %v9131 = vpop.f32.mrb[0].mxu0
        %v9132 = vadd.f32 %v8971, %v9131
        %v9133 = vpop.f32.mrb[0].mxu0
        %9134 = vmatprep.mubr.bf16.mxu0 %v7810
        %9135 = vmatmul.mubr.bf16.gmra.mrb[0].mxu0 %v7809
        %v9136 = vpop.f32.mrb[0].mxu0
        %v9137 = vadd.f32 %v8976, %v9136
        %v9138 = vpop.f32.mrb[0].mxu0
        %v9139 = vpop.f32.mrb[0].mxu0
        %v9140 = vadd.f32 %v8979, %v9139
        %v9141 = vpop.f32.mrb[0].mxu0
        %9142 = vmatprep.mubr.bf16.mxu0 %v7814
        %9143 = vmatmul.mubr.bf16.gmra.mrb[0].mxu0 %v7813
        %v9144 = vpop.f32.mrb[0].mxu0
        %v9145 = vadd.f32 %v8984, %v9144
        %v9146 = vpop.f32.mrb[0].mxu0
        %v9147 = vpop.f32.mrb[0].mxu0
        %v9148 = vadd.f32 %v8987, %v9147
        %v9149 = vpop.f32.mrb[0].mxu0
        %9150 = vmatprep.mubr.bf16.mxu0 %v7818
        %9151 = vmatmul.mubr.bf16.gmra.mrb[0].mxu0 %v7817
        %v9152 = vpop.f32.mrb[0].mxu0
        %v9153 = vadd.f32 %v8992, %v9152
        %v9154 = vpop.f32.mrb[0].mxu0
        %v9155 = vpop.f32.mrb[0].mxu0
        %v9156 = vadd.f32 %v8995, %v9155
        %v9157 = vpop.f32.mrb[0].mxu0
        %9158 = vmatprep.mubr.bf16.mxu0 %v7822
        %9159 = vmatmul.mubr.bf16.gmra.mrb[0].mxu0 %v7821
        %v9160 = vpop.f32.mrb[0].mxu0
        %v9161 = vadd.f32 %v9000, %v9160
        %v9162 = vpop.f32.mrb[0].mxu0
        %v9163 = vpop.f32.mrb[0].mxu0
        %v9164 = vadd.f32 %v9003, %v9163
        %v9165 = vpop.f32.mrb[0].mxu0
        %9166 = vmatprep.mubr.bf16.mxu0 %v7826
        %9167 = vmatmul.mubr.bf16.gmra.mrb[0].mxu0 %v7825
        %v9168 = vpop.f32.mrb[0].mxu0
        %v9169 = vadd.f32 %v9008, %v9168
        %v9170 = vpop.f32.mrb[0].mxu0
        %v9171 = vpop.f32.mrb[0].mxu0
        %v9172 = vadd.f32 %v9011, %v9171
        %v9173 = vpop.f32.mrb[0].mxu0
        %9174 = vdwg.mxu0
        %v9175 = vadd.f32 %v5785, %v8695
        %v9176 = vadd.f32 %v5787, %v8697
        %v9177 = vadd.f32 %v6139, %v9049
        %v9178 = vadd.f32 %v5789, %v8699
        %v9179 = vadd.f32 %v5791, %v8701
        %v9180 = vadd.f32 %v6142, %v9052
        %v9181 = vadd.f32 %v5795, %v8705
        %v9182 = vadd.f32 %v5797, %v8707
        %v9183 = vadd.f32 %v6147, %v9057
        %v9184 = vadd.f32 %v5799, %v8709
        %v9185 = vadd.f32 %v5801, %v8711
        %v9186 = vadd.f32 %v6150, %v9060
        %v9187 = vadd.f32 %v5805, %v8715
        %v9188 = vadd.f32 %v5807, %v8717
        %v9189 = vadd.f32 %v6155, %v9065
        %v9190 = vadd.f32 %v5809, %v8719
        %v9191 = vadd.f32 %v5811, %v8721
        %v9192 = vadd.f32 %v6158, %v9068
        %v9193 = vadd.f32 %v5815, %v8725
        %v9194 = vadd.f32 %v5817, %v8727
        %v9195 = vadd.f32 %v6163, %v9073
        %v9196 = vadd.f32 %v5819, %v8729
        %v9197 = vadd.f32 %v5821, %v8731
        %v9198 = vadd.f32 %v6166, %v9076
        %v9199 = vadd.f32 %v5825, %v8735
        %v9200 = vadd.f32 %v5827, %v8737
        %v9201 = vadd.f32 %v6171, %v9081
        %v9202 = vadd.f32 %v5829, %v8739
        %v9203 = vadd.f32 %v5831, %v8741
        %v9204 = vadd.f32 %v6174, %v9084
        %v9205 = vadd.f32 %v5835, %v8745
        %v9206 = vadd.f32 %v5837, %v8747
        %v9207 = vadd.f32 %v6179, %v9089
        %v9208 = vadd.f32 %v5839, %v8749
        %v9209 = vadd.f32 %v5841, %v8751
        %v9210 = vadd.f32 %v6182, %v9092
        %v9211 = vadd.f32 %v5845, %v8755
        %v9212 = vadd.f32 %v5847, %v8757
        %v9213 = vadd.f32 %v6187, %v9097
        %v9214 = vadd.f32 %v5849, %v8759
        %v9215 = vadd.f32 %v5851, %v8761
        %v9216 = vadd.f32 %v6190, %v9100
        %v9217 = vadd.f32 %v5855, %v8765
        %v9218 = vadd.f32 %v5857, %v8767
        %v9219 = vadd.f32 %v6195, %v9105
        %v9220 = vadd.f32 %v5859, %v8769
        %v9221 = vadd.f32 %v5861, %v8771
        %v9222 = vadd.f32 %v6198, %v9108
        %v9223 = vadd.f32 %v5865, %v8775
        %v9224 = vadd.f32 %v5867, %v8777
        %v9225 = vadd.f32 %v6203, %v9113
        %v9226 = vadd.f32 %v5869, %v8779
        %v9227 = vadd.f32 %v5871, %v8781
        %v9228 = vadd.f32 %v6206, %v9116
        %v9229 = vadd.f32 %v5875, %v8785
        %v9230 = vadd.f32 %v5877, %v8787
        %v9231 = vadd.f32 %v6211, %v9121
        %v9232 = vadd.f32 %v5879, %v8789
        %v9233 = vadd.f32 %v5881, %v8791
        %v9234 = vadd.f32 %v6214, %v9124
        %v9235 = vadd.f32 %v5885, %v8795
        %v9236 = vadd.f32 %v5887, %v8797
        %v9237 = vadd.f32 %v6219, %v9129
        %v9238 = vadd.f32 %v5889, %v8799
        %v9239 = vadd.f32 %v5891, %v8801
        %v9240 = vadd.f32 %v6222, %v9132
        %v9241 = vadd.f32 %v5895, %v8805
        %v9242 = vadd.f32 %v5897, %v8807
        %v9243 = vadd.f32 %v6227, %v9137
        %v9244 = vadd.f32 %v5899, %v8809
        %v9245 = vadd.f32 %v5901, %v8811
        %v9246 = vadd.f32 %v6230, %v9140
        %v9247 = vadd.f32 %v5905, %v8815
        %v9248 = vadd.f32 %v5907, %v8817
        %v9249 = vadd.f32 %v6235, %v9145
        %v9250 = vadd.f32 %v5909, %v8819
        %v9251 = vadd.f32 %v5911, %v8821
        %v9252 = vadd.f32 %v6238, %v9148
        %v9253 = vadd.f32 %v5915, %v8825
        %v9254 = vadd.f32 %v5917, %v8827
        %v9255 = vadd.f32 %v6243, %v9153
        %v9256 = vadd.f32 %v5919, %v8829
        %v9257 = vadd.f32 %v5921, %v8831
        %v9258 = vadd.f32 %v6246, %v9156
        %v9259 = vadd.f32 %v5925, %v8835
        %v9260 = vadd.f32 %v5927, %v8837
        %v9261 = vadd.f32 %v6251, %v9161
        %v9262 = vadd.f32 %v5929, %v8839
        %v9263 = vadd.f32 %v5931, %v8841
        %v9264 = vadd.f32 %v6254, %v9164
        %v9265 = vadd.f32 %v5935, %v8845
        %v9266 = vadd.f32 %v5937, %v8847
        %v9267 = vadd.f32 %v6259, %v9169
        %v9268 = vadd.f32 %v5939, %v8849
        %v9269 = vadd.f32 %v5941, %v8851
        %v9270 = vadd.f32 %v6262, %v9172
        %v9271 = vld [vmem:[#allocation10] sm:$0x7]
        %v9273 = vlaneseq
        %v9274 = vshrl.u32 %v9273, 7
        %v9275 = vsub.s32 0, %v9274
        %v9276 = vrot.slane %v9271, %v9275
        %v9277 = vlaneseq
        %v9278 = vshrl.u32 %v9277, 7
        %v9279 = vsub.s32 1, %v9278
        %v9280 = vrot.slane %v9271, %v9279
        %v9281 = vlaneseq
        %v9282 = vshrl.u32 %v9281, 7
        %v9283 = vsub.s32 2, %v9282
        %v9284 = vrot.slane %v9271, %v9283
        %v9288 = vadd.f32 %v9175, %v9276
        %v9289 = vadd.f32 %v9176, %v9280
        %v9290 = vadd.f32 %v9177, %v9284
        %v9291 = vadd.f32 %v9178, %v9276
        %v9292 = vadd.f32 %v9179, %v9280
        %v9293 = vadd.f32 %v9180, %v9284
        %v9294 = vadd.f32 %v9181, %v9276
        %v9295 = vadd.f32 %v9182, %v9280
        %v9296 = vadd.f32 %v9183, %v9284
        %v9297 = vadd.f32 %v9184, %v9276
        %v9298 = vadd.f32 %v9185, %v9280
        %v9299 = vadd.f32 %v9186, %v9284
        %v9300 = vadd.f32 %v9187, %v9276
        %v9301 = vadd.f32 %v9188, %v9280
        %v9302 = vadd.f32 %v9189, %v9284
        %v9303 = vadd.f32 %v9190, %v9276
        %v9304 = vadd.f32 %v9191, %v9280
        %v9305 = vadd.f32 %v9192, %v9284
        %v9306 = vadd.f32 %v9193, %v9276
        %v9307 = vadd.f32 %v9194, %v9280
        %v9308 = vadd.f32 %v9195, %v9284
        %v9309 = vadd.f32 %v9196, %v9276
        %v9310 = vadd.f32 %v9197, %v9280
        %v9311 = vadd.f32 %v9198, %v9284
        %v9312 = vadd.f32 %v9199, %v9276
        %v9313 = vadd.f32 %v9200, %v9280
        %v9314 = vadd.f32 %v9201, %v9284
        %v9315 = vadd.f32 %v9202, %v9276
        %v9316 = vadd.f32 %v9203, %v9280
        %v9317 = vadd.f32 %v9204, %v9284
        %v9318 = vadd.f32 %v9205, %v9276
        %v9319 = vadd.f32 %v9206, %v9280
        %v9320 = vadd.f32 %v9207, %v9284
        %v9321 = vadd.f32 %v9208, %v9276
        %v9322 = vadd.f32 %v9209, %v9280
        %v9323 = vadd.f32 %v9210, %v9284
        %v9324 = vadd.f32 %v9211, %v9276
        %v9325 = vadd.f32 %v9212, %v9280
        %v9326 = vadd.f32 %v9213, %v9284
        %v9327 = vadd.f32 %v9214, %v9276
        %v9328 = vadd.f32 %v9215, %v9280
        %v9329 = vadd.f32 %v9216, %v9284
        %v9330 = vadd.f32 %v9217, %v9276
        %v9331 = vadd.f32 %v9218, %v9280
        %v9332 = vadd.f32 %v9219, %v9284
        %v9333 = vadd.f32 %v9220, %v9276
        %v9334 = vadd.f32 %v9221, %v9280
        %v9335 = vadd.f32 %v9222, %v9284
        %v9336 = vadd.f32 %v9223, %v9276
        %v9337 = vadd.f32 %v9224, %v9280
        %v9338 = vadd.f32 %v9225, %v9284
        %v9339 = vadd.f32 %v9226, %v9276
        %v9340 = vadd.f32 %v9227, %v9280
        %v9341 = vadd.f32 %v9228, %v9284
        %v9342 = vadd.f32 %v9229, %v9276
        %v9343 = vadd.f32 %v9230, %v9280
        %v9344 = vadd.f32 %v9231, %v9284
        %v9345 = vadd.f32 %v9232, %v9276
        %v9346 = vadd.f32 %v9233, %v9280
        %v9347 = vadd.f32 %v9234, %v9284
        %v9348 = vadd.f32 %v9235, %v9276
        %v9349 = vadd.f32 %v9236, %v9280
        %v9350 = vadd.f32 %v9237, %v9284
        %v9351 = vadd.f32 %v9238, %v9276
        %v9352 = vadd.f32 %v9239, %v9280
        %v9353 = vadd.f32 %v9240, %v9284
        %v9354 = vadd.f32 %v9241, %v9276
        %v9355 = vadd.f32 %v9242, %v9280
        %v9356 = vadd.f32 %v9243, %v9284
        %v9357 = vadd.f32 %v9244, %v9276
        %v9358 = vadd.f32 %v9245, %v9280
        %v9359 = vadd.f32 %v9246, %v9284
        %v9360 = vadd.f32 %v9247, %v9276
        %v9361 = vadd.f32 %v9248, %v9280
        %v9362 = vadd.f32 %v9249, %v9284
        %v9363 = vadd.f32 %v9250, %v9276
        %v9364 = vadd.f32 %v9251, %v9280
        %v9365 = vadd.f32 %v9252, %v9284
        %v9366 = vadd.f32 %v9253, %v9276
        %v9367 = vadd.f32 %v9254, %v9280
        %v9368 = vadd.f32 %v9255, %v9284
        %v9369 = vadd.f32 %v9256, %v9276
        %v9370 = vadd.f32 %v9257, %v9280
        %v9371 = vadd.f32 %v9258, %v9284
        %v9372 = vadd.f32 %v9259, %v9276
        %v9373 = vadd.f32 %v9260, %v9280
        %v9374 = vadd.f32 %v9261, %v9284
        %v9375 = vadd.f32 %v9262, %v9276
        %v9376 = vadd.f32 %v9263, %v9280
        %v9377 = vadd.f32 %v9264, %v9284
        %v9378 = vadd.f32 %v9265, %v9276
        %v9379 = vadd.f32 %v9266, %v9280
        %v9380 = vadd.f32 %v9267, %v9284
        %v9381 = vadd.f32 %v9268, %v9276
        %v9382 = vadd.f32 %v9269, %v9280
        %v9383 = vadd.f32 %v9270, %v9284
        %9384 = vst [vmem:[%s297] sm:$0xff] %v9288
        %9385 = vst [vmem:[%s297 + $0x8] sm:$0xff] %v9289
        %9386 = vst [vmem:[%s297 + $0x10] sm:$0xff] %v9290
        %9387 = vst [vmem:[%s297 + $0x18] sm:$0xff] %v9291
        %9388 = vst [vmem:[%s297 + $0x20] sm:$0xff] %v9292
        %9389 = vst [vmem:[%s297 + $0x28] sm:$0xff] %v9293
        %9390 = vst [vmem:[%s297 + $0x30] sm:$0xff] %v9294
        %9391 = vst [vmem:[%s297 + $0x38] sm:$0xff] %v9295
        %9392 = vst [vmem:[%s297 + $0x40] sm:$0xff] %v9296
        %9393 = vst [vmem:[%s297 + $0x48] sm:$0xff] %v9297
        %9394 = vst [vmem:[%s297 + $0x50] sm:$0xff] %v9298
        %9395 = vst [vmem:[%s297 + $0x58] sm:$0xff] %v9299
        %9396 = vst [vmem:[%s297 + $0x60] sm:$0xff] %v9300
        %9397 = vst [vmem:[%s297 + $0x68] sm:$0xff] %v9301
        %9398 = vst [vmem:[%s297 + $0x70] sm:$0xff] %v9302
        %9399 = vst [vmem:[%s297 + $0x78] sm:$0xff] %v9303
        %9400 = vst [vmem:[%s297 + $0x80] sm:$0xff] %v9304
        %9401 = vst [vmem:[%s297 + $0x88] sm:$0xff] %v9305
        %9402 = vst [vmem:[%s297 + $0x90] sm:$0xff] %v9306
        %9403 = vst [vmem:[%s297 + $0x98] sm:$0xff] %v9307
        %9404 = vst [vmem:[%s297 + $0xa0] sm:$0xff] %v9308
        %9405 = vst [vmem:[%s297 + $0xa8] sm:$0xff] %v9309
        %9406 = vst [vmem:[%s297 + $0xb0] sm:$0xff] %v9310
        %9407 = vst [vmem:[%s297 + $0xb8] sm:$0xff] %v9311
        %9408 = vst [vmem:[%s297 + $0xc0] sm:$0xff] %v9312
        %9409 = vst [vmem:[%s297 + $0xc8] sm:$0xff] %v9313
        %9410 = vst [vmem:[%s297 + $0xd0] sm:$0xff] %v9314
        %9411 = vst [vmem:[%s297 + $0xd8] sm:$0xff] %v9315
        %9412 = vst [vmem:[%s297 + $0xe0] sm:$0xff] %v9316
        %9413 = vst [vmem:[%s297 + $0xe8] sm:$0xff] %v9317
        %9414 = vst [vmem:[%s297 + $0xf0] sm:$0xff] %v9318
        %9415 = vst [vmem:[%s297 + $0xf8] sm:$0xff] %v9319
        %9416 = vst [vmem:[%s297 + $0x100] sm:$0xff] %v9320
        %9417 = vst [vmem:[%s297 + $0x108] sm:$0xff] %v9321
        %9418 = vst [vmem:[%s297 + $0x110] sm:$0xff] %v9322
        %9419 = vst [vmem:[%s297 + $0x118] sm:$0xff] %v9323
        %9420 = vst [vmem:[%s297 + $0x120] sm:$0xff] %v9324
        %9421 = vst [vmem:[%s297 + $0x128] sm:$0xff] %v9325
        %9422 = vst [vmem:[%s297 + $0x130] sm:$0xff] %v9326
        %9423 = vst [vmem:[%s297 + $0x138] sm:$0xff] %v9327
        %9424 = vst [vmem:[%s297 + $0x140] sm:$0xff] %v9328
        %9425 = vst [vmem:[%s297 + $0x148] sm:$0xff] %v9329
        %9426 = vst [vmem:[%s297 + $0x150] sm:$0xff] %v9330
        %9427 = vst [vmem:[%s297 + $0x158] sm:$0xff] %v9331
        %9428 = vst [vmem:[%s297 + $0x160] sm:$0xff] %v9332
        %9429 = vst [vmem:[%s297 + $0x168] sm:$0xff] %v9333
        %9430 = vst [vmem:[%s297 + $0x170] sm:$0xff] %v9334
        %9431 = vst [vmem:[%s297 + $0x178] sm:$0xff] %v9335
        %9432 = vst [vmem:[%s297 + $0x180] sm:$0xff] %v9336
        %9433 = vst [vmem:[%s297 + $0x188] sm:$0xff] %v9337
        %9434 = vst [vmem:[%s297 + $0x190] sm:$0xff] %v9338
        %9435 = vst [vmem:[%s297 + $0x198] sm:$0xff] %v9339
        %9436 = vst [vmem:[%s297 + $0x1a0] sm:$0xff] %v9340
        %9437 = vst [vmem:[%s297 + $0x1a8] sm:$0xff] %v9341
        %9438 = vst [vmem:[%s297 + $0x1b0] sm:$0xff] %v9342
        %9439 = vst [vmem:[%s297 + $0x1b8] sm:$0xff] %v9343
        %9440 = vst [vmem:[%s297 + $0x1c0] sm:$0xff] %v9344
        %9441 = vst [vmem:[%s297 + $0x1c8] sm:$0xff] %v9345
        %9442 = vst [vmem:[%s297 + $0x1d0] sm:$0xff] %v9346
        %9443 = vst [vmem:[%s297 + $0x1d8] sm:$0xff] %v9347
        %9444 = vst [vmem:[%s297 + $0x1e0] sm:$0xff] %v9348
        %9445 = vst [vmem:[%s297 + $0x1e8] sm:$0xff] %v9349
        %9446 = vst [vmem:[%s297 + $0x1f0] sm:$0xff] %v9350
        %9447 = vst [vmem:[%s297 + $0x1f8] sm:$0xff] %v9351
        %9448 = vst [vmem:[%s297 + $0x200] sm:$0xff] %v9352
        %9449 = vst [vmem:[%s297 + $0x208] sm:$0xff] %v9353
        %9450 = vst [vmem:[%s297 + $0x210] sm:$0xff] %v9354
        %9451 = vst [vmem:[%s297 + $0x218] sm:$0xff] %v9355
        %9452 = vst [vmem:[%s297 + $0x220] sm:$0xff] %v9356
        %9453 = vst [vmem:[%s297 + $0x228] sm:$0xff] %v9357
        %9454 = vst [vmem:[%s297 + $0x230] sm:$0xff] %v9358
        %9455 = vst [vmem:[%s297 + $0x238] sm:$0xff] %v9359
        %9456 = vst [vmem:[%s297 + $0x240] sm:$0xff] %v9360
        %9457 = vst [vmem:[%s297 + $0x248] sm:$0xff] %v9361
        %9458 = vst [vmem:[%s297 + $0x250] sm:$0xff] %v9362
        %9459 = vst [vmem:[%s297 + $0x258] sm:$0xff] %v9363
        %9460 = vst [vmem:[%s297 + $0x260] sm:$0xff] %v9364
        %9461 = vst [vmem:[%s297 + $0x268] sm:$0xff] %v9365
        %9462 = vst [vmem:[%s297 + $0x270] sm:$0xff] %v9366
        %9463 = vst [vmem:[%s297 + $0x278] sm:$0xff] %v9367
        %9464 = vst [vmem:[%s297 + $0x280] sm:$0xff] %v9368
        %9465 = vst [vmem:[%s297 + $0x288] sm:$0xff] %v9369
        %9466 = vst [vmem:[%s297 + $0x290] sm:$0xff] %v9370
        %9467 = vst [vmem:[%s297 + $0x298] sm:$0xff] %v9371
        %9468 = vst [vmem:[%s297 + $0x2a0] sm:$0xff] %v9372
        %9469 = vst [vmem:[%s297 + $0x2a8] sm:$0xff] %v9373
        %9470 = vst [vmem:[%s297 + $0x2b0] sm:$0xff] %v9374
        %9471 = vst [vmem:[%s297 + $0x2b8] sm:$0xff] %v9375
        %9472 = vst [vmem:[%s297 + $0x2c0] sm:$0xff] %v9376
        %9473 = vst [vmem:[%s297 + $0x2c8] sm:$0xff] %v9377
        %9474 = vst [vmem:[%s297 + $0x2d0] sm:$0xff] %v9378
        %9475 = vst [vmem:[%s297 + $0x2d8] sm:$0xff] %v9379
        %9476 = vst [vmem:[%s297 + $0x2e0] sm:$0xff] %v9380
        %9477 = vst [vmem:[%s297 + $0x2e8] sm:$0xff] %v9381
        %9478 = vst [vmem:[%s297 + $0x2f0] sm:$0xff] %v9382
        %9479 = vst [vmem:[%s297 + $0x2f8] sm:$0xff] %v9383
        %s9480 = sand.u32 %s142, 1
        %s9481 = scalar_lea.sflag [#allocation4], %s9480
        %s9482 = sand.u32 %s142, 1
        %s9483 = smul.addr %s9482, 768
        %s9484 = scalar_lea.vmem [#allocation11], %s9483
        // Predicated region
        $region61: #{tpu_custom_call.1} parent=39 // pred_check
          %p9485 = pneg %p152
        $region62: #{tpu_custom_call.1} parent=39 // pred_check_branch
          %9487 = sbr.rel (%p9485) target = $region64
        $region63: #{tpu_custom_call.1} parent=39 // pred_region
          %s9488 = smul.u32 32, %s24
          %s9490 = ssub.s32 12288, 12288
          %9491 = vsyncadd %s9481, %s9490
          %s9492 = smul.addr %s9488, 3
          %s9493 = smul.addr %s9492, 128
          %s9494 = scalar_lea.hbm %s5, %s9493
          %s9495 = sshll.u32 %s9484, 4
          %s9496 = int_to_ptr.vmem [resolvable:$true] %s9495
          %9501 = dma.vmem_to_hbm [thread:$0]  %s9496, 12288, %s9494, %s9481, 384, 384, 24
        $region64: #{tpu_custom_call.1} parent=39 // pred_fallthru
          _
      $region40: #{tpu_custom_call.1} parent=5 // pred_fallthru
        _
      %p9502 = scmp.le.s32.totalorder 2, %s19
      // Predicated region
      $region65: #{tpu_custom_call.1} parent=5 // pred_check
        %p9503 = pneg %p9502
      $region66: #{tpu_custom_call.1} parent=5 // pred_check_branch
        %9505 = sbr.rel (%p9503) target = $region68
      $region67: #{tpu_custom_call.1} parent=5 // pred_region
        %s9506 = ssub.s32 %s19, 2
        // Predicated region
        $region69: #{tpu_custom_call.1} parent=67 // pred_check
          %p9507 = pneg %p158
        $region70: #{tpu_custom_call.1} parent=67 // pred_check_branch
          %9509 = sbr.rel (%p9507) target = $region72
        $region71: #{tpu_custom_call.1} parent=67 // pred_region
          %s9510 = sand.u32 %s143, 1
          %s9511 = scalar_lea.sflag [#allocation4], %s9510
          %s9512 = sand.u32 %s143, 1
          %s9513 = smul.addr %s9512, 768
          %s9514 = scalar_lea.vmem [#allocation11], %s9513
          %9515 = dma.done %s9511, 12288
        $region72: #{tpu_custom_call.1} parent=67 // pred_fallthru
          _
      $region68: #{tpu_custom_call.1} parent=5 // pred_fallthru
        _
    $region6: #{tpu_custom_call.1} parent=1 // loop_footer
      %s23 = sadd.s32 1, %s19
    $region7: #{tpu_custom_call.1} parent=1 // loop_footer_branch
      %18 = sbr.rel target = $region3
    $region8: #{tpu_custom_call.1} parent=1 // loop_exit
      _
    %9516 = vsyncpa [#allocation3], 1
    %s9517 = scalar_lea.sflag [#allocation3], 1
    %9518 = vsyncpa %s9517, 1
    %9519 = vsyncpa [#allocation6], 1
    %9520 = vsyncpa [#allocation9], 1
    %9521 = vsyncpa [#allocation4], 1
    %s9522 = scalar_lea.sflag [#allocation4], 1
    %9523 = vsyncpa %s9522, 1

</llo_original>
